<compile_context>
chip_gen: v6e
topology: v6e:2x2x1
jax: 0.10.0
libtpu: 0.0.40
codegen_flags: <defaults>
</compile_context>

<pallas_src>
import functools

import jax
import jax.numpy as jnp
from jax.experimental import pallas as pl
from jax.experimental.pallas import tpu as pltpu


# ----------------------------------------------------------------------------
# Bidirectional GRU layer kernel. Grid = (2,) over direction (0=fwd, 1=bwd),
# marked "parallel" so v7x can run the two directions on its two TensorCores.
# Each grid step: one big input-projection GEMM, then the serial recurrence.
# ----------------------------------------------------------------------------
def _bigru_layer_kernel(x_ref, w_in_ref, w_hh_ref, b_fold_ref, b_hn_ref,
                        out_ref, gxr_ref, gxz_ref, gxn_ref, *, seq_len, batch):
    # x_ref      : (S, T*B, Dh)  input halves (S=1 for layer 0, S=2 afterwards)
    # w_in_ref   : (S, Dh, 3H)   pre-transposed input weights for this direction
    # w_hh_ref   : (3, H, H)     pre-transposed, per-gate hidden weights (r, z, n)
    # b_fold_ref : (1, 3H)       b_ih + b_hh for r/z gates, b_ih only for n gate
    # b_hn_ref   : (1, H)        b_hh of the n gate (needed inside r * (...))
    # out_ref    : (T*B, H)      this direction's output slab
    # gx*_ref    : (T*B, H)      VMEM scratch, per-gate input projections
    d = pl.program_id(0)          # 0 = forward in time, 1 = reverse
    T = seq_len
    B = batch
    S = x_ref.shape[0]
    H = out_ref.shape[-1]

    # (1) Input projection hoisted out of the recurrence: one MXU GEMM over all
    #     T*B rows (per input half), biases pre-folded in the wrapper.
    acc = None
    for s in range(S):            # S is a static Python int
        c = jnp.dot(x_ref[s], w_in_ref[s], preferred_element_type=jnp.float32)
        acc = c if acc is None else acc + c
    gx = acc + b_fold_ref[...]                     # (T*B, 3H)
    # Split per gate ONCE so the serial time loop never lane-slices.
    gxr_ref[...] = gx[:, 0:H]
    gxz_ref[...] = gx[:, H:2 * H]
    gxn_ref[...] = gx[:, 2 * H:3 * H]

    # Hoist weight / bias loads out of the loop.
    w_r = w_hh_ref[0]
    w_z = w_hh_ref[1]
    w_n = w_hh_ref[2]
    b_hn = b_hn_ref[...]                           # (1, H)

    # (2) Recurrence: hidden state carried as a loop value (stays in vregs),
    #     only h @ W_h* GEMMs remain on the serial critical path.
    def step(i, h):
        t = jnp.where(d == 0, i, T - 1 - i)        # in-kernel time reversal for bwd
        row = t * B
        gh_r = jnp.dot(h, w_r, preferred_element_type=jnp.float32)
        gh_z = jnp.dot(h, w_z, preferred_element_type=jnp.float32)
        gh_n = jnp.dot(h, w_n, preferred_element_type=jnp.float32)
        r = jax.nn.sigmoid(gxr_ref[pl.ds(row, B), :] + gh_r)
        z = jax.nn.sigmoid(gxz_ref[pl.ds(row, B), :] + gh_z)
        n = jnp.tanh(gxn_ref[pl.ds(row, B), :] + r * (gh_n + b_hn))
        h_new = (1.0 - z) * n + z * h
        out_ref[pl.ds(row, B), :] = h_new
        return h_new

    jax.lax.fori_loop(0, T, step, jnp.zeros((B, H), jnp.float32),
                      unroll=(T <= 32))


def bigru_layer(x_in, w_in, w_hh, b_fold, b_hn, *, seq_len, batch):
    """One bidirectional GRU layer.

    x_in: (S, T*B, Dh) float32; returns (2, T*B, H) float32 [fwd half, bwd half].
    """
    S, TB, Dh = x_in.shape
    H = w_hh.shape[-1]
    kernel = functools.partial(_bigru_layer_kernel, seq_len=seq_len, batch=batch)
    return pl.pallas_call(
        kernel,
        out_shape=jax.ShapeDtypeStruct((2, TB, H), jnp.float32),
        grid_spec=pltpu.PrefetchScalarGridSpec(
            num_scalar_prefetch=0,
            grid=(2,),                                            # direction axis
            in_specs=[
                pl.BlockSpec((S, TB, Dh), lambda d: (0, 0, 0)),   # shared by both dirs
                pl.BlockSpec((None, S, Dh, 3 * H), lambda d: (d, 0, 0, 0)),
                pl.BlockSpec((None, 3, H, H), lambda d: (d, 0, 0, 0)),
                pl.BlockSpec((None, 1, 3 * H), lambda d: (d, 0, 0)),
                pl.BlockSpec((None, 1, H), lambda d: (d, 0, 0)),
            ],
            out_specs=pl.BlockSpec((None, TB, H), lambda d: (d, 0, 0)),
            scratch_shapes=[pltpu.VMEM((TB, H), jnp.float32)] * 3,
        ),
        # No state is carried across grid steps (h is a loop value, scratch is
        # fully re-written each step), so the direction axis is safely parallel
        # -> shards across the two TensorCores on v7x, no-op on v5e/v6e.
        compiler_params=pltpu.CompilerParams(dimension_semantics=("parallel",)),
    )(x_in, w_in, w_hh, b_fold, b_hn)


# ----------------------------------------------------------------------------
# Heads kernel: Linear(2H->O), the four 1-wide heads and the input_type gate are
# folded in the wrapper into per-batch weight vectors, so the kernel is a single
# multiply + lane-reduce over the feature slab (no intermediate (N, O) buffer).
# For production T*B this should be tiled over rows; at demo scale it fits VMEM.
# ----------------------------------------------------------------------------
def _heads_kernel(feat_ref, wg_ref, bg_ref, o_ref):
    # feat_ref: (2, T, B, H)  [fwd half, bwd half] of the final bi-GRU features
    # wg_ref  : (2, 2, B, H)  [output idx, dir half, batch, hidden] gated weights
    # bg_ref  : (2, 1, B)     gated biases
    # o_ref   : (2, T, B)
    f_f = feat_ref[0]
    f_b = feat_ref[1]
    for k in range(2):
        acc = (jnp.sum(f_f * wg_ref[k, 0][None, :, :], axis=-1)
               + jnp.sum(f_b * wg_ref[k, 1][None, :, :], axis=-1))   # (T, B)
        o_ref[k] = acc + bg_ref[k]


def heads_call(feats_tbh, wg, bg):
    _, T, B, _ = feats_tbh.shape
    return pl.pallas_call(
        _heads_kernel,
        out_shape=jax.ShapeDtypeStruct((2, T, B), jnp.float32),
    )(feats_tbh, wg, bg)


# ----------------------------------------------------------------------------
# Parameter construction (PyTorch layout / init) and conversion to kernel layout
# ----------------------------------------------------------------------------
def init_params(key, num_inputs, H, L, O):
    k = 1.0 / float(H) ** 0.5
    ko = 1.0 / float(O) ** 0.5

    def u(key, shape, bound):
        return jax.random.uniform(key, shape, jnp.float32, -bound, bound)

    params = {"gru": []}
    for layer in range(L):
        d_in = num_inputs if layer == 0 else 2 * H
        layer_p = {}
        for direction in ("fwd", "bwd"):
            key, k1, k2, k3, k4 = jax.random.split(key, 5)
            layer_p[direction] = dict(
                w_ih=u(k1, (3 * H, d_in), k),   # PyTorch layout (3H, D)
                w_hh=u(k2, (3 * H, H), k),
                b_ih=u(k3, (3 * H,), k),
                b_hh=u(k4, (3 * H,), k),
            )
        params["gru"].append(layer_p)

    key, k1, k2, k3, k4 = jax.random.split(key, 5)
    params["w_lin"] = u(k1, (O, 2 * H), k)       # Linear(2H -> O)
    params["b_lin"] = u(k2, (O,), k)
    # heads stacked in order [MIPD, WIPD, MPW, WPW]
    params["w_heads"] = u(k3, (4, O), ko)
    params["b_heads"] = u(k4, (4,), ko)
    return params


def prepare_kernel_params(params):
    """Pre-transpose / pre-split / pre-fold weights into the kernel layout (done once)."""
    H = params["gru"][0]["fwd"]["w_hh"].shape[1]
    layers = []
    for li, layer_p in enumerate(params["gru"]):
        dirs = [layer_p["fwd"], layer_p["bwd"]]
        w_in_l, w_hh_l, b_fold_l, b_hn_l = [], [], [], []
        for dp in dirs:
            wt = jnp.transpose(dp["w_ih"])                       # (D_total, 3H)
            if li == 0:
                w_in_l.append(wt[None])                          # (1, D_in, 3H)
            else:
                w_in_l.append(jnp.stack([wt[:H], wt[H:]], 0))    # (2, H, 3H): fwd/bwd halves
            w_hh_l.append(jnp.stack(
                [jnp.transpose(dp["w_hh"][g * H:(g + 1) * H]) for g in range(3)], 0))
            b_ih, b_hh = dp["b_ih"], dp["b_hh"]
            b_fold_l.append(jnp.concatenate(
                [b_ih[:2 * H] + b_hh[:2 * H], b_ih[2 * H:]])[None])   # (1, 3H)
            b_hn_l.append(b_hh[2 * H:][None])                         # (1, H)
        layers.append(dict(w_in=jnp.stack(w_in_l), w_hh=jnp.stack(w_hh_l),
                           b_fold=jnp.stack(b_fold_l), b_hn=jnp.stack(b_hn_l)))

    # Fold Linear(2H->O) with the four scalar heads (exact linear composition).
    w_comb = params["w_heads"] @ params["w_lin"]                      # (4, 2H)
    b_comb = params["w_heads"] @ params["b_lin"] + params["b_heads"]  # (4,)
    return {"layers": layers, "w_comb": w_comb, "b_comb": b_comb}


# ----------------------------------------------------------------------------
# Full forward pass (glue in plain JAX, hot loops in Pallas)
# ----------------------------------------------------------------------------
@jax.jit
def cpg_regression_forward(x_btd, input_type, kparams):
    B, T, _ = x_btd.shape
    H = kparams["w_comb"].shape[1] // 2

    # time-major flattened (T*B, D) row layout consumed by the GRU kernel
    x = jnp.transpose(x_btd, (1, 0, 2)).astype(jnp.float32).reshape(1, T * B, -1)

    feats = x
    for layer in kparams["layers"]:
        feats = bigru_layer(feats, layer["w_in"], layer["w_hh"],
                            layer["b_fold"], layer["b_hn"],
                            seq_len=T, batch=B)                   # (2, T*B, H)

    # Fold the input_type gate into per-batch head weight vectors (exact).
    it = input_type.reshape(-1).astype(jnp.float32)               # (B,)
    w_comb, b_comb = kparams["w_comb"], kparams["b_comb"]
    w1 = it[:, None] * w_comb[0] + (1.0 - it)[:, None] * w_comb[1]   # (B, 2H)
    w2 = it[:, None] * w_comb[2] + (1.0 - it)[:, None] * w_comb[3]
    b1 = it * b_comb[0] + (1.0 - it) * b_comb[1]                     # (B,)
    b2 = it * b_comb[2] + (1.0 - it) * b_comb[3]
    wg = jnp.stack([jnp.stack([w1[:, :H], w1[:, H:]], 0),
                    jnp.stack([w2[:, :H], w2[:, H:]], 0)], 0)        # (2, 2, B, H)
    bg = jnp.stack([b1, b2], 0)[:, None, :]                          # (2, 1, B)

    feats_tbh = feats.reshape(2, T, B, H)       # free reshape (row-major compatible)
    o = heads_call(feats_tbh, wg, bg)           # (2, T, B)
    o = jnp.transpose(o, (0, 2, 1))             # tiny output -> batch-major
    return o[0], o[1]


# ----------------------------------------------------------------------------
# Pure-JAX reference (PyTorch-layout math) for a sanity check.
# ----------------------------------------------------------------------------
def _gru_direction_ref(x_tbd, w_ih, w_hh, b_ih, b_hh):
    T, B, _ = x_tbd.shape
    H = w_hh.shape[1]
    h = jnp.zeros((B, H), jnp.float32)
    outs = []
    for t in range(T):
        gx = x_tbd[t] @ w_ih.T + b_ih
        gh = h @ w_hh.T + b_hh
        r = jax.nn.sigmoid(gx[:, :H] + gh[:, :H])
        z = jax.nn.sigmoid(gx[:, H:2 * H] + gh[:, H:2 * H])
        n = jnp.tanh(gx[:, 2 * H:] + r * gh[:, 2 * H:])
        h = (1.0 - z) * n + z * h
        outs.append(h)
    return jnp.stack(outs)


def _forward_ref(x_btd, input_type, params):
    x = jnp.transpose(x_btd, (1, 0, 2)).astype(jnp.float32)
    for layer_p in params["gru"]:
        f, b = layer_p["fwd"], layer_p["bwd"]
        out_f = _gru_direction_ref(x, f["w_ih"], f["w_hh"], f["b_ih"], f["b_hh"])
        out_b = jnp.flip(_gru_direction_ref(jnp.flip(x, 0), b["w_ih"], b["w_hh"],
                                            b["b_ih"], b["b_hh"]), 0)
        x = jnp.concatenate([out_f, out_b], axis=-1)
    feat = jnp.transpose(x, (1, 0, 2))                              # (B, T, 2H)
    y = feat @ params["w_lin"].T + params["b_lin"]
    heads = y @ params["w_heads"].T + params["b_heads"]             # (B, T, 4)
    it = input_type.reshape(-1, 1, 1).astype(jnp.float32)
    o1 = heads[..., 0:1] * it + (1.0 - it) * heads[..., 1:2]
    o2 = heads[..., 2:3] * it + (1.0 - it) * heads[..., 3:4]
    return o1[..., 0], o2[..., 0]


if __name__ == "__main__":
    # Small shapes consistent with the module: batch=2, seq=8, num_inputs=1,
    # num_hiddens=32, num_layers=2, output_size=32.
    B, T, D_IN, H, L, O = 2, 8, 1, 32, 2, 32

    key = jax.random.PRNGKey(0)
    key, kx = jax.random.split(key)
    x = jax.random.normal(kx, (B, T, D_IN), jnp.float32)
    input_type = jnp.array([1.0, 0.0], jnp.float32)

    params = init_params(jax.random.PRNGKey(0), D_IN, H, L, O)
    kparams = prepare_kernel_params(params)

    out1, out2 = cpg_regression_forward(x, input_type, kparams)
    jax.block_until_ready((out1, out2))

    ref1, ref2 = _forward_ref(x, input_type, params)
    assert out1.shape == (B, T) and out2.shape == (B, T)
    assert jnp.allclose(out1, ref1, atol=1e-3, rtol=1e-3)
    assert jnp.allclose(out2, ref2, atol=1e-3, rtol=1e-3)

    print("KERNEL_OK")
</pallas_src>

<mosaic_0001>
module attributes {stable_mosaic.version = 11 : i64} {
  func.func @_bigru_layer_kernel(%arg0: i32, %arg1: memref<2x16x32xf32, #tpu.memory_space<vmem>>, %arg2: memref<1x2x32x96xf32, #tpu.memory_space<vmem>>, %arg3: memref<1x3x32x32xf32, #tpu.memory_space<vmem>>, %arg4: memref<1x1x96xf32, #tpu.memory_space<vmem>>, %arg5: memref<1x1x32xf32, #tpu.memory_space<vmem>>, %arg6: memref<1x16x32xf32, #tpu.memory_space<vmem>>, %arg7: memref<16x32xf32, #tpu.memory_space<vmem>>, %arg8: memref<16x32xf32, #tpu.memory_space<vmem>>, %arg9: memref<16x32xf32, #tpu.memory_space<vmem>>) attributes {dimension_semantics = [#tpu.dimension_semantics<parallel>], iteration_bounds = array<i64: 2>, scalar_prefetch = 0 : i64, scratch_operands = 3 : i64, tpu.core_type = #tpu.core_type<tc>, window_params = [{pipeline_mode = #tpu.pipeline_mode<synchronous>, transform_indices = @transform_0, window_bounds = array<i64: 2, 16, 32>}, {transform_indices = @transform_1, window_bounds = array<i64: 1, 2, 32, 96>}, {transform_indices = @transform_2, window_bounds = array<i64: 1, 3, 32, 32>}, {transform_indices = @transform_3, window_bounds = array<i64: 1, 1, 96>}, {transform_indices = @transform_4, window_bounds = array<i64: 1, 1, 32>}, {transform_indices = @transform_5, window_bounds = array<i64: 1, 16, 32>}]} {
    %c0 = arith.constant 0 : index
    %c0_0 = arith.constant 0 : index
    %c0_1 = arith.constant 0 : index
    %0 = vector.load %arg1[%c0, %c0_0, %c0_1] : memref<2x16x32xf32, #tpu.memory_space<vmem>>, vector<1x16x32xf32>
    %1 = vector.shape_cast %0 : vector<1x16x32xf32> to vector<16x32xf32>
    %c0_2 = arith.constant 0 : index
    %c0_3 = arith.constant 0 : index
    %c0_4 = arith.constant 0 : index
    %c0_5 = arith.constant 0 : index
    %2 = vector.load %arg2[%c0_2, %c0_3, %c0_4, %c0_5] : memref<1x2x32x96xf32, #tpu.memory_space<vmem>>, vector<1x1x32x96xf32>
    %3 = vector.shape_cast %2 : vector<1x1x32x96xf32> to vector<32x96xf32>
    %cst = arith.constant dense<0.000000e+00> : vector<16x96xf32>
    %4 = tpu.matmul %1, %3, %cst {dimension_numbers = #tpu.dot_dimension_numbers<[1], [0], [0], [1], [0, 0, 1, 1], [], []>} : vector<16x32xf32>, vector<32x96xf32>, vector<16x96xf32> -> vector<16x96xf32>
    %c1 = arith.constant 1 : index
    %c0_6 = arith.constant 0 : index
    %c0_7 = arith.constant 0 : index
    %5 = vector.load %arg1[%c1, %c0_6, %c0_7] : memref<2x16x32xf32, #tpu.memory_space<vmem>>, vector<1x16x32xf32>
    %6 = vector.shape_cast %5 : vector<1x16x32xf32> to vector<16x32xf32>
    %c0_8 = arith.constant 0 : index
    %c1_9 = arith.constant 1 : index
    %c0_10 = arith.constant 0 : index
    %c0_11 = arith.constant 0 : index
    %7 = vector.load %arg2[%c0_8, %c1_9, %c0_10, %c0_11] : memref<1x2x32x96xf32, #tpu.memory_space<vmem>>, vector<1x1x32x96xf32>
    %8 = vector.shape_cast %7 : vector<1x1x32x96xf32> to vector<32x96xf32>
    %cst_12 = arith.constant dense<0.000000e+00> : vector<16x96xf32>
    %9 = tpu.matmul %6, %8, %cst_12 {dimension_numbers = #tpu.dot_dimension_numbers<[1], [0], [0], [1], [0, 0, 1, 1], [], []>} : vector<16x32xf32>, vector<32x96xf32>, vector<16x96xf32> -> vector<16x96xf32>
    %10 = arith.addf %4, %9 : vector<16x96xf32>
    %c0_13 = arith.constant 0 : index
    %c0_14 = arith.constant 0 : index
    %c0_15 = arith.constant 0 : index
    %11 = vector.load %arg4[%c0_13, %c0_14, %c0_15] : memref<1x1x96xf32, #tpu.memory_space<vmem>>, vector<1x1x96xf32>
    %12 = vector.shape_cast %11 : vector<1x1x96xf32> to vector<1x96xf32>
    %13 = vector.broadcast %12 : vector<1x96xf32> to vector<16x96xf32>
    %14 = arith.addf %10, %13 : vector<16x96xf32>
    %15 = vector.extract_strided_slice %14 {offsets = [0, 0], sizes = [16, 32], strides = [1, 1]} : vector<16x96xf32> to vector<16x32xf32>
    %c0_16 = arith.constant 0 : index
    %c0_17 = arith.constant 0 : index
    %16 = vector.load %arg7[%c0_16, %c0_17] : memref<16x32xf32, #tpu.memory_space<vmem>>, vector<16x32xf32>
    tpu.vector_store %arg7[%c0_16, %c0_17], %15 {strides = array<i32>} : memref<16x32xf32, #tpu.memory_space<vmem>>, vector<16x32xf32>,
    %17 = vector.extract_strided_slice %14 {offsets = [0, 32], sizes = [16, 32], strides = [1, 1]} : vector<16x96xf32> to vector<16x32xf32>
    %c0_18 = arith.constant 0 : index
    %c0_19 = arith.constant 0 : index
    %18 = vector.load %arg8[%c0_18, %c0_19] : memref<16x32xf32, #tpu.memory_space<vmem>>, vector<16x32xf32>
    tpu.vector_store %arg8[%c0_18, %c0_19], %17 {strides = array<i32>} : memref<16x32xf32, #tpu.memory_space<vmem>>, vector<16x32xf32>,
    %19 = vector.extract_strided_slice %14 {offsets = [0, 64], sizes = [16, 32], strides = [1, 1]} : vector<16x96xf32> to vector<16x32xf32>
    %c0_20 = arith.constant 0 : index
    %c0_21 = arith.constant 0 : index
    %20 = vector.load %arg9[%c0_20, %c0_21] : memref<16x32xf32, #tpu.memory_space<vmem>>, vector<16x32xf32>
    tpu.vector_store %arg9[%c0_20, %c0_21], %19 {strides = array<i32>} : memref<16x32xf32, #tpu.memory_space<vmem>>, vector<16x32xf32>,
    %c0_22 = arith.constant 0 : index
    %c0_23 = arith.constant 0 : index
    %c0_24 = arith.constant 0 : index
    %c0_25 = arith.constant 0 : index
    %21 = vector.load %arg3[%c0_22, %c0_23, %c0_24, %c0_25] : memref<1x3x32x32xf32, #tpu.memory_space<vmem>>, vector<1x1x32x32xf32>
    %22 = vector.shape_cast %21 : vector<1x1x32x32xf32> to vector<32x32xf32>
    %c0_26 = arith.constant 0 : index
    %c1_27 = arith.constant 1 : index
    %c0_28 = arith.constant 0 : index
    %c0_29 = arith.constant 0 : index
    %23 = vector.load %arg3[%c0_26, %c1_27, %c0_28, %c0_29] : memref<1x3x32x32xf32, #tpu.memory_space<vmem>>, vector<1x1x32x32xf32>
    %24 = vector.shape_cast %23 : vector<1x1x32x32xf32> to vector<32x32xf32>
    %c0_30 = arith.constant 0 : index
    %c2 = arith.constant 2 : index
    %c0_31 = arith.constant 0 : index
    %c0_32 = arith.constant 0 : index
    %25 = vector.load %arg3[%c0_30, %c2, %c0_31, %c0_32] : memref<1x3x32x32xf32, #tpu.memory_space<vmem>>, vector<1x1x32x32xf32>
    %26 = vector.shape_cast %25 : vector<1x1x32x32xf32> to vector<32x32xf32>
    %c0_33 = arith.constant 0 : index
    %c0_34 = arith.constant 0 : index
    %c0_35 = arith.constant 0 : index
    %27 = vector.load %arg5[%c0_33, %c0_34, %c0_35] : memref<1x1x32xf32, #tpu.memory_space<vmem>>, vector<1x1x32xf32>
    %28 = vector.shape_cast %27 : vector<1x1x32xf32> to vector<1x32xf32>
    %cst_36 = arith.constant 0.000000e+00 : f32
    %29 = vector.broadcast %cst_36 : f32 to vector<2x32xf32>
    %c0_i32 = arith.constant 0 : i32
    %c0_i32_37 = arith.constant 0 : i32
    %30 = arith.cmpi eq, %arg0, %c0_i32_37 : i32
    %c7_i32 = arith.constant 7 : i32
    %31 = arith.subi %c7_i32, %c0_i32 : i32
    %32 = arith.select %30, %c0_i32, %31 : i32
    %c2_i32 = arith.constant 2 : i32
    %33 = arith.muli %32, %c2_i32 : i32
    %cst_38 = arith.constant dense<0.000000e+00> : vector<2x32xf32>
    %34 = tpu.matmul %29, %22, %cst_38 {dimension_numbers = #tpu.dot_dimension_numbers<[1], [0], [0], [1], [0, 0, 1, 1], [], []>} : vector<2x32xf32>, vector<32x32xf32>, vector<2x32xf32> -> vector<2x32xf32>
    %cst_39 = arith.constant dense<0.000000e+00> : vector<2x32xf32>
    %35 = tpu.matmul %29, %24, %cst_39 {dimension_numbers = #tpu.dot_dimension_numbers<[1], [0], [0], [1], [0, 0, 1, 1], [], []>} : vector<2x32xf32>, vector<32x32xf32>, vector<2x32xf32> -> vector<2x32xf32>
    %cst_40 = arith.constant dense<0.000000e+00> : vector<2x32xf32>
    %36 = tpu.matmul %29, %26, %cst_40 {dimension_numbers = #tpu.dot_dimension_numbers<[1], [0], [0], [1], [0, 0, 1, 1], [], []>} : vector<2x32xf32>, vector<32x32xf32>, vector<2x32xf32> -> vector<2x32xf32>
    %37 = arith.index_cast %33 : i32 to index
    %c0_41 = arith.constant 0 : index
    %38 = vector.load %arg7[%37, %c0_41] : memref<16x32xf32, #tpu.memory_space<vmem>>, vector<2x32xf32>
    %39 = arith.addf %38, %34 : vector<2x32xf32>
    %40 = arith.negf %39 : vector<2x32xf32>
    %41 = math.exp %40 : vector<2x32xf32>
    %cst_42 = arith.constant 1.000000e+00 : f32
    %42 = vector.broadcast %cst_42 : f32 to vector<2x32xf32>
    %43 = arith.addf %42, %41 : vector<2x32xf32>
    %44 = arith.divf %42, %43 : vector<2x32xf32>
    %45 = arith.index_cast %33 : i32 to index
    %c0_43 = arith.constant 0 : index
    %46 = vector.load %arg8[%45, %c0_43] : memref<16x32xf32, #tpu.memory_space<vmem>>, vector<2x32xf32>
    %47 = arith.addf %46, %35 : vector<2x32xf32>
    %48 = arith.negf %47 : vector<2x32xf32>
    %49 = math.exp %48 : vector<2x32xf32>
    %cst_44 = arith.constant 1.000000e+00 : f32
    %50 = vector.broadcast %cst_44 : f32 to vector<2x32xf32>
    %51 = arith.addf %50, %49 : vector<2x32xf32>
    %52 = arith.divf %50, %51 : vector<2x32xf32>
    %53 = arith.index_cast %33 : i32 to index
    %c0_45 = arith.constant 0 : index
    %54 = vector.load %arg9[%53, %c0_45] : memref<16x32xf32, #tpu.memory_space<vmem>>, vector<2x32xf32>
    %55 = vector.broadcast %28 : vector<1x32xf32> to vector<2x32xf32>
    %56 = arith.addf %36, %55 : vector<2x32xf32>
    %57 = arith.mulf %44, %56 : vector<2x32xf32>
    %58 = arith.addf %54, %57 : vector<2x32xf32>
    %59 = math.tanh %58 : vector<2x32xf32>
    %cst_46 = arith.constant 1.000000e+00 : f32
    %60 = vector.broadcast %cst_46 : f32 to vector<2x32xf32>
    %61 = arith.subf %60, %52 : vector<2x32xf32>
    %62 = arith.mulf %61, %59 : vector<2x32xf32>
    %63 = arith.mulf %52, %29 : vector<2x32xf32>
    %64 = arith.addf %62, %63 : vector<2x32xf32>
    %c0_47 = arith.constant 0 : index
    %65 = arith.index_cast %33 : i32 to index
    %c0_48 = arith.constant 0 : index
    %66 = vector.load %arg6[%c0_47, %65, %c0_48] : memref<1x16x32xf32, #tpu.memory_space<vmem>>, vector<1x2x32xf32>
    %67 = vector.shape_cast %66 : vector<1x2x32xf32> to vector<2x32xf32>
    %68 = vector.shape_cast %64 : vector<2x32xf32> to vector<1x2x32xf32>
    tpu.vector_store %arg6[%c0_47, %65, %c0_48], %68 {strides = array<i32>} : memref<1x16x32xf32, #tpu.memory_space<vmem>>, vector<1x2x32xf32>,
    %c1_i32 = arith.constant 1 : i32
    %c0_i32_49 = arith.constant 0 : i32
    %69 = arith.cmpi eq, %arg0, %c0_i32_49 : i32
    %c7_i32_50 = arith.constant 7 : i32
    %70 = arith.subi %c7_i32_50, %c1_i32 : i32
    %71 = arith.select %69, %c1_i32, %70 : i32
    %c2_i32_51 = arith.constant 2 : i32
    %72 = arith.muli %71, %c2_i32_51 : i32
    %cst_52 = arith.constant dense<0.000000e+00> : vector<2x32xf32>
    %73 = tpu.matmul %64, %22, %cst_52 {dimension_numbers = #tpu.dot_dimension_numbers<[1], [0], [0], [1], [0, 0, 1, 1], [], []>} : vector<2x32xf32>, vector<32x32xf32>, vector<2x32xf32> -> vector<2x32xf32>
    %cst_53 = arith.constant dense<0.000000e+00> : vector<2x32xf32>
    %74 = tpu.matmul %64, %24, %cst_53 {dimension_numbers = #tpu.dot_dimension_numbers<[1], [0], [0], [1], [0, 0, 1, 1], [], []>} : vector<2x32xf32>, vector<32x32xf32>, vector<2x32xf32> -> vector<2x32xf32>
    %cst_54 = arith.constant dense<0.000000e+00> : vector<2x32xf32>
    %75 = tpu.matmul %64, %26, %cst_54 {dimension_numbers = #tpu.dot_dimension_numbers<[1], [0], [0], [1], [0, 0, 1, 1], [], []>} : vector<2x32xf32>, vector<32x32xf32>, vector<2x32xf32> -> vector<2x32xf32>
    %76 = arith.index_cast %72 : i32 to index
    %c0_55 = arith.constant 0 : index
    %77 = vector.load %arg7[%76, %c0_55] : memref<16x32xf32, #tpu.memory_space<vmem>>, vector<2x32xf32>
    %78 = arith.addf %77, %73 : vector<2x32xf32>
    %79 = arith.negf %78 : vector<2x32xf32>
    %80 = math.exp %79 : vector<2x32xf32>
    %cst_56 = arith.constant 1.000000e+00 : f32
    %81 = vector.broadcast %cst_56 : f32 to vector<2x32xf32>
    %82 = arith.addf %81, %80 : vector<2x32xf32>
    %83 = arith.divf %81, %82 : vector<2x32xf32>
    %84 = arith.index_cast %72 : i32 to index
    %c0_57 = arith.constant 0 : index
    %85 = vector.load %arg8[%84, %c0_57] : memref<16x32xf32, #tpu.memory_space<vmem>>, vector<2x32xf32>
    %86 = arith.addf %85, %74 : vector<2x32xf32>
    %87 = arith.negf %86 : vector<2x32xf32>
    %88 = math.exp %87 : vector<2x32xf32>
    %cst_58 = arith.constant 1.000000e+00 : f32
    %89 = vector.broadcast %cst_58 : f32 to vector<2x32xf32>
    %90 = arith.addf %89, %88 : vector<2x32xf32>
    %91 = arith.divf %89, %90 : vector<2x32xf32>
    %92 = arith.index_cast %72 : i32 to index
    %c0_59 = arith.constant 0 : index
    %93 = vector.load %arg9[%92, %c0_59] : memref<16x32xf32, #tpu.memory_space<vmem>>, vector<2x32xf32>
    %94 = vector.broadcast %28 : vector<1x32xf32> to vector<2x32xf32>
    %95 = arith.addf %75, %94 : vector<2x32xf32>
    %96 = arith.mulf %83, %95 : vector<2x32xf32>
    %97 = arith.addf %93, %96 : vector<2x32xf32>
    %98 = math.tanh %97 : vector<2x32xf32>
    %cst_60 = arith.constant 1.000000e+00 : f32
    %99 = vector.broadcast %cst_60 : f32 to vector<2x32xf32>
    %100 = arith.subf %99, %91 : vector<2x32xf32>
    %101 = arith.mulf %100, %98 : vector<2x32xf32>
    %102 = arith.mulf %91, %64 : vector<2x32xf32>
    %103 = arith.addf %101, %102 : vector<2x32xf32>
    %c0_61 = arith.constant 0 : index
    %104 = arith.index_cast %72 : i32 to index
    %c0_62 = arith.constant 0 : index
    %105 = vector.load %arg6[%c0_61, %104, %c0_62] : memref<1x16x32xf32, #tpu.memory_space<vmem>>, vector<1x2x32xf32>
    %106 = vector.shape_cast %105 : vector<1x2x32xf32> to vector<2x32xf32>
    %107 = vector.shape_cast %103 : vector<2x32xf32> to vector<1x2x32xf32>
    tpu.vector_store %arg6[%c0_61, %104, %c0_62], %107 {strides = array<i32>} : memref<1x16x32xf32, #tpu.memory_space<vmem>>, vector<1x2x32xf32>,
    %c2_i32_63 = arith.constant 2 : i32
    %c0_i32_64 = arith.constant 0 : i32
    %108 = arith.cmpi eq, %arg0, %c0_i32_64 : i32
    %c7_i32_65 = arith.constant 7 : i32
    %109 = arith.subi %c7_i32_65, %c2_i32_63 : i32
    %110 = arith.select %108, %c2_i32_63, %109 : i32
    %c2_i32_66 = arith.constant 2 : i32
    %111 = arith.muli %110, %c2_i32_66 : i32
    %cst_67 = arith.constant dense<0.000000e+00> : vector<2x32xf32>
    %112 = tpu.matmul %103, %22, %cst_67 {dimension_numbers = #tpu.dot_dimension_numbers<[1], [0], [0], [1], [0, 0, 1, 1], [], []>} : vector<2x32xf32>, vector<32x32xf32>, vector<2x32xf32> -> vector<2x32xf32>
    %cst_68 = arith.constant dense<0.000000e+00> : vector<2x32xf32>
    %113 = tpu.matmul %103, %24, %cst_68 {dimension_numbers = #tpu.dot_dimension_numbers<[1], [0], [0], [1], [0, 0, 1, 1], [], []>} : vector<2x32xf32>, vector<32x32xf32>, vector<2x32xf32> -> vector<2x32xf32>
    %cst_69 = arith.constant dense<0.000000e+00> : vector<2x32xf32>
    %114 = tpu.matmul %103, %26, %cst_69 {dimension_numbers = #tpu.dot_dimension_numbers<[1], [0], [0], [1], [0, 0, 1, 1], [], []>} : vector<2x32xf32>, vector<32x32xf32>, vector<2x32xf32> -> vector<2x32xf32>
    %115 = arith.index_cast %111 : i32 to index
    %c0_70 = arith.constant 0 : index
    %116 = vector.load %arg7[%115, %c0_70] : memref<16x32xf32, #tpu.memory_space<vmem>>, vector<2x32xf32>
    %117 = arith.addf %116, %112 : vector<2x32xf32>
    %118 = arith.negf %117 : vector<2x32xf32>
    %119 = math.exp %118 : vector<2x32xf32>
    %cst_71 = arith.constant 1.000000e+00 : f32
    %120 = vector.broadcast %cst_71 : f32 to vector<2x32xf32>
    %121 = arith.addf %120, %119 : vector<2x32xf32>
    %122 = arith.divf %120, %121 : vector<2x32xf32>
    %123 = arith.index_cast %111 : i32 to index
    %c0_72 = arith.constant 0 : index
    %124 = vector.load %arg8[%123, %c0_72] : memref<16x32xf32, #tpu.memory_space<vmem>>, vector<2x32xf32>
    %125 = arith.addf %124, %113 : vector<2x32xf32>
    %126 = arith.negf %125 : vector<2x32xf32>
    %127 = math.exp %126 : vector<2x32xf32>
    %cst_73 = arith.constant 1.000000e+00 : f32
    %128 = vector.broadcast %cst_73 : f32 to vector<2x32xf32>
    %129 = arith.addf %128, %127 : vector<2x32xf32>
    %130 = arith.divf %128, %129 : vector<2x32xf32>
    %131 = arith.index_cast %111 : i32 to index
    %c0_74 = arith.constant 0 : index
    %132 = vector.load %arg9[%131, %c0_74] : memref<16x32xf32, #tpu.memory_space<vmem>>, vector<2x32xf32>
    %133 = vector.broadcast %28 : vector<1x32xf32> to vector<2x32xf32>
    %134 = arith.addf %114, %133 : vector<2x32xf32>
    %135 = arith.mulf %122, %134 : vector<2x32xf32>
    %136 = arith.addf %132, %135 : vector<2x32xf32>
    %137 = math.tanh %136 : vector<2x32xf32>
    %cst_75 = arith.constant 1.000000e+00 : f32
    %138 = vector.broadcast %cst_75 : f32 to vector<2x32xf32>
    %139 = arith.subf %138, %130 : vector<2x32xf32>
    %140 = arith.mulf %139, %137 : vector<2x32xf32>
    %141 = arith.mulf %130, %103 : vector<2x32xf32>
    %142 = arith.addf %140, %141 : vector<2x32xf32>
    %c0_76 = arith.constant 0 : index
    %143 = arith.index_cast %111 : i32 to index
    %c0_77 = arith.constant 0 : index
    %144 = vector.load %arg6[%c0_76, %143, %c0_77] : memref<1x16x32xf32, #tpu.memory_space<vmem>>, vector<1x2x32xf32>
    %145 = vector.shape_cast %144 : vector<1x2x32xf32> to vector<2x32xf32>
    %146 = vector.shape_cast %142 : vector<2x32xf32> to vector<1x2x32xf32>
    tpu.vector_store %arg6[%c0_76, %143, %c0_77], %146 {strides = array<i32>} : memref<1x16x32xf32, #tpu.memory_space<vmem>>, vector<1x2x32xf32>,
    %c3_i32 = arith.constant 3 : i32
    %c0_i32_78 = arith.constant 0 : i32
    %147 = arith.cmpi eq, %arg0, %c0_i32_78 : i32
    %c7_i32_79 = arith.constant 7 : i32
    %148 = arith.subi %c7_i32_79, %c3_i32 : i32
    %149 = arith.select %147, %c3_i32, %148 : i32
    %c2_i32_80 = arith.constant 2 : i32
    %150 = arith.muli %149, %c2_i32_80 : i32
    %cst_81 = arith.constant dense<0.000000e+00> : vector<2x32xf32>
    %151 = tpu.matmul %142, %22, %cst_81 {dimension_numbers = #tpu.dot_dimension_numbers<[1], [0], [0], [1], [0, 0, 1, 1], [], []>} : vector<2x32xf32>, vector<32x32xf32>, vector<2x32xf32> -> vector<2x32xf32>
    %cst_82 = arith.constant dense<0.000000e+00> : vector<2x32xf32>
    %152 = tpu.matmul %142, %24, %cst_82 {dimension_numbers = #tpu.dot_dimension_numbers<[1], [0], [0], [1], [0, 0, 1, 1], [], []>} : vector<2x32xf32>, vector<32x32xf32>, vector<2x32xf32> -> vector<2x32xf32>
    %cst_83 = arith.constant dense<0.000000e+00> : vector<2x32xf32>
    %153 = tpu.matmul %142, %26, %cst_83 {dimension_numbers = #tpu.dot_dimension_numbers<[1], [0], [0], [1], [0, 0, 1, 1], [], []>} : vector<2x32xf32>, vector<32x32xf32>, vector<2x32xf32> -> vector<2x32xf32>
    %154 = arith.index_cast %150 : i32 to index
    %c0_84 = arith.constant 0 : index
    %155 = vector.load %arg7[%154, %c0_84] : memref<16x32xf32, #tpu.memory_space<vmem>>, vector<2x32xf32>
    %156 = arith.addf %155, %151 : vector<2x32xf32>
    %157 = arith.negf %156 : vector<2x32xf32>
    %158 = math.exp %157 : vector<2x32xf32>
    %cst_85 = arith.constant 1.000000e+00 : f32
    %159 = vector.broadcast %cst_85 : f32 to vector<2x32xf32>
    %160 = arith.addf %159, %158 : vector<2x32xf32>
    %161 = arith.divf %159, %160 : vector<2x32xf32>
    %162 = arith.index_cast %150 : i32 to index
    %c0_86 = arith.constant 0 : index
    %163 = vector.load %arg8[%162, %c0_86] : memref<16x32xf32, #tpu.memory_space<vmem>>, vector<2x32xf32>
    %164 = arith.addf %163, %152 : vector<2x32xf32>
    %165 = arith.negf %164 : vector<2x32xf32>
    %166 = math.exp %165 : vector<2x32xf32>
    %cst_87 = arith.constant 1.000000e+00 : f32
    %167 = vector.broadcast %cst_87 : f32 to vector<2x32xf32>
    %168 = arith.addf %167, %166 : vector<2x32xf32>
    %169 = arith.divf %167, %168 : vector<2x32xf32>
    %170 = arith.index_cast %150 : i32 to index
    %c0_88 = arith.constant 0 : index
    %171 = vector.load %arg9[%170, %c0_88] : memref<16x32xf32, #tpu.memory_space<vmem>>, vector<2x32xf32>
    %172 = vector.broadcast %28 : vector<1x32xf32> to vector<2x32xf32>
    %173 = arith.addf %153, %172 : vector<2x32xf32>
    %174 = arith.mulf %161, %173 : vector<2x32xf32>
    %175 = arith.addf %171, %174 : vector<2x32xf32>
    %176 = math.tanh %175 : vector<2x32xf32>
    %cst_89 = arith.constant 1.000000e+00 : f32
    %177 = vector.broadcast %cst_89 : f32 to vector<2x32xf32>
    %178 = arith.subf %177, %169 : vector<2x32xf32>
    %179 = arith.mulf %178, %176 : vector<2x32xf32>
    %180 = arith.mulf %169, %142 : vector<2x32xf32>
    %181 = arith.addf %179, %180 : vector<2x32xf32>
    %c0_90 = arith.constant 0 : index
    %182 = arith.index_cast %150 : i32 to index
    %c0_91 = arith.constant 0 : index
    %183 = vector.load %arg6[%c0_90, %182, %c0_91] : memref<1x16x32xf32, #tpu.memory_space<vmem>>, vector<1x2x32xf32>
    %184 = vector.shape_cast %183 : vector<1x2x32xf32> to vector<2x32xf32>
    %185 = vector.shape_cast %181 : vector<2x32xf32> to vector<1x2x32xf32>
    tpu.vector_store %arg6[%c0_90, %182, %c0_91], %185 {strides = array<i32>} : memref<1x16x32xf32, #tpu.memory_space<vmem>>, vector<1x2x32xf32>,
    %c4_i32 = arith.constant 4 : i32
    %c0_i32_92 = arith.constant 0 : i32
    %186 = arith.cmpi eq, %arg0, %c0_i32_92 : i32
    %c7_i32_93 = arith.constant 7 : i32
    %187 = arith.subi %c7_i32_93, %c4_i32 : i32
    %188 = arith.select %186, %c4_i32, %187 : i32
    %c2_i32_94 = arith.constant 2 : i32
    %189 = arith.muli %188, %c2_i32_94 : i32
    %cst_95 = arith.constant dense<0.000000e+00> : vector<2x32xf32>
    %190 = tpu.matmul %181, %22, %cst_95 {dimension_numbers = #tpu.dot_dimension_numbers<[1], [0], [0], [1], [0, 0, 1, 1], [], []>} : vector<2x32xf32>, vector<32x32xf32>, vector<2x32xf32> -> vector<2x32xf32>
    %cst_96 = arith.constant dense<0.000000e+00> : vector<2x32xf32>
    %191 = tpu.matmul %181, %24, %cst_96 {dimension_numbers = #tpu.dot_dimension_numbers<[1], [0], [0], [1], [0, 0, 1, 1], [], []>} : vector<2x32xf32>, vector<32x32xf32>, vector<2x32xf32> -> vector<2x32xf32>
    %cst_97 = arith.constant dense<0.000000e+00> : vector<2x32xf32>
    %192 = tpu.matmul %181, %26, %cst_97 {dimension_numbers = #tpu.dot_dimension_numbers<[1], [0], [0], [1], [0, 0, 1, 1], [], []>} : vector<2x32xf32>, vector<32x32xf32>, vector<2x32xf32> -> vector<2x32xf32>
    %193 = arith.index_cast %189 : i32 to index
    %c0_98 = arith.constant 0 : index
    %194 = vector.load %arg7[%193, %c0_98] : memref<16x32xf32, #tpu.memory_space<vmem>>, vector<2x32xf32>
    %195 = arith.addf %194, %190 : vector<2x32xf32>
    %196 = arith.negf %195 : vector<2x32xf32>
    %197 = math.exp %196 : vector<2x32xf32>
    %cst_99 = arith.constant 1.000000e+00 : f32
    %198 = vector.broadcast %cst_99 : f32 to vector<2x32xf32>
    %199 = arith.addf %198, %197 : vector<2x32xf32>
    %200 = arith.divf %198, %199 : vector<2x32xf32>
    %201 = arith.index_cast %189 : i32 to index
    %c0_100 = arith.constant 0 : index
    %202 = vector.load %arg8[%201, %c0_100] : memref<16x32xf32, #tpu.memory_space<vmem>>, vector<2x32xf32>
    %203 = arith.addf %202, %191 : vector<2x32xf32>
    %204 = arith.negf %203 : vector<2x32xf32>
    %205 = math.exp %204 : vector<2x32xf32>
    %cst_101 = arith.constant 1.000000e+00 : f32
    %206 = vector.broadcast %cst_101 : f32 to vector<2x32xf32>
    %207 = arith.addf %206, %205 : vector<2x32xf32>
    %208 = arith.divf %206, %207 : vector<2x32xf32>
    %209 = arith.index_cast %189 : i32 to index
    %c0_102 = arith.constant 0 : index
    %210 = vector.load %arg9[%209, %c0_102] : memref<16x32xf32, #tpu.memory_space<vmem>>, vector<2x32xf32>
    %211 = vector.broadcast %28 : vector<1x32xf32> to vector<2x32xf32>
    %212 = arith.addf %192, %211 : vector<2x32xf32>
    %213 = arith.mulf %200, %212 : vector<2x32xf32>
    %214 = arith.addf %210, %213 : vector<2x32xf32>
    %215 = math.tanh %214 : vector<2x32xf32>
    %cst_103 = arith.constant 1.000000e+00 : f32
    %216 = vector.broadcast %cst_103 : f32 to vector<2x32xf32>
    %217 = arith.subf %216, %208 : vector<2x32xf32>
    %218 = arith.mulf %217, %215 : vector<2x32xf32>
    %219 = arith.mulf %208, %181 : vector<2x32xf32>
    %220 = arith.addf %218, %219 : vector<2x32xf32>
    %c0_104 = arith.constant 0 : index
    %221 = arith.index_cast %189 : i32 to index
    %c0_105 = arith.constant 0 : index
    %222 = vector.load %arg6[%c0_104, %221, %c0_105] : memref<1x16x32xf32, #tpu.memory_space<vmem>>, vector<1x2x32xf32>
    %223 = vector.shape_cast %222 : vector<1x2x32xf32> to vector<2x32xf32>
    %224 = vector.shape_cast %220 : vector<2x32xf32> to vector<1x2x32xf32>
    tpu.vector_store %arg6[%c0_104, %221, %c0_105], %224 {strides = array<i32>} : memref<1x16x32xf32, #tpu.memory_space<vmem>>, vector<1x2x32xf32>,
    %c5_i32 = arith.constant 5 : i32
    %c0_i32_106 = arith.constant 0 : i32
    %225 = arith.cmpi eq, %arg0, %c0_i32_106 : i32
    %c7_i32_107 = arith.constant 7 : i32
    %226 = arith.subi %c7_i32_107, %c5_i32 : i32
    %227 = arith.select %225, %c5_i32, %226 : i32
    %c2_i32_108 = arith.constant 2 : i32
    %228 = arith.muli %227, %c2_i32_108 : i32
    %cst_109 = arith.constant dense<0.000000e+00> : vector<2x32xf32>
    %229 = tpu.matmul %220, %22, %cst_109 {dimension_numbers = #tpu.dot_dimension_numbers<[1], [0], [0], [1], [0, 0, 1, 1], [], []>} : vector<2x32xf32>, vector<32x32xf32>, vector<2x32xf32> -> vector<2x32xf32>
    %cst_110 = arith.constant dense<0.000000e+00> : vector<2x32xf32>
    %230 = tpu.matmul %220, %24, %cst_110 {dimension_numbers = #tpu.dot_dimension_numbers<[1], [0], [0], [1], [0, 0, 1, 1], [], []>} : vector<2x32xf32>, vector<32x32xf32>, vector<2x32xf32> -> vector<2x32xf32>
    %cst_111 = arith.constant dense<0.000000e+00> : vector<2x32xf32>
    %231 = tpu.matmul %220, %26, %cst_111 {dimension_numbers = #tpu.dot_dimension_numbers<[1], [0], [0], [1], [0, 0, 1, 1], [], []>} : vector<2x32xf32>, vector<32x32xf32>, vector<2x32xf32> -> vector<2x32xf32>
    %232 = arith.index_cast %228 : i32 to index
    %c0_112 = arith.constant 0 : index
    %233 = vector.load %arg7[%232, %c0_112] : memref<16x32xf32, #tpu.memory_space<vmem>>, vector<2x32xf32>
    %234 = arith.addf %233, %229 : vector<2x32xf32>
    %235 = arith.negf %234 : vector<2x32xf32>
    %236 = math.exp %235 : vector<2x32xf32>
    %cst_113 = arith.constant 1.000000e+00 : f32
    %237 = vector.broadcast %cst_113 : f32 to vector<2x32xf32>
    %238 = arith.addf %237, %236 : vector<2x32xf32>
    %239 = arith.divf %237, %238 : vector<2x32xf32>
    %240 = arith.index_cast %228 : i32 to index
    %c0_114 = arith.constant 0 : index
    %241 = vector.load %arg8[%240, %c0_114] : memref<16x32xf32, #tpu.memory_space<vmem>>, vector<2x32xf32>
    %242 = arith.addf %241, %230 : vector<2x32xf32>
    %243 = arith.negf %242 : vector<2x32xf32>
    %244 = math.exp %243 : vector<2x32xf32>
    %cst_115 = arith.constant 1.000000e+00 : f32
    %245 = vector.broadcast %cst_115 : f32 to vector<2x32xf32>
    %246 = arith.addf %245, %244 : vector<2x32xf32>
    %247 = arith.divf %245, %246 : vector<2x32xf32>
    %248 = arith.index_cast %228 : i32 to index
    %c0_116 = arith.constant 0 : index
    %249 = vector.load %arg9[%248, %c0_116] : memref<16x32xf32, #tpu.memory_space<vmem>>, vector<2x32xf32>
    %250 = vector.broadcast %28 : vector<1x32xf32> to vector<2x32xf32>
    %251 = arith.addf %231, %250 : vector<2x32xf32>
    %252 = arith.mulf %239, %251 : vector<2x32xf32>
    %253 = arith.addf %249, %252 : vector<2x32xf32>
    %254 = math.tanh %253 : vector<2x32xf32>
    %cst_117 = arith.constant 1.000000e+00 : f32
    %255 = vector.broadcast %cst_117 : f32 to vector<2x32xf32>
    %256 = arith.subf %255, %247 : vector<2x32xf32>
    %257 = arith.mulf %256, %254 : vector<2x32xf32>
    %258 = arith.mulf %247, %220 : vector<2x32xf32>
    %259 = arith.addf %257, %258 : vector<2x32xf32>
    %c0_118 = arith.constant 0 : index
    %260 = arith.index_cast %228 : i32 to index
    %c0_119 = arith.constant 0 : index
    %261 = vector.load %arg6[%c0_118, %260, %c0_119] : memref<1x16x32xf32, #tpu.memory_space<vmem>>, vector<1x2x32xf32>
    %262 = vector.shape_cast %261 : vector<1x2x32xf32> to vector<2x32xf32>
    %263 = vector.shape_cast %259 : vector<2x32xf32> to vector<1x2x32xf32>
    tpu.vector_store %arg6[%c0_118, %260, %c0_119], %263 {strides = array<i32>} : memref<1x16x32xf32, #tpu.memory_space<vmem>>, vector<1x2x32xf32>,
    %c6_i32 = arith.constant 6 : i32
    %c0_i32_120 = arith.constant 0 : i32
    %264 = arith.cmpi eq, %arg0, %c0_i32_120 : i32
    %c7_i32_121 = arith.constant 7 : i32
    %265 = arith.subi %c7_i32_121, %c6_i32 : i32
    %266 = arith.select %264, %c6_i32, %265 : i32
    %c2_i32_122 = arith.constant 2 : i32
    %267 = arith.muli %266, %c2_i32_122 : i32
    %cst_123 = arith.constant dense<0.000000e+00> : vector<2x32xf32>
    %268 = tpu.matmul %259, %22, %cst_123 {dimension_numbers = #tpu.dot_dimension_numbers<[1], [0], [0], [1], [0, 0, 1, 1], [], []>} : vector<2x32xf32>, vector<32x32xf32>, vector<2x32xf32> -> vector<2x32xf32>
    %cst_124 = arith.constant dense<0.000000e+00> : vector<2x32xf32>
    %269 = tpu.matmul %259, %24, %cst_124 {dimension_numbers = #tpu.dot_dimension_numbers<[1], [0], [0], [1], [0, 0, 1, 1], [], []>} : vector<2x32xf32>, vector<32x32xf32>, vector<2x32xf32> -> vector<2x32xf32>
    %cst_125 = arith.constant dense<0.000000e+00> : vector<2x32xf32>
    %270 = tpu.matmul %259, %26, %cst_125 {dimension_numbers = #tpu.dot_dimension_numbers<[1], [0], [0], [1], [0, 0, 1, 1], [], []>} : vector<2x32xf32>, vector<32x32xf32>, vector<2x32xf32> -> vector<2x32xf32>
    %271 = arith.index_cast %267 : i32 to index
    %c0_126 = arith.constant 0 : index
    %272 = vector.load %arg7[%271, %c0_126] : memref<16x32xf32, #tpu.memory_space<vmem>>, vector<2x32xf32>
    %273 = arith.addf %272, %268 : vector<2x32xf32>
    %274 = arith.negf %273 : vector<2x32xf32>
    %275 = math.exp %274 : vector<2x32xf32>
    %cst_127 = arith.constant 1.000000e+00 : f32
    %276 = vector.broadcast %cst_127 : f32 to vector<2x32xf32>
    %277 = arith.addf %276, %275 : vector<2x32xf32>
    %278 = arith.divf %276, %277 : vector<2x32xf32>
    %279 = arith.index_cast %267 : i32 to index
    %c0_128 = arith.constant 0 : index
    %280 = vector.load %arg8[%279, %c0_128] : memref<16x32xf32, #tpu.memory_space<vmem>>, vector<2x32xf32>
    %281 = arith.addf %280, %269 : vector<2x32xf32>
    %282 = arith.negf %281 : vector<2x32xf32>
    %283 = math.exp %282 : vector<2x32xf32>
    %cst_129 = arith.constant 1.000000e+00 : f32
    %284 = vector.broadcast %cst_129 : f32 to vector<2x32xf32>
    %285 = arith.addf %284, %283 : vector<2x32xf32>
    %286 = arith.divf %284, %285 : vector<2x32xf32>
    %287 = arith.index_cast %267 : i32 to index
    %c0_130 = arith.constant 0 : index
    %288 = vector.load %arg9[%287, %c0_130] : memref<16x32xf32, #tpu.memory_space<vmem>>, vector<2x32xf32>
    %289 = vector.broadcast %28 : vector<1x32xf32> to vector<2x32xf32>
    %290 = arith.addf %270, %289 : vector<2x32xf32>
    %291 = arith.mulf %278, %290 : vector<2x32xf32>
    %292 = arith.addf %288, %291 : vector<2x32xf32>
    %293 = math.tanh %292 : vector<2x32xf32>
    %cst_131 = arith.constant 1.000000e+00 : f32
    %294 = vector.broadcast %cst_131 : f32 to vector<2x32xf32>
    %295 = arith.subf %294, %286 : vector<2x32xf32>
    %296 = arith.mulf %295, %293 : vector<2x32xf32>
    %297 = arith.mulf %286, %259 : vector<2x32xf32>
    %298 = arith.addf %296, %297 : vector<2x32xf32>
    %c0_132 = arith.constant 0 : index
    %299 = arith.index_cast %267 : i32 to index
    %c0_133 = arith.constant 0 : index
    %300 = vector.load %arg6[%c0_132, %299, %c0_133] : memref<1x16x32xf32, #tpu.memory_space<vmem>>, vector<1x2x32xf32>
    %301 = vector.shape_cast %300 : vector<1x2x32xf32> to vector<2x32xf32>
    %302 = vector.shape_cast %298 : vector<2x32xf32> to vector<1x2x32xf32>
    tpu.vector_store %arg6[%c0_132, %299, %c0_133], %302 {strides = array<i32>} : memref<1x16x32xf32, #tpu.memory_space<vmem>>, vector<1x2x32xf32>,
    %c7_i32_134 = arith.constant 7 : i32
    %c0_i32_135 = arith.constant 0 : i32
    %303 = arith.cmpi eq, %arg0, %c0_i32_135 : i32
    %c7_i32_136 = arith.constant 7 : i32
    %304 = arith.subi %c7_i32_136, %c7_i32_134 : i32
    %305 = arith.select %303, %c7_i32_134, %304 : i32
    %c2_i32_137 = arith.constant 2 : i32
    %306 = arith.muli %305, %c2_i32_137 : i32
    %cst_138 = arith.constant dense<0.000000e+00> : vector<2x32xf32>
    %307 = tpu.matmul %298, %22, %cst_138 {dimension_numbers = #tpu.dot_dimension_numbers<[1], [0], [0], [1], [0, 0, 1, 1], [], []>} : vector<2x32xf32>, vector<32x32xf32>, vector<2x32xf32> -> vector<2x32xf32>
    %cst_139 = arith.constant dense<0.000000e+00> : vector<2x32xf32>
    %308 = tpu.matmul %298, %24, %cst_139 {dimension_numbers = #tpu.dot_dimension_numbers<[1], [0], [0], [1], [0, 0, 1, 1], [], []>} : vector<2x32xf32>, vector<32x32xf32>, vector<2x32xf32> -> vector<2x32xf32>
    %cst_140 = arith.constant dense<0.000000e+00> : vector<2x32xf32>
    %309 = tpu.matmul %298, %26, %cst_140 {dimension_numbers = #tpu.dot_dimension_numbers<[1], [0], [0], [1], [0, 0, 1, 1], [], []>} : vector<2x32xf32>, vector<32x32xf32>, vector<2x32xf32> -> vector<2x32xf32>
    %310 = arith.index_cast %306 : i32 to index
    %c0_141 = arith.constant 0 : index
    %311 = vector.load %arg7[%310, %c0_141] : memref<16x32xf32, #tpu.memory_space<vmem>>, vector<2x32xf32>
    %312 = arith.addf %311, %307 : vector<2x32xf32>
    %313 = arith.negf %312 : vector<2x32xf32>
    %314 = math.exp %313 : vector<2x32xf32>
    %cst_142 = arith.constant 1.000000e+00 : f32
    %315 = vector.broadcast %cst_142 : f32 to vector<2x32xf32>
    %316 = arith.addf %315, %314 : vector<2x32xf32>
    %317 = arith.divf %315, %316 : vector<2x32xf32>
    %318 = arith.index_cast %306 : i32 to index
    %c0_143 = arith.constant 0 : index
    %319 = vector.load %arg8[%318, %c0_143] : memref<16x32xf32, #tpu.memory_space<vmem>>, vector<2x32xf32>
    %320 = arith.addf %319, %308 : vector<2x32xf32>
    %321 = arith.negf %320 : vector<2x32xf32>
    %322 = math.exp %321 : vector<2x32xf32>
    %cst_144 = arith.constant 1.000000e+00 : f32
    %323 = vector.broadcast %cst_144 : f32 to vector<2x32xf32>
    %324 = arith.addf %323, %322 : vector<2x32xf32>
    %325 = arith.divf %323, %324 : vector<2x32xf32>
    %326 = arith.index_cast %306 : i32 to index
    %c0_145 = arith.constant 0 : index
    %327 = vector.load %arg9[%326, %c0_145] : memref<16x32xf32, #tpu.memory_space<vmem>>, vector<2x32xf32>
    %328 = vector.broadcast %28 : vector<1x32xf32> to vector<2x32xf32>
    %329 = arith.addf %309, %328 : vector<2x32xf32>
    %330 = arith.mulf %317, %329 : vector<2x32xf32>
    %331 = arith.addf %327, %330 : vector<2x32xf32>
    %332 = math.tanh %331 : vector<2x32xf32>
    %cst_146 = arith.constant 1.000000e+00 : f32
    %333 = vector.broadcast %cst_146 : f32 to vector<2x32xf32>
    %334 = arith.subf %333, %325 : vector<2x32xf32>
    %335 = arith.mulf %334, %332 : vector<2x32xf32>
    %336 = arith.mulf %325, %298 : vector<2x32xf32>
    %337 = arith.addf %335, %336 : vector<2x32xf32>
    %c0_147 = arith.constant 0 : index
    %338 = arith.index_cast %306 : i32 to index
    %c0_148 = arith.constant 0 : index
    %339 = vector.load %arg6[%c0_147, %338, %c0_148] : memref<1x16x32xf32, #tpu.memory_space<vmem>>, vector<1x2x32xf32>
    %340 = vector.shape_cast %339 : vector<1x2x32xf32> to vector<2x32xf32>
    %341 = vector.shape_cast %337 : vector<2x32xf32> to vector<1x2x32xf32>
    tpu.vector_store %arg6[%c0_147, %338, %c0_148], %341 {strides = array<i32>} : memref<1x16x32xf32, #tpu.memory_space<vmem>>, vector<1x2x32xf32>,
    %c8_i32 = arith.constant 8 : i32
    return
  }
  func.func @transform_0(%arg0: i32) -> (i32, i32, i32) {
    %c0_i32 = arith.constant 0 : i32
    %c0_i32_0 = arith.constant 0 : i32
    %c0_i32_1 = arith.constant 0 : i32
    %c0_i32_2 = arith.constant 0 : i32
    return %c0_i32, %c0_i32_0, %c0_i32_1 : i32, i32, i32
  }
  func.func @transform_1(%arg0: i32) -> (i32, i32, i32, i32) {
    %c0_i32 = arith.constant 0 : i32
    %c0_i32_0 = arith.constant 0 : i32
    %c0_i32_1 = arith.constant 0 : i32
    %c0_i32_2 = arith.constant 0 : i32
    return %arg0, %c0_i32, %c0_i32_0, %c0_i32_1 : i32, i32, i32, i32
  }
  func.func @transform_2(%arg0: i32) -> (i32, i32, i32, i32) {
    %c0_i32 = arith.constant 0 : i32
    %c0_i32_0 = arith.constant 0 : i32
    %c0_i32_1 = arith.constant 0 : i32
    %c0_i32_2 = arith.constant 0 : i32
    return %arg0, %c0_i32, %c0_i32_0, %c0_i32_1 : i32, i32, i32, i32
  }
  func.func @transform_3(%arg0: i32) -> (i32, i32, i32) {
    %c0_i32 = arith.constant 0 : i32
    %c0_i32_0 = arith.constant 0 : i32
    %c0_i32_1 = arith.constant 0 : i32
    return %arg0, %c0_i32, %c0_i32_0 : i32, i32, i32
  }
  func.func @transform_4(%arg0: i32) -> (i32, i32, i32) {
    %c0_i32 = arith.constant 0 : i32
    %c0_i32_0 = arith.constant 0 : i32
    %c0_i32_1 = arith.constant 0 : i32
    return %arg0, %c0_i32, %c0_i32_0 : i32, i32, i32
  }
  func.func @transform_5(%arg0: i32) -> (i32, i32, i32) {
    %c0_i32 = arith.constant 0 : i32
    %c0_i32_0 = arith.constant 0 : i32
    %c0_i32_1 = arith.constant 0 : i32
    return %arg0, %c0_i32, %c0_i32_0 : i32, i32, i32
  }
}

module attributes {stable_mosaic.version = 11 : i64} {
  func.func @_bigru_layer_kernel(%arg0: i32, %arg1: memref<1x16x1xf32, #tpu.memory_space<vmem>>, %arg2: memref<1x1x1x96xf32, #tpu.memory_space<vmem>>, %arg3: memref<1x3x32x32xf32, #tpu.memory_space<vmem>>, %arg4: memref<1x1x96xf32, #tpu.memory_space<vmem>>, %arg5: memref<1x1x32xf32, #tpu.memory_space<vmem>>, %arg6: memref<1x16x32xf32, #tpu.memory_space<vmem>>, %arg7: memref<16x32xf32, #tpu.memory_space<vmem>>, %arg8: memref<16x32xf32, #tpu.memory_space<vmem>>, %arg9: memref<16x32xf32, #tpu.memory_space<vmem>>) attributes {dimension_semantics = [#tpu.dimension_semantics<parallel>], iteration_bounds = array<i64: 2>, scalar_prefetch = 0 : i64, scratch_operands = 3 : i64, tpu.core_type = #tpu.core_type<tc>, window_params = [{pipeline_mode = #tpu.pipeline_mode<synchronous>, transform_indices = @transform_0, window_bounds = array<i64: 1, 16, 1>}, {transform_indices = @transform_1, window_bounds = array<i64: 1, 1, 1, 96>}, {transform_indices = @transform_2, window_bounds = array<i64: 1, 3, 32, 32>}, {transform_indices = @transform_3, window_bounds = array<i64: 1, 1, 96>}, {transform_indices = @transform_4, window_bounds = array<i64: 1, 1, 32>}, {transform_indices = @transform_5, window_bounds = array<i64: 1, 16, 32>}]} {
    %c0 = arith.constant 0 : index
    %c0_0 = arith.constant 0 : index
    %c0_1 = arith.constant 0 : index
    %0 = vector.load %arg1[%c0, %c0_0, %c0_1] : memref<1x16x1xf32, #tpu.memory_space<vmem>>, vector<1x16x1xf32>
    %1 = vector.shape_cast %0 : vector<1x16x1xf32> to vector<16x1xf32>
    %c0_2 = arith.constant 0 : index
    %c0_3 = arith.constant 0 : index
    %c0_4 = arith.constant 0 : index
    %c0_5 = arith.constant 0 : index
    %2 = vector.load %arg2[%c0_2, %c0_3, %c0_4, %c0_5] : memref<1x1x1x96xf32, #tpu.memory_space<vmem>>, vector<1x1x1x96xf32>
    %3 = vector.shape_cast %2 : vector<1x1x1x96xf32> to vector<1x96xf32>
    %cst = arith.constant dense<0.000000e+00> : vector<16x96xf32>
    %4 = tpu.matmul %1, %3, %cst {dimension_numbers = #tpu.dot_dimension_numbers<[1], [0], [0], [1], [0, 0, 1, 1], [], []>} : vector<16x1xf32>, vector<1x96xf32>, vector<16x96xf32> -> vector<16x96xf32>
    %c0_6 = arith.constant 0 : index
    %c0_7 = arith.constant 0 : index
    %c0_8 = arith.constant 0 : index
    %5 = vector.load %arg4[%c0_6, %c0_7, %c0_8] : memref<1x1x96xf32, #tpu.memory_space<vmem>>, vector<1x1x96xf32>
    %6 = vector.shape_cast %5 : vector<1x1x96xf32> to vector<1x96xf32>
    %7 = vector.broadcast %6 : vector<1x96xf32> to vector<16x96xf32>
    %8 = arith.addf %4, %7 : vector<16x96xf32>
    %9 = vector.extract_strided_slice %8 {offsets = [0, 0], sizes = [16, 32], strides = [1, 1]} : vector<16x96xf32> to vector<16x32xf32>
    %c0_9 = arith.constant 0 : index
    %c0_10 = arith.constant 0 : index
    %10 = vector.load %arg7[%c0_9, %c0_10] : memref<16x32xf32, #tpu.memory_space<vmem>>, vector<16x32xf32>
    tpu.vector_store %arg7[%c0_9, %c0_10], %9 {strides = array<i32>} : memref<16x32xf32, #tpu.memory_space<vmem>>, vector<16x32xf32>,
    %11 = vector.extract_strided_slice %8 {offsets = [0, 32], sizes = [16, 32], strides = [1, 1]} : vector<16x96xf32> to vector<16x32xf32>
    %c0_11 = arith.constant 0 : index
    %c0_12 = arith.constant 0 : index
    %12 = vector.load %arg8[%c0_11, %c0_12] : memref<16x32xf32, #tpu.memory_space<vmem>>, vector<16x32xf32>
    tpu.vector_store %arg8[%c0_11, %c0_12], %11 {strides = array<i32>} : memref<16x32xf32, #tpu.memory_space<vmem>>, vector<16x32xf32>,
    %13 = vector.extract_strided_slice %8 {offsets = [0, 64], sizes = [16, 32], strides = [1, 1]} : vector<16x96xf32> to vector<16x32xf32>
    %c0_13 = arith.constant 0 : index
    %c0_14 = arith.constant 0 : index
    %14 = vector.load %arg9[%c0_13, %c0_14] : memref<16x32xf32, #tpu.memory_space<vmem>>, vector<16x32xf32>
    tpu.vector_store %arg9[%c0_13, %c0_14], %13 {strides = array<i32>} : memref<16x32xf32, #tpu.memory_space<vmem>>, vector<16x32xf32>,
    %c0_15 = arith.constant 0 : index
    %c0_16 = arith.constant 0 : index
    %c0_17 = arith.constant 0 : index
    %c0_18 = arith.constant 0 : index
    %15 = vector.load %arg3[%c0_15, %c0_16, %c0_17, %c0_18] : memref<1x3x32x32xf32, #tpu.memory_space<vmem>>, vector<1x1x32x32xf32>
    %16 = vector.shape_cast %15 : vector<1x1x32x32xf32> to vector<32x32xf32>
    %c0_19 = arith.constant 0 : index
    %c1 = arith.constant 1 : index
    %c0_20 = arith.constant 0 : index
    %c0_21 = arith.constant 0 : index
    %17 = vector.load %arg3[%c0_19, %c1, %c0_20, %c0_21] : memref<1x3x32x32xf32, #tpu.memory_space<vmem>>, vector<1x1x32x32xf32>
    %18 = vector.shape_cast %17 : vector<1x1x32x32xf32> to vector<32x32xf32>
    %c0_22 = arith.constant 0 : index
    %c2 = arith.constant 2 : index
    %c0_23 = arith.constant 0 : index
    %c0_24 = arith.constant 0 : index
    %19 = vector.load %arg3[%c0_22, %c2, %c0_23, %c0_24] : memref<1x3x32x32xf32, #tpu.memory_space<vmem>>, vector<1x1x32x32xf32>
    %20 = vector.shape_cast %19 : vector<1x1x32x32xf32> to vector<32x32xf32>
    %c0_25 = arith.constant 0 : index
    %c0_26 = arith.constant 0 : index
    %c0_27 = arith.constant 0 : index
    %21 = vector.load %arg5[%c0_25, %c0_26, %c0_27] : memref<1x1x32xf32, #tpu.memory_space<vmem>>, vector<1x1x32xf32>
    %22 = vector.shape_cast %21 : vector<1x1x32xf32> to vector<1x32xf32>
    %cst_28 = arith.constant 0.000000e+00 : f32
    %23 = vector.broadcast %cst_28 : f32 to vector<2x32xf32>
    %c0_i32 = arith.constant 0 : i32
    %c0_i32_29 = arith.constant 0 : i32
    %24 = arith.cmpi eq, %arg0, %c0_i32_29 : i32
    %c7_i32 = arith.constant 7 : i32
    %25 = arith.subi %c7_i32, %c0_i32 : i32
    %26 = arith.select %24, %c0_i32, %25 : i32
    %c2_i32 = arith.constant 2 : i32
    %27 = arith.muli %26, %c2_i32 : i32
    %cst_30 = arith.constant dense<0.000000e+00> : vector<2x32xf32>
    %28 = tpu.matmul %23, %16, %cst_30 {dimension_numbers = #tpu.dot_dimension_numbers<[1], [0], [0], [1], [0, 0, 1, 1], [], []>} : vector<2x32xf32>, vector<32x32xf32>, vector<2x32xf32> -> vector<2x32xf32>
    %cst_31 = arith.constant dense<0.000000e+00> : vector<2x32xf32>
    %29 = tpu.matmul %23, %18, %cst_31 {dimension_numbers = #tpu.dot_dimension_numbers<[1], [0], [0], [1], [0, 0, 1, 1], [], []>} : vector<2x32xf32>, vector<32x32xf32>, vector<2x32xf32> -> vector<2x32xf32>
    %cst_32 = arith.constant dense<0.000000e+00> : vector<2x32xf32>
    %30 = tpu.matmul %23, %20, %cst_32 {dimension_numbers = #tpu.dot_dimension_numbers<[1], [0], [0], [1], [0, 0, 1, 1], [], []>} : vector<2x32xf32>, vector<32x32xf32>, vector<2x32xf32> -> vector<2x32xf32>
    %31 = arith.index_cast %27 : i32 to index
    %c0_33 = arith.constant 0 : index
    %32 = vector.load %arg7[%31, %c0_33] : memref<16x32xf32, #tpu.memory_space<vmem>>, vector<2x32xf32>
    %33 = arith.addf %32, %28 : vector<2x32xf32>
    %34 = arith.negf %33 : vector<2x32xf32>
    %35 = math.exp %34 : vector<2x32xf32>
    %cst_34 = arith.constant 1.000000e+00 : f32
    %36 = vector.broadcast %cst_34 : f32 to vector<2x32xf32>
    %37 = arith.addf %36, %35 : vector<2x32xf32>
    %38 = arith.divf %36, %37 : vector<2x32xf32>
    %39 = arith.index_cast %27 : i32 to index
    %c0_35 = arith.constant 0 : index
    %40 = vector.load %arg8[%39, %c0_35] : memref<16x32xf32, #tpu.memory_space<vmem>>, vector<2x32xf32>
    %41 = arith.addf %40, %29 : vector<2x32xf32>
    %42 = arith.negf %41 : vector<2x32xf32>
    %43 = math.exp %42 : vector<2x32xf32>
    %cst_36 = arith.constant 1.000000e+00 : f32
    %44 = vector.broadcast %cst_36 : f32 to vector<2x32xf32>
    %45 = arith.addf %44, %43 : vector<2x32xf32>
    %46 = arith.divf %44, %45 : vector<2x32xf32>
    %47 = arith.index_cast %27 : i32 to index
    %c0_37 = arith.constant 0 : index
    %48 = vector.load %arg9[%47, %c0_37] : memref<16x32xf32, #tpu.memory_space<vmem>>, vector<2x32xf32>
    %49 = vector.broadcast %22 : vector<1x32xf32> to vector<2x32xf32>
    %50 = arith.addf %30, %49 : vector<2x32xf32>
    %51 = arith.mulf %38, %50 : vector<2x32xf32>
    %52 = arith.addf %48, %51 : vector<2x32xf32>
    %53 = math.tanh %52 : vector<2x32xf32>
    %cst_38 = arith.constant 1.000000e+00 : f32
    %54 = vector.broadcast %cst_38 : f32 to vector<2x32xf32>
    %55 = arith.subf %54, %46 : vector<2x32xf32>
    %56 = arith.mulf %55, %53 : vector<2x32xf32>
    %57 = arith.mulf %46, %23 : vector<2x32xf32>
    %58 = arith.addf %56, %57 : vector<2x32xf32>
    %c0_39 = arith.constant 0 : index
    %59 = arith.index_cast %27 : i32 to index
    %c0_40 = arith.constant 0 : index
    %60 = vector.load %arg6[%c0_39, %59, %c0_40] : memref<1x16x32xf32, #tpu.memory_space<vmem>>, vector<1x2x32xf32>
    %61 = vector.shape_cast %60 : vector<1x2x32xf32> to vector<2x32xf32>
    %62 = vector.shape_cast %58 : vector<2x32xf32> to vector<1x2x32xf32>
    tpu.vector_store %arg6[%c0_39, %59, %c0_40], %62 {strides = array<i32>} : memref<1x16x32xf32, #tpu.memory_space<vmem>>, vector<1x2x32xf32>,
    %c1_i32 = arith.constant 1 : i32
    %c0_i32_41 = arith.constant 0 : i32
    %63 = arith.cmpi eq, %arg0, %c0_i32_41 : i32
    %c7_i32_42 = arith.constant 7 : i32
    %64 = arith.subi %c7_i32_42, %c1_i32 : i32
    %65 = arith.select %63, %c1_i32, %64 : i32
    %c2_i32_43 = arith.constant 2 : i32
    %66 = arith.muli %65, %c2_i32_43 : i32
    %cst_44 = arith.constant dense<0.000000e+00> : vector<2x32xf32>
    %67 = tpu.matmul %58, %16, %cst_44 {dimension_numbers = #tpu.dot_dimension_numbers<[1], [0], [0], [1], [0, 0, 1, 1], [], []>} : vector<2x32xf32>, vector<32x32xf32>, vector<2x32xf32> -> vector<2x32xf32>
    %cst_45 = arith.constant dense<0.000000e+00> : vector<2x32xf32>
    %68 = tpu.matmul %58, %18, %cst_45 {dimension_numbers = #tpu.dot_dimension_numbers<[1], [0], [0], [1], [0, 0, 1, 1], [], []>} : vector<2x32xf32>, vector<32x32xf32>, vector<2x32xf32> -> vector<2x32xf32>
    %cst_46 = arith.constant dense<0.000000e+00> : vector<2x32xf32>
    %69 = tpu.matmul %58, %20, %cst_46 {dimension_numbers = #tpu.dot_dimension_numbers<[1], [0], [0], [1], [0, 0, 1, 1], [], []>} : vector<2x32xf32>, vector<32x32xf32>, vector<2x32xf32> -> vector<2x32xf32>
    %70 = arith.index_cast %66 : i32 to index
    %c0_47 = arith.constant 0 : index
    %71 = vector.load %arg7[%70, %c0_47] : memref<16x32xf32, #tpu.memory_space<vmem>>, vector<2x32xf32>
    %72 = arith.addf %71, %67 : vector<2x32xf32>
    %73 = arith.negf %72 : vector<2x32xf32>
    %74 = math.exp %73 : vector<2x32xf32>
    %cst_48 = arith.constant 1.000000e+00 : f32
    %75 = vector.broadcast %cst_48 : f32 to vector<2x32xf32>
    %76 = arith.addf %75, %74 : vector<2x32xf32>
    %77 = arith.divf %75, %76 : vector<2x32xf32>
    %78 = arith.index_cast %66 : i32 to index
    %c0_49 = arith.constant 0 : index
    %79 = vector.load %arg8[%78, %c0_49] : memref<16x32xf32, #tpu.memory_space<vmem>>, vector<2x32xf32>
    %80 = arith.addf %79, %68 : vector<2x32xf32>
    %81 = arith.negf %80 : vector<2x32xf32>
    %82 = math.exp %81 : vector<2x32xf32>
    %cst_50 = arith.constant 1.000000e+00 : f32
    %83 = vector.broadcast %cst_50 : f32 to vector<2x32xf32>
    %84 = arith.addf %83, %82 : vector<2x32xf32>
    %85 = arith.divf %83, %84 : vector<2x32xf32>
    %86 = arith.index_cast %66 : i32 to index
    %c0_51 = arith.constant 0 : index
    %87 = vector.load %arg9[%86, %c0_51] : memref<16x32xf32, #tpu.memory_space<vmem>>, vector<2x32xf32>
    %88 = vector.broadcast %22 : vector<1x32xf32> to vector<2x32xf32>
    %89 = arith.addf %69, %88 : vector<2x32xf32>
    %90 = arith.mulf %77, %89 : vector<2x32xf32>
    %91 = arith.addf %87, %90 : vector<2x32xf32>
    %92 = math.tanh %91 : vector<2x32xf32>
    %cst_52 = arith.constant 1.000000e+00 : f32
    %93 = vector.broadcast %cst_52 : f32 to vector<2x32xf32>
    %94 = arith.subf %93, %85 : vector<2x32xf32>
    %95 = arith.mulf %94, %92 : vector<2x32xf32>
    %96 = arith.mulf %85, %58 : vector<2x32xf32>
    %97 = arith.addf %95, %96 : vector<2x32xf32>
    %c0_53 = arith.constant 0 : index
    %98 = arith.index_cast %66 : i32 to index
    %c0_54 = arith.constant 0 : index
    %99 = vector.load %arg6[%c0_53, %98, %c0_54] : memref<1x16x32xf32, #tpu.memory_space<vmem>>, vector<1x2x32xf32>
    %100 = vector.shape_cast %99 : vector<1x2x32xf32> to vector<2x32xf32>
    %101 = vector.shape_cast %97 : vector<2x32xf32> to vector<1x2x32xf32>
    tpu.vector_store %arg6[%c0_53, %98, %c0_54], %101 {strides = array<i32>} : memref<1x16x32xf32, #tpu.memory_space<vmem>>, vector<1x2x32xf32>,
    %c2_i32_55 = arith.constant 2 : i32
    %c0_i32_56 = arith.constant 0 : i32
    %102 = arith.cmpi eq, %arg0, %c0_i32_56 : i32
    %c7_i32_57 = arith.constant 7 : i32
    %103 = arith.subi %c7_i32_57, %c2_i32_55 : i32
    %104 = arith.select %102, %c2_i32_55, %103 : i32
    %c2_i32_58 = arith.constant 2 : i32
    %105 = arith.muli %104, %c2_i32_58 : i32
    %cst_59 = arith.constant dense<0.000000e+00> : vector<2x32xf32>
    %106 = tpu.matmul %97, %16, %cst_59 {dimension_numbers = #tpu.dot_dimension_numbers<[1], [0], [0], [1], [0, 0, 1, 1], [], []>} : vector<2x32xf32>, vector<32x32xf32>, vector<2x32xf32> -> vector<2x32xf32>
    %cst_60 = arith.constant dense<0.000000e+00> : vector<2x32xf32>
    %107 = tpu.matmul %97, %18, %cst_60 {dimension_numbers = #tpu.dot_dimension_numbers<[1], [0], [0], [1], [0, 0, 1, 1], [], []>} : vector<2x32xf32>, vector<32x32xf32>, vector<2x32xf32> -> vector<2x32xf32>
    %cst_61 = arith.constant dense<0.000000e+00> : vector<2x32xf32>
    %108 = tpu.matmul %97, %20, %cst_61 {dimension_numbers = #tpu.dot_dimension_numbers<[1], [0], [0], [1], [0, 0, 1, 1], [], []>} : vector<2x32xf32>, vector<32x32xf32>, vector<2x32xf32> -> vector<2x32xf32>
    %109 = arith.index_cast %105 : i32 to index
    %c0_62 = arith.constant 0 : index
    %110 = vector.load %arg7[%109, %c0_62] : memref<16x32xf32, #tpu.memory_space<vmem>>, vector<2x32xf32>
    %111 = arith.addf %110, %106 : vector<2x32xf32>
    %112 = arith.negf %111 : vector<2x32xf32>
    %113 = math.exp %112 : vector<2x32xf32>
    %cst_63 = arith.constant 1.000000e+00 : f32
    %114 = vector.broadcast %cst_63 : f32 to vector<2x32xf32>
    %115 = arith.addf %114, %113 : vector<2x32xf32>
    %116 = arith.divf %114, %115 : vector<2x32xf32>
    %117 = arith.index_cast %105 : i32 to index
    %c0_64 = arith.constant 0 : index
    %118 = vector.load %arg8[%117, %c0_64] : memref<16x32xf32, #tpu.memory_space<vmem>>, vector<2x32xf32>
    %119 = arith.addf %118, %107 : vector<2x32xf32>
    %120 = arith.negf %119 : vector<2x32xf32>
    %121 = math.exp %120 : vector<2x32xf32>
    %cst_65 = arith.constant 1.000000e+00 : f32
    %122 = vector.broadcast %cst_65 : f32 to vector<2x32xf32>
    %123 = arith.addf %122, %121 : vector<2x32xf32>
    %124 = arith.divf %122, %123 : vector<2x32xf32>
    %125 = arith.index_cast %105 : i32 to index
    %c0_66 = arith.constant 0 : index
    %126 = vector.load %arg9[%125, %c0_66] : memref<16x32xf32, #tpu.memory_space<vmem>>, vector<2x32xf32>
    %127 = vector.broadcast %22 : vector<1x32xf32> to vector<2x32xf32>
    %128 = arith.addf %108, %127 : vector<2x32xf32>
    %129 = arith.mulf %116, %128 : vector<2x32xf32>
    %130 = arith.addf %126, %129 : vector<2x32xf32>
    %131 = math.tanh %130 : vector<2x32xf32>
    %cst_67 = arith.constant 1.000000e+00 : f32
    %132 = vector.broadcast %cst_67 : f32 to vector<2x32xf32>
    %133 = arith.subf %132, %124 : vector<2x32xf32>
    %134 = arith.mulf %133, %131 : vector<2x32xf32>
    %135 = arith.mulf %124, %97 : vector<2x32xf32>
    %136 = arith.addf %134, %135 : vector<2x32xf32>
    %c0_68 = arith.constant 0 : index
    %137 = arith.index_cast %105 : i32 to index
    %c0_69 = arith.constant 0 : index
    %138 = vector.load %arg6[%c0_68, %137, %c0_69] : memref<1x16x32xf32, #tpu.memory_space<vmem>>, vector<1x2x32xf32>
    %139 = vector.shape_cast %138 : vector<1x2x32xf32> to vector<2x32xf32>
    %140 = vector.shape_cast %136 : vector<2x32xf32> to vector<1x2x32xf32>
    tpu.vector_store %arg6[%c0_68, %137, %c0_69], %140 {strides = array<i32>} : memref<1x16x32xf32, #tpu.memory_space<vmem>>, vector<1x2x32xf32>,
    %c3_i32 = arith.constant 3 : i32
    %c0_i32_70 = arith.constant 0 : i32
    %141 = arith.cmpi eq, %arg0, %c0_i32_70 : i32
    %c7_i32_71 = arith.constant 7 : i32
    %142 = arith.subi %c7_i32_71, %c3_i32 : i32
    %143 = arith.select %141, %c3_i32, %142 : i32
    %c2_i32_72 = arith.constant 2 : i32
    %144 = arith.muli %143, %c2_i32_72 : i32
    %cst_73 = arith.constant dense<0.000000e+00> : vector<2x32xf32>
    %145 = tpu.matmul %136, %16, %cst_73 {dimension_numbers = #tpu.dot_dimension_numbers<[1], [0], [0], [1], [0, 0, 1, 1], [], []>} : vector<2x32xf32>, vector<32x32xf32>, vector<2x32xf32> -> vector<2x32xf32>
    %cst_74 = arith.constant dense<0.000000e+00> : vector<2x32xf32>
    %146 = tpu.matmul %136, %18, %cst_74 {dimension_numbers = #tpu.dot_dimension_numbers<[1], [0], [0], [1], [0, 0, 1, 1], [], []>} : vector<2x32xf32>, vector<32x32xf32>, vector<2x32xf32> -> vector<2x32xf32>
    %cst_75 = arith.constant dense<0.000000e+00> : vector<2x32xf32>
    %147 = tpu.matmul %136, %20, %cst_75 {dimension_numbers = #tpu.dot_dimension_numbers<[1], [0], [0], [1], [0, 0, 1, 1], [], []>} : vector<2x32xf32>, vector<32x32xf32>, vector<2x32xf32> -> vector<2x32xf32>
    %148 = arith.index_cast %144 : i32 to index
    %c0_76 = arith.constant 0 : index
    %149 = vector.load %arg7[%148, %c0_76] : memref<16x32xf32, #tpu.memory_space<vmem>>, vector<2x32xf32>
    %150 = arith.addf %149, %145 : vector<2x32xf32>
    %151 = arith.negf %150 : vector<2x32xf32>
    %152 = math.exp %151 : vector<2x32xf32>
    %cst_77 = arith.constant 1.000000e+00 : f32
    %153 = vector.broadcast %cst_77 : f32 to vector<2x32xf32>
    %154 = arith.addf %153, %152 : vector<2x32xf32>
    %155 = arith.divf %153, %154 : vector<2x32xf32>
    %156 = arith.index_cast %144 : i32 to index
    %c0_78 = arith.constant 0 : index
    %157 = vector.load %arg8[%156, %c0_78] : memref<16x32xf32, #tpu.memory_space<vmem>>, vector<2x32xf32>
    %158 = arith.addf %157, %146 : vector<2x32xf32>
    %159 = arith.negf %158 : vector<2x32xf32>
    %160 = math.exp %159 : vector<2x32xf32>
    %cst_79 = arith.constant 1.000000e+00 : f32
    %161 = vector.broadcast %cst_79 : f32 to vector<2x32xf32>
    %162 = arith.addf %161, %160 : vector<2x32xf32>
    %163 = arith.divf %161, %162 : vector<2x32xf32>
    %164 = arith.index_cast %144 : i32 to index
    %c0_80 = arith.constant 0 : index
    %165 = vector.load %arg9[%164, %c0_80] : memref<16x32xf32, #tpu.memory_space<vmem>>, vector<2x32xf32>
    %166 = vector.broadcast %22 : vector<1x32xf32> to vector<2x32xf32>
    %167 = arith.addf %147, %166 : vector<2x32xf32>
    %168 = arith.mulf %155, %167 : vector<2x32xf32>
    %169 = arith.addf %165, %168 : vector<2x32xf32>
    %170 = math.tanh %169 : vector<2x32xf32>
    %cst_81 = arith.constant 1.000000e+00 : f32
    %171 = vector.broadcast %cst_81 : f32 to vector<2x32xf32>
    %172 = arith.subf %171, %163 : vector<2x32xf32>
    %173 = arith.mulf %172, %170 : vector<2x32xf32>
    %174 = arith.mulf %163, %136 : vector<2x32xf32>
    %175 = arith.addf %173, %174 : vector<2x32xf32>
    %c0_82 = arith.constant 0 : index
    %176 = arith.index_cast %144 : i32 to index
    %c0_83 = arith.constant 0 : index
    %177 = vector.load %arg6[%c0_82, %176, %c0_83] : memref<1x16x32xf32, #tpu.memory_space<vmem>>, vector<1x2x32xf32>
    %178 = vector.shape_cast %177 : vector<1x2x32xf32> to vector<2x32xf32>
    %179 = vector.shape_cast %175 : vector<2x32xf32> to vector<1x2x32xf32>
    tpu.vector_store %arg6[%c0_82, %176, %c0_83], %179 {strides = array<i32>} : memref<1x16x32xf32, #tpu.memory_space<vmem>>, vector<1x2x32xf32>,
    %c4_i32 = arith.constant 4 : i32
    %c0_i32_84 = arith.constant 0 : i32
    %180 = arith.cmpi eq, %arg0, %c0_i32_84 : i32
    %c7_i32_85 = arith.constant 7 : i32
    %181 = arith.subi %c7_i32_85, %c4_i32 : i32
    %182 = arith.select %180, %c4_i32, %181 : i32
    %c2_i32_86 = arith.constant 2 : i32
    %183 = arith.muli %182, %c2_i32_86 : i32
    %cst_87 = arith.constant dense<0.000000e+00> : vector<2x32xf32>
    %184 = tpu.matmul %175, %16, %cst_87 {dimension_numbers = #tpu.dot_dimension_numbers<[1], [0], [0], [1], [0, 0, 1, 1], [], []>} : vector<2x32xf32>, vector<32x32xf32>, vector<2x32xf32> -> vector<2x32xf32>
    %cst_88 = arith.constant dense<0.000000e+00> : vector<2x32xf32>
    %185 = tpu.matmul %175, %18, %cst_88 {dimension_numbers = #tpu.dot_dimension_numbers<[1], [0], [0], [1], [0, 0, 1, 1], [], []>} : vector<2x32xf32>, vector<32x32xf32>, vector<2x32xf32> -> vector<2x32xf32>
    %cst_89 = arith.constant dense<0.000000e+00> : vector<2x32xf32>
    %186 = tpu.matmul %175, %20, %cst_89 {dimension_numbers = #tpu.dot_dimension_numbers<[1], [0], [0], [1], [0, 0, 1, 1], [], []>} : vector<2x32xf32>, vector<32x32xf32>, vector<2x32xf32> -> vector<2x32xf32>
    %187 = arith.index_cast %183 : i32 to index
    %c0_90 = arith.constant 0 : index
    %188 = vector.load %arg7[%187, %c0_90] : memref<16x32xf32, #tpu.memory_space<vmem>>, vector<2x32xf32>
    %189 = arith.addf %188, %184 : vector<2x32xf32>
    %190 = arith.negf %189 : vector<2x32xf32>
    %191 = math.exp %190 : vector<2x32xf32>
    %cst_91 = arith.constant 1.000000e+00 : f32
    %192 = vector.broadcast %cst_91 : f32 to vector<2x32xf32>
    %193 = arith.addf %192, %191 : vector<2x32xf32>
    %194 = arith.divf %192, %193 : vector<2x32xf32>
    %195 = arith.index_cast %183 : i32 to index
    %c0_92 = arith.constant 0 : index
    %196 = vector.load %arg8[%195, %c0_92] : memref<16x32xf32, #tpu.memory_space<vmem>>, vector<2x32xf32>
    %197 = arith.addf %196, %185 : vector<2x32xf32>
    %198 = arith.negf %197 : vector<2x32xf32>
    %199 = math.exp %198 : vector<2x32xf32>
    %cst_93 = arith.constant 1.000000e+00 : f32
    %200 = vector.broadcast %cst_93 : f32 to vector<2x32xf32>
    %201 = arith.addf %200, %199 : vector<2x32xf32>
    %202 = arith.divf %200, %201 : vector<2x32xf32>
    %203 = arith.index_cast %183 : i32 to index
    %c0_94 = arith.constant 0 : index
    %204 = vector.load %arg9[%203, %c0_94] : memref<16x32xf32, #tpu.memory_space<vmem>>, vector<2x32xf32>
    %205 = vector.broadcast %22 : vector<1x32xf32> to vector<2x32xf32>
    %206 = arith.addf %186, %205 : vector<2x32xf32>
    %207 = arith.mulf %194, %206 : vector<2x32xf32>
    %208 = arith.addf %204, %207 : vector<2x32xf32>
    %209 = math.tanh %208 : vector<2x32xf32>
    %cst_95 = arith.constant 1.000000e+00 : f32
    %210 = vector.broadcast %cst_95 : f32 to vector<2x32xf32>
    %211 = arith.subf %210, %202 : vector<2x32xf32>
    %212 = arith.mulf %211, %209 : vector<2x32xf32>
    %213 = arith.mulf %202, %175 : vector<2x32xf32>
    %214 = arith.addf %212, %213 : vector<2x32xf32>
    %c0_96 = arith.constant 0 : index
    %215 = arith.index_cast %183 : i32 to index
    %c0_97 = arith.constant 0 : index
    %216 = vector.load %arg6[%c0_96, %215, %c0_97] : memref<1x16x32xf32, #tpu.memory_space<vmem>>, vector<1x2x32xf32>
    %217 = vector.shape_cast %216 : vector<1x2x32xf32> to vector<2x32xf32>
    %218 = vector.shape_cast %214 : vector<2x32xf32> to vector<1x2x32xf32>
    tpu.vector_store %arg6[%c0_96, %215, %c0_97], %218 {strides = array<i32>} : memref<1x16x32xf32, #tpu.memory_space<vmem>>, vector<1x2x32xf32>,
    %c5_i32 = arith.constant 5 : i32
    %c0_i32_98 = arith.constant 0 : i32
    %219 = arith.cmpi eq, %arg0, %c0_i32_98 : i32
    %c7_i32_99 = arith.constant 7 : i32
    %220 = arith.subi %c7_i32_99, %c5_i32 : i32
    %221 = arith.select %219, %c5_i32, %220 : i32
    %c2_i32_100 = arith.constant 2 : i32
    %222 = arith.muli %221, %c2_i32_100 : i32
    %cst_101 = arith.constant dense<0.000000e+00> : vector<2x32xf32>
    %223 = tpu.matmul %214, %16, %cst_101 {dimension_numbers = #tpu.dot_dimension_numbers<[1], [0], [0], [1], [0, 0, 1, 1], [], []>} : vector<2x32xf32>, vector<32x32xf32>, vector<2x32xf32> -> vector<2x32xf32>
    %cst_102 = arith.constant dense<0.000000e+00> : vector<2x32xf32>
    %224 = tpu.matmul %214, %18, %cst_102 {dimension_numbers = #tpu.dot_dimension_numbers<[1], [0], [0], [1], [0, 0, 1, 1], [], []>} : vector<2x32xf32>, vector<32x32xf32>, vector<2x32xf32> -> vector<2x32xf32>
    %cst_103 = arith.constant dense<0.000000e+00> : vector<2x32xf32>
    %225 = tpu.matmul %214, %20, %cst_103 {dimension_numbers = #tpu.dot_dimension_numbers<[1], [0], [0], [1], [0, 0, 1, 1], [], []>} : vector<2x32xf32>, vector<32x32xf32>, vector<2x32xf32> -> vector<2x32xf32>
    %226 = arith.index_cast %222 : i32 to index
    %c0_104 = arith.constant 0 : index
    %227 = vector.load %arg7[%226, %c0_104] : memref<16x32xf32, #tpu.memory_space<vmem>>, vector<2x32xf32>
    %228 = arith.addf %227, %223 : vector<2x32xf32>
    %229 = arith.negf %228 : vector<2x32xf32>
    %230 = math.exp %229 : vector<2x32xf32>
    %cst_105 = arith.constant 1.000000e+00 : f32
    %231 = vector.broadcast %cst_105 : f32 to vector<2x32xf32>
    %232 = arith.addf %231, %230 : vector<2x32xf32>
    %233 = arith.divf %231, %232 : vector<2x32xf32>
    %234 = arith.index_cast %222 : i32 to index
    %c0_106 = arith.constant 0 : index
    %235 = vector.load %arg8[%234, %c0_106] : memref<16x32xf32, #tpu.memory_space<vmem>>, vector<2x32xf32>
    %236 = arith.addf %235, %224 : vector<2x32xf32>
    %237 = arith.negf %236 : vector<2x32xf32>
    %238 = math.exp %237 : vector<2x32xf32>
    %cst_107 = arith.constant 1.000000e+00 : f32
    %239 = vector.broadcast %cst_107 : f32 to vector<2x32xf32>
    %240 = arith.addf %239, %238 : vector<2x32xf32>
    %241 = arith.divf %239, %240 : vector<2x32xf32>
    %242 = arith.index_cast %222 : i32 to index
    %c0_108 = arith.constant 0 : index
    %243 = vector.load %arg9[%242, %c0_108] : memref<16x32xf32, #tpu.memory_space<vmem>>, vector<2x32xf32>
    %244 = vector.broadcast %22 : vector<1x32xf32> to vector<2x32xf32>
    %245 = arith.addf %225, %244 : vector<2x32xf32>
    %246 = arith.mulf %233, %245 : vector<2x32xf32>
    %247 = arith.addf %243, %246 : vector<2x32xf32>
    %248 = math.tanh %247 : vector<2x32xf32>
    %cst_109 = arith.constant 1.000000e+00 : f32
    %249 = vector.broadcast %cst_109 : f32 to vector<2x32xf32>
    %250 = arith.subf %249, %241 : vector<2x32xf32>
    %251 = arith.mulf %250, %248 : vector<2x32xf32>
    %252 = arith.mulf %241, %214 : vector<2x32xf32>
    %253 = arith.addf %251, %252 : vector<2x32xf32>
    %c0_110 = arith.constant 0 : index
    %254 = arith.index_cast %222 : i32 to index
    %c0_111 = arith.constant 0 : index
    %255 = vector.load %arg6[%c0_110, %254, %c0_111] : memref<1x16x32xf32, #tpu.memory_space<vmem>>, vector<1x2x32xf32>
    %256 = vector.shape_cast %255 : vector<1x2x32xf32> to vector<2x32xf32>
    %257 = vector.shape_cast %253 : vector<2x32xf32> to vector<1x2x32xf32>
    tpu.vector_store %arg6[%c0_110, %254, %c0_111], %257 {strides = array<i32>} : memref<1x16x32xf32, #tpu.memory_space<vmem>>, vector<1x2x32xf32>,
    %c6_i32 = arith.constant 6 : i32
    %c0_i32_112 = arith.constant 0 : i32
    %258 = arith.cmpi eq, %arg0, %c0_i32_112 : i32
    %c7_i32_113 = arith.constant 7 : i32
    %259 = arith.subi %c7_i32_113, %c6_i32 : i32
    %260 = arith.select %258, %c6_i32, %259 : i32
    %c2_i32_114 = arith.constant 2 : i32
    %261 = arith.muli %260, %c2_i32_114 : i32
    %cst_115 = arith.constant dense<0.000000e+00> : vector<2x32xf32>
    %262 = tpu.matmul %253, %16, %cst_115 {dimension_numbers = #tpu.dot_dimension_numbers<[1], [0], [0], [1], [0, 0, 1, 1], [], []>} : vector<2x32xf32>, vector<32x32xf32>, vector<2x32xf32> -> vector<2x32xf32>
    %cst_116 = arith.constant dense<0.000000e+00> : vector<2x32xf32>
    %263 = tpu.matmul %253, %18, %cst_116 {dimension_numbers = #tpu.dot_dimension_numbers<[1], [0], [0], [1], [0, 0, 1, 1], [], []>} : vector<2x32xf32>, vector<32x32xf32>, vector<2x32xf32> -> vector<2x32xf32>
    %cst_117 = arith.constant dense<0.000000e+00> : vector<2x32xf32>
    %264 = tpu.matmul %253, %20, %cst_117 {dimension_numbers = #tpu.dot_dimension_numbers<[1], [0], [0], [1], [0, 0, 1, 1], [], []>} : vector<2x32xf32>, vector<32x32xf32>, vector<2x32xf32> -> vector<2x32xf32>
    %265 = arith.index_cast %261 : i32 to index
    %c0_118 = arith.constant 0 : index
    %266 = vector.load %arg7[%265, %c0_118] : memref<16x32xf32, #tpu.memory_space<vmem>>, vector<2x32xf32>
    %267 = arith.addf %266, %262 : vector<2x32xf32>
    %268 = arith.negf %267 : vector<2x32xf32>
    %269 = math.exp %268 : vector<2x32xf32>
    %cst_119 = arith.constant 1.000000e+00 : f32
    %270 = vector.broadcast %cst_119 : f32 to vector<2x32xf32>
    %271 = arith.addf %270, %269 : vector<2x32xf32>
    %272 = arith.divf %270, %271 : vector<2x32xf32>
    %273 = arith.index_cast %261 : i32 to index
    %c0_120 = arith.constant 0 : index
    %274 = vector.load %arg8[%273, %c0_120] : memref<16x32xf32, #tpu.memory_space<vmem>>, vector<2x32xf32>
    %275 = arith.addf %274, %263 : vector<2x32xf32>
    %276 = arith.negf %275 : vector<2x32xf32>
    %277 = math.exp %276 : vector<2x32xf32>
    %cst_121 = arith.constant 1.000000e+00 : f32
    %278 = vector.broadcast %cst_121 : f32 to vector<2x32xf32>
    %279 = arith.addf %278, %277 : vector<2x32xf32>
    %280 = arith.divf %278, %279 : vector<2x32xf32>
    %281 = arith.index_cast %261 : i32 to index
    %c0_122 = arith.constant 0 : index
    %282 = vector.load %arg9[%281, %c0_122] : memref<16x32xf32, #tpu.memory_space<vmem>>, vector<2x32xf32>
    %283 = vector.broadcast %22 : vector<1x32xf32> to vector<2x32xf32>
    %284 = arith.addf %264, %283 : vector<2x32xf32>
    %285 = arith.mulf %272, %284 : vector<2x32xf32>
    %286 = arith.addf %282, %285 : vector<2x32xf32>
    %287 = math.tanh %286 : vector<2x32xf32>
    %cst_123 = arith.constant 1.000000e+00 : f32
    %288 = vector.broadcast %cst_123 : f32 to vector<2x32xf32>
    %289 = arith.subf %288, %280 : vector<2x32xf32>
    %290 = arith.mulf %289, %287 : vector<2x32xf32>
    %291 = arith.mulf %280, %253 : vector<2x32xf32>
    %292 = arith.addf %290, %291 : vector<2x32xf32>
    %c0_124 = arith.constant 0 : index
    %293 = arith.index_cast %261 : i32 to index
    %c0_125 = arith.constant 0 : index
    %294 = vector.load %arg6[%c0_124, %293, %c0_125] : memref<1x16x32xf32, #tpu.memory_space<vmem>>, vector<1x2x32xf32>
    %295 = vector.shape_cast %294 : vector<1x2x32xf32> to vector<2x32xf32>
    %296 = vector.shape_cast %292 : vector<2x32xf32> to vector<1x2x32xf32>
    tpu.vector_store %arg6[%c0_124, %293, %c0_125], %296 {strides = array<i32>} : memref<1x16x32xf32, #tpu.memory_space<vmem>>, vector<1x2x32xf32>,
    %c7_i32_126 = arith.constant 7 : i32
    %c0_i32_127 = arith.constant 0 : i32
    %297 = arith.cmpi eq, %arg0, %c0_i32_127 : i32
    %c7_i32_128 = arith.constant 7 : i32
    %298 = arith.subi %c7_i32_128, %c7_i32_126 : i32
    %299 = arith.select %297, %c7_i32_126, %298 : i32
    %c2_i32_129 = arith.constant 2 : i32
    %300 = arith.muli %299, %c2_i32_129 : i32
    %cst_130 = arith.constant dense<0.000000e+00> : vector<2x32xf32>
    %301 = tpu.matmul %292, %16, %cst_130 {dimension_numbers = #tpu.dot_dimension_numbers<[1], [0], [0], [1], [0, 0, 1, 1], [], []>} : vector<2x32xf32>, vector<32x32xf32>, vector<2x32xf32> -> vector<2x32xf32>
    %cst_131 = arith.constant dense<0.000000e+00> : vector<2x32xf32>
    %302 = tpu.matmul %292, %18, %cst_131 {dimension_numbers = #tpu.dot_dimension_numbers<[1], [0], [0], [1], [0, 0, 1, 1], [], []>} : vector<2x32xf32>, vector<32x32xf32>, vector<2x32xf32> -> vector<2x32xf32>
    %cst_132 = arith.constant dense<0.000000e+00> : vector<2x32xf32>
    %303 = tpu.matmul %292, %20, %cst_132 {dimension_numbers = #tpu.dot_dimension_numbers<[1], [0], [0], [1], [0, 0, 1, 1], [], []>} : vector<2x32xf32>, vector<32x32xf32>, vector<2x32xf32> -> vector<2x32xf32>
    %304 = arith.index_cast %300 : i32 to index
    %c0_133 = arith.constant 0 : index
    %305 = vector.load %arg7[%304, %c0_133] : memref<16x32xf32, #tpu.memory_space<vmem>>, vector<2x32xf32>
    %306 = arith.addf %305, %301 : vector<2x32xf32>
    %307 = arith.negf %306 : vector<2x32xf32>
    %308 = math.exp %307 : vector<2x32xf32>
    %cst_134 = arith.constant 1.000000e+00 : f32
    %309 = vector.broadcast %cst_134 : f32 to vector<2x32xf32>
    %310 = arith.addf %309, %308 : vector<2x32xf32>
    %311 = arith.divf %309, %310 : vector<2x32xf32>
    %312 = arith.index_cast %300 : i32 to index
    %c0_135 = arith.constant 0 : index
    %313 = vector.load %arg8[%312, %c0_135] : memref<16x32xf32, #tpu.memory_space<vmem>>, vector<2x32xf32>
    %314 = arith.addf %313, %302 : vector<2x32xf32>
    %315 = arith.negf %314 : vector<2x32xf32>
    %316 = math.exp %315 : vector<2x32xf32>
    %cst_136 = arith.constant 1.000000e+00 : f32
    %317 = vector.broadcast %cst_136 : f32 to vector<2x32xf32>
    %318 = arith.addf %317, %316 : vector<2x32xf32>
    %319 = arith.divf %317, %318 : vector<2x32xf32>
    %320 = arith.index_cast %300 : i32 to index
    %c0_137 = arith.constant 0 : index
    %321 = vector.load %arg9[%320, %c0_137] : memref<16x32xf32, #tpu.memory_space<vmem>>, vector<2x32xf32>
    %322 = vector.broadcast %22 : vector<1x32xf32> to vector<2x32xf32>
    %323 = arith.addf %303, %322 : vector<2x32xf32>
    %324 = arith.mulf %311, %323 : vector<2x32xf32>
    %325 = arith.addf %321, %324 : vector<2x32xf32>
    %326 = math.tanh %325 : vector<2x32xf32>
    %cst_138 = arith.constant 1.000000e+00 : f32
    %327 = vector.broadcast %cst_138 : f32 to vector<2x32xf32>
    %328 = arith.subf %327, %319 : vector<2x32xf32>
    %329 = arith.mulf %328, %326 : vector<2x32xf32>
    %330 = arith.mulf %319, %292 : vector<2x32xf32>
    %331 = arith.addf %329, %330 : vector<2x32xf32>
    %c0_139 = arith.constant 0 : index
    %332 = arith.index_cast %300 : i32 to index
    %c0_140 = arith.constant 0 : index
    %333 = vector.load %arg6[%c0_139, %332, %c0_140] : memref<1x16x32xf32, #tpu.memory_space<vmem>>, vector<1x2x32xf32>
    %334 = vector.shape_cast %333 : vector<1x2x32xf32> to vector<2x32xf32>
    %335 = vector.shape_cast %331 : vector<2x32xf32> to vector<1x2x32xf32>
    tpu.vector_store %arg6[%c0_139, %332, %c0_140], %335 {strides = array<i32>} : memref<1x16x32xf32, #tpu.memory_space<vmem>>, vector<1x2x32xf32>,
    %c8_i32 = arith.constant 8 : i32
    return
  }
  func.func @transform_0(%arg0: i32) -> (i32, i32, i32) {
    %c0_i32 = arith.constant 0 : i32
    %c0_i32_0 = arith.constant 0 : i32
    %c0_i32_1 = arith.constant 0 : i32
    %c0_i32_2 = arith.constant 0 : i32
    return %c0_i32, %c0_i32_0, %c0_i32_1 : i32, i32, i32
  }
  func.func @transform_1(%arg0: i32) -> (i32, i32, i32, i32) {
    %c0_i32 = arith.constant 0 : i32
    %c0_i32_0 = arith.constant 0 : i32
    %c0_i32_1 = arith.constant 0 : i32
    %c0_i32_2 = arith.constant 0 : i32
    return %arg0, %c0_i32, %c0_i32_0, %c0_i32_1 : i32, i32, i32, i32
  }
  func.func @transform_2(%arg0: i32) -> (i32, i32, i32, i32) {
    %c0_i32 = arith.constant 0 : i32
    %c0_i32_0 = arith.constant 0 : i32
    %c0_i32_1 = arith.constant 0 : i32
    %c0_i32_2 = arith.constant 0 : i32
    return %arg0, %c0_i32, %c0_i32_0, %c0_i32_1 : i32, i32, i32, i32
  }
  func.func @transform_3(%arg0: i32) -> (i32, i32, i32) {
    %c0_i32 = arith.constant 0 : i32
    %c0_i32_0 = arith.constant 0 : i32
    %c0_i32_1 = arith.constant 0 : i32
    return %arg0, %c0_i32, %c0_i32_0 : i32, i32, i32
  }
  func.func @transform_4(%arg0: i32) -> (i32, i32, i32) {
    %c0_i32 = arith.constant 0 : i32
    %c0_i32_0 = arith.constant 0 : i32
    %c0_i32_1 = arith.constant 0 : i32
    return %arg0, %c0_i32, %c0_i32_0 : i32, i32, i32
  }
  func.func @transform_5(%arg0: i32) -> (i32, i32, i32) {
    %c0_i32 = arith.constant 0 : i32
    %c0_i32_0 = arith.constant 0 : i32
    %c0_i32_1 = arith.constant 0 : i32
    return %arg0, %c0_i32, %c0_i32_0 : i32, i32, i32
  }
}

module attributes {stable_mosaic.version = 11 : i64} {
  func.func @_heads_kernel(%arg0: memref<2x8x2x32xf32, #tpu.memory_space<vmem>>, %arg1: memref<2x2x2x32xf32, #tpu.memory_space<vmem>>, %arg2: memref<2x1x2xf32, #tpu.memory_space<vmem>>, %arg3: memref<2x8x2xf32, #tpu.memory_space<vmem>>) attributes {dimension_semantics = [], scalar_prefetch = 0 : i64, scratch_operands = 0 : i64, tpu.core_type = #tpu.core_type<tc>} {
    %c0 = arith.constant 0 : index
    %c0_0 = arith.constant 0 : index
    %c0_1 = arith.constant 0 : index
    %c0_2 = arith.constant 0 : index
    %0 = vector.load %arg0[%c0, %c0_0, %c0_1, %c0_2] : memref<2x8x2x32xf32, #tpu.memory_space<vmem>>, vector<1x8x2x32xf32>
    %1 = vector.shape_cast %0 : vector<1x8x2x32xf32> to vector<8x2x32xf32>
    %c1 = arith.constant 1 : index
    %c0_3 = arith.constant 0 : index
    %c0_4 = arith.constant 0 : index
    %c0_5 = arith.constant 0 : index
    %2 = vector.load %arg0[%c1, %c0_3, %c0_4, %c0_5] : memref<2x8x2x32xf32, #tpu.memory_space<vmem>>, vector<1x8x2x32xf32>
    %3 = vector.shape_cast %2 : vector<1x8x2x32xf32> to vector<8x2x32xf32>
    %c0_6 = arith.constant 0 : index
    %c0_7 = arith.constant 0 : index
    %c0_8 = arith.constant 0 : index
    %c0_9 = arith.constant 0 : index
    %4 = vector.load %arg1[%c0_6, %c0_7, %c0_8, %c0_9] : memref<2x2x2x32xf32, #tpu.memory_space<vmem>>, vector<1x1x2x32xf32>
    %5 = vector.shape_cast %4 : vector<1x1x2x32xf32> to vector<2x32xf32>
    %6 = vector.shape_cast %5 : vector<2x32xf32> to vector<1x2x32xf32>
    %7 = vector.broadcast %6 : vector<1x2x32xf32> to vector<8x2x32xf32>
    %8 = arith.mulf %1, %7 : vector<8x2x32xf32>
    %cst = arith.constant dense<0.000000e+00> : vector<8x2xf32>
    %9 = vector.multi_reduction <add>, %8, %cst [2] : vector<8x2x32xf32> to vector<8x2xf32>
    %c0_10 = arith.constant 0 : index
    %c1_11 = arith.constant 1 : index
    %c0_12 = arith.constant 0 : index
    %c0_13 = arith.constant 0 : index
    %10 = vector.load %arg1[%c0_10, %c1_11, %c0_12, %c0_13] : memref<2x2x2x32xf32, #tpu.memory_space<vmem>>, vector<1x1x2x32xf32>
    %11 = vector.shape_cast %10 : vector<1x1x2x32xf32> to vector<2x32xf32>
    %12 = vector.shape_cast %11 : vector<2x32xf32> to vector<1x2x32xf32>
    %13 = vector.broadcast %12 : vector<1x2x32xf32> to vector<8x2x32xf32>
    %14 = arith.mulf %3, %13 : vector<8x2x32xf32>
    %cst_14 = arith.constant dense<0.000000e+00> : vector<8x2xf32>
    %15 = vector.multi_reduction <add>, %14, %cst_14 [2] : vector<8x2x32xf32> to vector<8x2xf32>
    %16 = arith.addf %9, %15 : vector<8x2xf32>
    %c0_15 = arith.constant 0 : index
    %c0_16 = arith.constant 0 : index
    %c0_17 = arith.constant 0 : index
    %17 = vector.load %arg2[%c0_15, %c0_16, %c0_17] : memref<2x1x2xf32, #tpu.memory_space<vmem>>, vector<1x1x2xf32>
    %18 = vector.shape_cast %17 : vector<1x1x2xf32> to vector<1x2xf32>
    %19 = vector.broadcast %18 : vector<1x2xf32> to vector<8x2xf32>
    %20 = arith.addf %16, %19 : vector<8x2xf32>
    %c0_18 = arith.constant 0 : index
    %c0_19 = arith.constant 0 : index
    %c0_20 = arith.constant 0 : index
    %21 = vector.load %arg3[%c0_18, %c0_19, %c0_20] : memref<2x8x2xf32, #tpu.memory_space<vmem>>, vector<1x8x2xf32>
    %22 = vector.shape_cast %21 : vector<1x8x2xf32> to vector<8x2xf32>
    %23 = vector.shape_cast %20 : vector<8x2xf32> to vector<1x8x2xf32>
    tpu.vector_store %arg3[%c0_18, %c0_19, %c0_20], %23 {strides = array<i32>} : memref<2x8x2xf32, #tpu.memory_space<vmem>>, vector<1x8x2xf32>,
    %c1_21 = arith.constant 1 : index
    %c0_22 = arith.constant 0 : index
    %c0_23 = arith.constant 0 : index
    %c0_24 = arith.constant 0 : index
    %24 = vector.load %arg1[%c1_21, %c0_22, %c0_23, %c0_24] : memref<2x2x2x32xf32, #tpu.memory_space<vmem>>, vector<1x1x2x32xf32>
    %25 = vector.shape_cast %24 : vector<1x1x2x32xf32> to vector<2x32xf32>
    %26 = vector.shape_cast %25 : vector<2x32xf32> to vector<1x2x32xf32>
    %27 = vector.broadcast %26 : vector<1x2x32xf32> to vector<8x2x32xf32>
    %28 = arith.mulf %1, %27 : vector<8x2x32xf32>
    %cst_25 = arith.constant dense<0.000000e+00> : vector<8x2xf32>
    %29 = vector.multi_reduction <add>, %28, %cst_25 [2] : vector<8x2x32xf32> to vector<8x2xf32>
    %c1_26 = arith.constant 1 : index
    %c1_27 = arith.constant 1 : index
    %c0_28 = arith.constant 0 : index
    %c0_29 = arith.constant 0 : index
    %30 = vector.load %arg1[%c1_26, %c1_27, %c0_28, %c0_29] : memref<2x2x2x32xf32, #tpu.memory_space<vmem>>, vector<1x1x2x32xf32>
    %31 = vector.shape_cast %30 : vector<1x1x2x32xf32> to vector<2x32xf32>
    %32 = vector.shape_cast %31 : vector<2x32xf32> to vector<1x2x32xf32>
    %33 = vector.broadcast %32 : vector<1x2x32xf32> to vector<8x2x32xf32>
    %34 = arith.mulf %3, %33 : vector<8x2x32xf32>
    %cst_30 = arith.constant dense<0.000000e+00> : vector<8x2xf32>
    %35 = vector.multi_reduction <add>, %34, %cst_30 [2] : vector<8x2x32xf32> to vector<8x2xf32>
    %36 = arith.addf %29, %35 : vector<8x2xf32>
    %c1_31 = arith.constant 1 : index
    %c0_32 = arith.constant 0 : index
    %c0_33 = arith.constant 0 : index
    %37 = vector.load %arg2[%c1_31, %c0_32, %c0_33] : memref<2x1x2xf32, #tpu.memory_space<vmem>>, vector<1x1x2xf32>
    %38 = vector.shape_cast %37 : vector<1x1x2xf32> to vector<1x2xf32>
    %39 = vector.broadcast %38 : vector<1x2xf32> to vector<8x2xf32>
    %40 = arith.addf %36, %39 : vector<8x2xf32>
    %c1_34 = arith.constant 1 : index
    %c0_35 = arith.constant 0 : index
    %c0_36 = arith.constant 0 : index
    %41 = vector.load %arg3[%c1_34, %c0_35, %c0_36] : memref<2x8x2xf32, #tpu.memory_space<vmem>>, vector<1x8x2xf32>
    %42 = vector.shape_cast %41 : vector<1x8x2xf32> to vector<8x2xf32>
    %43 = vector.shape_cast %40 : vector<8x2xf32> to vector<1x8x2xf32>
    tpu.vector_store %arg3[%c1_34, %c0_35, %c0_36], %43 {strides = array<i32>} : memref<2x8x2xf32, #tpu.memory_space<vmem>>, vector<1x8x2xf32>,
    return
  }
}

</mosaic_0001>

<llo_original>
// kernel: cpg_regression_forward.5
$region0: #{cpg_regression_forward.5}
  #allocation0 [shape = 'u32[]', space=smem, size = 0x4, offset = 0x4, fixed_abs, tag = 'smem constant byte address 0x4 - core index']
  #allocation1 [shape = 'u32[144,128]{1,0:T(1,128)}', space=vmem, size = 0x12000, scoped, tag = 'internal scratch']
  %s0 = inlined_call_operand.vmem [shape: f32[2,8,2,32], index: 0, kind: input, shape index: {}]
  %s1 = inlined_call_operand.vmem [shape: f32[2,2,2,32], index: 1, kind: input, shape index: {}]
  %s2 = inlined_call_operand.vmem [shape: f32[2,1,2], index: 2, kind: input, shape index: {}]
  %s3 = inlined_call_operand.vmem [shape: f32[2,8,2], index: 3, kind: output, shape index: {}]
  %s4 = sld [smem:[#allocation0]]
  $region22: #{cpg_regression_forward.5} parent=0
    _
  %s6 = ssub.s32 1, %s4
  %s7 = scalar_select 0, %s6, %s4
  // Predicated region
  $region2: #{cpg_regression_forward.5} parent=0 // pred_check
    _
  $region3: #{cpg_regression_forward.5} parent=0 // pred_check_branch
    %9 = sbr.rel (0) target = $region5
  $region4: #{cpg_regression_forward.5} parent=0 // pred_region
    _
  $region5: #{cpg_regression_forward.5} parent=0 // pred_fallthru
    _
  // Predicated region
  $region6: #{cpg_regression_forward.5} parent=0 // pred_check
    _
  $region7: #{cpg_regression_forward.5} parent=0 // pred_check_branch
    %11 = sbr.rel (0) target = $region9
  $region8: #{cpg_regression_forward.5} parent=0 // pred_region
    _
  $region9: #{cpg_regression_forward.5} parent=0 // pred_fallthru
    _
  // Predicated region
  $region10: #{cpg_regression_forward.5} parent=0 // pred_check
    _
  $region11: #{cpg_regression_forward.5} parent=0 // pred_check_branch
    %13 = sbr.rel (0) target = $region13
  $region12: #{cpg_regression_forward.5} parent=0 // pred_region
    _
  $region13: #{cpg_regression_forward.5} parent=0 // pred_fallthru
    _
  %v14 = vld [vmem:[%s0] sm:$0x3]
  %v15 = vld [vmem:[%s0 + $0x2] sm:$0x3]
  %v16 = vld [vmem:[%s0 + $0x4] sm:$0x3]
  %v17 = vld [vmem:[%s0 + $0x6] sm:$0x3]
  %v18 = vld [vmem:[%s0 + $0x8] sm:$0x3]
  %v19 = vld [vmem:[%s0 + $0xa] sm:$0x3]
  %v20 = vld [vmem:[%s0 + $0xc] sm:$0x3]
  %v21 = vld [vmem:[%s0 + $0xe] sm:$0x3]
  %s22 = scalar_lea.vmem %s0, 16
  %v23 = vld [vmem:[%s22] sm:$0x3]
  %v24 = vld [vmem:[%s22 + $0x2] sm:$0x3]
  %v25 = vld [vmem:[%s22 + $0x4] sm:$0x3]
  %v26 = vld [vmem:[%s22 + $0x6] sm:$0x3]
  %v27 = vld [vmem:[%s22 + $0x8] sm:$0x3]
  %v28 = vld [vmem:[%s22 + $0xa] sm:$0x3]
  %v29 = vld [vmem:[%s22 + $0xc] sm:$0x3]
  %v30 = vld [vmem:[%s22 + $0xe] sm:$0x3]
  %v31 = vld [vmem:[%s1] sm:$0x3]
  %v32 = vmul.f32 %v14, %v31
  %v33 = vmul.f32 %v15, %v31
  %v34 = vmul.f32 %v16, %v31
  %v35 = vmul.f32 %v17, %v31
  %v36 = vmul.f32 %v18, %v31
  %v37 = vmul.f32 %v19, %v31
  %v38 = vmul.f32 %v20, %v31
  %v39 = vmul.f32 %v21, %v31
  %vm40 = vcmask 254976
  %v41 = vsel %vm40, %v32, 0.0
  %42 = vadd.xlane.f32.xlu0 %v41
  %v43 = vpop.xlane.xlu0 %42
  %v44 = vsel %vm40, %v33, 0.0
  %45 = vadd.xlane.f32.xlu0 %v44
  %v46 = vpop.xlane.xlu0 %45
  %v47 = vsel %vm40, %v34, 0.0
  %48 = vadd.xlane.f32.xlu0 %v47
  %v49 = vpop.xlane.xlu0 %48
  %v50 = vsel %vm40, %v35, 0.0
  %51 = vadd.xlane.f32.xlu0 %v50
  %v52 = vpop.xlane.xlu0 %51
  %v53 = vsel %vm40, %v36, 0.0
  %54 = vadd.xlane.f32.xlu0 %v53
  %v55 = vpop.xlane.xlu0 %54
  %v56 = vsel %vm40, %v37, 0.0
  %57 = vadd.xlane.f32.xlu0 %v56
  %v58 = vpop.xlane.xlu0 %57
  %v59 = vsel %vm40, %v38, 0.0
  %60 = vadd.xlane.f32.xlu0 %v59
  %v61 = vpop.xlane.xlu0 %60
  %v62 = vsel %vm40, %v39, 0.0
  %63 = vadd.xlane.f32.xlu0 %v62
  %v64 = vpop.xlane.xlu0 %63
  %s65 = scalar_lea.vmem %s1, 2
  %v66 = vld [vmem:[%s65] sm:$0x3]
  %v67 = vmul.f32 %v23, %v66
  %v68 = vmul.f32 %v24, %v66
  %v69 = vmul.f32 %v25, %v66
  %v70 = vmul.f32 %v26, %v66
  %v71 = vmul.f32 %v27, %v66
  %v72 = vmul.f32 %v28, %v66
  %v73 = vmul.f32 %v29, %v66
  %v74 = vmul.f32 %v30, %v66
  %v75 = vsel %vm40, %v67, 0.0
  %76 = vadd.xlane.f32.xlu0 %v75
  %v77 = vpop.xlane.xlu0 %76
  %v78 = vsel %vm40, %v68, 0.0
  %79 = vadd.xlane.f32.xlu0 %v78
  %v80 = vpop.xlane.xlu0 %79
  %v81 = vsel %vm40, %v69, 0.0
  %82 = vadd.xlane.f32.xlu0 %v81
  %v83 = vpop.xlane.xlu0 %82
  %v84 = vsel %vm40, %v70, 0.0
  %85 = vadd.xlane.f32.xlu0 %v84
  %v86 = vpop.xlane.xlu0 %85
  %v87 = vsel %vm40, %v71, 0.0
  %88 = vadd.xlane.f32.xlu0 %v87
  %v89 = vpop.xlane.xlu0 %88
  %v90 = vsel %vm40, %v72, 0.0
  %91 = vadd.xlane.f32.xlu0 %v90
  %v92 = vpop.xlane.xlu0 %91
  %v93 = vsel %vm40, %v73, 0.0
  %94 = vadd.xlane.f32.xlu0 %v93
  %v95 = vpop.xlane.xlu0 %94
  %v96 = vsel %vm40, %v74, 0.0
  %97 = vadd.xlane.f32.xlu0 %v96
  %v98 = vpop.xlane.xlu0 %97
  %v99 = vadd.f32 %v43, %v77
  %v100 = vadd.f32 %v46, %v80
  %v101 = vadd.f32 %v49, %v83
  %v102 = vadd.f32 %v52, %v86
  %v103 = vadd.f32 %v55, %v89
  %v104 = vadd.f32 %v58, %v92
  %v105 = vadd.f32 %v61, %v95
  %v106 = vadd.f32 %v64, %v98
  %v107 = vld [vmem:[%s2] sm:$0x1]
  %v109 = vlaneseq
  %v110 = vshrl.u32 %v109, 7
  %v111 = vsub.s32 0, %v110
  %v112 = vrot.slane %v107, %v111
  %114 = vbcast.lane.b32.xlu0 %v112, 256
  %v115 = vpop.permute.xlu0 %114
  %v117 = vadd.f32 %v99, %v115
  %v118 = vadd.f32 %v100, %v115
  %v119 = vadd.f32 %v101, %v115
  %v120 = vadd.f32 %v102, %v115
  %v121 = vadd.f32 %v103, %v115
  %v122 = vadd.f32 %v104, %v115
  %v123 = vadd.f32 %v105, %v115
  %v124 = vadd.f32 %v106, %v115
  %133 = vset.pattern.permute.xlu0 0
  %134 = vperm.xlu0 %133, %v117
  %v135 = vpop.permute.xlu0 %134
  %136 = vset.pattern.permute.xlu0 0
  %137 = vperm.xlu0 %136, %v118
  %v138 = vpop.permute.xlu0 %137
  %139 = vset.pattern.permute.xlu0 0
  %140 = vperm.xlu0 %139, %v119
  %v141 = vpop.permute.xlu0 %140
  %142 = vset.pattern.permute.xlu0 0
  %143 = vperm.xlu0 %142, %v120
  %v144 = vpop.permute.xlu0 %143
  %145 = vset.pattern.permute.xlu0 0
  %146 = vperm.xlu0 %145, %v121
  %v147 = vpop.permute.xlu0 %146
  %148 = vset.pattern.permute.xlu0 0
  %149 = vperm.xlu0 %148, %v122
  %v150 = vpop.permute.xlu0 %149
  %151 = vset.pattern.permute.xlu0 0
  %152 = vperm.xlu0 %151, %v123
  %v153 = vpop.permute.xlu0 %152
  %154 = vset.pattern.permute.xlu0 0
  %155 = vperm.xlu0 %154, %v124
  %v156 = vpop.permute.xlu0 %155
  %v157 = vlaneseq
  %v158 = vand.u32 %v157, 127
  %v159 = vlaneseq
  %v160 = vshrl.u32 %v159, 7
  %v161 = vsub.s32 %v158, %v160
  %v162 = vrot.slane %v135, %v161
  %v163 = vlaneseq
  %v164 = vshrl.u32 %v163, 7
  %v165 = vsub.s32 %v158, %v164
  %v166 = vrot.slane %v138, %v165
  %v167 = vlaneseq
  %v168 = vshrl.u32 %v167, 7
  %v169 = vsub.s32 %v158, %v168
  %v170 = vrot.slane %v141, %v169
  %v171 = vlaneseq
  %v172 = vshrl.u32 %v171, 7
  %v173 = vsub.s32 %v158, %v172
  %v174 = vrot.slane %v144, %v173
  %v175 = vlaneseq
  %v176 = vshrl.u32 %v175, 7
  %v177 = vsub.s32 %v158, %v176
  %v178 = vrot.slane %v147, %v177
  %v179 = vlaneseq
  %v180 = vshrl.u32 %v179, 7
  %v181 = vsub.s32 %v158, %v180
  %v182 = vrot.slane %v150, %v181
  %v183 = vlaneseq
  %v184 = vshrl.u32 %v183, 7
  %v185 = vsub.s32 %v158, %v184
  %v186 = vrot.slane %v153, %v185
  %v187 = vlaneseq
  %v188 = vshrl.u32 %v187, 7
  %v189 = vsub.s32 %v158, %v188
  %v190 = vrot.slane %v156, %v189
  %vm191 = vcmask 1041409
  %v192 = vsel %vm191, %v166, %v162
  %vm193 = vcmask 1042434
  %v194 = vsel %vm193, %v170, %v192
  %vm195 = vcmask 1043459
  %v196 = vsel %vm195, %v174, %v194
  %vm197 = vcmask 1044484
  %v198 = vsel %vm197, %v178, %v196
  %vm199 = vcmask 1045509
  %v200 = vsel %vm199, %v182, %v198
  %vm201 = vcmask 1046534
  %v202 = vsel %vm201, %v186, %v200
  %vm203 = vcmask 1047559
  %v204 = vsel %vm203, %v190, %v202
  %vm206 = vcmask 15360
  %207 = vst.msk [vmem:[%s3] sm:$0xff] %vm206, %v204
  %s208 = scalar_lea.vmem %s1, 4
  %v209 = vld [vmem:[%s208] sm:$0x3]
  %v210 = vmul.f32 %v14, %v209
  %v211 = vmul.f32 %v15, %v209
  %v212 = vmul.f32 %v16, %v209
  %v213 = vmul.f32 %v17, %v209
  %v214 = vmul.f32 %v18, %v209
  %v215 = vmul.f32 %v19, %v209
  %v216 = vmul.f32 %v20, %v209
  %v217 = vmul.f32 %v21, %v209
  %v218 = vsel %vm40, %v210, 0.0
  %219 = vadd.xlane.f32.xlu0 %v218
  %v220 = vpop.xlane.xlu0 %219
  %v221 = vsel %vm40, %v211, 0.0
  %222 = vadd.xlane.f32.xlu0 %v221
  %v223 = vpop.xlane.xlu0 %222
  %v224 = vsel %vm40, %v212, 0.0
  %225 = vadd.xlane.f32.xlu0 %v224
  %v226 = vpop.xlane.xlu0 %225
  %v227 = vsel %vm40, %v213, 0.0
  %228 = vadd.xlane.f32.xlu0 %v227
  %v229 = vpop.xlane.xlu0 %228
  %v230 = vsel %vm40, %v214, 0.0
  %231 = vadd.xlane.f32.xlu0 %v230
  %v232 = vpop.xlane.xlu0 %231
  %v233 = vsel %vm40, %v215, 0.0
  %234 = vadd.xlane.f32.xlu0 %v233
  %v235 = vpop.xlane.xlu0 %234
  %v236 = vsel %vm40, %v216, 0.0
  %237 = vadd.xlane.f32.xlu0 %v236
  %v238 = vpop.xlane.xlu0 %237
  %v239 = vsel %vm40, %v217, 0.0
  %240 = vadd.xlane.f32.xlu0 %v239
  %v241 = vpop.xlane.xlu0 %240
  %s242 = scalar_lea.vmem %s1, 6
  %v243 = vld [vmem:[%s242] sm:$0x3]
  %v244 = vmul.f32 %v23, %v243
  %v245 = vmul.f32 %v24, %v243
  %v246 = vmul.f32 %v25, %v243
  %v247 = vmul.f32 %v26, %v243
  %v248 = vmul.f32 %v27, %v243
  %v249 = vmul.f32 %v28, %v243
  %v250 = vmul.f32 %v29, %v243
  %v251 = vmul.f32 %v30, %v243
  %v252 = vsel %vm40, %v244, 0.0
  %253 = vadd.xlane.f32.xlu0 %v252
  %v254 = vpop.xlane.xlu0 %253
  %v255 = vsel %vm40, %v245, 0.0
  %256 = vadd.xlane.f32.xlu0 %v255
  %v257 = vpop.xlane.xlu0 %256
  %v258 = vsel %vm40, %v246, 0.0
  %259 = vadd.xlane.f32.xlu0 %v258
  %v260 = vpop.xlane.xlu0 %259
  %v261 = vsel %vm40, %v247, 0.0
  %262 = vadd.xlane.f32.xlu0 %v261
  %v263 = vpop.xlane.xlu0 %262
  %v264 = vsel %vm40, %v248, 0.0
  %265 = vadd.xlane.f32.xlu0 %v264
  %v266 = vpop.xlane.xlu0 %265
  %v267 = vsel %vm40, %v249, 0.0
  %268 = vadd.xlane.f32.xlu0 %v267
  %v269 = vpop.xlane.xlu0 %268
  %v270 = vsel %vm40, %v250, 0.0
  %271 = vadd.xlane.f32.xlu0 %v270
  %v272 = vpop.xlane.xlu0 %271
  %v273 = vsel %vm40, %v251, 0.0
  %274 = vadd.xlane.f32.xlu0 %v273
  %v275 = vpop.xlane.xlu0 %274
  %v276 = vadd.f32 %v220, %v254
  %v277 = vadd.f32 %v223, %v257
  %v278 = vadd.f32 %v226, %v260
  %v279 = vadd.f32 %v229, %v263
  %v280 = vadd.f32 %v232, %v266
  %v281 = vadd.f32 %v235, %v269
  %v282 = vadd.f32 %v238, %v272
  %v283 = vadd.f32 %v241, %v275
  %s284 = scalar_lea.vmem %s2, 1
  %v285 = vld [vmem:[%s284] sm:$0x1]
  %v287 = vlaneseq
  %v288 = vshrl.u32 %v287, 7
  %v289 = vsub.s32 0, %v288
  %v290 = vrot.slane %v285, %v289
  %292 = vbcast.lane.b32.xlu0 %v290, 256
  %v293 = vpop.permute.xlu0 %292
  %v295 = vadd.f32 %v276, %v293
  %v296 = vadd.f32 %v277, %v293
  %v297 = vadd.f32 %v278, %v293
  %v298 = vadd.f32 %v279, %v293
  %v299 = vadd.f32 %v280, %v293
  %v300 = vadd.f32 %v281, %v293
  %v301 = vadd.f32 %v282, %v293
  %v302 = vadd.f32 %v283, %v293
  %311 = vset.pattern.permute.xlu0 0
  %312 = vperm.xlu0 %311, %v295
  %v313 = vpop.permute.xlu0 %312
  %314 = vset.pattern.permute.xlu0 0
  %315 = vperm.xlu0 %314, %v296
  %v316 = vpop.permute.xlu0 %315
  %317 = vset.pattern.permute.xlu0 0
  %318 = vperm.xlu0 %317, %v297
  %v319 = vpop.permute.xlu0 %318
  %320 = vset.pattern.permute.xlu0 0
  %321 = vperm.xlu0 %320, %v298
  %v322 = vpop.permute.xlu0 %321
  %323 = vset.pattern.permute.xlu0 0
  %324 = vperm.xlu0 %323, %v299
  %v325 = vpop.permute.xlu0 %324
  %326 = vset.pattern.permute.xlu0 0
  %327 = vperm.xlu0 %326, %v300
  %v328 = vpop.permute.xlu0 %327
  %329 = vset.pattern.permute.xlu0 0
  %330 = vperm.xlu0 %329, %v301
  %v331 = vpop.permute.xlu0 %330
  %332 = vset.pattern.permute.xlu0 0
  %333 = vperm.xlu0 %332, %v302
  %v334 = vpop.permute.xlu0 %333
  %v335 = vlaneseq
  %v336 = vshrl.u32 %v335, 7
  %v337 = vsub.s32 %v158, %v336
  %v338 = vrot.slane %v313, %v337
  %v339 = vlaneseq
  %v340 = vshrl.u32 %v339, 7
  %v341 = vsub.s32 %v158, %v340
  %v342 = vrot.slane %v316, %v341
  %v343 = vlaneseq
  %v344 = vshrl.u32 %v343, 7
  %v345 = vsub.s32 %v158, %v344
  %v346 = vrot.slane %v319, %v345
  %v347 = vlaneseq
  %v348 = vshrl.u32 %v347, 7
  %v349 = vsub.s32 %v158, %v348
  %v350 = vrot.slane %v322, %v349
  %v351 = vlaneseq
  %v352 = vshrl.u32 %v351, 7
  %v353 = vsub.s32 %v158, %v352
  %v354 = vrot.slane %v325, %v353
  %v355 = vlaneseq
  %v356 = vshrl.u32 %v355, 7
  %v357 = vsub.s32 %v158, %v356
  %v358 = vrot.slane %v328, %v357
  %v359 = vlaneseq
  %v360 = vshrl.u32 %v359, 7
  %v361 = vsub.s32 %v158, %v360
  %v362 = vrot.slane %v331, %v361
  %v363 = vlaneseq
  %v364 = vshrl.u32 %v363, 7
  %v365 = vsub.s32 %v158, %v364
  %v366 = vrot.slane %v334, %v365
  %v367 = vsel %vm191, %v342, %v338
  %v368 = vsel %vm193, %v346, %v367
  %v369 = vsel %vm195, %v350, %v368
  %v370 = vsel %vm197, %v354, %v369
  %v371 = vsel %vm199, %v358, %v370
  %v372 = vsel %vm201, %v362, %v371
  %v373 = vsel %vm203, %v366, %v372
  %s375 = scalar_lea.vmem %s3, 8
  %376 = vst.msk [vmem:[%s375] sm:$0xff] %vm206, %v373
  // Predicated region
  $region14: #{cpg_regression_forward.5} parent=0 // pred_check
    _
  $region15: #{cpg_regression_forward.5} parent=0 // pred_check_branch
    %378 = sbr.rel (0) target = $region17
  $region16: #{cpg_regression_forward.5} parent=0 // pred_region
    _
  $region17: #{cpg_regression_forward.5} parent=0 // pred_fallthru
    _
  // Predicated region
  $region18: #{cpg_regression_forward.5} parent=0 // pred_check
    _
  $region19: #{cpg_regression_forward.5} parent=0 // pred_check_branch
    %380 = sbr.rel (0) target = $region21
  $region20: #{cpg_regression_forward.5} parent=0 // pred_region
    _
  $region21: #{cpg_regression_forward.5} parent=0 // pred_fallthru
    _

// kernel: cpg_regression_forward.3
$region0: #{cpg_regression_forward.3}
  #allocation0 [shape = 'u32[]', space=smem, size = 0x4, offset = 0x4, fixed_abs, tag = 'smem constant byte address 0x4 - core index']
  #allocation1 [shape = 'u32[144,128]{1,0:T(1,128)}', space=vmem, size = 0x12000, scoped, tag = 'internal scratch']
  #allocation2 [shape = 'f32[16,32]{1,0:T(8,128)}', space=vmem, size = 0x2000, scoped, tag = 'scratch operand']
  #allocation3 [shape = 'f32[16,32]{1,0:T(8,128)}', space=vmem, size = 0x2000, scoped, tag = 'scratch operand']
  #allocation4 [shape = 'f32[16,32]{1,0:T(8,128)}', space=vmem, size = 0x2000, scoped, tag = 'scratch operand']
  %s0 = inlined_call_operand.vmem [shape: f32[1,16,1], index: 0, kind: input, shape index: {}]
  %s1 = inlined_call_operand.vmem [shape: f32[2,1,1,96], index: 1, kind: input, shape index: {}]
  %s2 = inlined_call_operand.hbm [shape: f32[2,3,32,32], index: 2, kind: input, shape index: {}]
  %s3 = inlined_call_operand.vmem [shape: f32[2,1,96], index: 3, kind: input, shape index: {}]
  %s4 = inlined_call_operand.vmem [shape: f32[2,1,32], index: 4, kind: input, shape index: {}]
  %s5 = inlined_call_operand.vmem [shape: f32[2,16,32], index: 5, kind: output, shape index: {}]
  %s6 = sld [smem:[#allocation0]]
  $region57: #{cpg_regression_forward.3} parent=0
    _
  %s8 = ssub.s32 1, %s6
  %s9 = scalar_select 0, %s8, %s6
  $region1: #{cpg_regression_forward.3} parent=0
    #allocation5 [shape = 'u8[98304]{0}', space=vmem, size = 0x18000, scoped, tag = 'input window, operand 2']
    #allocation6 [shape = 's32[2]{0}', space=sflag, size = 0x8, scoped, tag = 'scoped memory for cpg_regression_forward.3']
    %10 = vsyncpa [#allocation6], 0
    %s11 = scalar_lea.sflag [#allocation6], 1
    %12 = vsyncpa %s11, 0
    loop: start=0, step=1, limit=4
    $region2: #{cpg_regression_forward.3} parent=1 // loop_pre_header
      _
    $region3: #{cpg_regression_forward.3} parent=1 // loop_header
      %s14 = sphi 0, %s18
      %p15 = scmp.ge.s32.totalorder %s14, 4
      %s22 = sphi 0, %s22
      %s24 = sphi 0, %s22
      %s25 = sphi 0, %s24
      %s39 = sphi 0, %s25
      %s45 = sphi 0, %s47
      %s48 = sphi 0, %s45
      %s49 = sphi 0, %s48
      %s65 = sphi 0, %s49
      %s71 = sphi 0, %s73
      %s74 = sphi 0, %s71
      %s75 = sphi 0, %s74
      %s91 = sphi 0, %s75
      %s97 = sphi 0, %s99
      %s100 = sphi 0, %s97
      %s101 = sphi 0, %s100
      %s117 = sphi 0, %s101
      %s123 = sphi 0, %s125
      %s126 = sphi 0, %s123
      %s127 = sphi 0, %s126
      %s143 = sphi 0, %s127
      %s149 = sphi 0, %s151
      %s152 = sphi 0, %s149
      %s153 = sphi 0, %s152
      %s169 = sphi 0, %s153
    $region4: #{cpg_regression_forward.3} parent=1 // loop_header_branch
      %17 = sbr.rel (%p15) target = $region8
    $region5: #{cpg_regression_forward.3} parent=1 // loop_body
      %s19 = ssub.s32 %s14, 1
      %s20 = ssub.s32 %s14, 2
      %s21 = sadd.s32 %s14, 1
      %s23 = sadd.s32 %s22, 1
      %p26 = scmp.eq.s32.totalorder %s14, 1
      %p27 = scmp.ne.s32.totalorder %s22, %s24
      %p28 = scmp.eq.s32.totalorder %s14, 0
      %p29 = por %p27, %p28
      %p30 = scmp.ne.s32.totalorder %s22, %s24
      %p31 = scmp.eq.s32.totalorder %s19, 1
      %p32 = por %p30, %p31
      %p33 = scmp.ne.s32.totalorder %s24, %s25
      %p34 = scmp.eq.s32.totalorder %s19, 0
      %p35 = por %p33, %p34
      %p36 = scmp.ne.s32.totalorder %s24, %s25
      %p37 = scmp.eq.s32.totalorder %s20, 1
      %p38 = por %p36, %p37
      %p40 = scmp.ne.s32.totalorder %s25, %s39
      %p41 = scmp.eq.s32.totalorder %s20, 0
      %p42 = por %p40, %p41
      %s43 = ssub.s32 %s14, %s21
      %p44 = scmp.eq.s32.totalorder %s43, 0
      %s46 = sadd.s32 %s45, 1
      %s47 = scalar_select %p44, %s45, %s46
      %p50 = pneg %p44
      %p51 = scmp.eq.s32.totalorder %s14, 1
      %p52 = por %p50, %p51
      %p53 = scmp.ne.s32.totalorder %s45, %s48
      %p54 = scmp.eq.s32.totalorder %s14, 0
      %p55 = por %p53, %p54
      %p56 = scmp.ne.s32.totalorder %s45, %s48
      %p57 = scmp.eq.s32.totalorder %s19, 1
      %p58 = por %p56, %p57
      %p59 = scmp.ne.s32.totalorder %s48, %s49
      %p60 = scmp.eq.s32.totalorder %s19, 0
      %p61 = por %p59, %p60
      %p62 = scmp.ne.s32.totalorder %s48, %s49
      %p63 = scmp.eq.s32.totalorder %s20, 1
      %p64 = por %p62, %p63
      %p66 = scmp.ne.s32.totalorder %s49, %s65
      %p67 = scmp.eq.s32.totalorder %s20, 0
      %p68 = por %p66, %p67
      %s69 = ssub.s32 %s14, %s21
      %p70 = scmp.eq.s32.totalorder %s69, 0
      %s72 = sadd.s32 %s71, 1
      %s73 = scalar_select %p70, %s71, %s72
      %p76 = pneg %p70
      %p77 = scmp.eq.s32.totalorder %s14, 1
      %p78 = por %p76, %p77
      %p79 = scmp.ne.s32.totalorder %s71, %s74
      %p80 = scmp.eq.s32.totalorder %s14, 0
      %p81 = por %p79, %p80
      %p82 = scmp.ne.s32.totalorder %s71, %s74
      %p83 = scmp.eq.s32.totalorder %s19, 1
      %p84 = por %p82, %p83
      %p85 = scmp.ne.s32.totalorder %s74, %s75
      %p86 = scmp.eq.s32.totalorder %s19, 0
      %p87 = por %p85, %p86
      %p88 = scmp.ne.s32.totalorder %s74, %s75
      %p89 = scmp.eq.s32.totalorder %s20, 1
      %p90 = por %p88, %p89
      %p92 = scmp.ne.s32.totalorder %s75, %s91
      %p93 = scmp.eq.s32.totalorder %s20, 0
      %p94 = por %p92, %p93
      %s95 = ssub.s32 %s14, %s21
      %p96 = scmp.eq.s32.totalorder %s95, 0
      %s98 = sadd.s32 %s97, 1
      %s99 = scalar_select %p96, %s97, %s98
      %p102 = pneg %p96
      %p103 = scmp.eq.s32.totalorder %s14, 1
      %p104 = por %p102, %p103
      %p105 = scmp.ne.s32.totalorder %s97, %s100
      %p106 = scmp.eq.s32.totalorder %s14, 0
      %p107 = por %p105, %p106
      %p108 = scmp.ne.s32.totalorder %s97, %s100
      %p109 = scmp.eq.s32.totalorder %s19, 1
      %p110 = por %p108, %p109
      %p111 = scmp.ne.s32.totalorder %s100, %s101
      %p112 = scmp.eq.s32.totalorder %s19, 0
      %p113 = por %p111, %p112
      %p114 = scmp.ne.s32.totalorder %s100, %s101
      %p115 = scmp.eq.s32.totalorder %s20, 1
      %p116 = por %p114, %p115
      %p118 = scmp.ne.s32.totalorder %s101, %s117
      %p119 = scmp.eq.s32.totalorder %s20, 0
      %p120 = por %p118, %p119
      %s121 = ssub.s32 %s14, %s21
      %p122 = scmp.eq.s32.totalorder %s121, 0
      %s124 = sadd.s32 %s123, 1
      %s125 = scalar_select %p122, %s123, %s124
      %p128 = pneg %p122
      %p129 = scmp.eq.s32.totalorder %s14, 1
      %p130 = por %p128, %p129
      %p131 = scmp.ne.s32.totalorder %s123, %s126
      %p132 = scmp.eq.s32.totalorder %s14, 0
      %p133 = por %p131, %p132
      %p134 = scmp.ne.s32.totalorder %s123, %s126
      %p135 = scmp.eq.s32.totalorder %s19, 1
      %p136 = por %p134, %p135
      %p137 = scmp.ne.s32.totalorder %s126, %s127
      %p138 = scmp.eq.s32.totalorder %s19, 0
      %p139 = por %p137, %p138
      %p140 = scmp.ne.s32.totalorder %s126, %s127
      %p141 = scmp.eq.s32.totalorder %s20, 1
      %p142 = por %p140, %p141
      %p144 = scmp.ne.s32.totalorder %s127, %s143
      %p145 = scmp.eq.s32.totalorder %s20, 0
      %p146 = por %p144, %p145
      %s147 = ssub.s32 %s14, %s21
      %p148 = scmp.eq.s32.totalorder %s147, 0
      %s150 = sadd.s32 %s149, 1
      %s151 = scalar_select %p148, %s149, %s150
      %p154 = pneg %p148
      %p155 = scmp.eq.s32.totalorder %s14, 1
      %p156 = por %p154, %p155
      %p157 = scmp.ne.s32.totalorder %s149, %s152
      %p158 = scmp.eq.s32.totalorder %s14, 0
      %p159 = por %p157, %p158
      %p160 = scmp.ne.s32.totalorder %s149, %s152
      %p161 = scmp.eq.s32.totalorder %s19, 1
      %p162 = por %p160, %p161
      %p163 = scmp.ne.s32.totalorder %s152, %s153
      %p164 = scmp.eq.s32.totalorder %s19, 0
      %p165 = por %p163, %p164
      %p166 = scmp.ne.s32.totalorder %s152, %s153
      %p167 = scmp.eq.s32.totalorder %s20, 1
      %p168 = por %p166, %p167
      %p170 = scmp.ne.s32.totalorder %s153, %s169
      %p171 = scmp.eq.s32.totalorder %s20, 0
      %p172 = por %p170, %p171
      %p173 = scmp.le.s32.totalorder 1, %s14
      %p174 = scmp.lt.s32.totalorder %s14, 3
      %p175 = pnand %p173, %p174
      %p176 = pneg %p175
      // Predicated region
      $region9: #{cpg_regression_forward.3} parent=5 // pred_check
        _
      $region10: #{cpg_regression_forward.3} parent=5 // pred_check_branch
        %178 = sbr.rel (%p175) target = $region12
      $region11: #{cpg_regression_forward.3} parent=5 // pred_region
        %s179 = ssub.s32 %s14, 1
        // Predicated region
        $region13: #{cpg_regression_forward.3} parent=11 // pred_check
          %p180 = pneg %p35
        $region14: #{cpg_regression_forward.3} parent=11 // pred_check_branch
          %182 = sbr.rel (%p180) target = $region16
        $region15: #{cpg_regression_forward.3} parent=11 // pred_region
          _
        $region16: #{cpg_regression_forward.3} parent=11 // pred_fallthru
          _
      $region12: #{cpg_regression_forward.3} parent=5 // pred_fallthru
        _
      %p183 = scmp.lt.s32.totalorder %s14, 2
      // Predicated region
      $region17: #{cpg_regression_forward.3} parent=5 // pred_check
        %p184 = pneg %p183
      $region18: #{cpg_regression_forward.3} parent=5 // pred_check_branch
        %186 = sbr.rel (%p184) target = $region20
      $region19: #{cpg_regression_forward.3} parent=5 // pred_region
        // Predicated region
        $region21: #{cpg_regression_forward.3} parent=19 // pred_check
          %p187 = pneg %p55
        $region22: #{cpg_regression_forward.3} parent=19 // pred_check_branch
          %189 = sbr.rel (%p187) target = $region24
        $region23: #{cpg_regression_forward.3} parent=19 // pred_region
          %p190 = scmp.lt.s32.totalorder %s14, 1
          %s191 = scalar_select %p190, %s14, 1
          %s192 = scalar_lea.vmem %s1, %s191
        $region24: #{cpg_regression_forward.3} parent=19 // pred_fallthru
          _
        // Predicated region
        $region25: #{cpg_regression_forward.3} parent=19 // pred_check
          %p193 = pneg %p81
        $region26: #{cpg_regression_forward.3} parent=19 // pred_check_branch
          %195 = sbr.rel (%p193) target = $region28
        $region27: #{cpg_regression_forward.3} parent=19 // pred_region
          %s196 = sand.u32 %s71, 1
          %s197 = scalar_lea.sflag [#allocation6], %s196
          %s198 = sand.u32 %s71, 1
          %s199 = smul.addr %s198, 96
          %s200 = scalar_lea.vmem [#allocation5], %s199
          %s202 = ssub.s32 1536, 1536
          %203 = vsyncadd %s197, %s202
          %s204 = smul.addr %s14, 12
          %s205 = smul.addr %s204, 128
          %s206 = scalar_lea.hbm %s2, %s205
          %s207 = sshll.u32 %s200, 4
          %s208 = int_to_ptr.vmem [resolvable:$true] %s207
          %213 = dma.hbm_to_vmem [thread:$0]  %s206, 1536, %s208, %s197, 128, 128, 8
        $region28: #{cpg_regression_forward.3} parent=19 // pred_fallthru
          _
        // Predicated region
        $region29: #{cpg_regression_forward.3} parent=19 // pred_check
          %p214 = pneg %p107
        $region30: #{cpg_regression_forward.3} parent=19 // pred_check_branch
          %216 = sbr.rel (%p214) target = $region32
        $region31: #{cpg_regression_forward.3} parent=19 // pred_region
          %p217 = scmp.lt.s32.totalorder %s14, 1
          %s218 = scalar_select %p217, %s14, 1
          %s219 = scalar_lea.vmem %s3, %s218
        $region32: #{cpg_regression_forward.3} parent=19 // pred_fallthru
          _
        // Predicated region
        $region33: #{cpg_regression_forward.3} parent=19 // pred_check
          %p220 = pneg %p133
        $region34: #{cpg_regression_forward.3} parent=19 // pred_check_branch
          %222 = sbr.rel (%p220) target = $region36
        $region35: #{cpg_regression_forward.3} parent=19 // pred_region
          %p223 = scmp.lt.s32.totalorder %s14, 1
          %s224 = scalar_select %p223, %s14, 1
          %s225 = scalar_lea.vmem %s4, %s224
        $region36: #{cpg_regression_forward.3} parent=19 // pred_fallthru
          _
      $region20: #{cpg_regression_forward.3} parent=5 // pred_fallthru
        _
      %p226 = scmp.le.s32.totalorder 1, %s14
      %p227 = scmp.lt.s32.totalorder %s14, 3
      %p228 = pnand %p226, %p227
      %p229 = pneg %p228
      // Predicated region
      $region37: #{cpg_regression_forward.3} parent=5 // pred_check
        _
      $region38: #{cpg_regression_forward.3} parent=5 // pred_check_branch
        %231 = sbr.rel (%p228) target = $region40
      $region39: #{cpg_regression_forward.3} parent=5 // pred_region
        %s232 = ssub.s32 %s14, 1
        %s233 = sand.u32 %s74, 1
        %s234 = scalar_lea.sflag [#allocation6], %s233
        %s235 = sand.u32 %s74, 1
        %s236 = smul.addr %s235, 96
        %s237 = scalar_lea.vmem [#allocation5], %s236
        // Predicated region
        $region41: #{cpg_regression_forward.3} parent=39 // pred_check
          %p238 = pneg %p87
        $region42: #{cpg_regression_forward.3} parent=39 // pred_check_branch
          %240 = sbr.rel (%p238) target = $region44
        $region43: #{cpg_regression_forward.3} parent=39 // pred_region
          %241 = dma.done %s234, 1536
        $region44: #{cpg_regression_forward.3} parent=39 // pred_fallthru
          _
        %p242 = pneg %p35
        %p243 = pneg %p32
        %p244 = scmp.lt.s32.totalorder %s19, 1
        %s245 = scalar_select %p244, %s19, 1
        %s246 = scalar_lea.vmem %s1, %s245
        %p247 = pneg %p61
        %p248 = pneg %p58
        %s249 = sand.u32 %s74, 1
        %s250 = scalar_lea.sflag [#allocation6], %s249
        %s251 = sand.u32 %s74, 1
        %s252 = smul.addr %s251, 96
        %s253 = scalar_lea.vmem [#allocation5], %s252
        %p254 = pneg %p87
        %p255 = pneg %p84
        %p256 = scmp.lt.s32.totalorder %s19, 1
        %s257 = scalar_select %p256, %s19, 1
        %s258 = scalar_lea.vmem %s3, %s257
        %p259 = pneg %p113
        %p260 = pneg %p110
        %p261 = scmp.lt.s32.totalorder %s19, 1
        %s262 = scalar_select %p261, %s19, 1
        %s263 = scalar_lea.vmem %s4, %s262
        %p264 = pneg %p139
        %p265 = pneg %p136
        %p266 = pneg %p165
        %p267 = pneg %p162
        %p268 = scmp.lt.s32.totalorder %s19, 1
        %s269 = scalar_select %p268, %s19, 1
        %s270 = smul.addr %s269, 2
        %s271 = smul.addr %s270, 8
        %s272 = scalar_lea.vmem %s5, %s271
        %p273 = scmp.lt.s32.totalorder %s19, 1
        %s274 = scalar_select %p273, %s19, 1
        %s275 = scalar_lea.vmem %s1, %s274
        %p276 = scmp.lt.s32.totalorder %s19, 1
        %s277 = scalar_select %p276, %s19, 1
        %s278 = scalar_lea.vmem %s3, %s277
        %p279 = scmp.lt.s32.totalorder %s19, 1
        %s280 = scalar_select %p279, %s19, 1
        %s281 = scalar_lea.vmem %s4, %s280
        %p282 = scmp.lt.s32.totalorder %s19, 1
        %s283 = scalar_select %p282, %s19, 1
        %s284 = smul.addr %s283, 2
        %s285 = smul.addr %s284, 8
        %s286 = scalar_lea.vmem %s5, %s285
        %v287 = vld [vmem:[%s0] sm:$0xff]
        %v288 = vld [vmem:[%s0 + $0x8] sm:$0xff]
        %v289 = vld [vmem:[%s275] sm:$0x1]
        %v290 = vld [vmem:[%s278] sm:$0x1]
        %v292 = vlaneseq
        %v293 = vshrl.u32 %v292, 7
        %v294 = vsub.s32 0, %v293
        %v295 = vrot.slane %v290, %v294
        %vm297 = vcmask 7168
        %v299 = vsel %vm297, %v287, 0
        %v302 = vsel %vm297, %v288, 0
        %vm304 = vcmask 1040384
        %v306 = vsel %vm304, %v289, 0
        %308 = vmatprep.subr.mxu0 0.0
        %309 = vmatpush1.msra.mxu0 0.0
        %310 = vmatprep.subr.mxu0 0.0
        %311 = vmatpush1.msra.mxu0 0.0
        %312 = vmatprep.subr.mxu0 0.0
        %313 = vmatpush1.msra.mxu0 0.0
        %314 = vmatprep.subr.mxu0 0.0
        %315 = vmatpush1.msra.mxu0 0.0
        %316 = vmatprep.subr.mxu0 0.0
        %317 = vmatpush1.msra.mxu0 0.0
        %318 = vmatprep.subr.mxu0 0.0
        %319 = vmatpush1.msra.mxu0 0.0
        %320 = vmatprep.subr.mxu0 0.0
        %321 = vmatpush1.msra.mxu0 0.0
        %322 = vmatprep.subr.mxu0 0.0
        %323 = vmatpush1.msra.mxu0 0.0
        %324 = vmatprep.subr.mxu0 0.0
        %325 = vmatpush1.msra.mxu0 0.0
        %326 = vmatprep.subr.mxu0 0.0
        %327 = vmatpush1.msra.mxu0 0.0
        %328 = vmatprep.subr.mxu0 0.0
        %329 = vmatpush1.msra.mxu0 0.0
        %330 = vmatprep.subr.mxu0 0.0
        %331 = vmatpush1.msra.mxu0 0.0
        %332 = vmatprep.subr.mxu0 0.0
        %333 = vmatpush1.msra.mxu0 0.0
        %334 = vmatprep.subr.mxu0 0.0
        %335 = vmatpush1.msra.mxu0 0.0
        %336 = vmatprep.subr.mxu0 0.0
        %337 = vmatpush1.msra.mxu0 0.0
        %338 = vmatprep.subr.mxu0 0.0
        %339 = vmatpush1.msra.mxu0 %v306
        %340 = vmatprep.subr.mxu0 0.0
        %341 = vmatpush2.msra.mxu0 0.0
        %342 = vmatprep.subr.mxu0 0.0
        %343 = vmatpush2.msra.mxu0 0.0
        %344 = vmatprep.subr.mxu0 0.0
        %345 = vmatpush2.msra.mxu0 0.0
        %346 = vmatprep.subr.mxu0 0.0
        %347 = vmatpush2.msra.mxu0 0.0
        %348 = vmatprep.subr.mxu0 0.0
        %349 = vmatpush2.msra.mxu0 0.0
        %350 = vmatprep.subr.mxu0 0.0
        %351 = vmatpush2.msra.mxu0 0.0
        %352 = vmatprep.subr.mxu0 0.0
        %353 = vmatpush2.msra.mxu0 0.0
        %354 = vmatprep.subr.mxu0 0.0
        %355 = vmatpush2.msra.mxu0 0.0
        %356 = vmatprep.subr.mxu0 0.0
        %357 = vmatpush2.msra.mxu0 0.0
        %358 = vmatprep.subr.mxu0 0.0
        %359 = vmatpush2.msra.mxu0 0.0
        %360 = vmatprep.subr.mxu0 0.0
        %361 = vmatpush2.msra.mxu0 0.0
        %362 = vmatprep.subr.mxu0 0.0
        %363 = vmatpush2.msra.mxu0 0.0
        %364 = vmatprep.subr.mxu0 0.0
        %365 = vmatpush2.msra.mxu0 0.0
        %366 = vmatprep.subr.mxu0 0.0
        %367 = vmatpush2.msra.mxu0 0.0
        %368 = vmatprep.subr.mxu0 0.0
        %369 = vmatpush2.msra.mxu0 0.0
        %370 = vmatprep.subr.mxu0 0.0
        %371 = vmatpush2.msra.mxu0 0.0
        %372 = vmatprep.mubr.f32.mxu0 0.0
        %373 = vmatmul.mubr.f32.gmra.mxu0 %v299
        %v374 = vpop.f32.mrf.mxu0
        %v375 = vadd.f32 %v295, %v374
        %v376 = vpop.f32.mrf.mxu0
        %377 = vmatprep.mubr.f32.mxu0 0.0
        %378 = vmatmul.mubr.f32.gmra.mxu0 %v302
        %v379 = vpop.f32.mrf.mxu0
        %v380 = vadd.f32 %v295, %v379
        %v381 = vpop.f32.mrf.mxu0
        %382 = vdwg.mxu0
        %vm383 = vcmask 261120
        %384 = vst.msk [vmem:[#allocation2] sm:$0xff] %vm383, %v375
        %385 = vst.msk [vmem:[#allocation2 + $0x8] sm:$0xff] %vm383, %v380
        %388 = vrot.lane.b32.xlu0 %v375, 96
        %v389 = vpop.permute.xlu0 %388
        %390 = vrot.lane.b32.xlu0 %v380, 96
        %v391 = vpop.permute.xlu0 %390
        %394 = vst.msk [vmem:[#allocation3] sm:$0xff] %vm383, %v389
        %395 = vst.msk [vmem:[#allocation3 + $0x8] sm:$0xff] %vm383, %v391
        %396 = vrot.lane.b32.xlu0 %v375, 64
        %v397 = vpop.permute.xlu0 %396
        %398 = vrot.lane.b32.xlu0 %v380, 64
        %v399 = vpop.permute.xlu0 %398
        %402 = vst.msk [vmem:[#allocation4] sm:$0xff] %vm383, %v397
        %403 = vst.msk [vmem:[#allocation4 + $0x8] sm:$0xff] %vm383, %v399
        %v404 = vld [vmem:[%s237] sm:$0xff]
        %v405 = vld [vmem:[%s237 + $0x8] sm:$0xff]
        %v406 = vld [vmem:[%s237 + $0x10] sm:$0xff]
        %v407 = vld [vmem:[%s237 + $0x18] sm:$0xff]
        %s408 = scalar_lea.vmem %s237, 32 [#allocation5]
        %v409 = vld [vmem:[%s408] sm:$0xff]
        %v410 = vld [vmem:[%s408 + $0x8] sm:$0xff]
        %v411 = vld [vmem:[%s408 + $0x10] sm:$0xff]
        %v412 = vld [vmem:[%s408 + $0x18] sm:$0xff]
        %s413 = scalar_lea.vmem %s237, 64 [#allocation5]
        %v414 = vld [vmem:[%s413] sm:$0xff]
        %v415 = vld [vmem:[%s413 + $0x8] sm:$0xff]
        %v416 = vld [vmem:[%s413 + $0x10] sm:$0xff]
        %v417 = vld [vmem:[%s413 + $0x18] sm:$0xff]
        %v418 = vld [vmem:[%s281] sm:$0x1]
        %p419 = scmp.eq.s32.totalorder %s19, 0
        %s420 = scalar_select %p419, 0, 7
        %s421 = smul.u32 %s420, 2
        %v423 = vsel %vm383, 0.0, 0
        %425 = vmatprep.subr.mxu0 0.0
        %426 = vmatpush1.msra.mxu0 0.0
        %427 = vmatprep.subr.mxu0 0.0
        %428 = vmatpush1.msra.mxu0 0.0
        %429 = vmatprep.subr.mxu0 0.0
        %430 = vmatpush1.msra.mxu0 0.0
        %431 = vmatprep.subr.mxu0 0.0
        %432 = vmatpush1.msra.mxu0 0.0
        %433 = vmatprep.subr.mxu0 0.0
        %434 = vmatpush1.msra.mxu0 0.0
        %435 = vmatprep.subr.mxu0 0.0
        %436 = vmatpush1.msra.mxu0 0.0
        %437 = vmatprep.subr.mxu0 0.0
        %438 = vmatpush1.msra.mxu0 0.0
        %439 = vmatprep.subr.mxu0 0.0
        %440 = vmatpush1.msra.mxu0 0.0
        %441 = vmatprep.subr.mxu0 0.0
        %442 = vmatpush1.msra.mxu0 0.0
        %443 = vmatprep.subr.mxu0 0.0
        %444 = vmatpush1.msra.mxu0 0.0
        %445 = vmatprep.subr.mxu0 0.0
        %446 = vmatpush1.msra.mxu0 0.0
        %447 = vmatprep.subr.mxu0 0.0
        %448 = vmatpush1.msra.mxu0 0.0
        %449 = vmatprep.subr.mxu0 0.0
        %450 = vmatpush1.msra.mxu0 %v407
        %451 = vmatprep.subr.mxu0 0.0
        %452 = vmatpush1.msra.mxu0 %v406
        %453 = vmatprep.subr.mxu0 0.0
        %454 = vmatpush1.msra.mxu0 %v405
        %455 = vmatprep.subr.mxu0 0.0
        %456 = vmatpush1.msra.mxu0 %v404
        %457 = vmatprep.subr.mxu0 0.0
        %458 = vmatpush2.msra.mxu0 0.0
        %459 = vmatprep.subr.mxu0 0.0
        %460 = vmatpush2.msra.mxu0 0.0
        %461 = vmatprep.subr.mxu0 0.0
        %462 = vmatpush2.msra.mxu0 0.0
        %463 = vmatprep.subr.mxu0 0.0
        %464 = vmatpush2.msra.mxu0 0.0
        %465 = vmatprep.subr.mxu0 0.0
        %466 = vmatpush2.msra.mxu0 0.0
        %467 = vmatprep.subr.mxu0 0.0
        %468 = vmatpush2.msra.mxu0 0.0
        %469 = vmatprep.subr.mxu0 0.0
        %470 = vmatpush2.msra.mxu0 0.0
        %471 = vmatprep.subr.mxu0 0.0
        %472 = vmatpush2.msra.mxu0 0.0
        %473 = vmatprep.subr.mxu0 0.0
        %474 = vmatpush2.msra.mxu0 0.0
        %475 = vmatprep.subr.mxu0 0.0
        %476 = vmatpush2.msra.mxu0 0.0
        %477 = vmatprep.subr.mxu0 0.0
        %478 = vmatpush2.msra.mxu0 0.0
        %479 = vmatprep.subr.mxu0 0.0
        %480 = vmatpush2.msra.mxu0 0.0
        %481 = vmatprep.subr.mxu0 0.0
        %482 = vmatpush2.msra.mxu0 0.0
        %483 = vmatprep.subr.mxu0 0.0
        %484 = vmatpush2.msra.mxu0 0.0
        %485 = vmatprep.subr.mxu0 0.0
        %486 = vmatpush2.msra.mxu0 0.0
        %487 = vmatprep.subr.mxu0 0.0
        %488 = vmatpush2.msra.mxu0 0.0
        %489 = vmatprep.mubr.f32.mxu0 0.0
        %490 = vmatmul.mubr.f32.gmra.mxu0 %v423
        %v491 = vpop.f32.mrf.mxu0
        %v492 = vadd.f32 0.0, %v491
        %v493 = vpop.f32.mrf.mxu0
        %494 = vdwg.mxu0
        %495 = vmatprep.subr.mxu0 0.0
        %496 = vmatpush1.msra.mxu0 0.0
        %497 = vmatprep.subr.mxu0 0.0
        %498 = vmatpush1.msra.mxu0 0.0
        %499 = vmatprep.subr.mxu0 0.0
        %500 = vmatpush1.msra.mxu0 0.0
        %501 = vmatprep.subr.mxu0 0.0
        %502 = vmatpush1.msra.mxu0 0.0
        %503 = vmatprep.subr.mxu0 0.0
        %504 = vmatpush1.msra.mxu0 0.0
        %505 = vmatprep.subr.mxu0 0.0
        %506 = vmatpush1.msra.mxu0 0.0
        %507 = vmatprep.subr.mxu0 0.0
        %508 = vmatpush1.msra.mxu0 0.0
        %509 = vmatprep.subr.mxu0 0.0
        %510 = vmatpush1.msra.mxu0 0.0
        %511 = vmatprep.subr.mxu0 0.0
        %512 = vmatpush1.msra.mxu0 0.0
        %513 = vmatprep.subr.mxu0 0.0
        %514 = vmatpush1.msra.mxu0 0.0
        %515 = vmatprep.subr.mxu0 0.0
        %516 = vmatpush1.msra.mxu0 0.0
        %517 = vmatprep.subr.mxu0 0.0
        %518 = vmatpush1.msra.mxu0 0.0
        %519 = vmatprep.subr.mxu0 0.0
        %520 = vmatpush1.msra.mxu0 %v412
        %521 = vmatprep.subr.mxu0 0.0
        %522 = vmatpush1.msra.mxu0 %v411
        %523 = vmatprep.subr.mxu0 0.0
        %524 = vmatpush1.msra.mxu0 %v410
        %525 = vmatprep.subr.mxu0 0.0
        %526 = vmatpush1.msra.mxu0 %v409
        %527 = vmatprep.subr.mxu0 0.0
        %528 = vmatpush2.msra.mxu0 0.0
        %529 = vmatprep.subr.mxu0 0.0
        %530 = vmatpush2.msra.mxu0 0.0
        %531 = vmatprep.subr.mxu0 0.0
        %532 = vmatpush2.msra.mxu0 0.0
        %533 = vmatprep.subr.mxu0 0.0
        %534 = vmatpush2.msra.mxu0 0.0
        %535 = vmatprep.subr.mxu0 0.0
        %536 = vmatpush2.msra.mxu0 0.0
        %537 = vmatprep.subr.mxu0 0.0
        %538 = vmatpush2.msra.mxu0 0.0
        %539 = vmatprep.subr.mxu0 0.0
        %540 = vmatpush2.msra.mxu0 0.0
        %541 = vmatprep.subr.mxu0 0.0
        %542 = vmatpush2.msra.mxu0 0.0
        %543 = vmatprep.subr.mxu0 0.0
        %544 = vmatpush2.msra.mxu0 0.0
        %545 = vmatprep.subr.mxu0 0.0
        %546 = vmatpush2.msra.mxu0 0.0
        %547 = vmatprep.subr.mxu0 0.0
        %548 = vmatpush2.msra.mxu0 0.0
        %549 = vmatprep.subr.mxu0 0.0
        %550 = vmatpush2.msra.mxu0 0.0
        %551 = vmatprep.subr.mxu0 0.0
        %552 = vmatpush2.msra.mxu0 0.0
        %553 = vmatprep.subr.mxu0 0.0
        %554 = vmatpush2.msra.mxu0 0.0
        %555 = vmatprep.subr.mxu0 0.0
        %556 = vmatpush2.msra.mxu0 0.0
        %557 = vmatprep.subr.mxu0 0.0
        %558 = vmatpush2.msra.mxu0 0.0
        %559 = vmatprep.mubr.f32.mxu0 0.0
        %560 = vmatmul.mubr.f32.gmra.mxu0 %v423
        %v561 = vpop.f32.mrf.mxu0
        %v562 = vadd.f32 0.0, %v561
        %v563 = vpop.f32.mrf.mxu0
        %564 = vdwg.mxu0
        %s565 = scalar_lea.vmem [#allocation2], %s421
        %v566 = vld [vmem:[%s565] sm:$0x3]
        %v567 = vadd.f32 %v566, %v492
        %v568 = vxor.u32 %v567, 2147483648
        %v569 = vmul.f32 %v568, 1.442695
        %v570 = vpow.pop %v569
        %v571 = vadd.f32 %v570, 1.0
        %v572 = vrcp.pop %v571
        %v573 = vmul.f32 1.0, %v572
        %s574 = scalar_lea.vmem [#allocation3], %s421
        %v575 = vld [vmem:[%s574] sm:$0x3]
        %v576 = vadd.f32 %v575, %v562
        %v577 = vxor.u32 %v576, 2147483648
        %v578 = vmul.f32 %v577, 1.442695
        %v579 = vpow.pop %v578
        %v580 = vadd.f32 %v579, 1.0
        %v581 = vrcp.pop %v580
        %v582 = vmul.f32 1.0, %v581
        %s583 = scalar_lea.vmem [#allocation4], %s421
        %v584 = vld [vmem:[%s583] sm:$0x3]
        %v586 = vlaneseq
        %v587 = vshrl.u32 %v586, 7
        %v588 = vsub.s32 0, %v587
        %v589 = vrot.slane %v418, %v588
        %591 = vmatprep.subr.mxu0 0.0
        %592 = vmatpush1.msra.mxu0 0.0
        %593 = vmatprep.subr.mxu0 0.0
        %594 = vmatpush1.msra.mxu0 0.0
        %595 = vmatprep.subr.mxu0 0.0
        %596 = vmatpush1.msra.mxu0 0.0
        %597 = vmatprep.subr.mxu0 0.0
        %598 = vmatpush1.msra.mxu0 0.0
        %599 = vmatprep.subr.mxu0 0.0
        %600 = vmatpush1.msra.mxu0 0.0
        %601 = vmatprep.subr.mxu0 0.0
        %602 = vmatpush1.msra.mxu0 0.0
        %603 = vmatprep.subr.mxu0 0.0
        %604 = vmatpush1.msra.mxu0 0.0
        %605 = vmatprep.subr.mxu0 0.0
        %606 = vmatpush1.msra.mxu0 0.0
        %607 = vmatprep.subr.mxu0 0.0
        %608 = vmatpush1.msra.mxu0 0.0
        %609 = vmatprep.subr.mxu0 0.0
        %610 = vmatpush1.msra.mxu0 0.0
        %611 = vmatprep.subr.mxu0 0.0
        %612 = vmatpush1.msra.mxu0 0.0
        %613 = vmatprep.subr.mxu0 0.0
        %614 = vmatpush1.msra.mxu0 0.0
        %615 = vmatprep.subr.mxu0 0.0
        %616 = vmatpush1.msra.mxu0 %v417
        %617 = vmatprep.subr.mxu0 0.0
        %618 = vmatpush1.msra.mxu0 %v416
        %619 = vmatprep.subr.mxu0 0.0
        %620 = vmatpush1.msra.mxu0 %v415
        %621 = vmatprep.subr.mxu0 0.0
        %622 = vmatpush1.msra.mxu0 %v414
        %623 = vmatprep.subr.mxu0 0.0
        %624 = vmatpush2.msra.mxu0 0.0
        %625 = vmatprep.subr.mxu0 0.0
        %626 = vmatpush2.msra.mxu0 0.0
        %627 = vmatprep.subr.mxu0 0.0
        %628 = vmatpush2.msra.mxu0 0.0
        %629 = vmatprep.subr.mxu0 0.0
        %630 = vmatpush2.msra.mxu0 0.0
        %631 = vmatprep.subr.mxu0 0.0
        %632 = vmatpush2.msra.mxu0 0.0
        %633 = vmatprep.subr.mxu0 0.0
        %634 = vmatpush2.msra.mxu0 0.0
        %635 = vmatprep.subr.mxu0 0.0
        %636 = vmatpush2.msra.mxu0 0.0
        %637 = vmatprep.subr.mxu0 0.0
        %638 = vmatpush2.msra.mxu0 0.0
        %639 = vmatprep.subr.mxu0 0.0
        %640 = vmatpush2.msra.mxu0 0.0
        %641 = vmatprep.subr.mxu0 0.0
        %642 = vmatpush2.msra.mxu0 0.0
        %643 = vmatprep.subr.mxu0 0.0
        %644 = vmatpush2.msra.mxu0 0.0
        %645 = vmatprep.subr.mxu0 0.0
        %646 = vmatpush2.msra.mxu0 0.0
        %647 = vmatprep.subr.mxu0 0.0
        %648 = vmatpush2.msra.mxu0 0.0
        %649 = vmatprep.subr.mxu0 0.0
        %650 = vmatpush2.msra.mxu0 0.0
        %651 = vmatprep.subr.mxu0 0.0
        %652 = vmatpush2.msra.mxu0 0.0
        %653 = vmatprep.subr.mxu0 0.0
        %654 = vmatpush2.msra.mxu0 0.0
        %655 = vmatprep.mubr.f32.mxu0 0.0
        %656 = vmatmul.mubr.f32.gmra.mxu0 %v423
        %v657 = vpop.f32.mrf.mxu0
        %v658 = vadd.f32 %v589, %v657
        %v659 = vpop.f32.mrf.mxu0
        %660 = vdwg.mxu0
        %v661 = vmul.f32 %v573, %v658
        %v662 = vadd.f32 %v584, %v661
        %v663 = vtanh.pop %v662
        %v664 = vsub.f32 1.0, %v582
        %v665 = vmul.f32 %v664, %v663
        %v666 = vmul.f32 %v582, 0.0
        %v667 = vadd.f32 %v665, %v666
        %s668 = scalar_lea.vmem %s286, %s421
        %vm669 = vcmask 254976
        %670 = vst.msk [vmem:[%s668] sm:$0x3] %vm669, %v667
        %s671 = scalar_select %p419, 1, 6
        %s672 = smul.u32 %s671, 2
        %v674 = vsel %vm383, %v667, 0
        %676 = vmatprep.subr.mxu0 0.0
        %677 = vmatpush1.msra.mxu0 0.0
        %678 = vmatprep.subr.mxu0 0.0
        %679 = vmatpush1.msra.mxu0 0.0
        %680 = vmatprep.subr.mxu0 0.0
        %681 = vmatpush1.msra.mxu0 0.0
        %682 = vmatprep.subr.mxu0 0.0
        %683 = vmatpush1.msra.mxu0 0.0
        %684 = vmatprep.subr.mxu0 0.0
        %685 = vmatpush1.msra.mxu0 0.0
        %686 = vmatprep.subr.mxu0 0.0
        %687 = vmatpush1.msra.mxu0 0.0
        %688 = vmatprep.subr.mxu0 0.0
        %689 = vmatpush1.msra.mxu0 0.0
        %690 = vmatprep.subr.mxu0 0.0
        %691 = vmatpush1.msra.mxu0 0.0
        %692 = vmatprep.subr.mxu0 0.0
        %693 = vmatpush1.msra.mxu0 0.0
        %694 = vmatprep.subr.mxu0 0.0
        %695 = vmatpush1.msra.mxu0 0.0
        %696 = vmatprep.subr.mxu0 0.0
        %697 = vmatpush1.msra.mxu0 0.0
        %698 = vmatprep.subr.mxu0 0.0
        %699 = vmatpush1.msra.mxu0 0.0
        %700 = vmatprep.subr.mxu0 0.0
        %701 = vmatpush1.msra.mxu0 %v407
        %702 = vmatprep.subr.mxu0 0.0
        %703 = vmatpush1.msra.mxu0 %v406
        %704 = vmatprep.subr.mxu0 0.0
        %705 = vmatpush1.msra.mxu0 %v405
        %706 = vmatprep.subr.mxu0 0.0
        %707 = vmatpush1.msra.mxu0 %v404
        %708 = vmatprep.subr.mxu0 0.0
        %709 = vmatpush2.msra.mxu0 0.0
        %710 = vmatprep.subr.mxu0 0.0
        %711 = vmatpush2.msra.mxu0 0.0
        %712 = vmatprep.subr.mxu0 0.0
        %713 = vmatpush2.msra.mxu0 0.0
        %714 = vmatprep.subr.mxu0 0.0
        %715 = vmatpush2.msra.mxu0 0.0
        %716 = vmatprep.subr.mxu0 0.0
        %717 = vmatpush2.msra.mxu0 0.0
        %718 = vmatprep.subr.mxu0 0.0
        %719 = vmatpush2.msra.mxu0 0.0
        %720 = vmatprep.subr.mxu0 0.0
        %721 = vmatpush2.msra.mxu0 0.0
        %722 = vmatprep.subr.mxu0 0.0
        %723 = vmatpush2.msra.mxu0 0.0
        %724 = vmatprep.subr.mxu0 0.0
        %725 = vmatpush2.msra.mxu0 0.0
        %726 = vmatprep.subr.mxu0 0.0
        %727 = vmatpush2.msra.mxu0 0.0
        %728 = vmatprep.subr.mxu0 0.0
        %729 = vmatpush2.msra.mxu0 0.0
        %730 = vmatprep.subr.mxu0 0.0
        %731 = vmatpush2.msra.mxu0 0.0
        %732 = vmatprep.subr.mxu0 0.0
        %733 = vmatpush2.msra.mxu0 0.0
        %734 = vmatprep.subr.mxu0 0.0
        %735 = vmatpush2.msra.mxu0 0.0
        %736 = vmatprep.subr.mxu0 0.0
        %737 = vmatpush2.msra.mxu0 0.0
        %738 = vmatprep.subr.mxu0 0.0
        %739 = vmatpush2.msra.mxu0 0.0
        %740 = vmatprep.mubr.f32.mxu0 0.0
        %741 = vmatmul.mubr.f32.gmra.mxu0 %v674
        %v742 = vpop.f32.mrf.mxu0
        %v743 = vadd.f32 0.0, %v742
        %v744 = vpop.f32.mrf.mxu0
        %745 = vdwg.mxu0
        %746 = vmatprep.subr.mxu0 0.0
        %747 = vmatpush1.msra.mxu0 0.0
        %748 = vmatprep.subr.mxu0 0.0
        %749 = vmatpush1.msra.mxu0 0.0
        %750 = vmatprep.subr.mxu0 0.0
        %751 = vmatpush1.msra.mxu0 0.0
        %752 = vmatprep.subr.mxu0 0.0
        %753 = vmatpush1.msra.mxu0 0.0
        %754 = vmatprep.subr.mxu0 0.0
        %755 = vmatpush1.msra.mxu0 0.0
        %756 = vmatprep.subr.mxu0 0.0
        %757 = vmatpush1.msra.mxu0 0.0
        %758 = vmatprep.subr.mxu0 0.0
        %759 = vmatpush1.msra.mxu0 0.0
        %760 = vmatprep.subr.mxu0 0.0
        %761 = vmatpush1.msra.mxu0 0.0
        %762 = vmatprep.subr.mxu0 0.0
        %763 = vmatpush1.msra.mxu0 0.0
        %764 = vmatprep.subr.mxu0 0.0
        %765 = vmatpush1.msra.mxu0 0.0
        %766 = vmatprep.subr.mxu0 0.0
        %767 = vmatpush1.msra.mxu0 0.0
        %768 = vmatprep.subr.mxu0 0.0
        %769 = vmatpush1.msra.mxu0 0.0
        %770 = vmatprep.subr.mxu0 0.0
        %771 = vmatpush1.msra.mxu0 %v412
        %772 = vmatprep.subr.mxu0 0.0
        %773 = vmatpush1.msra.mxu0 %v411
        %774 = vmatprep.subr.mxu0 0.0
        %775 = vmatpush1.msra.mxu0 %v410
        %776 = vmatprep.subr.mxu0 0.0
        %777 = vmatpush1.msra.mxu0 %v409
        %778 = vmatprep.subr.mxu0 0.0
        %779 = vmatpush2.msra.mxu0 0.0
        %780 = vmatprep.subr.mxu0 0.0
        %781 = vmatpush2.msra.mxu0 0.0
        %782 = vmatprep.subr.mxu0 0.0
        %783 = vmatpush2.msra.mxu0 0.0
        %784 = vmatprep.subr.mxu0 0.0
        %785 = vmatpush2.msra.mxu0 0.0
        %786 = vmatprep.subr.mxu0 0.0
        %787 = vmatpush2.msra.mxu0 0.0
        %788 = vmatprep.subr.mxu0 0.0
        %789 = vmatpush2.msra.mxu0 0.0
        %790 = vmatprep.subr.mxu0 0.0
        %791 = vmatpush2.msra.mxu0 0.0
        %792 = vmatprep.subr.mxu0 0.0
        %793 = vmatpush2.msra.mxu0 0.0
        %794 = vmatprep.subr.mxu0 0.0
        %795 = vmatpush2.msra.mxu0 0.0
        %796 = vmatprep.subr.mxu0 0.0
        %797 = vmatpush2.msra.mxu0 0.0
        %798 = vmatprep.subr.mxu0 0.0
        %799 = vmatpush2.msra.mxu0 0.0
        %800 = vmatprep.subr.mxu0 0.0
        %801 = vmatpush2.msra.mxu0 0.0
        %802 = vmatprep.subr.mxu0 0.0
        %803 = vmatpush2.msra.mxu0 0.0
        %804 = vmatprep.subr.mxu0 0.0
        %805 = vmatpush2.msra.mxu0 0.0
        %806 = vmatprep.subr.mxu0 0.0
        %807 = vmatpush2.msra.mxu0 0.0
        %808 = vmatprep.subr.mxu0 0.0
        %809 = vmatpush2.msra.mxu0 0.0
        %810 = vmatprep.mubr.f32.mxu0 0.0
        %811 = vmatmul.mubr.f32.gmra.mxu0 %v674
        %v812 = vpop.f32.mrf.mxu0
        %v813 = vadd.f32 0.0, %v812
        %v814 = vpop.f32.mrf.mxu0
        %815 = vdwg.mxu0
        %s816 = scalar_lea.vmem [#allocation2], %s672
        %v817 = vld [vmem:[%s816] sm:$0x3]
        %v818 = vadd.f32 %v817, %v743
        %v819 = vxor.u32 %v818, 2147483648
        %v820 = vmul.f32 %v819, 1.442695
        %v821 = vpow.pop %v820
        %v822 = vadd.f32 %v821, 1.0
        %v823 = vrcp.pop %v822
        %v824 = vmul.f32 1.0, %v823
        %s825 = scalar_lea.vmem [#allocation3], %s672
        %v826 = vld [vmem:[%s825] sm:$0x3]
        %v827 = vadd.f32 %v826, %v813
        %v828 = vxor.u32 %v827, 2147483648
        %v829 = vmul.f32 %v828, 1.442695
        %v830 = vpow.pop %v829
        %v831 = vadd.f32 %v830, 1.0
        %v832 = vrcp.pop %v831
        %v833 = vmul.f32 1.0, %v832
        %s834 = scalar_lea.vmem [#allocation4], %s672
        %v835 = vld [vmem:[%s834] sm:$0x3]
        %836 = vmatprep.subr.mxu0 0.0
        %837 = vmatpush1.msra.mxu0 0.0
        %838 = vmatprep.subr.mxu0 0.0
        %839 = vmatpush1.msra.mxu0 0.0
        %840 = vmatprep.subr.mxu0 0.0
        %841 = vmatpush1.msra.mxu0 0.0
        %842 = vmatprep.subr.mxu0 0.0
        %843 = vmatpush1.msra.mxu0 0.0
        %844 = vmatprep.subr.mxu0 0.0
        %845 = vmatpush1.msra.mxu0 0.0
        %846 = vmatprep.subr.mxu0 0.0
        %847 = vmatpush1.msra.mxu0 0.0
        %848 = vmatprep.subr.mxu0 0.0
        %849 = vmatpush1.msra.mxu0 0.0
        %850 = vmatprep.subr.mxu0 0.0
        %851 = vmatpush1.msra.mxu0 0.0
        %852 = vmatprep.subr.mxu0 0.0
        %853 = vmatpush1.msra.mxu0 0.0
        %854 = vmatprep.subr.mxu0 0.0
        %855 = vmatpush1.msra.mxu0 0.0
        %856 = vmatprep.subr.mxu0 0.0
        %857 = vmatpush1.msra.mxu0 0.0
        %858 = vmatprep.subr.mxu0 0.0
        %859 = vmatpush1.msra.mxu0 0.0
        %860 = vmatprep.subr.mxu0 0.0
        %861 = vmatpush1.msra.mxu0 %v417
        %862 = vmatprep.subr.mxu0 0.0
        %863 = vmatpush1.msra.mxu0 %v416
        %864 = vmatprep.subr.mxu0 0.0
        %865 = vmatpush1.msra.mxu0 %v415
        %866 = vmatprep.subr.mxu0 0.0
        %867 = vmatpush1.msra.mxu0 %v414
        %868 = vmatprep.subr.mxu0 0.0
        %869 = vmatpush2.msra.mxu0 0.0
        %870 = vmatprep.subr.mxu0 0.0
        %871 = vmatpush2.msra.mxu0 0.0
        %872 = vmatprep.subr.mxu0 0.0
        %873 = vmatpush2.msra.mxu0 0.0
        %874 = vmatprep.subr.mxu0 0.0
        %875 = vmatpush2.msra.mxu0 0.0
        %876 = vmatprep.subr.mxu0 0.0
        %877 = vmatpush2.msra.mxu0 0.0
        %878 = vmatprep.subr.mxu0 0.0
        %879 = vmatpush2.msra.mxu0 0.0
        %880 = vmatprep.subr.mxu0 0.0
        %881 = vmatpush2.msra.mxu0 0.0
        %882 = vmatprep.subr.mxu0 0.0
        %883 = vmatpush2.msra.mxu0 0.0
        %884 = vmatprep.subr.mxu0 0.0
        %885 = vmatpush2.msra.mxu0 0.0
        %886 = vmatprep.subr.mxu0 0.0
        %887 = vmatpush2.msra.mxu0 0.0
        %888 = vmatprep.subr.mxu0 0.0
        %889 = vmatpush2.msra.mxu0 0.0
        %890 = vmatprep.subr.mxu0 0.0
        %891 = vmatpush2.msra.mxu0 0.0
        %892 = vmatprep.subr.mxu0 0.0
        %893 = vmatpush2.msra.mxu0 0.0
        %894 = vmatprep.subr.mxu0 0.0
        %895 = vmatpush2.msra.mxu0 0.0
        %896 = vmatprep.subr.mxu0 0.0
        %897 = vmatpush2.msra.mxu0 0.0
        %898 = vmatprep.subr.mxu0 0.0
        %899 = vmatpush2.msra.mxu0 0.0
        %900 = vmatprep.mubr.f32.mxu0 0.0
        %901 = vmatmul.mubr.f32.gmra.mxu0 %v674
        %v902 = vpop.f32.mrf.mxu0
        %v903 = vadd.f32 %v589, %v902
        %v904 = vpop.f32.mrf.mxu0
        %905 = vdwg.mxu0
        %v906 = vmul.f32 %v824, %v903
        %v907 = vadd.f32 %v835, %v906
        %v908 = vtanh.pop %v907
        %v909 = vsub.f32 1.0, %v833
        %v910 = vmul.f32 %v909, %v908
        %v911 = vmul.f32 %v833, %v667
        %v912 = vadd.f32 %v910, %v911
        %s913 = scalar_lea.vmem %s286, %s672
        %914 = vst.msk [vmem:[%s913] sm:$0x3] %vm669, %v912
        %s915 = scalar_select %p419, 2, 5
        %s916 = smul.u32 %s915, 2
        %v918 = vsel %vm383, %v912, 0
        %920 = vmatprep.subr.mxu0 0.0
        %921 = vmatpush1.msra.mxu0 0.0
        %922 = vmatprep.subr.mxu0 0.0
        %923 = vmatpush1.msra.mxu0 0.0
        %924 = vmatprep.subr.mxu0 0.0
        %925 = vmatpush1.msra.mxu0 0.0
        %926 = vmatprep.subr.mxu0 0.0
        %927 = vmatpush1.msra.mxu0 0.0
        %928 = vmatprep.subr.mxu0 0.0
        %929 = vmatpush1.msra.mxu0 0.0
        %930 = vmatprep.subr.mxu0 0.0
        %931 = vmatpush1.msra.mxu0 0.0
        %932 = vmatprep.subr.mxu0 0.0
        %933 = vmatpush1.msra.mxu0 0.0
        %934 = vmatprep.subr.mxu0 0.0
        %935 = vmatpush1.msra.mxu0 0.0
        %936 = vmatprep.subr.mxu0 0.0
        %937 = vmatpush1.msra.mxu0 0.0
        %938 = vmatprep.subr.mxu0 0.0
        %939 = vmatpush1.msra.mxu0 0.0
        %940 = vmatprep.subr.mxu0 0.0
        %941 = vmatpush1.msra.mxu0 0.0
        %942 = vmatprep.subr.mxu0 0.0
        %943 = vmatpush1.msra.mxu0 0.0
        %944 = vmatprep.subr.mxu0 0.0
        %945 = vmatpush1.msra.mxu0 %v407
        %946 = vmatprep.subr.mxu0 0.0
        %947 = vmatpush1.msra.mxu0 %v406
        %948 = vmatprep.subr.mxu0 0.0
        %949 = vmatpush1.msra.mxu0 %v405
        %950 = vmatprep.subr.mxu0 0.0
        %951 = vmatpush1.msra.mxu0 %v404
        %952 = vmatprep.subr.mxu0 0.0
        %953 = vmatpush2.msra.mxu0 0.0
        %954 = vmatprep.subr.mxu0 0.0
        %955 = vmatpush2.msra.mxu0 0.0
        %956 = vmatprep.subr.mxu0 0.0
        %957 = vmatpush2.msra.mxu0 0.0
        %958 = vmatprep.subr.mxu0 0.0
        %959 = vmatpush2.msra.mxu0 0.0
        %960 = vmatprep.subr.mxu0 0.0
        %961 = vmatpush2.msra.mxu0 0.0
        %962 = vmatprep.subr.mxu0 0.0
        %963 = vmatpush2.msra.mxu0 0.0
        %964 = vmatprep.subr.mxu0 0.0
        %965 = vmatpush2.msra.mxu0 0.0
        %966 = vmatprep.subr.mxu0 0.0
        %967 = vmatpush2.msra.mxu0 0.0
        %968 = vmatprep.subr.mxu0 0.0
        %969 = vmatpush2.msra.mxu0 0.0
        %970 = vmatprep.subr.mxu0 0.0
        %971 = vmatpush2.msra.mxu0 0.0
        %972 = vmatprep.subr.mxu0 0.0
        %973 = vmatpush2.msra.mxu0 0.0
        %974 = vmatprep.subr.mxu0 0.0
        %975 = vmatpush2.msra.mxu0 0.0
        %976 = vmatprep.subr.mxu0 0.0
        %977 = vmatpush2.msra.mxu0 0.0
        %978 = vmatprep.subr.mxu0 0.0
        %979 = vmatpush2.msra.mxu0 0.0
        %980 = vmatprep.subr.mxu0 0.0
        %981 = vmatpush2.msra.mxu0 0.0
        %982 = vmatprep.subr.mxu0 0.0
        %983 = vmatpush2.msra.mxu0 0.0
        %984 = vmatprep.mubr.f32.mxu0 0.0
        %985 = vmatmul.mubr.f32.gmra.mxu0 %v918
        %v986 = vpop.f32.mrf.mxu0
        %v987 = vadd.f32 0.0, %v986
        %v988 = vpop.f32.mrf.mxu0
        %989 = vdwg.mxu0
        %990 = vmatprep.subr.mxu0 0.0
        %991 = vmatpush1.msra.mxu0 0.0
        %992 = vmatprep.subr.mxu0 0.0
        %993 = vmatpush1.msra.mxu0 0.0
        %994 = vmatprep.subr.mxu0 0.0
        %995 = vmatpush1.msra.mxu0 0.0
        %996 = vmatprep.subr.mxu0 0.0
        %997 = vmatpush1.msra.mxu0 0.0
        %998 = vmatprep.subr.mxu0 0.0
        %999 = vmatpush1.msra.mxu0 0.0
        %1000 = vmatprep.subr.mxu0 0.0
        %1001 = vmatpush1.msra.mxu0 0.0
        %1002 = vmatprep.subr.mxu0 0.0
        %1003 = vmatpush1.msra.mxu0 0.0
        %1004 = vmatprep.subr.mxu0 0.0
        %1005 = vmatpush1.msra.mxu0 0.0
        %1006 = vmatprep.subr.mxu0 0.0
        %1007 = vmatpush1.msra.mxu0 0.0
        %1008 = vmatprep.subr.mxu0 0.0
        %1009 = vmatpush1.msra.mxu0 0.0
        %1010 = vmatprep.subr.mxu0 0.0
        %1011 = vmatpush1.msra.mxu0 0.0
        %1012 = vmatprep.subr.mxu0 0.0
        %1013 = vmatpush1.msra.mxu0 0.0
        %1014 = vmatprep.subr.mxu0 0.0
        %1015 = vmatpush1.msra.mxu0 %v412
        %1016 = vmatprep.subr.mxu0 0.0
        %1017 = vmatpush1.msra.mxu0 %v411
        %1018 = vmatprep.subr.mxu0 0.0
        %1019 = vmatpush1.msra.mxu0 %v410
        %1020 = vmatprep.subr.mxu0 0.0
        %1021 = vmatpush1.msra.mxu0 %v409
        %1022 = vmatprep.subr.mxu0 0.0
        %1023 = vmatpush2.msra.mxu0 0.0
        %1024 = vmatprep.subr.mxu0 0.0
        %1025 = vmatpush2.msra.mxu0 0.0
        %1026 = vmatprep.subr.mxu0 0.0
        %1027 = vmatpush2.msra.mxu0 0.0
        %1028 = vmatprep.subr.mxu0 0.0
        %1029 = vmatpush2.msra.mxu0 0.0
        %1030 = vmatprep.subr.mxu0 0.0
        %1031 = vmatpush2.msra.mxu0 0.0
        %1032 = vmatprep.subr.mxu0 0.0
        %1033 = vmatpush2.msra.mxu0 0.0
        %1034 = vmatprep.subr.mxu0 0.0
        %1035 = vmatpush2.msra.mxu0 0.0
        %1036 = vmatprep.subr.mxu0 0.0
        %1037 = vmatpush2.msra.mxu0 0.0
        %1038 = vmatprep.subr.mxu0 0.0
        %1039 = vmatpush2.msra.mxu0 0.0
        %1040 = vmatprep.subr.mxu0 0.0
        %1041 = vmatpush2.msra.mxu0 0.0
        %1042 = vmatprep.subr.mxu0 0.0
        %1043 = vmatpush2.msra.mxu0 0.0
        %1044 = vmatprep.subr.mxu0 0.0
        %1045 = vmatpush2.msra.mxu0 0.0
        %1046 = vmatprep.subr.mxu0 0.0
        %1047 = vmatpush2.msra.mxu0 0.0
        %1048 = vmatprep.subr.mxu0 0.0
        %1049 = vmatpush2.msra.mxu0 0.0
        %1050 = vmatprep.subr.mxu0 0.0
        %1051 = vmatpush2.msra.mxu0 0.0
        %1052 = vmatprep.subr.mxu0 0.0
        %1053 = vmatpush2.msra.mxu0 0.0
        %1054 = vmatprep.mubr.f32.mxu0 0.0
        %1055 = vmatmul.mubr.f32.gmra.mxu0 %v918
        %v1056 = vpop.f32.mrf.mxu0
        %v1057 = vadd.f32 0.0, %v1056
        %v1058 = vpop.f32.mrf.mxu0
        %1059 = vdwg.mxu0
        %s1060 = scalar_lea.vmem [#allocation2], %s916
        %v1061 = vld [vmem:[%s1060] sm:$0x3]
        %v1062 = vadd.f32 %v1061, %v987
        %v1063 = vxor.u32 %v1062, 2147483648
        %v1064 = vmul.f32 %v1063, 1.442695
        %v1065 = vpow.pop %v1064
        %v1066 = vadd.f32 %v1065, 1.0
        %v1067 = vrcp.pop %v1066
        %v1068 = vmul.f32 1.0, %v1067
        %s1069 = scalar_lea.vmem [#allocation3], %s916
        %v1070 = vld [vmem:[%s1069] sm:$0x3]
        %v1071 = vadd.f32 %v1070, %v1057
        %v1072 = vxor.u32 %v1071, 2147483648
        %v1073 = vmul.f32 %v1072, 1.442695
        %v1074 = vpow.pop %v1073
        %v1075 = vadd.f32 %v1074, 1.0
        %v1076 = vrcp.pop %v1075
        %v1077 = vmul.f32 1.0, %v1076
        %s1078 = scalar_lea.vmem [#allocation4], %s916
        %v1079 = vld [vmem:[%s1078] sm:$0x3]
        %1080 = vmatprep.subr.mxu0 0.0
        %1081 = vmatpush1.msra.mxu0 0.0
        %1082 = vmatprep.subr.mxu0 0.0
        %1083 = vmatpush1.msra.mxu0 0.0
        %1084 = vmatprep.subr.mxu0 0.0
        %1085 = vmatpush1.msra.mxu0 0.0
        %1086 = vmatprep.subr.mxu0 0.0
        %1087 = vmatpush1.msra.mxu0 0.0
        %1088 = vmatprep.subr.mxu0 0.0
        %1089 = vmatpush1.msra.mxu0 0.0
        %1090 = vmatprep.subr.mxu0 0.0
        %1091 = vmatpush1.msra.mxu0 0.0
        %1092 = vmatprep.subr.mxu0 0.0
        %1093 = vmatpush1.msra.mxu0 0.0
        %1094 = vmatprep.subr.mxu0 0.0
        %1095 = vmatpush1.msra.mxu0 0.0
        %1096 = vmatprep.subr.mxu0 0.0
        %1097 = vmatpush1.msra.mxu0 0.0
        %1098 = vmatprep.subr.mxu0 0.0
        %1099 = vmatpush1.msra.mxu0 0.0
        %1100 = vmatprep.subr.mxu0 0.0
        %1101 = vmatpush1.msra.mxu0 0.0
        %1102 = vmatprep.subr.mxu0 0.0
        %1103 = vmatpush1.msra.mxu0 0.0
        %1104 = vmatprep.subr.mxu0 0.0
        %1105 = vmatpush1.msra.mxu0 %v417
        %1106 = vmatprep.subr.mxu0 0.0
        %1107 = vmatpush1.msra.mxu0 %v416
        %1108 = vmatprep.subr.mxu0 0.0
        %1109 = vmatpush1.msra.mxu0 %v415
        %1110 = vmatprep.subr.mxu0 0.0
        %1111 = vmatpush1.msra.mxu0 %v414
        %1112 = vmatprep.subr.mxu0 0.0
        %1113 = vmatpush2.msra.mxu0 0.0
        %1114 = vmatprep.subr.mxu0 0.0
        %1115 = vmatpush2.msra.mxu0 0.0
        %1116 = vmatprep.subr.mxu0 0.0
        %1117 = vmatpush2.msra.mxu0 0.0
        %1118 = vmatprep.subr.mxu0 0.0
        %1119 = vmatpush2.msra.mxu0 0.0
        %1120 = vmatprep.subr.mxu0 0.0
        %1121 = vmatpush2.msra.mxu0 0.0
        %1122 = vmatprep.subr.mxu0 0.0
        %1123 = vmatpush2.msra.mxu0 0.0
        %1124 = vmatprep.subr.mxu0 0.0
        %1125 = vmatpush2.msra.mxu0 0.0
        %1126 = vmatprep.subr.mxu0 0.0
        %1127 = vmatpush2.msra.mxu0 0.0
        %1128 = vmatprep.subr.mxu0 0.0
        %1129 = vmatpush2.msra.mxu0 0.0
        %1130 = vmatprep.subr.mxu0 0.0
        %1131 = vmatpush2.msra.mxu0 0.0
        %1132 = vmatprep.subr.mxu0 0.0
        %1133 = vmatpush2.msra.mxu0 0.0
        %1134 = vmatprep.subr.mxu0 0.0
        %1135 = vmatpush2.msra.mxu0 0.0
        %1136 = vmatprep.subr.mxu0 0.0
        %1137 = vmatpush2.msra.mxu0 0.0
        %1138 = vmatprep.subr.mxu0 0.0
        %1139 = vmatpush2.msra.mxu0 0.0
        %1140 = vmatprep.subr.mxu0 0.0
        %1141 = vmatpush2.msra.mxu0 0.0
        %1142 = vmatprep.subr.mxu0 0.0
        %1143 = vmatpush2.msra.mxu0 0.0
        %1144 = vmatprep.mubr.f32.mxu0 0.0
        %1145 = vmatmul.mubr.f32.gmra.mxu0 %v918
        %v1146 = vpop.f32.mrf.mxu0
        %v1147 = vadd.f32 %v589, %v1146
        %v1148 = vpop.f32.mrf.mxu0
        %1149 = vdwg.mxu0
        %v1150 = vmul.f32 %v1068, %v1147
        %v1151 = vadd.f32 %v1079, %v1150
        %v1152 = vtanh.pop %v1151
        %v1153 = vsub.f32 1.0, %v1077
        %v1154 = vmul.f32 %v1153, %v1152
        %v1155 = vmul.f32 %v1077, %v912
        %v1156 = vadd.f32 %v1154, %v1155
        %s1157 = scalar_lea.vmem %s286, %s916
        %1158 = vst.msk [vmem:[%s1157] sm:$0x3] %vm669, %v1156
        %s1159 = scalar_select %p419, 3, 4
        %s1160 = smul.u32 %s1159, 2
        %v1162 = vsel %vm383, %v1156, 0
        %1164 = vmatprep.subr.mxu0 0.0
        %1165 = vmatpush1.msra.mxu0 0.0
        %1166 = vmatprep.subr.mxu0 0.0
        %1167 = vmatpush1.msra.mxu0 0.0
        %1168 = vmatprep.subr.mxu0 0.0
        %1169 = vmatpush1.msra.mxu0 0.0
        %1170 = vmatprep.subr.mxu0 0.0
        %1171 = vmatpush1.msra.mxu0 0.0
        %1172 = vmatprep.subr.mxu0 0.0
        %1173 = vmatpush1.msra.mxu0 0.0
        %1174 = vmatprep.subr.mxu0 0.0
        %1175 = vmatpush1.msra.mxu0 0.0
        %1176 = vmatprep.subr.mxu0 0.0
        %1177 = vmatpush1.msra.mxu0 0.0
        %1178 = vmatprep.subr.mxu0 0.0
        %1179 = vmatpush1.msra.mxu0 0.0
        %1180 = vmatprep.subr.mxu0 0.0
        %1181 = vmatpush1.msra.mxu0 0.0
        %1182 = vmatprep.subr.mxu0 0.0
        %1183 = vmatpush1.msra.mxu0 0.0
        %1184 = vmatprep.subr.mxu0 0.0
        %1185 = vmatpush1.msra.mxu0 0.0
        %1186 = vmatprep.subr.mxu0 0.0
        %1187 = vmatpush1.msra.mxu0 0.0
        %1188 = vmatprep.subr.mxu0 0.0
        %1189 = vmatpush1.msra.mxu0 %v407
        %1190 = vmatprep.subr.mxu0 0.0
        %1191 = vmatpush1.msra.mxu0 %v406
        %1192 = vmatprep.subr.mxu0 0.0
        %1193 = vmatpush1.msra.mxu0 %v405
        %1194 = vmatprep.subr.mxu0 0.0
        %1195 = vmatpush1.msra.mxu0 %v404
        %1196 = vmatprep.subr.mxu0 0.0
        %1197 = vmatpush2.msra.mxu0 0.0
        %1198 = vmatprep.subr.mxu0 0.0
        %1199 = vmatpush2.msra.mxu0 0.0
        %1200 = vmatprep.subr.mxu0 0.0
        %1201 = vmatpush2.msra.mxu0 0.0
        %1202 = vmatprep.subr.mxu0 0.0
        %1203 = vmatpush2.msra.mxu0 0.0
        %1204 = vmatprep.subr.mxu0 0.0
        %1205 = vmatpush2.msra.mxu0 0.0
        %1206 = vmatprep.subr.mxu0 0.0
        %1207 = vmatpush2.msra.mxu0 0.0
        %1208 = vmatprep.subr.mxu0 0.0
        %1209 = vmatpush2.msra.mxu0 0.0
        %1210 = vmatprep.subr.mxu0 0.0
        %1211 = vmatpush2.msra.mxu0 0.0
        %1212 = vmatprep.subr.mxu0 0.0
        %1213 = vmatpush2.msra.mxu0 0.0
        %1214 = vmatprep.subr.mxu0 0.0
        %1215 = vmatpush2.msra.mxu0 0.0
        %1216 = vmatprep.subr.mxu0 0.0
        %1217 = vmatpush2.msra.mxu0 0.0
        %1218 = vmatprep.subr.mxu0 0.0
        %1219 = vmatpush2.msra.mxu0 0.0
        %1220 = vmatprep.subr.mxu0 0.0
        %1221 = vmatpush2.msra.mxu0 0.0
        %1222 = vmatprep.subr.mxu0 0.0
        %1223 = vmatpush2.msra.mxu0 0.0
        %1224 = vmatprep.subr.mxu0 0.0
        %1225 = vmatpush2.msra.mxu0 0.0
        %1226 = vmatprep.subr.mxu0 0.0
        %1227 = vmatpush2.msra.mxu0 0.0
        %1228 = vmatprep.mubr.f32.mxu0 0.0
        %1229 = vmatmul.mubr.f32.gmra.mxu0 %v1162
        %v1230 = vpop.f32.mrf.mxu0
        %v1231 = vadd.f32 0.0, %v1230
        %v1232 = vpop.f32.mrf.mxu0
        %1233 = vdwg.mxu0
        %1234 = vmatprep.subr.mxu0 0.0
        %1235 = vmatpush1.msra.mxu0 0.0
        %1236 = vmatprep.subr.mxu0 0.0
        %1237 = vmatpush1.msra.mxu0 0.0
        %1238 = vmatprep.subr.mxu0 0.0
        %1239 = vmatpush1.msra.mxu0 0.0
        %1240 = vmatprep.subr.mxu0 0.0
        %1241 = vmatpush1.msra.mxu0 0.0
        %1242 = vmatprep.subr.mxu0 0.0
        %1243 = vmatpush1.msra.mxu0 0.0
        %1244 = vmatprep.subr.mxu0 0.0
        %1245 = vmatpush1.msra.mxu0 0.0
        %1246 = vmatprep.subr.mxu0 0.0
        %1247 = vmatpush1.msra.mxu0 0.0
        %1248 = vmatprep.subr.mxu0 0.0
        %1249 = vmatpush1.msra.mxu0 0.0
        %1250 = vmatprep.subr.mxu0 0.0
        %1251 = vmatpush1.msra.mxu0 0.0
        %1252 = vmatprep.subr.mxu0 0.0
        %1253 = vmatpush1.msra.mxu0 0.0
        %1254 = vmatprep.subr.mxu0 0.0
        %1255 = vmatpush1.msra.mxu0 0.0
        %1256 = vmatprep.subr.mxu0 0.0
        %1257 = vmatpush1.msra.mxu0 0.0
        %1258 = vmatprep.subr.mxu0 0.0
        %1259 = vmatpush1.msra.mxu0 %v412
        %1260 = vmatprep.subr.mxu0 0.0
        %1261 = vmatpush1.msra.mxu0 %v411
        %1262 = vmatprep.subr.mxu0 0.0
        %1263 = vmatpush1.msra.mxu0 %v410
        %1264 = vmatprep.subr.mxu0 0.0
        %1265 = vmatpush1.msra.mxu0 %v409
        %1266 = vmatprep.subr.mxu0 0.0
        %1267 = vmatpush2.msra.mxu0 0.0
        %1268 = vmatprep.subr.mxu0 0.0
        %1269 = vmatpush2.msra.mxu0 0.0
        %1270 = vmatprep.subr.mxu0 0.0
        %1271 = vmatpush2.msra.mxu0 0.0
        %1272 = vmatprep.subr.mxu0 0.0
        %1273 = vmatpush2.msra.mxu0 0.0
        %1274 = vmatprep.subr.mxu0 0.0
        %1275 = vmatpush2.msra.mxu0 0.0
        %1276 = vmatprep.subr.mxu0 0.0
        %1277 = vmatpush2.msra.mxu0 0.0
        %1278 = vmatprep.subr.mxu0 0.0
        %1279 = vmatpush2.msra.mxu0 0.0
        %1280 = vmatprep.subr.mxu0 0.0
        %1281 = vmatpush2.msra.mxu0 0.0
        %1282 = vmatprep.subr.mxu0 0.0
        %1283 = vmatpush2.msra.mxu0 0.0
        %1284 = vmatprep.subr.mxu0 0.0
        %1285 = vmatpush2.msra.mxu0 0.0
        %1286 = vmatprep.subr.mxu0 0.0
        %1287 = vmatpush2.msra.mxu0 0.0
        %1288 = vmatprep.subr.mxu0 0.0
        %1289 = vmatpush2.msra.mxu0 0.0
        %1290 = vmatprep.subr.mxu0 0.0
        %1291 = vmatpush2.msra.mxu0 0.0
        %1292 = vmatprep.subr.mxu0 0.0
        %1293 = vmatpush2.msra.mxu0 0.0
        %1294 = vmatprep.subr.mxu0 0.0
        %1295 = vmatpush2.msra.mxu0 0.0
        %1296 = vmatprep.subr.mxu0 0.0
        %1297 = vmatpush2.msra.mxu0 0.0
        %1298 = vmatprep.mubr.f32.mxu0 0.0
        %1299 = vmatmul.mubr.f32.gmra.mxu0 %v1162
        %v1300 = vpop.f32.mrf.mxu0
        %v1301 = vadd.f32 0.0, %v1300
        %v1302 = vpop.f32.mrf.mxu0
        %1303 = vdwg.mxu0
        %s1304 = scalar_lea.vmem [#allocation2], %s1160
        %v1305 = vld [vmem:[%s1304] sm:$0x3]
        %v1306 = vadd.f32 %v1305, %v1231
        %v1307 = vxor.u32 %v1306, 2147483648
        %v1308 = vmul.f32 %v1307, 1.442695
        %v1309 = vpow.pop %v1308
        %v1310 = vadd.f32 %v1309, 1.0
        %v1311 = vrcp.pop %v1310
        %v1312 = vmul.f32 1.0, %v1311
        %s1313 = scalar_lea.vmem [#allocation3], %s1160
        %v1314 = vld [vmem:[%s1313] sm:$0x3]
        %v1315 = vadd.f32 %v1314, %v1301
        %v1316 = vxor.u32 %v1315, 2147483648
        %v1317 = vmul.f32 %v1316, 1.442695
        %v1318 = vpow.pop %v1317
        %v1319 = vadd.f32 %v1318, 1.0
        %v1320 = vrcp.pop %v1319
        %v1321 = vmul.f32 1.0, %v1320
        %s1322 = scalar_lea.vmem [#allocation4], %s1160
        %v1323 = vld [vmem:[%s1322] sm:$0x3]
        %1324 = vmatprep.subr.mxu0 0.0
        %1325 = vmatpush1.msra.mxu0 0.0
        %1326 = vmatprep.subr.mxu0 0.0
        %1327 = vmatpush1.msra.mxu0 0.0
        %1328 = vmatprep.subr.mxu0 0.0
        %1329 = vmatpush1.msra.mxu0 0.0
        %1330 = vmatprep.subr.mxu0 0.0
        %1331 = vmatpush1.msra.mxu0 0.0
        %1332 = vmatprep.subr.mxu0 0.0
        %1333 = vmatpush1.msra.mxu0 0.0
        %1334 = vmatprep.subr.mxu0 0.0
        %1335 = vmatpush1.msra.mxu0 0.0
        %1336 = vmatprep.subr.mxu0 0.0
        %1337 = vmatpush1.msra.mxu0 0.0
        %1338 = vmatprep.subr.mxu0 0.0
        %1339 = vmatpush1.msra.mxu0 0.0
        %1340 = vmatprep.subr.mxu0 0.0
        %1341 = vmatpush1.msra.mxu0 0.0
        %1342 = vmatprep.subr.mxu0 0.0
        %1343 = vmatpush1.msra.mxu0 0.0
        %1344 = vmatprep.subr.mxu0 0.0
        %1345 = vmatpush1.msra.mxu0 0.0
        %1346 = vmatprep.subr.mxu0 0.0
        %1347 = vmatpush1.msra.mxu0 0.0
        %1348 = vmatprep.subr.mxu0 0.0
        %1349 = vmatpush1.msra.mxu0 %v417
        %1350 = vmatprep.subr.mxu0 0.0
        %1351 = vmatpush1.msra.mxu0 %v416
        %1352 = vmatprep.subr.mxu0 0.0
        %1353 = vmatpush1.msra.mxu0 %v415
        %1354 = vmatprep.subr.mxu0 0.0
        %1355 = vmatpush1.msra.mxu0 %v414
        %1356 = vmatprep.subr.mxu0 0.0
        %1357 = vmatpush2.msra.mxu0 0.0
        %1358 = vmatprep.subr.mxu0 0.0
        %1359 = vmatpush2.msra.mxu0 0.0
        %1360 = vmatprep.subr.mxu0 0.0
        %1361 = vmatpush2.msra.mxu0 0.0
        %1362 = vmatprep.subr.mxu0 0.0
        %1363 = vmatpush2.msra.mxu0 0.0
        %1364 = vmatprep.subr.mxu0 0.0
        %1365 = vmatpush2.msra.mxu0 0.0
        %1366 = vmatprep.subr.mxu0 0.0
        %1367 = vmatpush2.msra.mxu0 0.0
        %1368 = vmatprep.subr.mxu0 0.0
        %1369 = vmatpush2.msra.mxu0 0.0
        %1370 = vmatprep.subr.mxu0 0.0
        %1371 = vmatpush2.msra.mxu0 0.0
        %1372 = vmatprep.subr.mxu0 0.0
        %1373 = vmatpush2.msra.mxu0 0.0
        %1374 = vmatprep.subr.mxu0 0.0
        %1375 = vmatpush2.msra.mxu0 0.0
        %1376 = vmatprep.subr.mxu0 0.0
        %1377 = vmatpush2.msra.mxu0 0.0
        %1378 = vmatprep.subr.mxu0 0.0
        %1379 = vmatpush2.msra.mxu0 0.0
        %1380 = vmatprep.subr.mxu0 0.0
        %1381 = vmatpush2.msra.mxu0 0.0
        %1382 = vmatprep.subr.mxu0 0.0
        %1383 = vmatpush2.msra.mxu0 0.0
        %1384 = vmatprep.subr.mxu0 0.0
        %1385 = vmatpush2.msra.mxu0 0.0
        %1386 = vmatprep.subr.mxu0 0.0
        %1387 = vmatpush2.msra.mxu0 0.0
        %1388 = vmatprep.mubr.f32.mxu0 0.0
        %1389 = vmatmul.mubr.f32.gmra.mxu0 %v1162
        %v1390 = vpop.f32.mrf.mxu0
        %v1391 = vadd.f32 %v589, %v1390
        %v1392 = vpop.f32.mrf.mxu0
        %1393 = vdwg.mxu0
        %v1394 = vmul.f32 %v1312, %v1391
        %v1395 = vadd.f32 %v1323, %v1394
        %v1396 = vtanh.pop %v1395
        %v1397 = vsub.f32 1.0, %v1321
        %v1398 = vmul.f32 %v1397, %v1396
        %v1399 = vmul.f32 %v1321, %v1156
        %v1400 = vadd.f32 %v1398, %v1399
        %s1401 = scalar_lea.vmem %s286, %s1160
        %1402 = vst.msk [vmem:[%s1401] sm:$0x3] %vm669, %v1400
        %s1403 = scalar_select %p419, 4, 3
        %s1404 = smul.u32 %s1403, 2
        %v1406 = vsel %vm383, %v1400, 0
        %1408 = vmatprep.subr.mxu0 0.0
        %1409 = vmatpush1.msra.mxu0 0.0
        %1410 = vmatprep.subr.mxu0 0.0
        %1411 = vmatpush1.msra.mxu0 0.0
        %1412 = vmatprep.subr.mxu0 0.0
        %1413 = vmatpush1.msra.mxu0 0.0
        %1414 = vmatprep.subr.mxu0 0.0
        %1415 = vmatpush1.msra.mxu0 0.0
        %1416 = vmatprep.subr.mxu0 0.0
        %1417 = vmatpush1.msra.mxu0 0.0
        %1418 = vmatprep.subr.mxu0 0.0
        %1419 = vmatpush1.msra.mxu0 0.0
        %1420 = vmatprep.subr.mxu0 0.0
        %1421 = vmatpush1.msra.mxu0 0.0
        %1422 = vmatprep.subr.mxu0 0.0
        %1423 = vmatpush1.msra.mxu0 0.0
        %1424 = vmatprep.subr.mxu0 0.0
        %1425 = vmatpush1.msra.mxu0 0.0
        %1426 = vmatprep.subr.mxu0 0.0
        %1427 = vmatpush1.msra.mxu0 0.0
        %1428 = vmatprep.subr.mxu0 0.0
        %1429 = vmatpush1.msra.mxu0 0.0
        %1430 = vmatprep.subr.mxu0 0.0
        %1431 = vmatpush1.msra.mxu0 0.0
        %1432 = vmatprep.subr.mxu0 0.0
        %1433 = vmatpush1.msra.mxu0 %v407
        %1434 = vmatprep.subr.mxu0 0.0
        %1435 = vmatpush1.msra.mxu0 %v406
        %1436 = vmatprep.subr.mxu0 0.0
        %1437 = vmatpush1.msra.mxu0 %v405
        %1438 = vmatprep.subr.mxu0 0.0
        %1439 = vmatpush1.msra.mxu0 %v404
        %1440 = vmatprep.subr.mxu0 0.0
        %1441 = vmatpush2.msra.mxu0 0.0
        %1442 = vmatprep.subr.mxu0 0.0
        %1443 = vmatpush2.msra.mxu0 0.0
        %1444 = vmatprep.subr.mxu0 0.0
        %1445 = vmatpush2.msra.mxu0 0.0
        %1446 = vmatprep.subr.mxu0 0.0
        %1447 = vmatpush2.msra.mxu0 0.0
        %1448 = vmatprep.subr.mxu0 0.0
        %1449 = vmatpush2.msra.mxu0 0.0
        %1450 = vmatprep.subr.mxu0 0.0
        %1451 = vmatpush2.msra.mxu0 0.0
        %1452 = vmatprep.subr.mxu0 0.0
        %1453 = vmatpush2.msra.mxu0 0.0
        %1454 = vmatprep.subr.mxu0 0.0
        %1455 = vmatpush2.msra.mxu0 0.0
        %1456 = vmatprep.subr.mxu0 0.0
        %1457 = vmatpush2.msra.mxu0 0.0
        %1458 = vmatprep.subr.mxu0 0.0
        %1459 = vmatpush2.msra.mxu0 0.0
        %1460 = vmatprep.subr.mxu0 0.0
        %1461 = vmatpush2.msra.mxu0 0.0
        %1462 = vmatprep.subr.mxu0 0.0
        %1463 = vmatpush2.msra.mxu0 0.0
        %1464 = vmatprep.subr.mxu0 0.0
        %1465 = vmatpush2.msra.mxu0 0.0
        %1466 = vmatprep.subr.mxu0 0.0
        %1467 = vmatpush2.msra.mxu0 0.0
        %1468 = vmatprep.subr.mxu0 0.0
        %1469 = vmatpush2.msra.mxu0 0.0
        %1470 = vmatprep.subr.mxu0 0.0
        %1471 = vmatpush2.msra.mxu0 0.0
        %1472 = vmatprep.mubr.f32.mxu0 0.0
        %1473 = vmatmul.mubr.f32.gmra.mxu0 %v1406
        %v1474 = vpop.f32.mrf.mxu0
        %v1475 = vadd.f32 0.0, %v1474
        %v1476 = vpop.f32.mrf.mxu0
        %1477 = vdwg.mxu0
        %1478 = vmatprep.subr.mxu0 0.0
        %1479 = vmatpush1.msra.mxu0 0.0
        %1480 = vmatprep.subr.mxu0 0.0
        %1481 = vmatpush1.msra.mxu0 0.0
        %1482 = vmatprep.subr.mxu0 0.0
        %1483 = vmatpush1.msra.mxu0 0.0
        %1484 = vmatprep.subr.mxu0 0.0
        %1485 = vmatpush1.msra.mxu0 0.0
        %1486 = vmatprep.subr.mxu0 0.0
        %1487 = vmatpush1.msra.mxu0 0.0
        %1488 = vmatprep.subr.mxu0 0.0
        %1489 = vmatpush1.msra.mxu0 0.0
        %1490 = vmatprep.subr.mxu0 0.0
        %1491 = vmatpush1.msra.mxu0 0.0
        %1492 = vmatprep.subr.mxu0 0.0
        %1493 = vmatpush1.msra.mxu0 0.0
        %1494 = vmatprep.subr.mxu0 0.0
        %1495 = vmatpush1.msra.mxu0 0.0
        %1496 = vmatprep.subr.mxu0 0.0
        %1497 = vmatpush1.msra.mxu0 0.0
        %1498 = vmatprep.subr.mxu0 0.0
        %1499 = vmatpush1.msra.mxu0 0.0
        %1500 = vmatprep.subr.mxu0 0.0
        %1501 = vmatpush1.msra.mxu0 0.0
        %1502 = vmatprep.subr.mxu0 0.0
        %1503 = vmatpush1.msra.mxu0 %v412
        %1504 = vmatprep.subr.mxu0 0.0
        %1505 = vmatpush1.msra.mxu0 %v411
        %1506 = vmatprep.subr.mxu0 0.0
        %1507 = vmatpush1.msra.mxu0 %v410
        %1508 = vmatprep.subr.mxu0 0.0
        %1509 = vmatpush1.msra.mxu0 %v409
        %1510 = vmatprep.subr.mxu0 0.0
        %1511 = vmatpush2.msra.mxu0 0.0
        %1512 = vmatprep.subr.mxu0 0.0
        %1513 = vmatpush2.msra.mxu0 0.0
        %1514 = vmatprep.subr.mxu0 0.0
        %1515 = vmatpush2.msra.mxu0 0.0
        %1516 = vmatprep.subr.mxu0 0.0
        %1517 = vmatpush2.msra.mxu0 0.0
        %1518 = vmatprep.subr.mxu0 0.0
        %1519 = vmatpush2.msra.mxu0 0.0
        %1520 = vmatprep.subr.mxu0 0.0
        %1521 = vmatpush2.msra.mxu0 0.0
        %1522 = vmatprep.subr.mxu0 0.0
        %1523 = vmatpush2.msra.mxu0 0.0
        %1524 = vmatprep.subr.mxu0 0.0
        %1525 = vmatpush2.msra.mxu0 0.0
        %1526 = vmatprep.subr.mxu0 0.0
        %1527 = vmatpush2.msra.mxu0 0.0
        %1528 = vmatprep.subr.mxu0 0.0
        %1529 = vmatpush2.msra.mxu0 0.0
        %1530 = vmatprep.subr.mxu0 0.0
        %1531 = vmatpush2.msra.mxu0 0.0
        %1532 = vmatprep.subr.mxu0 0.0
        %1533 = vmatpush2.msra.mxu0 0.0
        %1534 = vmatprep.subr.mxu0 0.0
        %1535 = vmatpush2.msra.mxu0 0.0
        %1536 = vmatprep.subr.mxu0 0.0
        %1537 = vmatpush2.msra.mxu0 0.0
        %1538 = vmatprep.subr.mxu0 0.0
        %1539 = vmatpush2.msra.mxu0 0.0
        %1540 = vmatprep.subr.mxu0 0.0
        %1541 = vmatpush2.msra.mxu0 0.0
        %1542 = vmatprep.mubr.f32.mxu0 0.0
        %1543 = vmatmul.mubr.f32.gmra.mxu0 %v1406
        %v1544 = vpop.f32.mrf.mxu0
        %v1545 = vadd.f32 0.0, %v1544
        %v1546 = vpop.f32.mrf.mxu0
        %1547 = vdwg.mxu0
        %s1548 = scalar_lea.vmem [#allocation2], %s1404
        %v1549 = vld [vmem:[%s1548] sm:$0x3]
        %v1550 = vadd.f32 %v1549, %v1475
        %v1551 = vxor.u32 %v1550, 2147483648
        %v1552 = vmul.f32 %v1551, 1.442695
        %v1553 = vpow.pop %v1552
        %v1554 = vadd.f32 %v1553, 1.0
        %v1555 = vrcp.pop %v1554
        %v1556 = vmul.f32 1.0, %v1555
        %s1557 = scalar_lea.vmem [#allocation3], %s1404
        %v1558 = vld [vmem:[%s1557] sm:$0x3]
        %v1559 = vadd.f32 %v1558, %v1545
        %v1560 = vxor.u32 %v1559, 2147483648
        %v1561 = vmul.f32 %v1560, 1.442695
        %v1562 = vpow.pop %v1561
        %v1563 = vadd.f32 %v1562, 1.0
        %v1564 = vrcp.pop %v1563
        %v1565 = vmul.f32 1.0, %v1564
        %s1566 = scalar_lea.vmem [#allocation4], %s1404
        %v1567 = vld [vmem:[%s1566] sm:$0x3]
        %1568 = vmatprep.subr.mxu0 0.0
        %1569 = vmatpush1.msra.mxu0 0.0
        %1570 = vmatprep.subr.mxu0 0.0
        %1571 = vmatpush1.msra.mxu0 0.0
        %1572 = vmatprep.subr.mxu0 0.0
        %1573 = vmatpush1.msra.mxu0 0.0
        %1574 = vmatprep.subr.mxu0 0.0
        %1575 = vmatpush1.msra.mxu0 0.0
        %1576 = vmatprep.subr.mxu0 0.0
        %1577 = vmatpush1.msra.mxu0 0.0
        %1578 = vmatprep.subr.mxu0 0.0
        %1579 = vmatpush1.msra.mxu0 0.0
        %1580 = vmatprep.subr.mxu0 0.0
        %1581 = vmatpush1.msra.mxu0 0.0
        %1582 = vmatprep.subr.mxu0 0.0
        %1583 = vmatpush1.msra.mxu0 0.0
        %1584 = vmatprep.subr.mxu0 0.0
        %1585 = vmatpush1.msra.mxu0 0.0
        %1586 = vmatprep.subr.mxu0 0.0
        %1587 = vmatpush1.msra.mxu0 0.0
        %1588 = vmatprep.subr.mxu0 0.0
        %1589 = vmatpush1.msra.mxu0 0.0
        %1590 = vmatprep.subr.mxu0 0.0
        %1591 = vmatpush1.msra.mxu0 0.0
        %1592 = vmatprep.subr.mxu0 0.0
        %1593 = vmatpush1.msra.mxu0 %v417
        %1594 = vmatprep.subr.mxu0 0.0
        %1595 = vmatpush1.msra.mxu0 %v416
        %1596 = vmatprep.subr.mxu0 0.0
        %1597 = vmatpush1.msra.mxu0 %v415
        %1598 = vmatprep.subr.mxu0 0.0
        %1599 = vmatpush1.msra.mxu0 %v414
        %1600 = vmatprep.subr.mxu0 0.0
        %1601 = vmatpush2.msra.mxu0 0.0
        %1602 = vmatprep.subr.mxu0 0.0
        %1603 = vmatpush2.msra.mxu0 0.0
        %1604 = vmatprep.subr.mxu0 0.0
        %1605 = vmatpush2.msra.mxu0 0.0
        %1606 = vmatprep.subr.mxu0 0.0
        %1607 = vmatpush2.msra.mxu0 0.0
        %1608 = vmatprep.subr.mxu0 0.0
        %1609 = vmatpush2.msra.mxu0 0.0
        %1610 = vmatprep.subr.mxu0 0.0
        %1611 = vmatpush2.msra.mxu0 0.0
        %1612 = vmatprep.subr.mxu0 0.0
        %1613 = vmatpush2.msra.mxu0 0.0
        %1614 = vmatprep.subr.mxu0 0.0
        %1615 = vmatpush2.msra.mxu0 0.0
        %1616 = vmatprep.subr.mxu0 0.0
        %1617 = vmatpush2.msra.mxu0 0.0
        %1618 = vmatprep.subr.mxu0 0.0
        %1619 = vmatpush2.msra.mxu0 0.0
        %1620 = vmatprep.subr.mxu0 0.0
        %1621 = vmatpush2.msra.mxu0 0.0
        %1622 = vmatprep.subr.mxu0 0.0
        %1623 = vmatpush2.msra.mxu0 0.0
        %1624 = vmatprep.subr.mxu0 0.0
        %1625 = vmatpush2.msra.mxu0 0.0
        %1626 = vmatprep.subr.mxu0 0.0
        %1627 = vmatpush2.msra.mxu0 0.0
        %1628 = vmatprep.subr.mxu0 0.0
        %1629 = vmatpush2.msra.mxu0 0.0
        %1630 = vmatprep.subr.mxu0 0.0
        %1631 = vmatpush2.msra.mxu0 0.0
        %1632 = vmatprep.mubr.f32.mxu0 0.0
        %1633 = vmatmul.mubr.f32.gmra.mxu0 %v1406
        %v1634 = vpop.f32.mrf.mxu0
        %v1635 = vadd.f32 %v589, %v1634
        %v1636 = vpop.f32.mrf.mxu0
        %1637 = vdwg.mxu0
        %v1638 = vmul.f32 %v1556, %v1635
        %v1639 = vadd.f32 %v1567, %v1638
        %v1640 = vtanh.pop %v1639
        %v1641 = vsub.f32 1.0, %v1565
        %v1642 = vmul.f32 %v1641, %v1640
        %v1643 = vmul.f32 %v1565, %v1400
        %v1644 = vadd.f32 %v1642, %v1643
        %s1645 = scalar_lea.vmem %s286, %s1404
        %1646 = vst.msk [vmem:[%s1645] sm:$0x3] %vm669, %v1644
        %s1647 = scalar_select %p419, 5, 2
        %s1648 = smul.u32 %s1647, 2
        %v1650 = vsel %vm383, %v1644, 0
        %1652 = vmatprep.subr.mxu0 0.0
        %1653 = vmatpush1.msra.mxu0 0.0
        %1654 = vmatprep.subr.mxu0 0.0
        %1655 = vmatpush1.msra.mxu0 0.0
        %1656 = vmatprep.subr.mxu0 0.0
        %1657 = vmatpush1.msra.mxu0 0.0
        %1658 = vmatprep.subr.mxu0 0.0
        %1659 = vmatpush1.msra.mxu0 0.0
        %1660 = vmatprep.subr.mxu0 0.0
        %1661 = vmatpush1.msra.mxu0 0.0
        %1662 = vmatprep.subr.mxu0 0.0
        %1663 = vmatpush1.msra.mxu0 0.0
        %1664 = vmatprep.subr.mxu0 0.0
        %1665 = vmatpush1.msra.mxu0 0.0
        %1666 = vmatprep.subr.mxu0 0.0
        %1667 = vmatpush1.msra.mxu0 0.0
        %1668 = vmatprep.subr.mxu0 0.0
        %1669 = vmatpush1.msra.mxu0 0.0
        %1670 = vmatprep.subr.mxu0 0.0
        %1671 = vmatpush1.msra.mxu0 0.0
        %1672 = vmatprep.subr.mxu0 0.0
        %1673 = vmatpush1.msra.mxu0 0.0
        %1674 = vmatprep.subr.mxu0 0.0
        %1675 = vmatpush1.msra.mxu0 0.0
        %1676 = vmatprep.subr.mxu0 0.0
        %1677 = vmatpush1.msra.mxu0 %v407
        %1678 = vmatprep.subr.mxu0 0.0
        %1679 = vmatpush1.msra.mxu0 %v406
        %1680 = vmatprep.subr.mxu0 0.0
        %1681 = vmatpush1.msra.mxu0 %v405
        %1682 = vmatprep.subr.mxu0 0.0
        %1683 = vmatpush1.msra.mxu0 %v404
        %1684 = vmatprep.subr.mxu0 0.0
        %1685 = vmatpush2.msra.mxu0 0.0
        %1686 = vmatprep.subr.mxu0 0.0
        %1687 = vmatpush2.msra.mxu0 0.0
        %1688 = vmatprep.subr.mxu0 0.0
        %1689 = vmatpush2.msra.mxu0 0.0
        %1690 = vmatprep.subr.mxu0 0.0
        %1691 = vmatpush2.msra.mxu0 0.0
        %1692 = vmatprep.subr.mxu0 0.0
        %1693 = vmatpush2.msra.mxu0 0.0
        %1694 = vmatprep.subr.mxu0 0.0
        %1695 = vmatpush2.msra.mxu0 0.0
        %1696 = vmatprep.subr.mxu0 0.0
        %1697 = vmatpush2.msra.mxu0 0.0
        %1698 = vmatprep.subr.mxu0 0.0
        %1699 = vmatpush2.msra.mxu0 0.0
        %1700 = vmatprep.subr.mxu0 0.0
        %1701 = vmatpush2.msra.mxu0 0.0
        %1702 = vmatprep.subr.mxu0 0.0
        %1703 = vmatpush2.msra.mxu0 0.0
        %1704 = vmatprep.subr.mxu0 0.0
        %1705 = vmatpush2.msra.mxu0 0.0
        %1706 = vmatprep.subr.mxu0 0.0
        %1707 = vmatpush2.msra.mxu0 0.0
        %1708 = vmatprep.subr.mxu0 0.0
        %1709 = vmatpush2.msra.mxu0 0.0
        %1710 = vmatprep.subr.mxu0 0.0
        %1711 = vmatpush2.msra.mxu0 0.0
        %1712 = vmatprep.subr.mxu0 0.0
        %1713 = vmatpush2.msra.mxu0 0.0
        %1714 = vmatprep.subr.mxu0 0.0
        %1715 = vmatpush2.msra.mxu0 0.0
        %1716 = vmatprep.mubr.f32.mxu0 0.0
        %1717 = vmatmul.mubr.f32.gmra.mxu0 %v1650
        %v1718 = vpop.f32.mrf.mxu0
        %v1719 = vadd.f32 0.0, %v1718
        %v1720 = vpop.f32.mrf.mxu0
        %1721 = vdwg.mxu0
        %1722 = vmatprep.subr.mxu0 0.0
        %1723 = vmatpush1.msra.mxu0 0.0
        %1724 = vmatprep.subr.mxu0 0.0
        %1725 = vmatpush1.msra.mxu0 0.0
        %1726 = vmatprep.subr.mxu0 0.0
        %1727 = vmatpush1.msra.mxu0 0.0
        %1728 = vmatprep.subr.mxu0 0.0
        %1729 = vmatpush1.msra.mxu0 0.0
        %1730 = vmatprep.subr.mxu0 0.0
        %1731 = vmatpush1.msra.mxu0 0.0
        %1732 = vmatprep.subr.mxu0 0.0
        %1733 = vmatpush1.msra.mxu0 0.0
        %1734 = vmatprep.subr.mxu0 0.0
        %1735 = vmatpush1.msra.mxu0 0.0
        %1736 = vmatprep.subr.mxu0 0.0
        %1737 = vmatpush1.msra.mxu0 0.0
        %1738 = vmatprep.subr.mxu0 0.0
        %1739 = vmatpush1.msra.mxu0 0.0
        %1740 = vmatprep.subr.mxu0 0.0
        %1741 = vmatpush1.msra.mxu0 0.0
        %1742 = vmatprep.subr.mxu0 0.0
        %1743 = vmatpush1.msra.mxu0 0.0
        %1744 = vmatprep.subr.mxu0 0.0
        %1745 = vmatpush1.msra.mxu0 0.0
        %1746 = vmatprep.subr.mxu0 0.0
        %1747 = vmatpush1.msra.mxu0 %v412
        %1748 = vmatprep.subr.mxu0 0.0
        %1749 = vmatpush1.msra.mxu0 %v411
        %1750 = vmatprep.subr.mxu0 0.0
        %1751 = vmatpush1.msra.mxu0 %v410
        %1752 = vmatprep.subr.mxu0 0.0
        %1753 = vmatpush1.msra.mxu0 %v409
        %1754 = vmatprep.subr.mxu0 0.0
        %1755 = vmatpush2.msra.mxu0 0.0
        %1756 = vmatprep.subr.mxu0 0.0
        %1757 = vmatpush2.msra.mxu0 0.0
        %1758 = vmatprep.subr.mxu0 0.0
        %1759 = vmatpush2.msra.mxu0 0.0
        %1760 = vmatprep.subr.mxu0 0.0
        %1761 = vmatpush2.msra.mxu0 0.0
        %1762 = vmatprep.subr.mxu0 0.0
        %1763 = vmatpush2.msra.mxu0 0.0
        %1764 = vmatprep.subr.mxu0 0.0
        %1765 = vmatpush2.msra.mxu0 0.0
        %1766 = vmatprep.subr.mxu0 0.0
        %1767 = vmatpush2.msra.mxu0 0.0
        %1768 = vmatprep.subr.mxu0 0.0
        %1769 = vmatpush2.msra.mxu0 0.0
        %1770 = vmatprep.subr.mxu0 0.0
        %1771 = vmatpush2.msra.mxu0 0.0
        %1772 = vmatprep.subr.mxu0 0.0
        %1773 = vmatpush2.msra.mxu0 0.0
        %1774 = vmatprep.subr.mxu0 0.0
        %1775 = vmatpush2.msra.mxu0 0.0
        %1776 = vmatprep.subr.mxu0 0.0
        %1777 = vmatpush2.msra.mxu0 0.0
        %1778 = vmatprep.subr.mxu0 0.0
        %1779 = vmatpush2.msra.mxu0 0.0
        %1780 = vmatprep.subr.mxu0 0.0
        %1781 = vmatpush2.msra.mxu0 0.0
        %1782 = vmatprep.subr.mxu0 0.0
        %1783 = vmatpush2.msra.mxu0 0.0
        %1784 = vmatprep.subr.mxu0 0.0
        %1785 = vmatpush2.msra.mxu0 0.0
        %1786 = vmatprep.mubr.f32.mxu0 0.0
        %1787 = vmatmul.mubr.f32.gmra.mxu0 %v1650
        %v1788 = vpop.f32.mrf.mxu0
        %v1789 = vadd.f32 0.0, %v1788
        %v1790 = vpop.f32.mrf.mxu0
        %1791 = vdwg.mxu0
        %s1792 = scalar_lea.vmem [#allocation2], %s1648
        %v1793 = vld [vmem:[%s1792] sm:$0x3]
        %v1794 = vadd.f32 %v1793, %v1719
        %v1795 = vxor.u32 %v1794, 2147483648
        %v1796 = vmul.f32 %v1795, 1.442695
        %v1797 = vpow.pop %v1796
        %v1798 = vadd.f32 %v1797, 1.0
        %v1799 = vrcp.pop %v1798
        %v1800 = vmul.f32 1.0, %v1799
        %s1801 = scalar_lea.vmem [#allocation3], %s1648
        %v1802 = vld [vmem:[%s1801] sm:$0x3]
        %v1803 = vadd.f32 %v1802, %v1789
        %v1804 = vxor.u32 %v1803, 2147483648
        %v1805 = vmul.f32 %v1804, 1.442695
        %v1806 = vpow.pop %v1805
        %v1807 = vadd.f32 %v1806, 1.0
        %v1808 = vrcp.pop %v1807
        %v1809 = vmul.f32 1.0, %v1808
        %s1810 = scalar_lea.vmem [#allocation4], %s1648
        %v1811 = vld [vmem:[%s1810] sm:$0x3]
        %1812 = vmatprep.subr.mxu0 0.0
        %1813 = vmatpush1.msra.mxu0 0.0
        %1814 = vmatprep.subr.mxu0 0.0
        %1815 = vmatpush1.msra.mxu0 0.0
        %1816 = vmatprep.subr.mxu0 0.0
        %1817 = vmatpush1.msra.mxu0 0.0
        %1818 = vmatprep.subr.mxu0 0.0
        %1819 = vmatpush1.msra.mxu0 0.0
        %1820 = vmatprep.subr.mxu0 0.0
        %1821 = vmatpush1.msra.mxu0 0.0
        %1822 = vmatprep.subr.mxu0 0.0
        %1823 = vmatpush1.msra.mxu0 0.0
        %1824 = vmatprep.subr.mxu0 0.0
        %1825 = vmatpush1.msra.mxu0 0.0
        %1826 = vmatprep.subr.mxu0 0.0
        %1827 = vmatpush1.msra.mxu0 0.0
        %1828 = vmatprep.subr.mxu0 0.0
        %1829 = vmatpush1.msra.mxu0 0.0
        %1830 = vmatprep.subr.mxu0 0.0
        %1831 = vmatpush1.msra.mxu0 0.0
        %1832 = vmatprep.subr.mxu0 0.0
        %1833 = vmatpush1.msra.mxu0 0.0
        %1834 = vmatprep.subr.mxu0 0.0
        %1835 = vmatpush1.msra.mxu0 0.0
        %1836 = vmatprep.subr.mxu0 0.0
        %1837 = vmatpush1.msra.mxu0 %v417
        %1838 = vmatprep.subr.mxu0 0.0
        %1839 = vmatpush1.msra.mxu0 %v416
        %1840 = vmatprep.subr.mxu0 0.0
        %1841 = vmatpush1.msra.mxu0 %v415
        %1842 = vmatprep.subr.mxu0 0.0
        %1843 = vmatpush1.msra.mxu0 %v414
        %1844 = vmatprep.subr.mxu0 0.0
        %1845 = vmatpush2.msra.mxu0 0.0
        %1846 = vmatprep.subr.mxu0 0.0
        %1847 = vmatpush2.msra.mxu0 0.0
        %1848 = vmatprep.subr.mxu0 0.0
        %1849 = vmatpush2.msra.mxu0 0.0
        %1850 = vmatprep.subr.mxu0 0.0
        %1851 = vmatpush2.msra.mxu0 0.0
        %1852 = vmatprep.subr.mxu0 0.0
        %1853 = vmatpush2.msra.mxu0 0.0
        %1854 = vmatprep.subr.mxu0 0.0
        %1855 = vmatpush2.msra.mxu0 0.0
        %1856 = vmatprep.subr.mxu0 0.0
        %1857 = vmatpush2.msra.mxu0 0.0
        %1858 = vmatprep.subr.mxu0 0.0
        %1859 = vmatpush2.msra.mxu0 0.0
        %1860 = vmatprep.subr.mxu0 0.0
        %1861 = vmatpush2.msra.mxu0 0.0
        %1862 = vmatprep.subr.mxu0 0.0
        %1863 = vmatpush2.msra.mxu0 0.0
        %1864 = vmatprep.subr.mxu0 0.0
        %1865 = vmatpush2.msra.mxu0 0.0
        %1866 = vmatprep.subr.mxu0 0.0
        %1867 = vmatpush2.msra.mxu0 0.0
        %1868 = vmatprep.subr.mxu0 0.0
        %1869 = vmatpush2.msra.mxu0 0.0
        %1870 = vmatprep.subr.mxu0 0.0
        %1871 = vmatpush2.msra.mxu0 0.0
        %1872 = vmatprep.subr.mxu0 0.0
        %1873 = vmatpush2.msra.mxu0 0.0
        %1874 = vmatprep.subr.mxu0 0.0
        %1875 = vmatpush2.msra.mxu0 0.0
        %1876 = vmatprep.mubr.f32.mxu0 0.0
        %1877 = vmatmul.mubr.f32.gmra.mxu0 %v1650
        %v1878 = vpop.f32.mrf.mxu0
        %v1879 = vadd.f32 %v589, %v1878
        %v1880 = vpop.f32.mrf.mxu0
        %1881 = vdwg.mxu0
        %v1882 = vmul.f32 %v1800, %v1879
        %v1883 = vadd.f32 %v1811, %v1882
        %v1884 = vtanh.pop %v1883
        %v1885 = vsub.f32 1.0, %v1809
        %v1886 = vmul.f32 %v1885, %v1884
        %v1887 = vmul.f32 %v1809, %v1644
        %v1888 = vadd.f32 %v1886, %v1887
        %s1889 = scalar_lea.vmem %s286, %s1648
        %1890 = vst.msk [vmem:[%s1889] sm:$0x3] %vm669, %v1888
        %s1891 = scalar_select %p419, 6, 1
        %s1892 = smul.u32 %s1891, 2
        %v1894 = vsel %vm383, %v1888, 0
        %1896 = vmatprep.subr.mxu0 0.0
        %1897 = vmatpush1.msra.mxu0 0.0
        %1898 = vmatprep.subr.mxu0 0.0
        %1899 = vmatpush1.msra.mxu0 0.0
        %1900 = vmatprep.subr.mxu0 0.0
        %1901 = vmatpush1.msra.mxu0 0.0
        %1902 = vmatprep.subr.mxu0 0.0
        %1903 = vmatpush1.msra.mxu0 0.0
        %1904 = vmatprep.subr.mxu0 0.0
        %1905 = vmatpush1.msra.mxu0 0.0
        %1906 = vmatprep.subr.mxu0 0.0
        %1907 = vmatpush1.msra.mxu0 0.0
        %1908 = vmatprep.subr.mxu0 0.0
        %1909 = vmatpush1.msra.mxu0 0.0
        %1910 = vmatprep.subr.mxu0 0.0
        %1911 = vmatpush1.msra.mxu0 0.0
        %1912 = vmatprep.subr.mxu0 0.0
        %1913 = vmatpush1.msra.mxu0 0.0
        %1914 = vmatprep.subr.mxu0 0.0
        %1915 = vmatpush1.msra.mxu0 0.0
        %1916 = vmatprep.subr.mxu0 0.0
        %1917 = vmatpush1.msra.mxu0 0.0
        %1918 = vmatprep.subr.mxu0 0.0
        %1919 = vmatpush1.msra.mxu0 0.0
        %1920 = vmatprep.subr.mxu0 0.0
        %1921 = vmatpush1.msra.mxu0 %v407
        %1922 = vmatprep.subr.mxu0 0.0
        %1923 = vmatpush1.msra.mxu0 %v406
        %1924 = vmatprep.subr.mxu0 0.0
        %1925 = vmatpush1.msra.mxu0 %v405
        %1926 = vmatprep.subr.mxu0 0.0
        %1927 = vmatpush1.msra.mxu0 %v404
        %1928 = vmatprep.subr.mxu0 0.0
        %1929 = vmatpush2.msra.mxu0 0.0
        %1930 = vmatprep.subr.mxu0 0.0
        %1931 = vmatpush2.msra.mxu0 0.0
        %1932 = vmatprep.subr.mxu0 0.0
        %1933 = vmatpush2.msra.mxu0 0.0
        %1934 = vmatprep.subr.mxu0 0.0
        %1935 = vmatpush2.msra.mxu0 0.0
        %1936 = vmatprep.subr.mxu0 0.0
        %1937 = vmatpush2.msra.mxu0 0.0
        %1938 = vmatprep.subr.mxu0 0.0
        %1939 = vmatpush2.msra.mxu0 0.0
        %1940 = vmatprep.subr.mxu0 0.0
        %1941 = vmatpush2.msra.mxu0 0.0
        %1942 = vmatprep.subr.mxu0 0.0
        %1943 = vmatpush2.msra.mxu0 0.0
        %1944 = vmatprep.subr.mxu0 0.0
        %1945 = vmatpush2.msra.mxu0 0.0
        %1946 = vmatprep.subr.mxu0 0.0
        %1947 = vmatpush2.msra.mxu0 0.0
        %1948 = vmatprep.subr.mxu0 0.0
        %1949 = vmatpush2.msra.mxu0 0.0
        %1950 = vmatprep.subr.mxu0 0.0
        %1951 = vmatpush2.msra.mxu0 0.0
        %1952 = vmatprep.subr.mxu0 0.0
        %1953 = vmatpush2.msra.mxu0 0.0
        %1954 = vmatprep.subr.mxu0 0.0
        %1955 = vmatpush2.msra.mxu0 0.0
        %1956 = vmatprep.subr.mxu0 0.0
        %1957 = vmatpush2.msra.mxu0 0.0
        %1958 = vmatprep.subr.mxu0 0.0
        %1959 = vmatpush2.msra.mxu0 0.0
        %1960 = vmatprep.mubr.f32.mxu0 0.0
        %1961 = vmatmul.mubr.f32.gmra.mxu0 %v1894
        %v1962 = vpop.f32.mrf.mxu0
        %v1963 = vadd.f32 0.0, %v1962
        %v1964 = vpop.f32.mrf.mxu0
        %1965 = vdwg.mxu0
        %1966 = vmatprep.subr.mxu0 0.0
        %1967 = vmatpush1.msra.mxu0 0.0
        %1968 = vmatprep.subr.mxu0 0.0
        %1969 = vmatpush1.msra.mxu0 0.0
        %1970 = vmatprep.subr.mxu0 0.0
        %1971 = vmatpush1.msra.mxu0 0.0
        %1972 = vmatprep.subr.mxu0 0.0
        %1973 = vmatpush1.msra.mxu0 0.0
        %1974 = vmatprep.subr.mxu0 0.0
        %1975 = vmatpush1.msra.mxu0 0.0
        %1976 = vmatprep.subr.mxu0 0.0
        %1977 = vmatpush1.msra.mxu0 0.0
        %1978 = vmatprep.subr.mxu0 0.0
        %1979 = vmatpush1.msra.mxu0 0.0
        %1980 = vmatprep.subr.mxu0 0.0
        %1981 = vmatpush1.msra.mxu0 0.0
        %1982 = vmatprep.subr.mxu0 0.0
        %1983 = vmatpush1.msra.mxu0 0.0
        %1984 = vmatprep.subr.mxu0 0.0
        %1985 = vmatpush1.msra.mxu0 0.0
        %1986 = vmatprep.subr.mxu0 0.0
        %1987 = vmatpush1.msra.mxu0 0.0
        %1988 = vmatprep.subr.mxu0 0.0
        %1989 = vmatpush1.msra.mxu0 0.0
        %1990 = vmatprep.subr.mxu0 0.0
        %1991 = vmatpush1.msra.mxu0 %v412
        %1992 = vmatprep.subr.mxu0 0.0
        %1993 = vmatpush1.msra.mxu0 %v411
        %1994 = vmatprep.subr.mxu0 0.0
        %1995 = vmatpush1.msra.mxu0 %v410
        %1996 = vmatprep.subr.mxu0 0.0
        %1997 = vmatpush1.msra.mxu0 %v409
        %1998 = vmatprep.subr.mxu0 0.0
        %1999 = vmatpush2.msra.mxu0 0.0
        %2000 = vmatprep.subr.mxu0 0.0
        %2001 = vmatpush2.msra.mxu0 0.0
        %2002 = vmatprep.subr.mxu0 0.0
        %2003 = vmatpush2.msra.mxu0 0.0
        %2004 = vmatprep.subr.mxu0 0.0
        %2005 = vmatpush2.msra.mxu0 0.0
        %2006 = vmatprep.subr.mxu0 0.0
        %2007 = vmatpush2.msra.mxu0 0.0
        %2008 = vmatprep.subr.mxu0 0.0
        %2009 = vmatpush2.msra.mxu0 0.0
        %2010 = vmatprep.subr.mxu0 0.0
        %2011 = vmatpush2.msra.mxu0 0.0
        %2012 = vmatprep.subr.mxu0 0.0
        %2013 = vmatpush2.msra.mxu0 0.0
        %2014 = vmatprep.subr.mxu0 0.0
        %2015 = vmatpush2.msra.mxu0 0.0
        %2016 = vmatprep.subr.mxu0 0.0
        %2017 = vmatpush2.msra.mxu0 0.0
        %2018 = vmatprep.subr.mxu0 0.0
        %2019 = vmatpush2.msra.mxu0 0.0
        %2020 = vmatprep.subr.mxu0 0.0
        %2021 = vmatpush2.msra.mxu0 0.0
        %2022 = vmatprep.subr.mxu0 0.0
        %2023 = vmatpush2.msra.mxu0 0.0
        %2024 = vmatprep.subr.mxu0 0.0
        %2025 = vmatpush2.msra.mxu0 0.0
        %2026 = vmatprep.subr.mxu0 0.0
        %2027 = vmatpush2.msra.mxu0 0.0
        %2028 = vmatprep.subr.mxu0 0.0
        %2029 = vmatpush2.msra.mxu0 0.0
        %2030 = vmatprep.mubr.f32.mxu0 0.0
        %2031 = vmatmul.mubr.f32.gmra.mxu0 %v1894
        %v2032 = vpop.f32.mrf.mxu0
        %v2033 = vadd.f32 0.0, %v2032
        %v2034 = vpop.f32.mrf.mxu0
        %2035 = vdwg.mxu0
        %s2036 = scalar_lea.vmem [#allocation2], %s1892
        %v2037 = vld [vmem:[%s2036] sm:$0x3]
        %v2038 = vadd.f32 %v2037, %v1963
        %v2039 = vxor.u32 %v2038, 2147483648
        %v2040 = vmul.f32 %v2039, 1.442695
        %v2041 = vpow.pop %v2040
        %v2042 = vadd.f32 %v2041, 1.0
        %v2043 = vrcp.pop %v2042
        %v2044 = vmul.f32 1.0, %v2043
        %s2045 = scalar_lea.vmem [#allocation3], %s1892
        %v2046 = vld [vmem:[%s2045] sm:$0x3]
        %v2047 = vadd.f32 %v2046, %v2033
        %v2048 = vxor.u32 %v2047, 2147483648
        %v2049 = vmul.f32 %v2048, 1.442695
        %v2050 = vpow.pop %v2049
        %v2051 = vadd.f32 %v2050, 1.0
        %v2052 = vrcp.pop %v2051
        %v2053 = vmul.f32 1.0, %v2052
        %s2054 = scalar_lea.vmem [#allocation4], %s1892
        %v2055 = vld [vmem:[%s2054] sm:$0x3]
        %2056 = vmatprep.subr.mxu0 0.0
        %2057 = vmatpush1.msra.mxu0 0.0
        %2058 = vmatprep.subr.mxu0 0.0
        %2059 = vmatpush1.msra.mxu0 0.0
        %2060 = vmatprep.subr.mxu0 0.0
        %2061 = vmatpush1.msra.mxu0 0.0
        %2062 = vmatprep.subr.mxu0 0.0
        %2063 = vmatpush1.msra.mxu0 0.0
        %2064 = vmatprep.subr.mxu0 0.0
        %2065 = vmatpush1.msra.mxu0 0.0
        %2066 = vmatprep.subr.mxu0 0.0
        %2067 = vmatpush1.msra.mxu0 0.0
        %2068 = vmatprep.subr.mxu0 0.0
        %2069 = vmatpush1.msra.mxu0 0.0
        %2070 = vmatprep.subr.mxu0 0.0
        %2071 = vmatpush1.msra.mxu0 0.0
        %2072 = vmatprep.subr.mxu0 0.0
        %2073 = vmatpush1.msra.mxu0 0.0
        %2074 = vmatprep.subr.mxu0 0.0
        %2075 = vmatpush1.msra.mxu0 0.0
        %2076 = vmatprep.subr.mxu0 0.0
        %2077 = vmatpush1.msra.mxu0 0.0
        %2078 = vmatprep.subr.mxu0 0.0
        %2079 = vmatpush1.msra.mxu0 0.0
        %2080 = vmatprep.subr.mxu0 0.0
        %2081 = vmatpush1.msra.mxu0 %v417
        %2082 = vmatprep.subr.mxu0 0.0
        %2083 = vmatpush1.msra.mxu0 %v416
        %2084 = vmatprep.subr.mxu0 0.0
        %2085 = vmatpush1.msra.mxu0 %v415
        %2086 = vmatprep.subr.mxu0 0.0
        %2087 = vmatpush1.msra.mxu0 %v414
        %2088 = vmatprep.subr.mxu0 0.0
        %2089 = vmatpush2.msra.mxu0 0.0
        %2090 = vmatprep.subr.mxu0 0.0
        %2091 = vmatpush2.msra.mxu0 0.0
        %2092 = vmatprep.subr.mxu0 0.0
        %2093 = vmatpush2.msra.mxu0 0.0
        %2094 = vmatprep.subr.mxu0 0.0
        %2095 = vmatpush2.msra.mxu0 0.0
        %2096 = vmatprep.subr.mxu0 0.0
        %2097 = vmatpush2.msra.mxu0 0.0
        %2098 = vmatprep.subr.mxu0 0.0
        %2099 = vmatpush2.msra.mxu0 0.0
        %2100 = vmatprep.subr.mxu0 0.0
        %2101 = vmatpush2.msra.mxu0 0.0
        %2102 = vmatprep.subr.mxu0 0.0
        %2103 = vmatpush2.msra.mxu0 0.0
        %2104 = vmatprep.subr.mxu0 0.0
        %2105 = vmatpush2.msra.mxu0 0.0
        %2106 = vmatprep.subr.mxu0 0.0
        %2107 = vmatpush2.msra.mxu0 0.0
        %2108 = vmatprep.subr.mxu0 0.0
        %2109 = vmatpush2.msra.mxu0 0.0
        %2110 = vmatprep.subr.mxu0 0.0
        %2111 = vmatpush2.msra.mxu0 0.0
        %2112 = vmatprep.subr.mxu0 0.0
        %2113 = vmatpush2.msra.mxu0 0.0
        %2114 = vmatprep.subr.mxu0 0.0
        %2115 = vmatpush2.msra.mxu0 0.0
        %2116 = vmatprep.subr.mxu0 0.0
        %2117 = vmatpush2.msra.mxu0 0.0
        %2118 = vmatprep.subr.mxu0 0.0
        %2119 = vmatpush2.msra.mxu0 0.0
        %2120 = vmatprep.mubr.f32.mxu0 0.0
        %2121 = vmatmul.mubr.f32.gmra.mxu0 %v1894
        %v2122 = vpop.f32.mrf.mxu0
        %v2123 = vadd.f32 %v589, %v2122
        %v2124 = vpop.f32.mrf.mxu0
        %2125 = vdwg.mxu0
        %v2126 = vmul.f32 %v2044, %v2123
        %v2127 = vadd.f32 %v2055, %v2126
        %v2128 = vtanh.pop %v2127
        %v2129 = vsub.f32 1.0, %v2053
        %v2130 = vmul.f32 %v2129, %v2128
        %v2131 = vmul.f32 %v2053, %v1888
        %v2132 = vadd.f32 %v2130, %v2131
        %s2133 = scalar_lea.vmem %s286, %s1892
        %2134 = vst.msk [vmem:[%s2133] sm:$0x3] %vm669, %v2132
        %s2135 = scalar_select %p419, 7, 0
        %s2136 = smul.u32 %s2135, 2
        %v2138 = vsel %vm383, %v2132, 0
        %2140 = vmatprep.subr.mxu0 0.0
        %2141 = vmatpush1.msra.mxu0 0.0
        %2142 = vmatprep.subr.mxu0 0.0
        %2143 = vmatpush1.msra.mxu0 0.0
        %2144 = vmatprep.subr.mxu0 0.0
        %2145 = vmatpush1.msra.mxu0 0.0
        %2146 = vmatprep.subr.mxu0 0.0
        %2147 = vmatpush1.msra.mxu0 0.0
        %2148 = vmatprep.subr.mxu0 0.0
        %2149 = vmatpush1.msra.mxu0 0.0
        %2150 = vmatprep.subr.mxu0 0.0
        %2151 = vmatpush1.msra.mxu0 0.0
        %2152 = vmatprep.subr.mxu0 0.0
        %2153 = vmatpush1.msra.mxu0 0.0
        %2154 = vmatprep.subr.mxu0 0.0
        %2155 = vmatpush1.msra.mxu0 0.0
        %2156 = vmatprep.subr.mxu0 0.0
        %2157 = vmatpush1.msra.mxu0 0.0
        %2158 = vmatprep.subr.mxu0 0.0
        %2159 = vmatpush1.msra.mxu0 0.0
        %2160 = vmatprep.subr.mxu0 0.0
        %2161 = vmatpush1.msra.mxu0 0.0
        %2162 = vmatprep.subr.mxu0 0.0
        %2163 = vmatpush1.msra.mxu0 0.0
        %2164 = vmatprep.subr.mxu0 0.0
        %2165 = vmatpush1.msra.mxu0 %v407
        %2166 = vmatprep.subr.mxu0 0.0
        %2167 = vmatpush1.msra.mxu0 %v406
        %2168 = vmatprep.subr.mxu0 0.0
        %2169 = vmatpush1.msra.mxu0 %v405
        %2170 = vmatprep.subr.mxu0 0.0
        %2171 = vmatpush1.msra.mxu0 %v404
        %2172 = vmatprep.subr.mxu0 0.0
        %2173 = vmatpush2.msra.mxu0 0.0
        %2174 = vmatprep.subr.mxu0 0.0
        %2175 = vmatpush2.msra.mxu0 0.0
        %2176 = vmatprep.subr.mxu0 0.0
        %2177 = vmatpush2.msra.mxu0 0.0
        %2178 = vmatprep.subr.mxu0 0.0
        %2179 = vmatpush2.msra.mxu0 0.0
        %2180 = vmatprep.subr.mxu0 0.0
        %2181 = vmatpush2.msra.mxu0 0.0
        %2182 = vmatprep.subr.mxu0 0.0
        %2183 = vmatpush2.msra.mxu0 0.0
        %2184 = vmatprep.subr.mxu0 0.0
        %2185 = vmatpush2.msra.mxu0 0.0
        %2186 = vmatprep.subr.mxu0 0.0
        %2187 = vmatpush2.msra.mxu0 0.0
        %2188 = vmatprep.subr.mxu0 0.0
        %2189 = vmatpush2.msra.mxu0 0.0
        %2190 = vmatprep.subr.mxu0 0.0
        %2191 = vmatpush2.msra.mxu0 0.0
        %2192 = vmatprep.subr.mxu0 0.0
        %2193 = vmatpush2.msra.mxu0 0.0
        %2194 = vmatprep.subr.mxu0 0.0
        %2195 = vmatpush2.msra.mxu0 0.0
        %2196 = vmatprep.subr.mxu0 0.0
        %2197 = vmatpush2.msra.mxu0 0.0
        %2198 = vmatprep.subr.mxu0 0.0
        %2199 = vmatpush2.msra.mxu0 0.0
        %2200 = vmatprep.subr.mxu0 0.0
        %2201 = vmatpush2.msra.mxu0 0.0
        %2202 = vmatprep.subr.mxu0 0.0
        %2203 = vmatpush2.msra.mxu0 0.0
        %2204 = vmatprep.mubr.f32.mxu0 0.0
        %2205 = vmatmul.mubr.f32.gmra.mxu0 %v2138
        %v2206 = vpop.f32.mrf.mxu0
        %v2207 = vadd.f32 0.0, %v2206
        %v2208 = vpop.f32.mrf.mxu0
        %2209 = vdwg.mxu0
        %2210 = vmatprep.subr.mxu0 0.0
        %2211 = vmatpush1.msra.mxu0 0.0
        %2212 = vmatprep.subr.mxu0 0.0
        %2213 = vmatpush1.msra.mxu0 0.0
        %2214 = vmatprep.subr.mxu0 0.0
        %2215 = vmatpush1.msra.mxu0 0.0
        %2216 = vmatprep.subr.mxu0 0.0
        %2217 = vmatpush1.msra.mxu0 0.0
        %2218 = vmatprep.subr.mxu0 0.0
        %2219 = vmatpush1.msra.mxu0 0.0
        %2220 = vmatprep.subr.mxu0 0.0
        %2221 = vmatpush1.msra.mxu0 0.0
        %2222 = vmatprep.subr.mxu0 0.0
        %2223 = vmatpush1.msra.mxu0 0.0
        %2224 = vmatprep.subr.mxu0 0.0
        %2225 = vmatpush1.msra.mxu0 0.0
        %2226 = vmatprep.subr.mxu0 0.0
        %2227 = vmatpush1.msra.mxu0 0.0
        %2228 = vmatprep.subr.mxu0 0.0
        %2229 = vmatpush1.msra.mxu0 0.0
        %2230 = vmatprep.subr.mxu0 0.0
        %2231 = vmatpush1.msra.mxu0 0.0
        %2232 = vmatprep.subr.mxu0 0.0
        %2233 = vmatpush1.msra.mxu0 0.0
        %2234 = vmatprep.subr.mxu0 0.0
        %2235 = vmatpush1.msra.mxu0 %v412
        %2236 = vmatprep.subr.mxu0 0.0
        %2237 = vmatpush1.msra.mxu0 %v411
        %2238 = vmatprep.subr.mxu0 0.0
        %2239 = vmatpush1.msra.mxu0 %v410
        %2240 = vmatprep.subr.mxu0 0.0
        %2241 = vmatpush1.msra.mxu0 %v409
        %2242 = vmatprep.subr.mxu0 0.0
        %2243 = vmatpush2.msra.mxu0 0.0
        %2244 = vmatprep.subr.mxu0 0.0
        %2245 = vmatpush2.msra.mxu0 0.0
        %2246 = vmatprep.subr.mxu0 0.0
        %2247 = vmatpush2.msra.mxu0 0.0
        %2248 = vmatprep.subr.mxu0 0.0
        %2249 = vmatpush2.msra.mxu0 0.0
        %2250 = vmatprep.subr.mxu0 0.0
        %2251 = vmatpush2.msra.mxu0 0.0
        %2252 = vmatprep.subr.mxu0 0.0
        %2253 = vmatpush2.msra.mxu0 0.0
        %2254 = vmatprep.subr.mxu0 0.0
        %2255 = vmatpush2.msra.mxu0 0.0
        %2256 = vmatprep.subr.mxu0 0.0
        %2257 = vmatpush2.msra.mxu0 0.0
        %2258 = vmatprep.subr.mxu0 0.0
        %2259 = vmatpush2.msra.mxu0 0.0
        %2260 = vmatprep.subr.mxu0 0.0
        %2261 = vmatpush2.msra.mxu0 0.0
        %2262 = vmatprep.subr.mxu0 0.0
        %2263 = vmatpush2.msra.mxu0 0.0
        %2264 = vmatprep.subr.mxu0 0.0
        %2265 = vmatpush2.msra.mxu0 0.0
        %2266 = vmatprep.subr.mxu0 0.0
        %2267 = vmatpush2.msra.mxu0 0.0
        %2268 = vmatprep.subr.mxu0 0.0
        %2269 = vmatpush2.msra.mxu0 0.0
        %2270 = vmatprep.subr.mxu0 0.0
        %2271 = vmatpush2.msra.mxu0 0.0
        %2272 = vmatprep.subr.mxu0 0.0
        %2273 = vmatpush2.msra.mxu0 0.0
        %2274 = vmatprep.mubr.f32.mxu0 0.0
        %2275 = vmatmul.mubr.f32.gmra.mxu0 %v2138
        %v2276 = vpop.f32.mrf.mxu0
        %v2277 = vadd.f32 0.0, %v2276
        %v2278 = vpop.f32.mrf.mxu0
        %2279 = vdwg.mxu0
        %s2280 = scalar_lea.vmem [#allocation2], %s2136
        %v2281 = vld [vmem:[%s2280] sm:$0x3]
        %v2282 = vadd.f32 %v2281, %v2207
        %v2283 = vxor.u32 %v2282, 2147483648
        %v2284 = vmul.f32 %v2283, 1.442695
        %v2285 = vpow.pop %v2284
        %v2286 = vadd.f32 %v2285, 1.0
        %v2287 = vrcp.pop %v2286
        %v2288 = vmul.f32 1.0, %v2287
        %s2289 = scalar_lea.vmem [#allocation3], %s2136
        %v2290 = vld [vmem:[%s2289] sm:$0x3]
        %v2291 = vadd.f32 %v2290, %v2277
        %v2292 = vxor.u32 %v2291, 2147483648
        %v2293 = vmul.f32 %v2292, 1.442695
        %v2294 = vpow.pop %v2293
        %v2295 = vadd.f32 %v2294, 1.0
        %v2296 = vrcp.pop %v2295
        %v2297 = vmul.f32 1.0, %v2296
        %s2298 = scalar_lea.vmem [#allocation4], %s2136
        %v2299 = vld [vmem:[%s2298] sm:$0x3]
        %2300 = vmatprep.subr.mxu0 0.0
        %2301 = vmatpush1.msra.mxu0 0.0
        %2302 = vmatprep.subr.mxu0 0.0
        %2303 = vmatpush1.msra.mxu0 0.0
        %2304 = vmatprep.subr.mxu0 0.0
        %2305 = vmatpush1.msra.mxu0 0.0
        %2306 = vmatprep.subr.mxu0 0.0
        %2307 = vmatpush1.msra.mxu0 0.0
        %2308 = vmatprep.subr.mxu0 0.0
        %2309 = vmatpush1.msra.mxu0 0.0
        %2310 = vmatprep.subr.mxu0 0.0
        %2311 = vmatpush1.msra.mxu0 0.0
        %2312 = vmatprep.subr.mxu0 0.0
        %2313 = vmatpush1.msra.mxu0 0.0
        %2314 = vmatprep.subr.mxu0 0.0
        %2315 = vmatpush1.msra.mxu0 0.0
        %2316 = vmatprep.subr.mxu0 0.0
        %2317 = vmatpush1.msra.mxu0 0.0
        %2318 = vmatprep.subr.mxu0 0.0
        %2319 = vmatpush1.msra.mxu0 0.0
        %2320 = vmatprep.subr.mxu0 0.0
        %2321 = vmatpush1.msra.mxu0 0.0
        %2322 = vmatprep.subr.mxu0 0.0
        %2323 = vmatpush1.msra.mxu0 0.0
        %2324 = vmatprep.subr.mxu0 0.0
        %2325 = vmatpush1.msra.mxu0 %v417
        %2326 = vmatprep.subr.mxu0 0.0
        %2327 = vmatpush1.msra.mxu0 %v416
        %2328 = vmatprep.subr.mxu0 0.0
        %2329 = vmatpush1.msra.mxu0 %v415
        %2330 = vmatprep.subr.mxu0 0.0
        %2331 = vmatpush1.msra.mxu0 %v414
        %2332 = vmatprep.subr.mxu0 0.0
        %2333 = vmatpush2.msra.mxu0 0.0
        %2334 = vmatprep.subr.mxu0 0.0
        %2335 = vmatpush2.msra.mxu0 0.0
        %2336 = vmatprep.subr.mxu0 0.0
        %2337 = vmatpush2.msra.mxu0 0.0
        %2338 = vmatprep.subr.mxu0 0.0
        %2339 = vmatpush2.msra.mxu0 0.0
        %2340 = vmatprep.subr.mxu0 0.0
        %2341 = vmatpush2.msra.mxu0 0.0
        %2342 = vmatprep.subr.mxu0 0.0
        %2343 = vmatpush2.msra.mxu0 0.0
        %2344 = vmatprep.subr.mxu0 0.0
        %2345 = vmatpush2.msra.mxu0 0.0
        %2346 = vmatprep.subr.mxu0 0.0
        %2347 = vmatpush2.msra.mxu0 0.0
        %2348 = vmatprep.subr.mxu0 0.0
        %2349 = vmatpush2.msra.mxu0 0.0
        %2350 = vmatprep.subr.mxu0 0.0
        %2351 = vmatpush2.msra.mxu0 0.0
        %2352 = vmatprep.subr.mxu0 0.0
        %2353 = vmatpush2.msra.mxu0 0.0
        %2354 = vmatprep.subr.mxu0 0.0
        %2355 = vmatpush2.msra.mxu0 0.0
        %2356 = vmatprep.subr.mxu0 0.0
        %2357 = vmatpush2.msra.mxu0 0.0
        %2358 = vmatprep.subr.mxu0 0.0
        %2359 = vmatpush2.msra.mxu0 0.0
        %2360 = vmatprep.subr.mxu0 0.0
        %2361 = vmatpush2.msra.mxu0 0.0
        %2362 = vmatprep.subr.mxu0 0.0
        %2363 = vmatpush2.msra.mxu0 0.0
        %2364 = vmatprep.mubr.f32.mxu0 0.0
        %2365 = vmatmul.mubr.f32.gmra.mxu0 %v2138
        %v2366 = vpop.f32.mrf.mxu0
        %v2367 = vadd.f32 %v589, %v2366
        %v2368 = vpop.f32.mrf.mxu0
        %2369 = vdwg.mxu0
        %v2370 = vmul.f32 %v2288, %v2367
        %v2371 = vadd.f32 %v2299, %v2370
        %v2372 = vtanh.pop %v2371
        %v2373 = vsub.f32 1.0, %v2297
        %v2374 = vmul.f32 %v2373, %v2372
        %v2375 = vmul.f32 %v2297, %v2132
        %v2376 = vadd.f32 %v2374, %v2375
        %s2377 = scalar_lea.vmem %s286, %s2136
        %2378 = vst.msk [vmem:[%s2377] sm:$0x3] %vm669, %v2376
        %p2379 = scmp.lt.s32.totalorder %s19, 1
        %s2380 = scalar_select %p2379, %s19, 1
        %s2381 = smul.addr %s2380, 2
        %s2382 = smul.addr %s2381, 8
        %s2383 = scalar_lea.vmem %s5, %s2382
        // Predicated region
        $region45: #{cpg_regression_forward.3} parent=39 // pred_check
          %p2384 = pneg %p162
        $region46: #{cpg_regression_forward.3} parent=39 // pred_check_branch
          %2386 = sbr.rel (%p2384) target = $region48
        $region47: #{cpg_regression_forward.3} parent=39 // pred_region
          _
        $region48: #{cpg_regression_forward.3} parent=39 // pred_fallthru
          _
      $region40: #{cpg_regression_forward.3} parent=5 // pred_fallthru
        _
      %p2387 = scmp.le.s32.totalorder 2, %s14
      // Predicated region
      $region49: #{cpg_regression_forward.3} parent=5 // pred_check
        %p2388 = pneg %p2387
      $region50: #{cpg_regression_forward.3} parent=5 // pred_check_branch
        %2390 = sbr.rel (%p2388) target = $region52
      $region51: #{cpg_regression_forward.3} parent=5 // pred_region
        %s2391 = ssub.s32 %s14, 2
        // Predicated region
        $region53: #{cpg_regression_forward.3} parent=51 // pred_check
          %p2392 = pneg %p168
        $region54: #{cpg_regression_forward.3} parent=51 // pred_check_branch
          %2394 = sbr.rel (%p2392) target = $region56
        $region55: #{cpg_regression_forward.3} parent=51 // pred_region
          %p2395 = scmp.lt.s32.totalorder %s20, 1
          %s2396 = scalar_select %p2395, %s20, 1
          %s2397 = smul.addr %s2396, 2
          %s2398 = smul.addr %s2397, 8
          %s2399 = scalar_lea.vmem %s5, %s2398
        $region56: #{cpg_regression_forward.3} parent=51 // pred_fallthru
          _
      $region52: #{cpg_regression_forward.3} parent=5 // pred_fallthru
        _
    $region6: #{cpg_regression_forward.3} parent=1 // loop_footer
      %s18 = sadd.s32 1, %s14
    $region7: #{cpg_regression_forward.3} parent=1 // loop_footer_branch
      %13 = sbr.rel target = $region3
    $region8: #{cpg_regression_forward.3} parent=1 // loop_exit
      _
    %2400 = vsyncpa [#allocation6], 1
    %s2401 = scalar_lea.sflag [#allocation6], 1
    %2402 = vsyncpa %s2401, 1

// kernel: cpg_regression_forward.4
$region0: #{cpg_regression_forward.4}
  #allocation0 [shape = 'u32[]', space=smem, size = 0x4, offset = 0x4, fixed_abs, tag = 'smem constant byte address 0x4 - core index']
  #allocation1 [shape = 'u32[144,128]{1,0:T(1,128)}', space=vmem, size = 0x12000, scoped, tag = 'internal scratch']
  #allocation2 [shape = 'f32[16,32]{1,0:T(8,128)}', space=vmem, size = 0x2000, scoped, tag = 'scratch operand']
  #allocation3 [shape = 'f32[16,32]{1,0:T(8,128)}', space=vmem, size = 0x2000, scoped, tag = 'scratch operand']
  #allocation4 [shape = 'f32[16,32]{1,0:T(8,128)}', space=vmem, size = 0x2000, scoped, tag = 'scratch operand']
  %s0 = inlined_call_operand.vmem [shape: f32[2,16,32], index: 0, kind: input, shape index: {}]
  %s1 = inlined_call_operand.hbm [shape: f32[2,2,32,96], index: 1, kind: input, shape index: {}]
  %s2 = inlined_call_operand.vmem [shape: f32[2,3,32,32], index: 2, kind: input, shape index: {}]
  %s3 = inlined_call_operand.vmem [shape: f32[2,1,96], index: 3, kind: input, shape index: {}]
  %s4 = inlined_call_operand.vmem [shape: f32[2,1,32], index: 4, kind: input, shape index: {}]
  %s5 = inlined_call_operand.vmem [shape: f32[2,16,32], index: 5, kind: output, shape index: {}]
  %s6 = sld [smem:[#allocation0]]
  $region57: #{cpg_regression_forward.4} parent=0
    _
  %s8 = ssub.s32 1, %s6
  %s9 = scalar_select 0, %s8, %s6
  $region1: #{cpg_regression_forward.4} parent=0
    #allocation5 [shape = 'u8[65536]{0}', space=vmem, size = 0x10000, scoped, tag = 'input window, operand 1']
    #allocation6 [shape = 's32[2]{0}', space=sflag, size = 0x8, scoped, tag = 'scoped memory for cpg_regression_forward.4']
    %10 = vsyncpa [#allocation6], 0
    %s11 = scalar_lea.sflag [#allocation6], 1
    %12 = vsyncpa %s11, 0
    loop: start=0, step=1, limit=4
    $region2: #{cpg_regression_forward.4} parent=1 // loop_pre_header
      _
    $region3: #{cpg_regression_forward.4} parent=1 // loop_header
      %s14 = sphi 0, %s18
      %p15 = scmp.ge.s32.totalorder %s14, 4
      %s22 = sphi 0, %s22
      %s24 = sphi 0, %s22
      %s25 = sphi 0, %s24
      %s39 = sphi 0, %s25
      %s45 = sphi 0, %s47
      %s48 = sphi 0, %s45
      %s49 = sphi 0, %s48
      %s65 = sphi 0, %s49
      %s71 = sphi 0, %s73
      %s74 = sphi 0, %s71
      %s75 = sphi 0, %s74
      %s91 = sphi 0, %s75
      %s97 = sphi 0, %s99
      %s100 = sphi 0, %s97
      %s101 = sphi 0, %s100
      %s117 = sphi 0, %s101
      %s123 = sphi 0, %s125
      %s126 = sphi 0, %s123
      %s127 = sphi 0, %s126
      %s143 = sphi 0, %s127
      %s149 = sphi 0, %s151
      %s152 = sphi 0, %s149
      %s153 = sphi 0, %s152
      %s169 = sphi 0, %s153
    $region4: #{cpg_regression_forward.4} parent=1 // loop_header_branch
      %17 = sbr.rel (%p15) target = $region8
    $region5: #{cpg_regression_forward.4} parent=1 // loop_body
      %s19 = ssub.s32 %s14, 1
      %s20 = ssub.s32 %s14, 2
      %s21 = sadd.s32 %s14, 1
      %s23 = sadd.s32 %s22, 1
      %p26 = scmp.eq.s32.totalorder %s14, 1
      %p27 = scmp.ne.s32.totalorder %s22, %s24
      %p28 = scmp.eq.s32.totalorder %s14, 0
      %p29 = por %p27, %p28
      %p30 = scmp.ne.s32.totalorder %s22, %s24
      %p31 = scmp.eq.s32.totalorder %s19, 1
      %p32 = por %p30, %p31
      %p33 = scmp.ne.s32.totalorder %s24, %s25
      %p34 = scmp.eq.s32.totalorder %s19, 0
      %p35 = por %p33, %p34
      %p36 = scmp.ne.s32.totalorder %s24, %s25
      %p37 = scmp.eq.s32.totalorder %s20, 1
      %p38 = por %p36, %p37
      %p40 = scmp.ne.s32.totalorder %s25, %s39
      %p41 = scmp.eq.s32.totalorder %s20, 0
      %p42 = por %p40, %p41
      %s43 = ssub.s32 %s14, %s21
      %p44 = scmp.eq.s32.totalorder %s43, 0
      %s46 = sadd.s32 %s45, 1
      %s47 = scalar_select %p44, %s45, %s46
      %p50 = pneg %p44
      %p51 = scmp.eq.s32.totalorder %s14, 1
      %p52 = por %p50, %p51
      %p53 = scmp.ne.s32.totalorder %s45, %s48
      %p54 = scmp.eq.s32.totalorder %s14, 0
      %p55 = por %p53, %p54
      %p56 = scmp.ne.s32.totalorder %s45, %s48
      %p57 = scmp.eq.s32.totalorder %s19, 1
      %p58 = por %p56, %p57
      %p59 = scmp.ne.s32.totalorder %s48, %s49
      %p60 = scmp.eq.s32.totalorder %s19, 0
      %p61 = por %p59, %p60
      %p62 = scmp.ne.s32.totalorder %s48, %s49
      %p63 = scmp.eq.s32.totalorder %s20, 1
      %p64 = por %p62, %p63
      %p66 = scmp.ne.s32.totalorder %s49, %s65
      %p67 = scmp.eq.s32.totalorder %s20, 0
      %p68 = por %p66, %p67
      %s69 = ssub.s32 %s14, %s21
      %p70 = scmp.eq.s32.totalorder %s69, 0
      %s72 = sadd.s32 %s71, 1
      %s73 = scalar_select %p70, %s71, %s72
      %p76 = pneg %p70
      %p77 = scmp.eq.s32.totalorder %s14, 1
      %p78 = por %p76, %p77
      %p79 = scmp.ne.s32.totalorder %s71, %s74
      %p80 = scmp.eq.s32.totalorder %s14, 0
      %p81 = por %p79, %p80
      %p82 = scmp.ne.s32.totalorder %s71, %s74
      %p83 = scmp.eq.s32.totalorder %s19, 1
      %p84 = por %p82, %p83
      %p85 = scmp.ne.s32.totalorder %s74, %s75
      %p86 = scmp.eq.s32.totalorder %s19, 0
      %p87 = por %p85, %p86
      %p88 = scmp.ne.s32.totalorder %s74, %s75
      %p89 = scmp.eq.s32.totalorder %s20, 1
      %p90 = por %p88, %p89
      %p92 = scmp.ne.s32.totalorder %s75, %s91
      %p93 = scmp.eq.s32.totalorder %s20, 0
      %p94 = por %p92, %p93
      %s95 = ssub.s32 %s14, %s21
      %p96 = scmp.eq.s32.totalorder %s95, 0
      %s98 = sadd.s32 %s97, 1
      %s99 = scalar_select %p96, %s97, %s98
      %p102 = pneg %p96
      %p103 = scmp.eq.s32.totalorder %s14, 1
      %p104 = por %p102, %p103
      %p105 = scmp.ne.s32.totalorder %s97, %s100
      %p106 = scmp.eq.s32.totalorder %s14, 0
      %p107 = por %p105, %p106
      %p108 = scmp.ne.s32.totalorder %s97, %s100
      %p109 = scmp.eq.s32.totalorder %s19, 1
      %p110 = por %p108, %p109
      %p111 = scmp.ne.s32.totalorder %s100, %s101
      %p112 = scmp.eq.s32.totalorder %s19, 0
      %p113 = por %p111, %p112
      %p114 = scmp.ne.s32.totalorder %s100, %s101
      %p115 = scmp.eq.s32.totalorder %s20, 1
      %p116 = por %p114, %p115
      %p118 = scmp.ne.s32.totalorder %s101, %s117
      %p119 = scmp.eq.s32.totalorder %s20, 0
      %p120 = por %p118, %p119
      %s121 = ssub.s32 %s14, %s21
      %p122 = scmp.eq.s32.totalorder %s121, 0
      %s124 = sadd.s32 %s123, 1
      %s125 = scalar_select %p122, %s123, %s124
      %p128 = pneg %p122
      %p129 = scmp.eq.s32.totalorder %s14, 1
      %p130 = por %p128, %p129
      %p131 = scmp.ne.s32.totalorder %s123, %s126
      %p132 = scmp.eq.s32.totalorder %s14, 0
      %p133 = por %p131, %p132
      %p134 = scmp.ne.s32.totalorder %s123, %s126
      %p135 = scmp.eq.s32.totalorder %s19, 1
      %p136 = por %p134, %p135
      %p137 = scmp.ne.s32.totalorder %s126, %s127
      %p138 = scmp.eq.s32.totalorder %s19, 0
      %p139 = por %p137, %p138
      %p140 = scmp.ne.s32.totalorder %s126, %s127
      %p141 = scmp.eq.s32.totalorder %s20, 1
      %p142 = por %p140, %p141
      %p144 = scmp.ne.s32.totalorder %s127, %s143
      %p145 = scmp.eq.s32.totalorder %s20, 0
      %p146 = por %p144, %p145
      %s147 = ssub.s32 %s14, %s21
      %p148 = scmp.eq.s32.totalorder %s147, 0
      %s150 = sadd.s32 %s149, 1
      %s151 = scalar_select %p148, %s149, %s150
      %p154 = pneg %p148
      %p155 = scmp.eq.s32.totalorder %s14, 1
      %p156 = por %p154, %p155
      %p157 = scmp.ne.s32.totalorder %s149, %s152
      %p158 = scmp.eq.s32.totalorder %s14, 0
      %p159 = por %p157, %p158
      %p160 = scmp.ne.s32.totalorder %s149, %s152
      %p161 = scmp.eq.s32.totalorder %s19, 1
      %p162 = por %p160, %p161
      %p163 = scmp.ne.s32.totalorder %s152, %s153
      %p164 = scmp.eq.s32.totalorder %s19, 0
      %p165 = por %p163, %p164
      %p166 = scmp.ne.s32.totalorder %s152, %s153
      %p167 = scmp.eq.s32.totalorder %s20, 1
      %p168 = por %p166, %p167
      %p170 = scmp.ne.s32.totalorder %s153, %s169
      %p171 = scmp.eq.s32.totalorder %s20, 0
      %p172 = por %p170, %p171
      %p173 = scmp.le.s32.totalorder 1, %s14
      %p174 = scmp.lt.s32.totalorder %s14, 3
      %p175 = pnand %p173, %p174
      %p176 = pneg %p175
      // Predicated region
      $region9: #{cpg_regression_forward.4} parent=5 // pred_check
        _
      $region10: #{cpg_regression_forward.4} parent=5 // pred_check_branch
        %178 = sbr.rel (%p175) target = $region12
      $region11: #{cpg_regression_forward.4} parent=5 // pred_region
        %s179 = ssub.s32 %s14, 1
        // Predicated region
        $region13: #{cpg_regression_forward.4} parent=11 // pred_check
          %p180 = pneg %p35
        $region14: #{cpg_regression_forward.4} parent=11 // pred_check_branch
          %182 = sbr.rel (%p180) target = $region16
        $region15: #{cpg_regression_forward.4} parent=11 // pred_region
          _
        $region16: #{cpg_regression_forward.4} parent=11 // pred_fallthru
          _
      $region12: #{cpg_regression_forward.4} parent=5 // pred_fallthru
        _
      %p183 = scmp.lt.s32.totalorder %s14, 2
      // Predicated region
      $region17: #{cpg_regression_forward.4} parent=5 // pred_check
        %p184 = pneg %p183
      $region18: #{cpg_regression_forward.4} parent=5 // pred_check_branch
        %186 = sbr.rel (%p184) target = $region20
      $region19: #{cpg_regression_forward.4} parent=5 // pred_region
        // Predicated region
        $region21: #{cpg_regression_forward.4} parent=19 // pred_check
          %p187 = pneg %p55
        $region22: #{cpg_regression_forward.4} parent=19 // pred_check_branch
          %189 = sbr.rel (%p187) target = $region24
        $region23: #{cpg_regression_forward.4} parent=19 // pred_region
          %s190 = sand.u32 %s45, 1
          %s191 = scalar_lea.sflag [#allocation6], %s190
          %s192 = sand.u32 %s45, 1
          %s193 = smul.addr %s192, 64
          %s194 = scalar_lea.vmem [#allocation5], %s193
          %s196 = ssub.s32 1024, 1024
          %197 = vsyncadd %s191, %s196
          %s198 = smul.addr %s14, 8
          %s199 = smul.addr %s198, 128
          %s200 = scalar_lea.hbm %s1, %s199
          %s201 = sshll.u32 %s194, 4
          %s202 = int_to_ptr.vmem [resolvable:$true] %s201
          %207 = dma.hbm_to_vmem [thread:$0]  %s200, 1024, %s202, %s191, 128, 128, 8
        $region24: #{cpg_regression_forward.4} parent=19 // pred_fallthru
          _
        // Predicated region
        $region25: #{cpg_regression_forward.4} parent=19 // pred_check
          %p208 = pneg %p81
        $region26: #{cpg_regression_forward.4} parent=19 // pred_check_branch
          %210 = sbr.rel (%p208) target = $region28
        $region27: #{cpg_regression_forward.4} parent=19 // pred_region
          %p211 = scmp.lt.s32.totalorder %s14, 1
          %s212 = scalar_select %p211, %s14, 1
          %s213 = smul.addr %s212, 12
          %s214 = smul.addr %s213, 8
          %s215 = scalar_lea.vmem %s2, %s214
        $region28: #{cpg_regression_forward.4} parent=19 // pred_fallthru
          _
        // Predicated region
        $region29: #{cpg_regression_forward.4} parent=19 // pred_check
          %p216 = pneg %p107
        $region30: #{cpg_regression_forward.4} parent=19 // pred_check_branch
          %218 = sbr.rel (%p216) target = $region32
        $region31: #{cpg_regression_forward.4} parent=19 // pred_region
          %p219 = scmp.lt.s32.totalorder %s14, 1
          %s220 = scalar_select %p219, %s14, 1
          %s221 = scalar_lea.vmem %s3, %s220
        $region32: #{cpg_regression_forward.4} parent=19 // pred_fallthru
          _
        // Predicated region
        $region33: #{cpg_regression_forward.4} parent=19 // pred_check
          %p222 = pneg %p133
        $region34: #{cpg_regression_forward.4} parent=19 // pred_check_branch
          %224 = sbr.rel (%p222) target = $region36
        $region35: #{cpg_regression_forward.4} parent=19 // pred_region
          %p225 = scmp.lt.s32.totalorder %s14, 1
          %s226 = scalar_select %p225, %s14, 1
          %s227 = scalar_lea.vmem %s4, %s226
        $region36: #{cpg_regression_forward.4} parent=19 // pred_fallthru
          _
      $region20: #{cpg_regression_forward.4} parent=5 // pred_fallthru
        _
      %p228 = scmp.le.s32.totalorder 1, %s14
      %p229 = scmp.lt.s32.totalorder %s14, 3
      %p230 = pnand %p228, %p229
      %p231 = pneg %p230
      // Predicated region
      $region37: #{cpg_regression_forward.4} parent=5 // pred_check
        _
      $region38: #{cpg_regression_forward.4} parent=5 // pred_check_branch
        %233 = sbr.rel (%p230) target = $region40
      $region39: #{cpg_regression_forward.4} parent=5 // pred_region
        %s234 = ssub.s32 %s14, 1
        %s235 = sand.u32 %s48, 1
        %s236 = scalar_lea.sflag [#allocation6], %s235
        %s237 = sand.u32 %s48, 1
        %s238 = smul.addr %s237, 64
        %s239 = scalar_lea.vmem [#allocation5], %s238
        // Predicated region
        $region41: #{cpg_regression_forward.4} parent=39 // pred_check
          %p240 = pneg %p61
        $region42: #{cpg_regression_forward.4} parent=39 // pred_check_branch
          %242 = sbr.rel (%p240) target = $region44
        $region43: #{cpg_regression_forward.4} parent=39 // pred_region
          %243 = dma.done %s236, 1024
        $region44: #{cpg_regression_forward.4} parent=39 // pred_fallthru
          _
        %p244 = pneg %p35
        %p245 = pneg %p32
        %s246 = sand.u32 %s48, 1
        %s247 = scalar_lea.sflag [#allocation6], %s246
        %s248 = sand.u32 %s48, 1
        %s249 = smul.addr %s248, 64
        %s250 = scalar_lea.vmem [#allocation5], %s249
        %p251 = pneg %p61
        %p252 = pneg %p58
        %p253 = scmp.lt.s32.totalorder %s19, 1
        %s254 = scalar_select %p253, %s19, 1
        %s255 = smul.addr %s254, 12
        %s256 = smul.addr %s255, 8
        %s257 = scalar_lea.vmem %s2, %s256
        %p258 = pneg %p87
        %p259 = pneg %p84
        %p260 = scmp.lt.s32.totalorder %s19, 1
        %s261 = scalar_select %p260, %s19, 1
        %s262 = scalar_lea.vmem %s3, %s261
        %p263 = pneg %p113
        %p264 = pneg %p110
        %p265 = scmp.lt.s32.totalorder %s19, 1
        %s266 = scalar_select %p265, %s19, 1
        %s267 = scalar_lea.vmem %s4, %s266
        %p268 = pneg %p139
        %p269 = pneg %p136
        %p270 = pneg %p165
        %p271 = pneg %p162
        %p272 = scmp.lt.s32.totalorder %s19, 1
        %s273 = scalar_select %p272, %s19, 1
        %s274 = smul.addr %s273, 2
        %s275 = smul.addr %s274, 8
        %s276 = scalar_lea.vmem %s5, %s275
        %p277 = scmp.lt.s32.totalorder %s19, 1
        %s278 = scalar_select %p277, %s19, 1
        %s279 = smul.addr %s278, 12
        %s280 = smul.addr %s279, 8
        %s281 = scalar_lea.vmem %s2, %s280
        %p282 = scmp.lt.s32.totalorder %s19, 1
        %s283 = scalar_select %p282, %s19, 1
        %s284 = scalar_lea.vmem %s3, %s283
        %p285 = scmp.lt.s32.totalorder %s19, 1
        %s286 = scalar_select %p285, %s19, 1
        %s287 = scalar_lea.vmem %s4, %s286
        %p288 = scmp.lt.s32.totalorder %s19, 1
        %s289 = scalar_select %p288, %s19, 1
        %s290 = smul.addr %s289, 2
        %s291 = smul.addr %s290, 8
        %s292 = scalar_lea.vmem %s5, %s291
        %v293 = vld [vmem:[%s0] sm:$0xff]
        %v294 = vld [vmem:[%s0 + $0x8] sm:$0xff]
        %v295 = vld [vmem:[%s239] sm:$0xff]
        %v296 = vld [vmem:[%s239 + $0x8] sm:$0xff]
        %v297 = vld [vmem:[%s239 + $0x10] sm:$0xff]
        %v298 = vld [vmem:[%s239 + $0x18] sm:$0xff]
        %s299 = scalar_lea.vmem %s0, 16
        %v300 = vld [vmem:[%s299] sm:$0xff]
        %v301 = vld [vmem:[%s299 + $0x8] sm:$0xff]
        %s302 = scalar_lea.vmem %s239, 32 [#allocation5]
        %v303 = vld [vmem:[%s302] sm:$0xff]
        %v304 = vld [vmem:[%s302 + $0x8] sm:$0xff]
        %v305 = vld [vmem:[%s302 + $0x10] sm:$0xff]
        %v306 = vld [vmem:[%s302 + $0x18] sm:$0xff]
        %vm307 = vcmask 261120
        %v309 = vsel %vm307, %v300, 0
        %v312 = vsel %vm307, %v301, 0
        %314 = vmatprep.subr.mxu0 0.0
        %315 = vmatpush1.msra.mxu0 0.0
        %316 = vmatprep.subr.mxu0 0.0
        %317 = vmatpush1.msra.mxu0 0.0
        %318 = vmatprep.subr.mxu0 0.0
        %319 = vmatpush1.msra.mxu0 0.0
        %320 = vmatprep.subr.mxu0 0.0
        %321 = vmatpush1.msra.mxu0 0.0
        %322 = vmatprep.subr.mxu0 0.0
        %323 = vmatpush1.msra.mxu0 0.0
        %324 = vmatprep.subr.mxu0 0.0
        %325 = vmatpush1.msra.mxu0 0.0
        %326 = vmatprep.subr.mxu0 0.0
        %327 = vmatpush1.msra.mxu0 0.0
        %328 = vmatprep.subr.mxu0 0.0
        %329 = vmatpush1.msra.mxu0 0.0
        %330 = vmatprep.subr.mxu0 0.0
        %331 = vmatpush1.msra.mxu0 0.0
        %332 = vmatprep.subr.mxu0 0.0
        %333 = vmatpush1.msra.mxu0 0.0
        %334 = vmatprep.subr.mxu0 0.0
        %335 = vmatpush1.msra.mxu0 0.0
        %336 = vmatprep.subr.mxu0 0.0
        %337 = vmatpush1.msra.mxu0 0.0
        %338 = vmatprep.subr.mxu0 0.0
        %339 = vmatpush1.msra.mxu0 %v306
        %340 = vmatprep.subr.mxu0 0.0
        %341 = vmatpush1.msra.mxu0 %v305
        %342 = vmatprep.subr.mxu0 0.0
        %343 = vmatpush1.msra.mxu0 %v304
        %344 = vmatprep.subr.mxu0 0.0
        %345 = vmatpush1.msra.mxu0 %v303
        %346 = vmatprep.subr.mxu0 0.0
        %347 = vmatpush2.msra.mxu0 0.0
        %348 = vmatprep.subr.mxu0 0.0
        %349 = vmatpush2.msra.mxu0 0.0
        %350 = vmatprep.subr.mxu0 0.0
        %351 = vmatpush2.msra.mxu0 0.0
        %352 = vmatprep.subr.mxu0 0.0
        %353 = vmatpush2.msra.mxu0 0.0
        %354 = vmatprep.subr.mxu0 0.0
        %355 = vmatpush2.msra.mxu0 0.0
        %356 = vmatprep.subr.mxu0 0.0
        %357 = vmatpush2.msra.mxu0 0.0
        %358 = vmatprep.subr.mxu0 0.0
        %359 = vmatpush2.msra.mxu0 0.0
        %360 = vmatprep.subr.mxu0 0.0
        %361 = vmatpush2.msra.mxu0 0.0
        %362 = vmatprep.subr.mxu0 0.0
        %363 = vmatpush2.msra.mxu0 0.0
        %364 = vmatprep.subr.mxu0 0.0
        %365 = vmatpush2.msra.mxu0 0.0
        %366 = vmatprep.subr.mxu0 0.0
        %367 = vmatpush2.msra.mxu0 0.0
        %368 = vmatprep.subr.mxu0 0.0
        %369 = vmatpush2.msra.mxu0 0.0
        %370 = vmatprep.subr.mxu0 0.0
        %371 = vmatpush2.msra.mxu0 0.0
        %372 = vmatprep.subr.mxu0 0.0
        %373 = vmatpush2.msra.mxu0 0.0
        %374 = vmatprep.subr.mxu0 0.0
        %375 = vmatpush2.msra.mxu0 0.0
        %376 = vmatprep.subr.mxu0 0.0
        %377 = vmatpush2.msra.mxu0 0.0
        %378 = vmatprep.mubr.f32.mxu0 0.0
        %379 = vmatmul.mubr.f32.gmra.mxu0 %v309
        %v380 = vpop.f32.mrf.mxu0
        %v381 = vadd.f32 0.0, %v380
        %v382 = vpop.f32.mrf.mxu0
        %383 = vmatprep.mubr.f32.mxu0 0.0
        %384 = vmatmul.mubr.f32.gmra.mxu0 %v312
        %v385 = vpop.f32.mrf.mxu0
        %v386 = vadd.f32 0.0, %v385
        %v387 = vpop.f32.mrf.mxu0
        %388 = vdwg.mxu0
        %v390 = vsel %vm307, %v293, 0
        %v393 = vsel %vm307, %v294, 0
        %395 = vmatprep.subr.mxu0 0.0
        %396 = vmatpush1.msra.mxu0 0.0
        %397 = vmatprep.subr.mxu0 0.0
        %398 = vmatpush1.msra.mxu0 0.0
        %399 = vmatprep.subr.mxu0 0.0
        %400 = vmatpush1.msra.mxu0 0.0
        %401 = vmatprep.subr.mxu0 0.0
        %402 = vmatpush1.msra.mxu0 0.0
        %403 = vmatprep.subr.mxu0 0.0
        %404 = vmatpush1.msra.mxu0 0.0
        %405 = vmatprep.subr.mxu0 0.0
        %406 = vmatpush1.msra.mxu0 0.0
        %407 = vmatprep.subr.mxu0 0.0
        %408 = vmatpush1.msra.mxu0 0.0
        %409 = vmatprep.subr.mxu0 0.0
        %410 = vmatpush1.msra.mxu0 0.0
        %411 = vmatprep.subr.mxu0 0.0
        %412 = vmatpush1.msra.mxu0 0.0
        %413 = vmatprep.subr.mxu0 0.0
        %414 = vmatpush1.msra.mxu0 0.0
        %415 = vmatprep.subr.mxu0 0.0
        %416 = vmatpush1.msra.mxu0 0.0
        %417 = vmatprep.subr.mxu0 0.0
        %418 = vmatpush1.msra.mxu0 0.0
        %419 = vmatprep.subr.mxu0 0.0
        %420 = vmatpush1.msra.mxu0 %v298
        %421 = vmatprep.subr.mxu0 0.0
        %422 = vmatpush1.msra.mxu0 %v297
        %423 = vmatprep.subr.mxu0 0.0
        %424 = vmatpush1.msra.mxu0 %v296
        %425 = vmatprep.subr.mxu0 0.0
        %426 = vmatpush1.msra.mxu0 %v295
        %427 = vmatprep.subr.mxu0 0.0
        %428 = vmatpush2.msra.mxu0 0.0
        %429 = vmatprep.subr.mxu0 0.0
        %430 = vmatpush2.msra.mxu0 0.0
        %431 = vmatprep.subr.mxu0 0.0
        %432 = vmatpush2.msra.mxu0 0.0
        %433 = vmatprep.subr.mxu0 0.0
        %434 = vmatpush2.msra.mxu0 0.0
        %435 = vmatprep.subr.mxu0 0.0
        %436 = vmatpush2.msra.mxu0 0.0
        %437 = vmatprep.subr.mxu0 0.0
        %438 = vmatpush2.msra.mxu0 0.0
        %439 = vmatprep.subr.mxu0 0.0
        %440 = vmatpush2.msra.mxu0 0.0
        %441 = vmatprep.subr.mxu0 0.0
        %442 = vmatpush2.msra.mxu0 0.0
        %443 = vmatprep.subr.mxu0 0.0
        %444 = vmatpush2.msra.mxu0 0.0
        %445 = vmatprep.subr.mxu0 0.0
        %446 = vmatpush2.msra.mxu0 0.0
        %447 = vmatprep.subr.mxu0 0.0
        %448 = vmatpush2.msra.mxu0 0.0
        %449 = vmatprep.subr.mxu0 0.0
        %450 = vmatpush2.msra.mxu0 0.0
        %451 = vmatprep.subr.mxu0 0.0
        %452 = vmatpush2.msra.mxu0 0.0
        %453 = vmatprep.subr.mxu0 0.0
        %454 = vmatpush2.msra.mxu0 0.0
        %455 = vmatprep.subr.mxu0 0.0
        %456 = vmatpush2.msra.mxu0 0.0
        %457 = vmatprep.subr.mxu0 0.0
        %458 = vmatpush2.msra.mxu0 0.0
        %459 = vmatprep.mubr.f32.mxu0 0.0
        %460 = vmatmul.mubr.f32.gmra.mxu0 %v390
        %v461 = vpop.f32.mrf.mxu0
        %v462 = vadd.f32 %v381, %v461
        %v463 = vpop.f32.mrf.mxu0
        %464 = vmatprep.mubr.f32.mxu0 0.0
        %465 = vmatmul.mubr.f32.gmra.mxu0 %v393
        %v466 = vpop.f32.mrf.mxu0
        %v467 = vadd.f32 %v386, %v466
        %v468 = vpop.f32.mrf.mxu0
        %469 = vdwg.mxu0
        %v470 = vld [vmem:[%s284] sm:$0x1]
        %v472 = vlaneseq
        %v473 = vshrl.u32 %v472, 7
        %v474 = vsub.s32 0, %v473
        %v475 = vrot.slane %v470, %v474
        %v477 = vadd.f32 %v462, %v475
        %v478 = vadd.f32 %v467, %v475
        %479 = vst.msk [vmem:[#allocation2] sm:$0xff] %vm307, %v477
        %480 = vst.msk [vmem:[#allocation2 + $0x8] sm:$0xff] %vm307, %v478
        %483 = vrot.lane.b32.xlu0 %v477, 96
        %v484 = vpop.permute.xlu0 %483
        %485 = vrot.lane.b32.xlu0 %v478, 96
        %v486 = vpop.permute.xlu0 %485
        %489 = vst.msk [vmem:[#allocation3] sm:$0xff] %vm307, %v484
        %490 = vst.msk [vmem:[#allocation3 + $0x8] sm:$0xff] %vm307, %v486
        %491 = vrot.lane.b32.xlu0 %v477, 64
        %v492 = vpop.permute.xlu0 %491
        %493 = vrot.lane.b32.xlu0 %v478, 64
        %v494 = vpop.permute.xlu0 %493
        %497 = vst.msk [vmem:[#allocation4] sm:$0xff] %vm307, %v492
        %498 = vst.msk [vmem:[#allocation4 + $0x8] sm:$0xff] %vm307, %v494
        %v499 = vld [vmem:[%s281] sm:$0xff]
        %v500 = vld [vmem:[%s281 + $0x8] sm:$0xff]
        %v501 = vld [vmem:[%s281 + $0x10] sm:$0xff]
        %v502 = vld [vmem:[%s281 + $0x18] sm:$0xff]
        %s503 = scalar_lea.vmem %s281, 32
        %v504 = vld [vmem:[%s503] sm:$0xff]
        %v505 = vld [vmem:[%s503 + $0x8] sm:$0xff]
        %v506 = vld [vmem:[%s503 + $0x10] sm:$0xff]
        %v507 = vld [vmem:[%s503 + $0x18] sm:$0xff]
        %s508 = scalar_lea.vmem %s281, 64
        %v509 = vld [vmem:[%s508] sm:$0xff]
        %v510 = vld [vmem:[%s508 + $0x8] sm:$0xff]
        %v511 = vld [vmem:[%s508 + $0x10] sm:$0xff]
        %v512 = vld [vmem:[%s508 + $0x18] sm:$0xff]
        %v513 = vld [vmem:[%s287] sm:$0x1]
        %p514 = scmp.eq.s32.totalorder %s19, 0
        %s515 = scalar_select %p514, 0, 7
        %s516 = smul.u32 %s515, 2
        %v518 = vsel %vm307, 0.0, 0
        %520 = vmatprep.subr.mxu0 0.0
        %521 = vmatpush1.msra.mxu0 0.0
        %522 = vmatprep.subr.mxu0 0.0
        %523 = vmatpush1.msra.mxu0 0.0
        %524 = vmatprep.subr.mxu0 0.0
        %525 = vmatpush1.msra.mxu0 0.0
        %526 = vmatprep.subr.mxu0 0.0
        %527 = vmatpush1.msra.mxu0 0.0
        %528 = vmatprep.subr.mxu0 0.0
        %529 = vmatpush1.msra.mxu0 0.0
        %530 = vmatprep.subr.mxu0 0.0
        %531 = vmatpush1.msra.mxu0 0.0
        %532 = vmatprep.subr.mxu0 0.0
        %533 = vmatpush1.msra.mxu0 0.0
        %534 = vmatprep.subr.mxu0 0.0
        %535 = vmatpush1.msra.mxu0 0.0
        %536 = vmatprep.subr.mxu0 0.0
        %537 = vmatpush1.msra.mxu0 0.0
        %538 = vmatprep.subr.mxu0 0.0
        %539 = vmatpush1.msra.mxu0 0.0
        %540 = vmatprep.subr.mxu0 0.0
        %541 = vmatpush1.msra.mxu0 0.0
        %542 = vmatprep.subr.mxu0 0.0
        %543 = vmatpush1.msra.mxu0 0.0
        %544 = vmatprep.subr.mxu0 0.0
        %545 = vmatpush1.msra.mxu0 %v502
        %546 = vmatprep.subr.mxu0 0.0
        %547 = vmatpush1.msra.mxu0 %v501
        %548 = vmatprep.subr.mxu0 0.0
        %549 = vmatpush1.msra.mxu0 %v500
        %550 = vmatprep.subr.mxu0 0.0
        %551 = vmatpush1.msra.mxu0 %v499
        %552 = vmatprep.subr.mxu0 0.0
        %553 = vmatpush2.msra.mxu0 0.0
        %554 = vmatprep.subr.mxu0 0.0
        %555 = vmatpush2.msra.mxu0 0.0
        %556 = vmatprep.subr.mxu0 0.0
        %557 = vmatpush2.msra.mxu0 0.0
        %558 = vmatprep.subr.mxu0 0.0
        %559 = vmatpush2.msra.mxu0 0.0
        %560 = vmatprep.subr.mxu0 0.0
        %561 = vmatpush2.msra.mxu0 0.0
        %562 = vmatprep.subr.mxu0 0.0
        %563 = vmatpush2.msra.mxu0 0.0
        %564 = vmatprep.subr.mxu0 0.0
        %565 = vmatpush2.msra.mxu0 0.0
        %566 = vmatprep.subr.mxu0 0.0
        %567 = vmatpush2.msra.mxu0 0.0
        %568 = vmatprep.subr.mxu0 0.0
        %569 = vmatpush2.msra.mxu0 0.0
        %570 = vmatprep.subr.mxu0 0.0
        %571 = vmatpush2.msra.mxu0 0.0
        %572 = vmatprep.subr.mxu0 0.0
        %573 = vmatpush2.msra.mxu0 0.0
        %574 = vmatprep.subr.mxu0 0.0
        %575 = vmatpush2.msra.mxu0 0.0
        %576 = vmatprep.subr.mxu0 0.0
        %577 = vmatpush2.msra.mxu0 0.0
        %578 = vmatprep.subr.mxu0 0.0
        %579 = vmatpush2.msra.mxu0 0.0
        %580 = vmatprep.subr.mxu0 0.0
        %581 = vmatpush2.msra.mxu0 0.0
        %582 = vmatprep.subr.mxu0 0.0
        %583 = vmatpush2.msra.mxu0 0.0
        %584 = vmatprep.mubr.f32.mxu0 0.0
        %585 = vmatmul.mubr.f32.gmra.mxu0 %v518
        %v586 = vpop.f32.mrf.mxu0
        %v587 = vadd.f32 0.0, %v586
        %v588 = vpop.f32.mrf.mxu0
        %589 = vdwg.mxu0
        %590 = vmatprep.subr.mxu0 0.0
        %591 = vmatpush1.msra.mxu0 0.0
        %592 = vmatprep.subr.mxu0 0.0
        %593 = vmatpush1.msra.mxu0 0.0
        %594 = vmatprep.subr.mxu0 0.0
        %595 = vmatpush1.msra.mxu0 0.0
        %596 = vmatprep.subr.mxu0 0.0
        %597 = vmatpush1.msra.mxu0 0.0
        %598 = vmatprep.subr.mxu0 0.0
        %599 = vmatpush1.msra.mxu0 0.0
        %600 = vmatprep.subr.mxu0 0.0
        %601 = vmatpush1.msra.mxu0 0.0
        %602 = vmatprep.subr.mxu0 0.0
        %603 = vmatpush1.msra.mxu0 0.0
        %604 = vmatprep.subr.mxu0 0.0
        %605 = vmatpush1.msra.mxu0 0.0
        %606 = vmatprep.subr.mxu0 0.0
        %607 = vmatpush1.msra.mxu0 0.0
        %608 = vmatprep.subr.mxu0 0.0
        %609 = vmatpush1.msra.mxu0 0.0
        %610 = vmatprep.subr.mxu0 0.0
        %611 = vmatpush1.msra.mxu0 0.0
        %612 = vmatprep.subr.mxu0 0.0
        %613 = vmatpush1.msra.mxu0 0.0
        %614 = vmatprep.subr.mxu0 0.0
        %615 = vmatpush1.msra.mxu0 %v507
        %616 = vmatprep.subr.mxu0 0.0
        %617 = vmatpush1.msra.mxu0 %v506
        %618 = vmatprep.subr.mxu0 0.0
        %619 = vmatpush1.msra.mxu0 %v505
        %620 = vmatprep.subr.mxu0 0.0
        %621 = vmatpush1.msra.mxu0 %v504
        %622 = vmatprep.subr.mxu0 0.0
        %623 = vmatpush2.msra.mxu0 0.0
        %624 = vmatprep.subr.mxu0 0.0
        %625 = vmatpush2.msra.mxu0 0.0
        %626 = vmatprep.subr.mxu0 0.0
        %627 = vmatpush2.msra.mxu0 0.0
        %628 = vmatprep.subr.mxu0 0.0
        %629 = vmatpush2.msra.mxu0 0.0
        %630 = vmatprep.subr.mxu0 0.0
        %631 = vmatpush2.msra.mxu0 0.0
        %632 = vmatprep.subr.mxu0 0.0
        %633 = vmatpush2.msra.mxu0 0.0
        %634 = vmatprep.subr.mxu0 0.0
        %635 = vmatpush2.msra.mxu0 0.0
        %636 = vmatprep.subr.mxu0 0.0
        %637 = vmatpush2.msra.mxu0 0.0
        %638 = vmatprep.subr.mxu0 0.0
        %639 = vmatpush2.msra.mxu0 0.0
        %640 = vmatprep.subr.mxu0 0.0
        %641 = vmatpush2.msra.mxu0 0.0
        %642 = vmatprep.subr.mxu0 0.0
        %643 = vmatpush2.msra.mxu0 0.0
        %644 = vmatprep.subr.mxu0 0.0
        %645 = vmatpush2.msra.mxu0 0.0
        %646 = vmatprep.subr.mxu0 0.0
        %647 = vmatpush2.msra.mxu0 0.0
        %648 = vmatprep.subr.mxu0 0.0
        %649 = vmatpush2.msra.mxu0 0.0
        %650 = vmatprep.subr.mxu0 0.0
        %651 = vmatpush2.msra.mxu0 0.0
        %652 = vmatprep.subr.mxu0 0.0
        %653 = vmatpush2.msra.mxu0 0.0
        %654 = vmatprep.mubr.f32.mxu0 0.0
        %655 = vmatmul.mubr.f32.gmra.mxu0 %v518
        %v656 = vpop.f32.mrf.mxu0
        %v657 = vadd.f32 0.0, %v656
        %v658 = vpop.f32.mrf.mxu0
        %659 = vdwg.mxu0
        %s660 = scalar_lea.vmem [#allocation2], %s516
        %v661 = vld [vmem:[%s660] sm:$0x3]
        %v662 = vadd.f32 %v661, %v587
        %v663 = vxor.u32 %v662, 2147483648
        %v664 = vmul.f32 %v663, 1.442695
        %v665 = vpow.pop %v664
        %v666 = vadd.f32 %v665, 1.0
        %v667 = vrcp.pop %v666
        %v668 = vmul.f32 1.0, %v667
        %s669 = scalar_lea.vmem [#allocation3], %s516
        %v670 = vld [vmem:[%s669] sm:$0x3]
        %v671 = vadd.f32 %v670, %v657
        %v672 = vxor.u32 %v671, 2147483648
        %v673 = vmul.f32 %v672, 1.442695
        %v674 = vpow.pop %v673
        %v675 = vadd.f32 %v674, 1.0
        %v676 = vrcp.pop %v675
        %v677 = vmul.f32 1.0, %v676
        %s678 = scalar_lea.vmem [#allocation4], %s516
        %v679 = vld [vmem:[%s678] sm:$0x3]
        %v681 = vlaneseq
        %v682 = vshrl.u32 %v681, 7
        %v683 = vsub.s32 0, %v682
        %v684 = vrot.slane %v513, %v683
        %686 = vmatprep.subr.mxu0 0.0
        %687 = vmatpush1.msra.mxu0 0.0
        %688 = vmatprep.subr.mxu0 0.0
        %689 = vmatpush1.msra.mxu0 0.0
        %690 = vmatprep.subr.mxu0 0.0
        %691 = vmatpush1.msra.mxu0 0.0
        %692 = vmatprep.subr.mxu0 0.0
        %693 = vmatpush1.msra.mxu0 0.0
        %694 = vmatprep.subr.mxu0 0.0
        %695 = vmatpush1.msra.mxu0 0.0
        %696 = vmatprep.subr.mxu0 0.0
        %697 = vmatpush1.msra.mxu0 0.0
        %698 = vmatprep.subr.mxu0 0.0
        %699 = vmatpush1.msra.mxu0 0.0
        %700 = vmatprep.subr.mxu0 0.0
        %701 = vmatpush1.msra.mxu0 0.0
        %702 = vmatprep.subr.mxu0 0.0
        %703 = vmatpush1.msra.mxu0 0.0
        %704 = vmatprep.subr.mxu0 0.0
        %705 = vmatpush1.msra.mxu0 0.0
        %706 = vmatprep.subr.mxu0 0.0
        %707 = vmatpush1.msra.mxu0 0.0
        %708 = vmatprep.subr.mxu0 0.0
        %709 = vmatpush1.msra.mxu0 0.0
        %710 = vmatprep.subr.mxu0 0.0
        %711 = vmatpush1.msra.mxu0 %v512
        %712 = vmatprep.subr.mxu0 0.0
        %713 = vmatpush1.msra.mxu0 %v511
        %714 = vmatprep.subr.mxu0 0.0
        %715 = vmatpush1.msra.mxu0 %v510
        %716 = vmatprep.subr.mxu0 0.0
        %717 = vmatpush1.msra.mxu0 %v509
        %718 = vmatprep.subr.mxu0 0.0
        %719 = vmatpush2.msra.mxu0 0.0
        %720 = vmatprep.subr.mxu0 0.0
        %721 = vmatpush2.msra.mxu0 0.0
        %722 = vmatprep.subr.mxu0 0.0
        %723 = vmatpush2.msra.mxu0 0.0
        %724 = vmatprep.subr.mxu0 0.0
        %725 = vmatpush2.msra.mxu0 0.0
        %726 = vmatprep.subr.mxu0 0.0
        %727 = vmatpush2.msra.mxu0 0.0
        %728 = vmatprep.subr.mxu0 0.0
        %729 = vmatpush2.msra.mxu0 0.0
        %730 = vmatprep.subr.mxu0 0.0
        %731 = vmatpush2.msra.mxu0 0.0
        %732 = vmatprep.subr.mxu0 0.0
        %733 = vmatpush2.msra.mxu0 0.0
        %734 = vmatprep.subr.mxu0 0.0
        %735 = vmatpush2.msra.mxu0 0.0
        %736 = vmatprep.subr.mxu0 0.0
        %737 = vmatpush2.msra.mxu0 0.0
        %738 = vmatprep.subr.mxu0 0.0
        %739 = vmatpush2.msra.mxu0 0.0
        %740 = vmatprep.subr.mxu0 0.0
        %741 = vmatpush2.msra.mxu0 0.0
        %742 = vmatprep.subr.mxu0 0.0
        %743 = vmatpush2.msra.mxu0 0.0
        %744 = vmatprep.subr.mxu0 0.0
        %745 = vmatpush2.msra.mxu0 0.0
        %746 = vmatprep.subr.mxu0 0.0
        %747 = vmatpush2.msra.mxu0 0.0
        %748 = vmatprep.subr.mxu0 0.0
        %749 = vmatpush2.msra.mxu0 0.0
        %750 = vmatprep.mubr.f32.mxu0 0.0
        %751 = vmatmul.mubr.f32.gmra.mxu0 %v518
        %v752 = vpop.f32.mrf.mxu0
        %v753 = vadd.f32 %v684, %v752
        %v754 = vpop.f32.mrf.mxu0
        %755 = vdwg.mxu0
        %v756 = vmul.f32 %v668, %v753
        %v757 = vadd.f32 %v679, %v756
        %v758 = vtanh.pop %v757
        %v759 = vsub.f32 1.0, %v677
        %v760 = vmul.f32 %v759, %v758
        %v761 = vmul.f32 %v677, 0.0
        %v762 = vadd.f32 %v760, %v761
        %s763 = scalar_lea.vmem %s292, %s516
        %vm764 = vcmask 254976
        %765 = vst.msk [vmem:[%s763] sm:$0x3] %vm764, %v762
        %s766 = scalar_select %p514, 1, 6
        %s767 = smul.u32 %s766, 2
        %v769 = vsel %vm307, %v762, 0
        %771 = vmatprep.subr.mxu0 0.0
        %772 = vmatpush1.msra.mxu0 0.0
        %773 = vmatprep.subr.mxu0 0.0
        %774 = vmatpush1.msra.mxu0 0.0
        %775 = vmatprep.subr.mxu0 0.0
        %776 = vmatpush1.msra.mxu0 0.0
        %777 = vmatprep.subr.mxu0 0.0
        %778 = vmatpush1.msra.mxu0 0.0
        %779 = vmatprep.subr.mxu0 0.0
        %780 = vmatpush1.msra.mxu0 0.0
        %781 = vmatprep.subr.mxu0 0.0
        %782 = vmatpush1.msra.mxu0 0.0
        %783 = vmatprep.subr.mxu0 0.0
        %784 = vmatpush1.msra.mxu0 0.0
        %785 = vmatprep.subr.mxu0 0.0
        %786 = vmatpush1.msra.mxu0 0.0
        %787 = vmatprep.subr.mxu0 0.0
        %788 = vmatpush1.msra.mxu0 0.0
        %789 = vmatprep.subr.mxu0 0.0
        %790 = vmatpush1.msra.mxu0 0.0
        %791 = vmatprep.subr.mxu0 0.0
        %792 = vmatpush1.msra.mxu0 0.0
        %793 = vmatprep.subr.mxu0 0.0
        %794 = vmatpush1.msra.mxu0 0.0
        %795 = vmatprep.subr.mxu0 0.0
        %796 = vmatpush1.msra.mxu0 %v502
        %797 = vmatprep.subr.mxu0 0.0
        %798 = vmatpush1.msra.mxu0 %v501
        %799 = vmatprep.subr.mxu0 0.0
        %800 = vmatpush1.msra.mxu0 %v500
        %801 = vmatprep.subr.mxu0 0.0
        %802 = vmatpush1.msra.mxu0 %v499
        %803 = vmatprep.subr.mxu0 0.0
        %804 = vmatpush2.msra.mxu0 0.0
        %805 = vmatprep.subr.mxu0 0.0
        %806 = vmatpush2.msra.mxu0 0.0
        %807 = vmatprep.subr.mxu0 0.0
        %808 = vmatpush2.msra.mxu0 0.0
        %809 = vmatprep.subr.mxu0 0.0
        %810 = vmatpush2.msra.mxu0 0.0
        %811 = vmatprep.subr.mxu0 0.0
        %812 = vmatpush2.msra.mxu0 0.0
        %813 = vmatprep.subr.mxu0 0.0
        %814 = vmatpush2.msra.mxu0 0.0
        %815 = vmatprep.subr.mxu0 0.0
        %816 = vmatpush2.msra.mxu0 0.0
        %817 = vmatprep.subr.mxu0 0.0
        %818 = vmatpush2.msra.mxu0 0.0
        %819 = vmatprep.subr.mxu0 0.0
        %820 = vmatpush2.msra.mxu0 0.0
        %821 = vmatprep.subr.mxu0 0.0
        %822 = vmatpush2.msra.mxu0 0.0
        %823 = vmatprep.subr.mxu0 0.0
        %824 = vmatpush2.msra.mxu0 0.0
        %825 = vmatprep.subr.mxu0 0.0
        %826 = vmatpush2.msra.mxu0 0.0
        %827 = vmatprep.subr.mxu0 0.0
        %828 = vmatpush2.msra.mxu0 0.0
        %829 = vmatprep.subr.mxu0 0.0
        %830 = vmatpush2.msra.mxu0 0.0
        %831 = vmatprep.subr.mxu0 0.0
        %832 = vmatpush2.msra.mxu0 0.0
        %833 = vmatprep.subr.mxu0 0.0
        %834 = vmatpush2.msra.mxu0 0.0
        %835 = vmatprep.mubr.f32.mxu0 0.0
        %836 = vmatmul.mubr.f32.gmra.mxu0 %v769
        %v837 = vpop.f32.mrf.mxu0
        %v838 = vadd.f32 0.0, %v837
        %v839 = vpop.f32.mrf.mxu0
        %840 = vdwg.mxu0
        %841 = vmatprep.subr.mxu0 0.0
        %842 = vmatpush1.msra.mxu0 0.0
        %843 = vmatprep.subr.mxu0 0.0
        %844 = vmatpush1.msra.mxu0 0.0
        %845 = vmatprep.subr.mxu0 0.0
        %846 = vmatpush1.msra.mxu0 0.0
        %847 = vmatprep.subr.mxu0 0.0
        %848 = vmatpush1.msra.mxu0 0.0
        %849 = vmatprep.subr.mxu0 0.0
        %850 = vmatpush1.msra.mxu0 0.0
        %851 = vmatprep.subr.mxu0 0.0
        %852 = vmatpush1.msra.mxu0 0.0
        %853 = vmatprep.subr.mxu0 0.0
        %854 = vmatpush1.msra.mxu0 0.0
        %855 = vmatprep.subr.mxu0 0.0
        %856 = vmatpush1.msra.mxu0 0.0
        %857 = vmatprep.subr.mxu0 0.0
        %858 = vmatpush1.msra.mxu0 0.0
        %859 = vmatprep.subr.mxu0 0.0
        %860 = vmatpush1.msra.mxu0 0.0
        %861 = vmatprep.subr.mxu0 0.0
        %862 = vmatpush1.msra.mxu0 0.0
        %863 = vmatprep.subr.mxu0 0.0
        %864 = vmatpush1.msra.mxu0 0.0
        %865 = vmatprep.subr.mxu0 0.0
        %866 = vmatpush1.msra.mxu0 %v507
        %867 = vmatprep.subr.mxu0 0.0
        %868 = vmatpush1.msra.mxu0 %v506
        %869 = vmatprep.subr.mxu0 0.0
        %870 = vmatpush1.msra.mxu0 %v505
        %871 = vmatprep.subr.mxu0 0.0
        %872 = vmatpush1.msra.mxu0 %v504
        %873 = vmatprep.subr.mxu0 0.0
        %874 = vmatpush2.msra.mxu0 0.0
        %875 = vmatprep.subr.mxu0 0.0
        %876 = vmatpush2.msra.mxu0 0.0
        %877 = vmatprep.subr.mxu0 0.0
        %878 = vmatpush2.msra.mxu0 0.0
        %879 = vmatprep.subr.mxu0 0.0
        %880 = vmatpush2.msra.mxu0 0.0
        %881 = vmatprep.subr.mxu0 0.0
        %882 = vmatpush2.msra.mxu0 0.0
        %883 = vmatprep.subr.mxu0 0.0
        %884 = vmatpush2.msra.mxu0 0.0
        %885 = vmatprep.subr.mxu0 0.0
        %886 = vmatpush2.msra.mxu0 0.0
        %887 = vmatprep.subr.mxu0 0.0
        %888 = vmatpush2.msra.mxu0 0.0
        %889 = vmatprep.subr.mxu0 0.0
        %890 = vmatpush2.msra.mxu0 0.0
        %891 = vmatprep.subr.mxu0 0.0
        %892 = vmatpush2.msra.mxu0 0.0
        %893 = vmatprep.subr.mxu0 0.0
        %894 = vmatpush2.msra.mxu0 0.0
        %895 = vmatprep.subr.mxu0 0.0
        %896 = vmatpush2.msra.mxu0 0.0
        %897 = vmatprep.subr.mxu0 0.0
        %898 = vmatpush2.msra.mxu0 0.0
        %899 = vmatprep.subr.mxu0 0.0
        %900 = vmatpush2.msra.mxu0 0.0
        %901 = vmatprep.subr.mxu0 0.0
        %902 = vmatpush2.msra.mxu0 0.0
        %903 = vmatprep.subr.mxu0 0.0
        %904 = vmatpush2.msra.mxu0 0.0
        %905 = vmatprep.mubr.f32.mxu0 0.0
        %906 = vmatmul.mubr.f32.gmra.mxu0 %v769
        %v907 = vpop.f32.mrf.mxu0
        %v908 = vadd.f32 0.0, %v907
        %v909 = vpop.f32.mrf.mxu0
        %910 = vdwg.mxu0
        %s911 = scalar_lea.vmem [#allocation2], %s767
        %v912 = vld [vmem:[%s911] sm:$0x3]
        %v913 = vadd.f32 %v912, %v838
        %v914 = vxor.u32 %v913, 2147483648
        %v915 = vmul.f32 %v914, 1.442695
        %v916 = vpow.pop %v915
        %v917 = vadd.f32 %v916, 1.0
        %v918 = vrcp.pop %v917
        %v919 = vmul.f32 1.0, %v918
        %s920 = scalar_lea.vmem [#allocation3], %s767
        %v921 = vld [vmem:[%s920] sm:$0x3]
        %v922 = vadd.f32 %v921, %v908
        %v923 = vxor.u32 %v922, 2147483648
        %v924 = vmul.f32 %v923, 1.442695
        %v925 = vpow.pop %v924
        %v926 = vadd.f32 %v925, 1.0
        %v927 = vrcp.pop %v926
        %v928 = vmul.f32 1.0, %v927
        %s929 = scalar_lea.vmem [#allocation4], %s767
        %v930 = vld [vmem:[%s929] sm:$0x3]
        %931 = vmatprep.subr.mxu0 0.0
        %932 = vmatpush1.msra.mxu0 0.0
        %933 = vmatprep.subr.mxu0 0.0
        %934 = vmatpush1.msra.mxu0 0.0
        %935 = vmatprep.subr.mxu0 0.0
        %936 = vmatpush1.msra.mxu0 0.0
        %937 = vmatprep.subr.mxu0 0.0
        %938 = vmatpush1.msra.mxu0 0.0
        %939 = vmatprep.subr.mxu0 0.0
        %940 = vmatpush1.msra.mxu0 0.0
        %941 = vmatprep.subr.mxu0 0.0
        %942 = vmatpush1.msra.mxu0 0.0
        %943 = vmatprep.subr.mxu0 0.0
        %944 = vmatpush1.msra.mxu0 0.0
        %945 = vmatprep.subr.mxu0 0.0
        %946 = vmatpush1.msra.mxu0 0.0
        %947 = vmatprep.subr.mxu0 0.0
        %948 = vmatpush1.msra.mxu0 0.0
        %949 = vmatprep.subr.mxu0 0.0
        %950 = vmatpush1.msra.mxu0 0.0
        %951 = vmatprep.subr.mxu0 0.0
        %952 = vmatpush1.msra.mxu0 0.0
        %953 = vmatprep.subr.mxu0 0.0
        %954 = vmatpush1.msra.mxu0 0.0
        %955 = vmatprep.subr.mxu0 0.0
        %956 = vmatpush1.msra.mxu0 %v512
        %957 = vmatprep.subr.mxu0 0.0
        %958 = vmatpush1.msra.mxu0 %v511
        %959 = vmatprep.subr.mxu0 0.0
        %960 = vmatpush1.msra.mxu0 %v510
        %961 = vmatprep.subr.mxu0 0.0
        %962 = vmatpush1.msra.mxu0 %v509
        %963 = vmatprep.subr.mxu0 0.0
        %964 = vmatpush2.msra.mxu0 0.0
        %965 = vmatprep.subr.mxu0 0.0
        %966 = vmatpush2.msra.mxu0 0.0
        %967 = vmatprep.subr.mxu0 0.0
        %968 = vmatpush2.msra.mxu0 0.0
        %969 = vmatprep.subr.mxu0 0.0
        %970 = vmatpush2.msra.mxu0 0.0
        %971 = vmatprep.subr.mxu0 0.0
        %972 = vmatpush2.msra.mxu0 0.0
        %973 = vmatprep.subr.mxu0 0.0
        %974 = vmatpush2.msra.mxu0 0.0
        %975 = vmatprep.subr.mxu0 0.0
        %976 = vmatpush2.msra.mxu0 0.0
        %977 = vmatprep.subr.mxu0 0.0
        %978 = vmatpush2.msra.mxu0 0.0
        %979 = vmatprep.subr.mxu0 0.0
        %980 = vmatpush2.msra.mxu0 0.0
        %981 = vmatprep.subr.mxu0 0.0
        %982 = vmatpush2.msra.mxu0 0.0
        %983 = vmatprep.subr.mxu0 0.0
        %984 = vmatpush2.msra.mxu0 0.0
        %985 = vmatprep.subr.mxu0 0.0
        %986 = vmatpush2.msra.mxu0 0.0
        %987 = vmatprep.subr.mxu0 0.0
        %988 = vmatpush2.msra.mxu0 0.0
        %989 = vmatprep.subr.mxu0 0.0
        %990 = vmatpush2.msra.mxu0 0.0
        %991 = vmatprep.subr.mxu0 0.0
        %992 = vmatpush2.msra.mxu0 0.0
        %993 = vmatprep.subr.mxu0 0.0
        %994 = vmatpush2.msra.mxu0 0.0
        %995 = vmatprep.mubr.f32.mxu0 0.0
        %996 = vmatmul.mubr.f32.gmra.mxu0 %v769
        %v997 = vpop.f32.mrf.mxu0
        %v998 = vadd.f32 %v684, %v997
        %v999 = vpop.f32.mrf.mxu0
        %1000 = vdwg.mxu0
        %v1001 = vmul.f32 %v919, %v998
        %v1002 = vadd.f32 %v930, %v1001
        %v1003 = vtanh.pop %v1002
        %v1004 = vsub.f32 1.0, %v928
        %v1005 = vmul.f32 %v1004, %v1003
        %v1006 = vmul.f32 %v928, %v762
        %v1007 = vadd.f32 %v1005, %v1006
        %s1008 = scalar_lea.vmem %s292, %s767
        %1009 = vst.msk [vmem:[%s1008] sm:$0x3] %vm764, %v1007
        %s1010 = scalar_select %p514, 2, 5
        %s1011 = smul.u32 %s1010, 2
        %v1013 = vsel %vm307, %v1007, 0
        %1015 = vmatprep.subr.mxu0 0.0
        %1016 = vmatpush1.msra.mxu0 0.0
        %1017 = vmatprep.subr.mxu0 0.0
        %1018 = vmatpush1.msra.mxu0 0.0
        %1019 = vmatprep.subr.mxu0 0.0
        %1020 = vmatpush1.msra.mxu0 0.0
        %1021 = vmatprep.subr.mxu0 0.0
        %1022 = vmatpush1.msra.mxu0 0.0
        %1023 = vmatprep.subr.mxu0 0.0
        %1024 = vmatpush1.msra.mxu0 0.0
        %1025 = vmatprep.subr.mxu0 0.0
        %1026 = vmatpush1.msra.mxu0 0.0
        %1027 = vmatprep.subr.mxu0 0.0
        %1028 = vmatpush1.msra.mxu0 0.0
        %1029 = vmatprep.subr.mxu0 0.0
        %1030 = vmatpush1.msra.mxu0 0.0
        %1031 = vmatprep.subr.mxu0 0.0
        %1032 = vmatpush1.msra.mxu0 0.0
        %1033 = vmatprep.subr.mxu0 0.0
        %1034 = vmatpush1.msra.mxu0 0.0
        %1035 = vmatprep.subr.mxu0 0.0
        %1036 = vmatpush1.msra.mxu0 0.0
        %1037 = vmatprep.subr.mxu0 0.0
        %1038 = vmatpush1.msra.mxu0 0.0
        %1039 = vmatprep.subr.mxu0 0.0
        %1040 = vmatpush1.msra.mxu0 %v502
        %1041 = vmatprep.subr.mxu0 0.0
        %1042 = vmatpush1.msra.mxu0 %v501
        %1043 = vmatprep.subr.mxu0 0.0
        %1044 = vmatpush1.msra.mxu0 %v500
        %1045 = vmatprep.subr.mxu0 0.0
        %1046 = vmatpush1.msra.mxu0 %v499
        %1047 = vmatprep.subr.mxu0 0.0
        %1048 = vmatpush2.msra.mxu0 0.0
        %1049 = vmatprep.subr.mxu0 0.0
        %1050 = vmatpush2.msra.mxu0 0.0
        %1051 = vmatprep.subr.mxu0 0.0
        %1052 = vmatpush2.msra.mxu0 0.0
        %1053 = vmatprep.subr.mxu0 0.0
        %1054 = vmatpush2.msra.mxu0 0.0
        %1055 = vmatprep.subr.mxu0 0.0
        %1056 = vmatpush2.msra.mxu0 0.0
        %1057 = vmatprep.subr.mxu0 0.0
        %1058 = vmatpush2.msra.mxu0 0.0
        %1059 = vmatprep.subr.mxu0 0.0
        %1060 = vmatpush2.msra.mxu0 0.0
        %1061 = vmatprep.subr.mxu0 0.0
        %1062 = vmatpush2.msra.mxu0 0.0
        %1063 = vmatprep.subr.mxu0 0.0
        %1064 = vmatpush2.msra.mxu0 0.0
        %1065 = vmatprep.subr.mxu0 0.0
        %1066 = vmatpush2.msra.mxu0 0.0
        %1067 = vmatprep.subr.mxu0 0.0
        %1068 = vmatpush2.msra.mxu0 0.0
        %1069 = vmatprep.subr.mxu0 0.0
        %1070 = vmatpush2.msra.mxu0 0.0
        %1071 = vmatprep.subr.mxu0 0.0
        %1072 = vmatpush2.msra.mxu0 0.0
        %1073 = vmatprep.subr.mxu0 0.0
        %1074 = vmatpush2.msra.mxu0 0.0
        %1075 = vmatprep.subr.mxu0 0.0
        %1076 = vmatpush2.msra.mxu0 0.0
        %1077 = vmatprep.subr.mxu0 0.0
        %1078 = vmatpush2.msra.mxu0 0.0
        %1079 = vmatprep.mubr.f32.mxu0 0.0
        %1080 = vmatmul.mubr.f32.gmra.mxu0 %v1013
        %v1081 = vpop.f32.mrf.mxu0
        %v1082 = vadd.f32 0.0, %v1081
        %v1083 = vpop.f32.mrf.mxu0
        %1084 = vdwg.mxu0
        %1085 = vmatprep.subr.mxu0 0.0
        %1086 = vmatpush1.msra.mxu0 0.0
        %1087 = vmatprep.subr.mxu0 0.0
        %1088 = vmatpush1.msra.mxu0 0.0
        %1089 = vmatprep.subr.mxu0 0.0
        %1090 = vmatpush1.msra.mxu0 0.0
        %1091 = vmatprep.subr.mxu0 0.0
        %1092 = vmatpush1.msra.mxu0 0.0
        %1093 = vmatprep.subr.mxu0 0.0
        %1094 = vmatpush1.msra.mxu0 0.0
        %1095 = vmatprep.subr.mxu0 0.0
        %1096 = vmatpush1.msra.mxu0 0.0
        %1097 = vmatprep.subr.mxu0 0.0
        %1098 = vmatpush1.msra.mxu0 0.0
        %1099 = vmatprep.subr.mxu0 0.0
        %1100 = vmatpush1.msra.mxu0 0.0
        %1101 = vmatprep.subr.mxu0 0.0
        %1102 = vmatpush1.msra.mxu0 0.0
        %1103 = vmatprep.subr.mxu0 0.0
        %1104 = vmatpush1.msra.mxu0 0.0
        %1105 = vmatprep.subr.mxu0 0.0
        %1106 = vmatpush1.msra.mxu0 0.0
        %1107 = vmatprep.subr.mxu0 0.0
        %1108 = vmatpush1.msra.mxu0 0.0
        %1109 = vmatprep.subr.mxu0 0.0
        %1110 = vmatpush1.msra.mxu0 %v507
        %1111 = vmatprep.subr.mxu0 0.0
        %1112 = vmatpush1.msra.mxu0 %v506
        %1113 = vmatprep.subr.mxu0 0.0
        %1114 = vmatpush1.msra.mxu0 %v505
        %1115 = vmatprep.subr.mxu0 0.0
        %1116 = vmatpush1.msra.mxu0 %v504
        %1117 = vmatprep.subr.mxu0 0.0
        %1118 = vmatpush2.msra.mxu0 0.0
        %1119 = vmatprep.subr.mxu0 0.0
        %1120 = vmatpush2.msra.mxu0 0.0
        %1121 = vmatprep.subr.mxu0 0.0
        %1122 = vmatpush2.msra.mxu0 0.0
        %1123 = vmatprep.subr.mxu0 0.0
        %1124 = vmatpush2.msra.mxu0 0.0
        %1125 = vmatprep.subr.mxu0 0.0
        %1126 = vmatpush2.msra.mxu0 0.0
        %1127 = vmatprep.subr.mxu0 0.0
        %1128 = vmatpush2.msra.mxu0 0.0
        %1129 = vmatprep.subr.mxu0 0.0
        %1130 = vmatpush2.msra.mxu0 0.0
        %1131 = vmatprep.subr.mxu0 0.0
        %1132 = vmatpush2.msra.mxu0 0.0
        %1133 = vmatprep.subr.mxu0 0.0
        %1134 = vmatpush2.msra.mxu0 0.0
        %1135 = vmatprep.subr.mxu0 0.0
        %1136 = vmatpush2.msra.mxu0 0.0
        %1137 = vmatprep.subr.mxu0 0.0
        %1138 = vmatpush2.msra.mxu0 0.0
        %1139 = vmatprep.subr.mxu0 0.0
        %1140 = vmatpush2.msra.mxu0 0.0
        %1141 = vmatprep.subr.mxu0 0.0
        %1142 = vmatpush2.msra.mxu0 0.0
        %1143 = vmatprep.subr.mxu0 0.0
        %1144 = vmatpush2.msra.mxu0 0.0
        %1145 = vmatprep.subr.mxu0 0.0
        %1146 = vmatpush2.msra.mxu0 0.0
        %1147 = vmatprep.subr.mxu0 0.0
        %1148 = vmatpush2.msra.mxu0 0.0
        %1149 = vmatprep.mubr.f32.mxu0 0.0
        %1150 = vmatmul.mubr.f32.gmra.mxu0 %v1013
        %v1151 = vpop.f32.mrf.mxu0
        %v1152 = vadd.f32 0.0, %v1151
        %v1153 = vpop.f32.mrf.mxu0
        %1154 = vdwg.mxu0
        %s1155 = scalar_lea.vmem [#allocation2], %s1011
        %v1156 = vld [vmem:[%s1155] sm:$0x3]
        %v1157 = vadd.f32 %v1156, %v1082
        %v1158 = vxor.u32 %v1157, 2147483648
        %v1159 = vmul.f32 %v1158, 1.442695
        %v1160 = vpow.pop %v1159
        %v1161 = vadd.f32 %v1160, 1.0
        %v1162 = vrcp.pop %v1161
        %v1163 = vmul.f32 1.0, %v1162
        %s1164 = scalar_lea.vmem [#allocation3], %s1011
        %v1165 = vld [vmem:[%s1164] sm:$0x3]
        %v1166 = vadd.f32 %v1165, %v1152
        %v1167 = vxor.u32 %v1166, 2147483648
        %v1168 = vmul.f32 %v1167, 1.442695
        %v1169 = vpow.pop %v1168
        %v1170 = vadd.f32 %v1169, 1.0
        %v1171 = vrcp.pop %v1170
        %v1172 = vmul.f32 1.0, %v1171
        %s1173 = scalar_lea.vmem [#allocation4], %s1011
        %v1174 = vld [vmem:[%s1173] sm:$0x3]
        %1175 = vmatprep.subr.mxu0 0.0
        %1176 = vmatpush1.msra.mxu0 0.0
        %1177 = vmatprep.subr.mxu0 0.0
        %1178 = vmatpush1.msra.mxu0 0.0
        %1179 = vmatprep.subr.mxu0 0.0
        %1180 = vmatpush1.msra.mxu0 0.0
        %1181 = vmatprep.subr.mxu0 0.0
        %1182 = vmatpush1.msra.mxu0 0.0
        %1183 = vmatprep.subr.mxu0 0.0
        %1184 = vmatpush1.msra.mxu0 0.0
        %1185 = vmatprep.subr.mxu0 0.0
        %1186 = vmatpush1.msra.mxu0 0.0
        %1187 = vmatprep.subr.mxu0 0.0
        %1188 = vmatpush1.msra.mxu0 0.0
        %1189 = vmatprep.subr.mxu0 0.0
        %1190 = vmatpush1.msra.mxu0 0.0
        %1191 = vmatprep.subr.mxu0 0.0
        %1192 = vmatpush1.msra.mxu0 0.0
        %1193 = vmatprep.subr.mxu0 0.0
        %1194 = vmatpush1.msra.mxu0 0.0
        %1195 = vmatprep.subr.mxu0 0.0
        %1196 = vmatpush1.msra.mxu0 0.0
        %1197 = vmatprep.subr.mxu0 0.0
        %1198 = vmatpush1.msra.mxu0 0.0
        %1199 = vmatprep.subr.mxu0 0.0
        %1200 = vmatpush1.msra.mxu0 %v512
        %1201 = vmatprep.subr.mxu0 0.0
        %1202 = vmatpush1.msra.mxu0 %v511
        %1203 = vmatprep.subr.mxu0 0.0
        %1204 = vmatpush1.msra.mxu0 %v510
        %1205 = vmatprep.subr.mxu0 0.0
        %1206 = vmatpush1.msra.mxu0 %v509
        %1207 = vmatprep.subr.mxu0 0.0
        %1208 = vmatpush2.msra.mxu0 0.0
        %1209 = vmatprep.subr.mxu0 0.0
        %1210 = vmatpush2.msra.mxu0 0.0
        %1211 = vmatprep.subr.mxu0 0.0
        %1212 = vmatpush2.msra.mxu0 0.0
        %1213 = vmatprep.subr.mxu0 0.0
        %1214 = vmatpush2.msra.mxu0 0.0
        %1215 = vmatprep.subr.mxu0 0.0
        %1216 = vmatpush2.msra.mxu0 0.0
        %1217 = vmatprep.subr.mxu0 0.0
        %1218 = vmatpush2.msra.mxu0 0.0
        %1219 = vmatprep.subr.mxu0 0.0
        %1220 = vmatpush2.msra.mxu0 0.0
        %1221 = vmatprep.subr.mxu0 0.0
        %1222 = vmatpush2.msra.mxu0 0.0
        %1223 = vmatprep.subr.mxu0 0.0
        %1224 = vmatpush2.msra.mxu0 0.0
        %1225 = vmatprep.subr.mxu0 0.0
        %1226 = vmatpush2.msra.mxu0 0.0
        %1227 = vmatprep.subr.mxu0 0.0
        %1228 = vmatpush2.msra.mxu0 0.0
        %1229 = vmatprep.subr.mxu0 0.0
        %1230 = vmatpush2.msra.mxu0 0.0
        %1231 = vmatprep.subr.mxu0 0.0
        %1232 = vmatpush2.msra.mxu0 0.0
        %1233 = vmatprep.subr.mxu0 0.0
        %1234 = vmatpush2.msra.mxu0 0.0
        %1235 = vmatprep.subr.mxu0 0.0
        %1236 = vmatpush2.msra.mxu0 0.0
        %1237 = vmatprep.subr.mxu0 0.0
        %1238 = vmatpush2.msra.mxu0 0.0
        %1239 = vmatprep.mubr.f32.mxu0 0.0
        %1240 = vmatmul.mubr.f32.gmra.mxu0 %v1013
        %v1241 = vpop.f32.mrf.mxu0
        %v1242 = vadd.f32 %v684, %v1241
        %v1243 = vpop.f32.mrf.mxu0
        %1244 = vdwg.mxu0
        %v1245 = vmul.f32 %v1163, %v1242
        %v1246 = vadd.f32 %v1174, %v1245
        %v1247 = vtanh.pop %v1246
        %v1248 = vsub.f32 1.0, %v1172
        %v1249 = vmul.f32 %v1248, %v1247
        %v1250 = vmul.f32 %v1172, %v1007
        %v1251 = vadd.f32 %v1249, %v1250
        %s1252 = scalar_lea.vmem %s292, %s1011
        %1253 = vst.msk [vmem:[%s1252] sm:$0x3] %vm764, %v1251
        %s1254 = scalar_select %p514, 3, 4
        %s1255 = smul.u32 %s1254, 2
        %v1257 = vsel %vm307, %v1251, 0
        %1259 = vmatprep.subr.mxu0 0.0
        %1260 = vmatpush1.msra.mxu0 0.0
        %1261 = vmatprep.subr.mxu0 0.0
        %1262 = vmatpush1.msra.mxu0 0.0
        %1263 = vmatprep.subr.mxu0 0.0
        %1264 = vmatpush1.msra.mxu0 0.0
        %1265 = vmatprep.subr.mxu0 0.0
        %1266 = vmatpush1.msra.mxu0 0.0
        %1267 = vmatprep.subr.mxu0 0.0
        %1268 = vmatpush1.msra.mxu0 0.0
        %1269 = vmatprep.subr.mxu0 0.0
        %1270 = vmatpush1.msra.mxu0 0.0
        %1271 = vmatprep.subr.mxu0 0.0
        %1272 = vmatpush1.msra.mxu0 0.0
        %1273 = vmatprep.subr.mxu0 0.0
        %1274 = vmatpush1.msra.mxu0 0.0
        %1275 = vmatprep.subr.mxu0 0.0
        %1276 = vmatpush1.msra.mxu0 0.0
        %1277 = vmatprep.subr.mxu0 0.0
        %1278 = vmatpush1.msra.mxu0 0.0
        %1279 = vmatprep.subr.mxu0 0.0
        %1280 = vmatpush1.msra.mxu0 0.0
        %1281 = vmatprep.subr.mxu0 0.0
        %1282 = vmatpush1.msra.mxu0 0.0
        %1283 = vmatprep.subr.mxu0 0.0
        %1284 = vmatpush1.msra.mxu0 %v502
        %1285 = vmatprep.subr.mxu0 0.0
        %1286 = vmatpush1.msra.mxu0 %v501
        %1287 = vmatprep.subr.mxu0 0.0
        %1288 = vmatpush1.msra.mxu0 %v500
        %1289 = vmatprep.subr.mxu0 0.0
        %1290 = vmatpush1.msra.mxu0 %v499
        %1291 = vmatprep.subr.mxu0 0.0
        %1292 = vmatpush2.msra.mxu0 0.0
        %1293 = vmatprep.subr.mxu0 0.0
        %1294 = vmatpush2.msra.mxu0 0.0
        %1295 = vmatprep.subr.mxu0 0.0
        %1296 = vmatpush2.msra.mxu0 0.0
        %1297 = vmatprep.subr.mxu0 0.0
        %1298 = vmatpush2.msra.mxu0 0.0
        %1299 = vmatprep.subr.mxu0 0.0
        %1300 = vmatpush2.msra.mxu0 0.0
        %1301 = vmatprep.subr.mxu0 0.0
        %1302 = vmatpush2.msra.mxu0 0.0
        %1303 = vmatprep.subr.mxu0 0.0
        %1304 = vmatpush2.msra.mxu0 0.0
        %1305 = vmatprep.subr.mxu0 0.0
        %1306 = vmatpush2.msra.mxu0 0.0
        %1307 = vmatprep.subr.mxu0 0.0
        %1308 = vmatpush2.msra.mxu0 0.0
        %1309 = vmatprep.subr.mxu0 0.0
        %1310 = vmatpush2.msra.mxu0 0.0
        %1311 = vmatprep.subr.mxu0 0.0
        %1312 = vmatpush2.msra.mxu0 0.0
        %1313 = vmatprep.subr.mxu0 0.0
        %1314 = vmatpush2.msra.mxu0 0.0
        %1315 = vmatprep.subr.mxu0 0.0
        %1316 = vmatpush2.msra.mxu0 0.0
        %1317 = vmatprep.subr.mxu0 0.0
        %1318 = vmatpush2.msra.mxu0 0.0
        %1319 = vmatprep.subr.mxu0 0.0
        %1320 = vmatpush2.msra.mxu0 0.0
        %1321 = vmatprep.subr.mxu0 0.0
        %1322 = vmatpush2.msra.mxu0 0.0
        %1323 = vmatprep.mubr.f32.mxu0 0.0
        %1324 = vmatmul.mubr.f32.gmra.mxu0 %v1257
        %v1325 = vpop.f32.mrf.mxu0
        %v1326 = vadd.f32 0.0, %v1325
        %v1327 = vpop.f32.mrf.mxu0
        %1328 = vdwg.mxu0
        %1329 = vmatprep.subr.mxu0 0.0
        %1330 = vmatpush1.msra.mxu0 0.0
        %1331 = vmatprep.subr.mxu0 0.0
        %1332 = vmatpush1.msra.mxu0 0.0
        %1333 = vmatprep.subr.mxu0 0.0
        %1334 = vmatpush1.msra.mxu0 0.0
        %1335 = vmatprep.subr.mxu0 0.0
        %1336 = vmatpush1.msra.mxu0 0.0
        %1337 = vmatprep.subr.mxu0 0.0
        %1338 = vmatpush1.msra.mxu0 0.0
        %1339 = vmatprep.subr.mxu0 0.0
        %1340 = vmatpush1.msra.mxu0 0.0
        %1341 = vmatprep.subr.mxu0 0.0
        %1342 = vmatpush1.msra.mxu0 0.0
        %1343 = vmatprep.subr.mxu0 0.0
        %1344 = vmatpush1.msra.mxu0 0.0
        %1345 = vmatprep.subr.mxu0 0.0
        %1346 = vmatpush1.msra.mxu0 0.0
        %1347 = vmatprep.subr.mxu0 0.0
        %1348 = vmatpush1.msra.mxu0 0.0
        %1349 = vmatprep.subr.mxu0 0.0
        %1350 = vmatpush1.msra.mxu0 0.0
        %1351 = vmatprep.subr.mxu0 0.0
        %1352 = vmatpush1.msra.mxu0 0.0
        %1353 = vmatprep.subr.mxu0 0.0
        %1354 = vmatpush1.msra.mxu0 %v507
        %1355 = vmatprep.subr.mxu0 0.0
        %1356 = vmatpush1.msra.mxu0 %v506
        %1357 = vmatprep.subr.mxu0 0.0
        %1358 = vmatpush1.msra.mxu0 %v505
        %1359 = vmatprep.subr.mxu0 0.0
        %1360 = vmatpush1.msra.mxu0 %v504
        %1361 = vmatprep.subr.mxu0 0.0
        %1362 = vmatpush2.msra.mxu0 0.0
        %1363 = vmatprep.subr.mxu0 0.0
        %1364 = vmatpush2.msra.mxu0 0.0
        %1365 = vmatprep.subr.mxu0 0.0
        %1366 = vmatpush2.msra.mxu0 0.0
        %1367 = vmatprep.subr.mxu0 0.0
        %1368 = vmatpush2.msra.mxu0 0.0
        %1369 = vmatprep.subr.mxu0 0.0
        %1370 = vmatpush2.msra.mxu0 0.0
        %1371 = vmatprep.subr.mxu0 0.0
        %1372 = vmatpush2.msra.mxu0 0.0
        %1373 = vmatprep.subr.mxu0 0.0
        %1374 = vmatpush2.msra.mxu0 0.0
        %1375 = vmatprep.subr.mxu0 0.0
        %1376 = vmatpush2.msra.mxu0 0.0
        %1377 = vmatprep.subr.mxu0 0.0
        %1378 = vmatpush2.msra.mxu0 0.0
        %1379 = vmatprep.subr.mxu0 0.0
        %1380 = vmatpush2.msra.mxu0 0.0
        %1381 = vmatprep.subr.mxu0 0.0
        %1382 = vmatpush2.msra.mxu0 0.0
        %1383 = vmatprep.subr.mxu0 0.0
        %1384 = vmatpush2.msra.mxu0 0.0
        %1385 = vmatprep.subr.mxu0 0.0
        %1386 = vmatpush2.msra.mxu0 0.0
        %1387 = vmatprep.subr.mxu0 0.0
        %1388 = vmatpush2.msra.mxu0 0.0
        %1389 = vmatprep.subr.mxu0 0.0
        %1390 = vmatpush2.msra.mxu0 0.0
        %1391 = vmatprep.subr.mxu0 0.0
        %1392 = vmatpush2.msra.mxu0 0.0
        %1393 = vmatprep.mubr.f32.mxu0 0.0
        %1394 = vmatmul.mubr.f32.gmra.mxu0 %v1257
        %v1395 = vpop.f32.mrf.mxu0
        %v1396 = vadd.f32 0.0, %v1395
        %v1397 = vpop.f32.mrf.mxu0
        %1398 = vdwg.mxu0
        %s1399 = scalar_lea.vmem [#allocation2], %s1255
        %v1400 = vld [vmem:[%s1399] sm:$0x3]
        %v1401 = vadd.f32 %v1400, %v1326
        %v1402 = vxor.u32 %v1401, 2147483648
        %v1403 = vmul.f32 %v1402, 1.442695
        %v1404 = vpow.pop %v1403
        %v1405 = vadd.f32 %v1404, 1.0
        %v1406 = vrcp.pop %v1405
        %v1407 = vmul.f32 1.0, %v1406
        %s1408 = scalar_lea.vmem [#allocation3], %s1255
        %v1409 = vld [vmem:[%s1408] sm:$0x3]
        %v1410 = vadd.f32 %v1409, %v1396
        %v1411 = vxor.u32 %v1410, 2147483648
        %v1412 = vmul.f32 %v1411, 1.442695
        %v1413 = vpow.pop %v1412
        %v1414 = vadd.f32 %v1413, 1.0
        %v1415 = vrcp.pop %v1414
        %v1416 = vmul.f32 1.0, %v1415
        %s1417 = scalar_lea.vmem [#allocation4], %s1255
        %v1418 = vld [vmem:[%s1417] sm:$0x3]
        %1419 = vmatprep.subr.mxu0 0.0
        %1420 = vmatpush1.msra.mxu0 0.0
        %1421 = vmatprep.subr.mxu0 0.0
        %1422 = vmatpush1.msra.mxu0 0.0
        %1423 = vmatprep.subr.mxu0 0.0
        %1424 = vmatpush1.msra.mxu0 0.0
        %1425 = vmatprep.subr.mxu0 0.0
        %1426 = vmatpush1.msra.mxu0 0.0
        %1427 = vmatprep.subr.mxu0 0.0
        %1428 = vmatpush1.msra.mxu0 0.0
        %1429 = vmatprep.subr.mxu0 0.0
        %1430 = vmatpush1.msra.mxu0 0.0
        %1431 = vmatprep.subr.mxu0 0.0
        %1432 = vmatpush1.msra.mxu0 0.0
        %1433 = vmatprep.subr.mxu0 0.0
        %1434 = vmatpush1.msra.mxu0 0.0
        %1435 = vmatprep.subr.mxu0 0.0
        %1436 = vmatpush1.msra.mxu0 0.0
        %1437 = vmatprep.subr.mxu0 0.0
        %1438 = vmatpush1.msra.mxu0 0.0
        %1439 = vmatprep.subr.mxu0 0.0
        %1440 = vmatpush1.msra.mxu0 0.0
        %1441 = vmatprep.subr.mxu0 0.0
        %1442 = vmatpush1.msra.mxu0 0.0
        %1443 = vmatprep.subr.mxu0 0.0
        %1444 = vmatpush1.msra.mxu0 %v512
        %1445 = vmatprep.subr.mxu0 0.0
        %1446 = vmatpush1.msra.mxu0 %v511
        %1447 = vmatprep.subr.mxu0 0.0
        %1448 = vmatpush1.msra.mxu0 %v510
        %1449 = vmatprep.subr.mxu0 0.0
        %1450 = vmatpush1.msra.mxu0 %v509
        %1451 = vmatprep.subr.mxu0 0.0
        %1452 = vmatpush2.msra.mxu0 0.0
        %1453 = vmatprep.subr.mxu0 0.0
        %1454 = vmatpush2.msra.mxu0 0.0
        %1455 = vmatprep.subr.mxu0 0.0
        %1456 = vmatpush2.msra.mxu0 0.0
        %1457 = vmatprep.subr.mxu0 0.0
        %1458 = vmatpush2.msra.mxu0 0.0
        %1459 = vmatprep.subr.mxu0 0.0
        %1460 = vmatpush2.msra.mxu0 0.0
        %1461 = vmatprep.subr.mxu0 0.0
        %1462 = vmatpush2.msra.mxu0 0.0
        %1463 = vmatprep.subr.mxu0 0.0
        %1464 = vmatpush2.msra.mxu0 0.0
        %1465 = vmatprep.subr.mxu0 0.0
        %1466 = vmatpush2.msra.mxu0 0.0
        %1467 = vmatprep.subr.mxu0 0.0
        %1468 = vmatpush2.msra.mxu0 0.0
        %1469 = vmatprep.subr.mxu0 0.0
        %1470 = vmatpush2.msra.mxu0 0.0
        %1471 = vmatprep.subr.mxu0 0.0
        %1472 = vmatpush2.msra.mxu0 0.0
        %1473 = vmatprep.subr.mxu0 0.0
        %1474 = vmatpush2.msra.mxu0 0.0
        %1475 = vmatprep.subr.mxu0 0.0
        %1476 = vmatpush2.msra.mxu0 0.0
        %1477 = vmatprep.subr.mxu0 0.0
        %1478 = vmatpush2.msra.mxu0 0.0
        %1479 = vmatprep.subr.mxu0 0.0
        %1480 = vmatpush2.msra.mxu0 0.0
        %1481 = vmatprep.subr.mxu0 0.0
        %1482 = vmatpush2.msra.mxu0 0.0
        %1483 = vmatprep.mubr.f32.mxu0 0.0
        %1484 = vmatmul.mubr.f32.gmra.mxu0 %v1257
        %v1485 = vpop.f32.mrf.mxu0
        %v1486 = vadd.f32 %v684, %v1485
        %v1487 = vpop.f32.mrf.mxu0
        %1488 = vdwg.mxu0
        %v1489 = vmul.f32 %v1407, %v1486
        %v1490 = vadd.f32 %v1418, %v1489
        %v1491 = vtanh.pop %v1490
        %v1492 = vsub.f32 1.0, %v1416
        %v1493 = vmul.f32 %v1492, %v1491
        %v1494 = vmul.f32 %v1416, %v1251
        %v1495 = vadd.f32 %v1493, %v1494
        %s1496 = scalar_lea.vmem %s292, %s1255
        %1497 = vst.msk [vmem:[%s1496] sm:$0x3] %vm764, %v1495
        %s1498 = scalar_select %p514, 4, 3
        %s1499 = smul.u32 %s1498, 2
        %v1501 = vsel %vm307, %v1495, 0
        %1503 = vmatprep.subr.mxu0 0.0
        %1504 = vmatpush1.msra.mxu0 0.0
        %1505 = vmatprep.subr.mxu0 0.0
        %1506 = vmatpush1.msra.mxu0 0.0
        %1507 = vmatprep.subr.mxu0 0.0
        %1508 = vmatpush1.msra.mxu0 0.0
        %1509 = vmatprep.subr.mxu0 0.0
        %1510 = vmatpush1.msra.mxu0 0.0
        %1511 = vmatprep.subr.mxu0 0.0
        %1512 = vmatpush1.msra.mxu0 0.0
        %1513 = vmatprep.subr.mxu0 0.0
        %1514 = vmatpush1.msra.mxu0 0.0
        %1515 = vmatprep.subr.mxu0 0.0
        %1516 = vmatpush1.msra.mxu0 0.0
        %1517 = vmatprep.subr.mxu0 0.0
        %1518 = vmatpush1.msra.mxu0 0.0
        %1519 = vmatprep.subr.mxu0 0.0
        %1520 = vmatpush1.msra.mxu0 0.0
        %1521 = vmatprep.subr.mxu0 0.0
        %1522 = vmatpush1.msra.mxu0 0.0
        %1523 = vmatprep.subr.mxu0 0.0
        %1524 = vmatpush1.msra.mxu0 0.0
        %1525 = vmatprep.subr.mxu0 0.0
        %1526 = vmatpush1.msra.mxu0 0.0
        %1527 = vmatprep.subr.mxu0 0.0
        %1528 = vmatpush1.msra.mxu0 %v502
        %1529 = vmatprep.subr.mxu0 0.0
        %1530 = vmatpush1.msra.mxu0 %v501
        %1531 = vmatprep.subr.mxu0 0.0
        %1532 = vmatpush1.msra.mxu0 %v500
        %1533 = vmatprep.subr.mxu0 0.0
        %1534 = vmatpush1.msra.mxu0 %v499
        %1535 = vmatprep.subr.mxu0 0.0
        %1536 = vmatpush2.msra.mxu0 0.0
        %1537 = vmatprep.subr.mxu0 0.0
        %1538 = vmatpush2.msra.mxu0 0.0
        %1539 = vmatprep.subr.mxu0 0.0
        %1540 = vmatpush2.msra.mxu0 0.0
        %1541 = vmatprep.subr.mxu0 0.0
        %1542 = vmatpush2.msra.mxu0 0.0
        %1543 = vmatprep.subr.mxu0 0.0
        %1544 = vmatpush2.msra.mxu0 0.0
        %1545 = vmatprep.subr.mxu0 0.0
        %1546 = vmatpush2.msra.mxu0 0.0
        %1547 = vmatprep.subr.mxu0 0.0
        %1548 = vmatpush2.msra.mxu0 0.0
        %1549 = vmatprep.subr.mxu0 0.0
        %1550 = vmatpush2.msra.mxu0 0.0
        %1551 = vmatprep.subr.mxu0 0.0
        %1552 = vmatpush2.msra.mxu0 0.0
        %1553 = vmatprep.subr.mxu0 0.0
        %1554 = vmatpush2.msra.mxu0 0.0
        %1555 = vmatprep.subr.mxu0 0.0
        %1556 = vmatpush2.msra.mxu0 0.0
        %1557 = vmatprep.subr.mxu0 0.0
        %1558 = vmatpush2.msra.mxu0 0.0
        %1559 = vmatprep.subr.mxu0 0.0
        %1560 = vmatpush2.msra.mxu0 0.0
        %1561 = vmatprep.subr.mxu0 0.0
        %1562 = vmatpush2.msra.mxu0 0.0
        %1563 = vmatprep.subr.mxu0 0.0
        %1564 = vmatpush2.msra.mxu0 0.0
        %1565 = vmatprep.subr.mxu0 0.0
        %1566 = vmatpush2.msra.mxu0 0.0
        %1567 = vmatprep.mubr.f32.mxu0 0.0
        %1568 = vmatmul.mubr.f32.gmra.mxu0 %v1501
        %v1569 = vpop.f32.mrf.mxu0
        %v1570 = vadd.f32 0.0, %v1569
        %v1571 = vpop.f32.mrf.mxu0
        %1572 = vdwg.mxu0
        %1573 = vmatprep.subr.mxu0 0.0
        %1574 = vmatpush1.msra.mxu0 0.0
        %1575 = vmatprep.subr.mxu0 0.0
        %1576 = vmatpush1.msra.mxu0 0.0
        %1577 = vmatprep.subr.mxu0 0.0
        %1578 = vmatpush1.msra.mxu0 0.0
        %1579 = vmatprep.subr.mxu0 0.0
        %1580 = vmatpush1.msra.mxu0 0.0
        %1581 = vmatprep.subr.mxu0 0.0
        %1582 = vmatpush1.msra.mxu0 0.0
        %1583 = vmatprep.subr.mxu0 0.0
        %1584 = vmatpush1.msra.mxu0 0.0
        %1585 = vmatprep.subr.mxu0 0.0
        %1586 = vmatpush1.msra.mxu0 0.0
        %1587 = vmatprep.subr.mxu0 0.0
        %1588 = vmatpush1.msra.mxu0 0.0
        %1589 = vmatprep.subr.mxu0 0.0
        %1590 = vmatpush1.msra.mxu0 0.0
        %1591 = vmatprep.subr.mxu0 0.0
        %1592 = vmatpush1.msra.mxu0 0.0
        %1593 = vmatprep.subr.mxu0 0.0
        %1594 = vmatpush1.msra.mxu0 0.0
        %1595 = vmatprep.subr.mxu0 0.0
        %1596 = vmatpush1.msra.mxu0 0.0
        %1597 = vmatprep.subr.mxu0 0.0
        %1598 = vmatpush1.msra.mxu0 %v507
        %1599 = vmatprep.subr.mxu0 0.0
        %1600 = vmatpush1.msra.mxu0 %v506
        %1601 = vmatprep.subr.mxu0 0.0
        %1602 = vmatpush1.msra.mxu0 %v505
        %1603 = vmatprep.subr.mxu0 0.0
        %1604 = vmatpush1.msra.mxu0 %v504
        %1605 = vmatprep.subr.mxu0 0.0
        %1606 = vmatpush2.msra.mxu0 0.0
        %1607 = vmatprep.subr.mxu0 0.0
        %1608 = vmatpush2.msra.mxu0 0.0
        %1609 = vmatprep.subr.mxu0 0.0
        %1610 = vmatpush2.msra.mxu0 0.0
        %1611 = vmatprep.subr.mxu0 0.0
        %1612 = vmatpush2.msra.mxu0 0.0
        %1613 = vmatprep.subr.mxu0 0.0
        %1614 = vmatpush2.msra.mxu0 0.0
        %1615 = vmatprep.subr.mxu0 0.0
        %1616 = vmatpush2.msra.mxu0 0.0
        %1617 = vmatprep.subr.mxu0 0.0
        %1618 = vmatpush2.msra.mxu0 0.0
        %1619 = vmatprep.subr.mxu0 0.0
        %1620 = vmatpush2.msra.mxu0 0.0
        %1621 = vmatprep.subr.mxu0 0.0
        %1622 = vmatpush2.msra.mxu0 0.0
        %1623 = vmatprep.subr.mxu0 0.0
        %1624 = vmatpush2.msra.mxu0 0.0
        %1625 = vmatprep.subr.mxu0 0.0
        %1626 = vmatpush2.msra.mxu0 0.0
        %1627 = vmatprep.subr.mxu0 0.0
        %1628 = vmatpush2.msra.mxu0 0.0
        %1629 = vmatprep.subr.mxu0 0.0
        %1630 = vmatpush2.msra.mxu0 0.0
        %1631 = vmatprep.subr.mxu0 0.0
        %1632 = vmatpush2.msra.mxu0 0.0
        %1633 = vmatprep.subr.mxu0 0.0
        %1634 = vmatpush2.msra.mxu0 0.0
        %1635 = vmatprep.subr.mxu0 0.0
        %1636 = vmatpush2.msra.mxu0 0.0
        %1637 = vmatprep.mubr.f32.mxu0 0.0
        %1638 = vmatmul.mubr.f32.gmra.mxu0 %v1501
        %v1639 = vpop.f32.mrf.mxu0
        %v1640 = vadd.f32 0.0, %v1639
        %v1641 = vpop.f32.mrf.mxu0
        %1642 = vdwg.mxu0
        %s1643 = scalar_lea.vmem [#allocation2], %s1499
        %v1644 = vld [vmem:[%s1643] sm:$0x3]
        %v1645 = vadd.f32 %v1644, %v1570
        %v1646 = vxor.u32 %v1645, 2147483648
        %v1647 = vmul.f32 %v1646, 1.442695
        %v1648 = vpow.pop %v1647
        %v1649 = vadd.f32 %v1648, 1.0
        %v1650 = vrcp.pop %v1649
        %v1651 = vmul.f32 1.0, %v1650
        %s1652 = scalar_lea.vmem [#allocation3], %s1499
        %v1653 = vld [vmem:[%s1652] sm:$0x3]
        %v1654 = vadd.f32 %v1653, %v1640
        %v1655 = vxor.u32 %v1654, 2147483648
        %v1656 = vmul.f32 %v1655, 1.442695
        %v1657 = vpow.pop %v1656
        %v1658 = vadd.f32 %v1657, 1.0
        %v1659 = vrcp.pop %v1658
        %v1660 = vmul.f32 1.0, %v1659
        %s1661 = scalar_lea.vmem [#allocation4], %s1499
        %v1662 = vld [vmem:[%s1661] sm:$0x3]
        %1663 = vmatprep.subr.mxu0 0.0
        %1664 = vmatpush1.msra.mxu0 0.0
        %1665 = vmatprep.subr.mxu0 0.0
        %1666 = vmatpush1.msra.mxu0 0.0
        %1667 = vmatprep.subr.mxu0 0.0
        %1668 = vmatpush1.msra.mxu0 0.0
        %1669 = vmatprep.subr.mxu0 0.0
        %1670 = vmatpush1.msra.mxu0 0.0
        %1671 = vmatprep.subr.mxu0 0.0
        %1672 = vmatpush1.msra.mxu0 0.0
        %1673 = vmatprep.subr.mxu0 0.0
        %1674 = vmatpush1.msra.mxu0 0.0
        %1675 = vmatprep.subr.mxu0 0.0
        %1676 = vmatpush1.msra.mxu0 0.0
        %1677 = vmatprep.subr.mxu0 0.0
        %1678 = vmatpush1.msra.mxu0 0.0
        %1679 = vmatprep.subr.mxu0 0.0
        %1680 = vmatpush1.msra.mxu0 0.0
        %1681 = vmatprep.subr.mxu0 0.0
        %1682 = vmatpush1.msra.mxu0 0.0
        %1683 = vmatprep.subr.mxu0 0.0
        %1684 = vmatpush1.msra.mxu0 0.0
        %1685 = vmatprep.subr.mxu0 0.0
        %1686 = vmatpush1.msra.mxu0 0.0
        %1687 = vmatprep.subr.mxu0 0.0
        %1688 = vmatpush1.msra.mxu0 %v512
        %1689 = vmatprep.subr.mxu0 0.0
        %1690 = vmatpush1.msra.mxu0 %v511
        %1691 = vmatprep.subr.mxu0 0.0
        %1692 = vmatpush1.msra.mxu0 %v510
        %1693 = vmatprep.subr.mxu0 0.0
        %1694 = vmatpush1.msra.mxu0 %v509
        %1695 = vmatprep.subr.mxu0 0.0
        %1696 = vmatpush2.msra.mxu0 0.0
        %1697 = vmatprep.subr.mxu0 0.0
        %1698 = vmatpush2.msra.mxu0 0.0
        %1699 = vmatprep.subr.mxu0 0.0
        %1700 = vmatpush2.msra.mxu0 0.0
        %1701 = vmatprep.subr.mxu0 0.0
        %1702 = vmatpush2.msra.mxu0 0.0
        %1703 = vmatprep.subr.mxu0 0.0
        %1704 = vmatpush2.msra.mxu0 0.0
        %1705 = vmatprep.subr.mxu0 0.0
        %1706 = vmatpush2.msra.mxu0 0.0
        %1707 = vmatprep.subr.mxu0 0.0
        %1708 = vmatpush2.msra.mxu0 0.0
        %1709 = vmatprep.subr.mxu0 0.0
        %1710 = vmatpush2.msra.mxu0 0.0
        %1711 = vmatprep.subr.mxu0 0.0
        %1712 = vmatpush2.msra.mxu0 0.0
        %1713 = vmatprep.subr.mxu0 0.0
        %1714 = vmatpush2.msra.mxu0 0.0
        %1715 = vmatprep.subr.mxu0 0.0
        %1716 = vmatpush2.msra.mxu0 0.0
        %1717 = vmatprep.subr.mxu0 0.0
        %1718 = vmatpush2.msra.mxu0 0.0
        %1719 = vmatprep.subr.mxu0 0.0
        %1720 = vmatpush2.msra.mxu0 0.0
        %1721 = vmatprep.subr.mxu0 0.0
        %1722 = vmatpush2.msra.mxu0 0.0
        %1723 = vmatprep.subr.mxu0 0.0
        %1724 = vmatpush2.msra.mxu0 0.0
        %1725 = vmatprep.subr.mxu0 0.0
        %1726 = vmatpush2.msra.mxu0 0.0
        %1727 = vmatprep.mubr.f32.mxu0 0.0
        %1728 = vmatmul.mubr.f32.gmra.mxu0 %v1501
        %v1729 = vpop.f32.mrf.mxu0
        %v1730 = vadd.f32 %v684, %v1729
        %v1731 = vpop.f32.mrf.mxu0
        %1732 = vdwg.mxu0
        %v1733 = vmul.f32 %v1651, %v1730
        %v1734 = vadd.f32 %v1662, %v1733
        %v1735 = vtanh.pop %v1734
        %v1736 = vsub.f32 1.0, %v1660
        %v1737 = vmul.f32 %v1736, %v1735
        %v1738 = vmul.f32 %v1660, %v1495
        %v1739 = vadd.f32 %v1737, %v1738
        %s1740 = scalar_lea.vmem %s292, %s1499
        %1741 = vst.msk [vmem:[%s1740] sm:$0x3] %vm764, %v1739
        %s1742 = scalar_select %p514, 5, 2
        %s1743 = smul.u32 %s1742, 2
        %v1745 = vsel %vm307, %v1739, 0
        %1747 = vmatprep.subr.mxu0 0.0
        %1748 = vmatpush1.msra.mxu0 0.0
        %1749 = vmatprep.subr.mxu0 0.0
        %1750 = vmatpush1.msra.mxu0 0.0
        %1751 = vmatprep.subr.mxu0 0.0
        %1752 = vmatpush1.msra.mxu0 0.0
        %1753 = vmatprep.subr.mxu0 0.0
        %1754 = vmatpush1.msra.mxu0 0.0
        %1755 = vmatprep.subr.mxu0 0.0
        %1756 = vmatpush1.msra.mxu0 0.0
        %1757 = vmatprep.subr.mxu0 0.0
        %1758 = vmatpush1.msra.mxu0 0.0
        %1759 = vmatprep.subr.mxu0 0.0
        %1760 = vmatpush1.msra.mxu0 0.0
        %1761 = vmatprep.subr.mxu0 0.0
        %1762 = vmatpush1.msra.mxu0 0.0
        %1763 = vmatprep.subr.mxu0 0.0
        %1764 = vmatpush1.msra.mxu0 0.0
        %1765 = vmatprep.subr.mxu0 0.0
        %1766 = vmatpush1.msra.mxu0 0.0
        %1767 = vmatprep.subr.mxu0 0.0
        %1768 = vmatpush1.msra.mxu0 0.0
        %1769 = vmatprep.subr.mxu0 0.0
        %1770 = vmatpush1.msra.mxu0 0.0
        %1771 = vmatprep.subr.mxu0 0.0
        %1772 = vmatpush1.msra.mxu0 %v502
        %1773 = vmatprep.subr.mxu0 0.0
        %1774 = vmatpush1.msra.mxu0 %v501
        %1775 = vmatprep.subr.mxu0 0.0
        %1776 = vmatpush1.msra.mxu0 %v500
        %1777 = vmatprep.subr.mxu0 0.0
        %1778 = vmatpush1.msra.mxu0 %v499
        %1779 = vmatprep.subr.mxu0 0.0
        %1780 = vmatpush2.msra.mxu0 0.0
        %1781 = vmatprep.subr.mxu0 0.0
        %1782 = vmatpush2.msra.mxu0 0.0
        %1783 = vmatprep.subr.mxu0 0.0
        %1784 = vmatpush2.msra.mxu0 0.0
        %1785 = vmatprep.subr.mxu0 0.0
        %1786 = vmatpush2.msra.mxu0 0.0
        %1787 = vmatprep.subr.mxu0 0.0
        %1788 = vmatpush2.msra.mxu0 0.0
        %1789 = vmatprep.subr.mxu0 0.0
        %1790 = vmatpush2.msra.mxu0 0.0
        %1791 = vmatprep.subr.mxu0 0.0
        %1792 = vmatpush2.msra.mxu0 0.0
        %1793 = vmatprep.subr.mxu0 0.0
        %1794 = vmatpush2.msra.mxu0 0.0
        %1795 = vmatprep.subr.mxu0 0.0
        %1796 = vmatpush2.msra.mxu0 0.0
        %1797 = vmatprep.subr.mxu0 0.0
        %1798 = vmatpush2.msra.mxu0 0.0
        %1799 = vmatprep.subr.mxu0 0.0
        %1800 = vmatpush2.msra.mxu0 0.0
        %1801 = vmatprep.subr.mxu0 0.0
        %1802 = vmatpush2.msra.mxu0 0.0
        %1803 = vmatprep.subr.mxu0 0.0
        %1804 = vmatpush2.msra.mxu0 0.0
        %1805 = vmatprep.subr.mxu0 0.0
        %1806 = vmatpush2.msra.mxu0 0.0
        %1807 = vmatprep.subr.mxu0 0.0
        %1808 = vmatpush2.msra.mxu0 0.0
        %1809 = vmatprep.subr.mxu0 0.0
        %1810 = vmatpush2.msra.mxu0 0.0
        %1811 = vmatprep.mubr.f32.mxu0 0.0
        %1812 = vmatmul.mubr.f32.gmra.mxu0 %v1745
        %v1813 = vpop.f32.mrf.mxu0
        %v1814 = vadd.f32 0.0, %v1813
        %v1815 = vpop.f32.mrf.mxu0
        %1816 = vdwg.mxu0
        %1817 = vmatprep.subr.mxu0 0.0
        %1818 = vmatpush1.msra.mxu0 0.0
        %1819 = vmatprep.subr.mxu0 0.0
        %1820 = vmatpush1.msra.mxu0 0.0
        %1821 = vmatprep.subr.mxu0 0.0
        %1822 = vmatpush1.msra.mxu0 0.0
        %1823 = vmatprep.subr.mxu0 0.0
        %1824 = vmatpush1.msra.mxu0 0.0
        %1825 = vmatprep.subr.mxu0 0.0
        %1826 = vmatpush1.msra.mxu0 0.0
        %1827 = vmatprep.subr.mxu0 0.0
        %1828 = vmatpush1.msra.mxu0 0.0
        %1829 = vmatprep.subr.mxu0 0.0
        %1830 = vmatpush1.msra.mxu0 0.0
        %1831 = vmatprep.subr.mxu0 0.0
        %1832 = vmatpush1.msra.mxu0 0.0
        %1833 = vmatprep.subr.mxu0 0.0
        %1834 = vmatpush1.msra.mxu0 0.0
        %1835 = vmatprep.subr.mxu0 0.0
        %1836 = vmatpush1.msra.mxu0 0.0
        %1837 = vmatprep.subr.mxu0 0.0
        %1838 = vmatpush1.msra.mxu0 0.0
        %1839 = vmatprep.subr.mxu0 0.0
        %1840 = vmatpush1.msra.mxu0 0.0
        %1841 = vmatprep.subr.mxu0 0.0
        %1842 = vmatpush1.msra.mxu0 %v507
        %1843 = vmatprep.subr.mxu0 0.0
        %1844 = vmatpush1.msra.mxu0 %v506
        %1845 = vmatprep.subr.mxu0 0.0
        %1846 = vmatpush1.msra.mxu0 %v505
        %1847 = vmatprep.subr.mxu0 0.0
        %1848 = vmatpush1.msra.mxu0 %v504
        %1849 = vmatprep.subr.mxu0 0.0
        %1850 = vmatpush2.msra.mxu0 0.0
        %1851 = vmatprep.subr.mxu0 0.0
        %1852 = vmatpush2.msra.mxu0 0.0
        %1853 = vmatprep.subr.mxu0 0.0
        %1854 = vmatpush2.msra.mxu0 0.0
        %1855 = vmatprep.subr.mxu0 0.0
        %1856 = vmatpush2.msra.mxu0 0.0
        %1857 = vmatprep.subr.mxu0 0.0
        %1858 = vmatpush2.msra.mxu0 0.0
        %1859 = vmatprep.subr.mxu0 0.0
        %1860 = vmatpush2.msra.mxu0 0.0
        %1861 = vmatprep.subr.mxu0 0.0
        %1862 = vmatpush2.msra.mxu0 0.0
        %1863 = vmatprep.subr.mxu0 0.0
        %1864 = vmatpush2.msra.mxu0 0.0
        %1865 = vmatprep.subr.mxu0 0.0
        %1866 = vmatpush2.msra.mxu0 0.0
        %1867 = vmatprep.subr.mxu0 0.0
        %1868 = vmatpush2.msra.mxu0 0.0
        %1869 = vmatprep.subr.mxu0 0.0
        %1870 = vmatpush2.msra.mxu0 0.0
        %1871 = vmatprep.subr.mxu0 0.0
        %1872 = vmatpush2.msra.mxu0 0.0
        %1873 = vmatprep.subr.mxu0 0.0
        %1874 = vmatpush2.msra.mxu0 0.0
        %1875 = vmatprep.subr.mxu0 0.0
        %1876 = vmatpush2.msra.mxu0 0.0
        %1877 = vmatprep.subr.mxu0 0.0
        %1878 = vmatpush2.msra.mxu0 0.0
        %1879 = vmatprep.subr.mxu0 0.0
        %1880 = vmatpush2.msra.mxu0 0.0
        %1881 = vmatprep.mubr.f32.mxu0 0.0
        %1882 = vmatmul.mubr.f32.gmra.mxu0 %v1745
        %v1883 = vpop.f32.mrf.mxu0
        %v1884 = vadd.f32 0.0, %v1883
        %v1885 = vpop.f32.mrf.mxu0
        %1886 = vdwg.mxu0
        %s1887 = scalar_lea.vmem [#allocation2], %s1743
        %v1888 = vld [vmem:[%s1887] sm:$0x3]
        %v1889 = vadd.f32 %v1888, %v1814
        %v1890 = vxor.u32 %v1889, 2147483648
        %v1891 = vmul.f32 %v1890, 1.442695
        %v1892 = vpow.pop %v1891
        %v1893 = vadd.f32 %v1892, 1.0
        %v1894 = vrcp.pop %v1893
        %v1895 = vmul.f32 1.0, %v1894
        %s1896 = scalar_lea.vmem [#allocation3], %s1743
        %v1897 = vld [vmem:[%s1896] sm:$0x3]
        %v1898 = vadd.f32 %v1897, %v1884
        %v1899 = vxor.u32 %v1898, 2147483648
        %v1900 = vmul.f32 %v1899, 1.442695
        %v1901 = vpow.pop %v1900
        %v1902 = vadd.f32 %v1901, 1.0
        %v1903 = vrcp.pop %v1902
        %v1904 = vmul.f32 1.0, %v1903
        %s1905 = scalar_lea.vmem [#allocation4], %s1743
        %v1906 = vld [vmem:[%s1905] sm:$0x3]
        %1907 = vmatprep.subr.mxu0 0.0
        %1908 = vmatpush1.msra.mxu0 0.0
        %1909 = vmatprep.subr.mxu0 0.0
        %1910 = vmatpush1.msra.mxu0 0.0
        %1911 = vmatprep.subr.mxu0 0.0
        %1912 = vmatpush1.msra.mxu0 0.0
        %1913 = vmatprep.subr.mxu0 0.0
        %1914 = vmatpush1.msra.mxu0 0.0
        %1915 = vmatprep.subr.mxu0 0.0
        %1916 = vmatpush1.msra.mxu0 0.0
        %1917 = vmatprep.subr.mxu0 0.0
        %1918 = vmatpush1.msra.mxu0 0.0
        %1919 = vmatprep.subr.mxu0 0.0
        %1920 = vmatpush1.msra.mxu0 0.0
        %1921 = vmatprep.subr.mxu0 0.0
        %1922 = vmatpush1.msra.mxu0 0.0
        %1923 = vmatprep.subr.mxu0 0.0
        %1924 = vmatpush1.msra.mxu0 0.0
        %1925 = vmatprep.subr.mxu0 0.0
        %1926 = vmatpush1.msra.mxu0 0.0
        %1927 = vmatprep.subr.mxu0 0.0
        %1928 = vmatpush1.msra.mxu0 0.0
        %1929 = vmatprep.subr.mxu0 0.0
        %1930 = vmatpush1.msra.mxu0 0.0
        %1931 = vmatprep.subr.mxu0 0.0
        %1932 = vmatpush1.msra.mxu0 %v512
        %1933 = vmatprep.subr.mxu0 0.0
        %1934 = vmatpush1.msra.mxu0 %v511
        %1935 = vmatprep.subr.mxu0 0.0
        %1936 = vmatpush1.msra.mxu0 %v510
        %1937 = vmatprep.subr.mxu0 0.0
        %1938 = vmatpush1.msra.mxu0 %v509
        %1939 = vmatprep.subr.mxu0 0.0
        %1940 = vmatpush2.msra.mxu0 0.0
        %1941 = vmatprep.subr.mxu0 0.0
        %1942 = vmatpush2.msra.mxu0 0.0
        %1943 = vmatprep.subr.mxu0 0.0
        %1944 = vmatpush2.msra.mxu0 0.0
        %1945 = vmatprep.subr.mxu0 0.0
        %1946 = vmatpush2.msra.mxu0 0.0
        %1947 = vmatprep.subr.mxu0 0.0
        %1948 = vmatpush2.msra.mxu0 0.0
        %1949 = vmatprep.subr.mxu0 0.0
        %1950 = vmatpush2.msra.mxu0 0.0
        %1951 = vmatprep.subr.mxu0 0.0
        %1952 = vmatpush2.msra.mxu0 0.0
        %1953 = vmatprep.subr.mxu0 0.0
        %1954 = vmatpush2.msra.mxu0 0.0
        %1955 = vmatprep.subr.mxu0 0.0
        %1956 = vmatpush2.msra.mxu0 0.0
        %1957 = vmatprep.subr.mxu0 0.0
        %1958 = vmatpush2.msra.mxu0 0.0
        %1959 = vmatprep.subr.mxu0 0.0
        %1960 = vmatpush2.msra.mxu0 0.0
        %1961 = vmatprep.subr.mxu0 0.0
        %1962 = vmatpush2.msra.mxu0 0.0
        %1963 = vmatprep.subr.mxu0 0.0
        %1964 = vmatpush2.msra.mxu0 0.0
        %1965 = vmatprep.subr.mxu0 0.0
        %1966 = vmatpush2.msra.mxu0 0.0
        %1967 = vmatprep.subr.mxu0 0.0
        %1968 = vmatpush2.msra.mxu0 0.0
        %1969 = vmatprep.subr.mxu0 0.0
        %1970 = vmatpush2.msra.mxu0 0.0
        %1971 = vmatprep.mubr.f32.mxu0 0.0
        %1972 = vmatmul.mubr.f32.gmra.mxu0 %v1745
        %v1973 = vpop.f32.mrf.mxu0
        %v1974 = vadd.f32 %v684, %v1973
        %v1975 = vpop.f32.mrf.mxu0
        %1976 = vdwg.mxu0
        %v1977 = vmul.f32 %v1895, %v1974
        %v1978 = vadd.f32 %v1906, %v1977
        %v1979 = vtanh.pop %v1978
        %v1980 = vsub.f32 1.0, %v1904
        %v1981 = vmul.f32 %v1980, %v1979
        %v1982 = vmul.f32 %v1904, %v1739
        %v1983 = vadd.f32 %v1981, %v1982
        %s1984 = scalar_lea.vmem %s292, %s1743
        %1985 = vst.msk [vmem:[%s1984] sm:$0x3] %vm764, %v1983
        %s1986 = scalar_select %p514, 6, 1
        %s1987 = smul.u32 %s1986, 2
        %v1989 = vsel %vm307, %v1983, 0
        %1991 = vmatprep.subr.mxu0 0.0
        %1992 = vmatpush1.msra.mxu0 0.0
        %1993 = vmatprep.subr.mxu0 0.0
        %1994 = vmatpush1.msra.mxu0 0.0
        %1995 = vmatprep.subr.mxu0 0.0
        %1996 = vmatpush1.msra.mxu0 0.0
        %1997 = vmatprep.subr.mxu0 0.0
        %1998 = vmatpush1.msra.mxu0 0.0
        %1999 = vmatprep.subr.mxu0 0.0
        %2000 = vmatpush1.msra.mxu0 0.0
        %2001 = vmatprep.subr.mxu0 0.0
        %2002 = vmatpush1.msra.mxu0 0.0
        %2003 = vmatprep.subr.mxu0 0.0
        %2004 = vmatpush1.msra.mxu0 0.0
        %2005 = vmatprep.subr.mxu0 0.0
        %2006 = vmatpush1.msra.mxu0 0.0
        %2007 = vmatprep.subr.mxu0 0.0
        %2008 = vmatpush1.msra.mxu0 0.0
        %2009 = vmatprep.subr.mxu0 0.0
        %2010 = vmatpush1.msra.mxu0 0.0
        %2011 = vmatprep.subr.mxu0 0.0
        %2012 = vmatpush1.msra.mxu0 0.0
        %2013 = vmatprep.subr.mxu0 0.0
        %2014 = vmatpush1.msra.mxu0 0.0
        %2015 = vmatprep.subr.mxu0 0.0
        %2016 = vmatpush1.msra.mxu0 %v502
        %2017 = vmatprep.subr.mxu0 0.0
        %2018 = vmatpush1.msra.mxu0 %v501
        %2019 = vmatprep.subr.mxu0 0.0
        %2020 = vmatpush1.msra.mxu0 %v500
        %2021 = vmatprep.subr.mxu0 0.0
        %2022 = vmatpush1.msra.mxu0 %v499
        %2023 = vmatprep.subr.mxu0 0.0
        %2024 = vmatpush2.msra.mxu0 0.0
        %2025 = vmatprep.subr.mxu0 0.0
        %2026 = vmatpush2.msra.mxu0 0.0
        %2027 = vmatprep.subr.mxu0 0.0
        %2028 = vmatpush2.msra.mxu0 0.0
        %2029 = vmatprep.subr.mxu0 0.0
        %2030 = vmatpush2.msra.mxu0 0.0
        %2031 = vmatprep.subr.mxu0 0.0
        %2032 = vmatpush2.msra.mxu0 0.0
        %2033 = vmatprep.subr.mxu0 0.0
        %2034 = vmatpush2.msra.mxu0 0.0
        %2035 = vmatprep.subr.mxu0 0.0
        %2036 = vmatpush2.msra.mxu0 0.0
        %2037 = vmatprep.subr.mxu0 0.0
        %2038 = vmatpush2.msra.mxu0 0.0
        %2039 = vmatprep.subr.mxu0 0.0
        %2040 = vmatpush2.msra.mxu0 0.0
        %2041 = vmatprep.subr.mxu0 0.0
        %2042 = vmatpush2.msra.mxu0 0.0
        %2043 = vmatprep.subr.mxu0 0.0
        %2044 = vmatpush2.msra.mxu0 0.0
        %2045 = vmatprep.subr.mxu0 0.0
        %2046 = vmatpush2.msra.mxu0 0.0
        %2047 = vmatprep.subr.mxu0 0.0
        %2048 = vmatpush2.msra.mxu0 0.0
        %2049 = vmatprep.subr.mxu0 0.0
        %2050 = vmatpush2.msra.mxu0 0.0
        %2051 = vmatprep.subr.mxu0 0.0
        %2052 = vmatpush2.msra.mxu0 0.0
        %2053 = vmatprep.subr.mxu0 0.0
        %2054 = vmatpush2.msra.mxu0 0.0
        %2055 = vmatprep.mubr.f32.mxu0 0.0
        %2056 = vmatmul.mubr.f32.gmra.mxu0 %v1989
        %v2057 = vpop.f32.mrf.mxu0
        %v2058 = vadd.f32 0.0, %v2057
        %v2059 = vpop.f32.mrf.mxu0
        %2060 = vdwg.mxu0
        %2061 = vmatprep.subr.mxu0 0.0
        %2062 = vmatpush1.msra.mxu0 0.0
        %2063 = vmatprep.subr.mxu0 0.0
        %2064 = vmatpush1.msra.mxu0 0.0
        %2065 = vmatprep.subr.mxu0 0.0
        %2066 = vmatpush1.msra.mxu0 0.0
        %2067 = vmatprep.subr.mxu0 0.0
        %2068 = vmatpush1.msra.mxu0 0.0
        %2069 = vmatprep.subr.mxu0 0.0
        %2070 = vmatpush1.msra.mxu0 0.0
        %2071 = vmatprep.subr.mxu0 0.0
        %2072 = vmatpush1.msra.mxu0 0.0
        %2073 = vmatprep.subr.mxu0 0.0
        %2074 = vmatpush1.msra.mxu0 0.0
        %2075 = vmatprep.subr.mxu0 0.0
        %2076 = vmatpush1.msra.mxu0 0.0
        %2077 = vmatprep.subr.mxu0 0.0
        %2078 = vmatpush1.msra.mxu0 0.0
        %2079 = vmatprep.subr.mxu0 0.0
        %2080 = vmatpush1.msra.mxu0 0.0
        %2081 = vmatprep.subr.mxu0 0.0
        %2082 = vmatpush1.msra.mxu0 0.0
        %2083 = vmatprep.subr.mxu0 0.0
        %2084 = vmatpush1.msra.mxu0 0.0
        %2085 = vmatprep.subr.mxu0 0.0
        %2086 = vmatpush1.msra.mxu0 %v507
        %2087 = vmatprep.subr.mxu0 0.0
        %2088 = vmatpush1.msra.mxu0 %v506
        %2089 = vmatprep.subr.mxu0 0.0
        %2090 = vmatpush1.msra.mxu0 %v505
        %2091 = vmatprep.subr.mxu0 0.0
        %2092 = vmatpush1.msra.mxu0 %v504
        %2093 = vmatprep.subr.mxu0 0.0
        %2094 = vmatpush2.msra.mxu0 0.0
        %2095 = vmatprep.subr.mxu0 0.0
        %2096 = vmatpush2.msra.mxu0 0.0
        %2097 = vmatprep.subr.mxu0 0.0
        %2098 = vmatpush2.msra.mxu0 0.0
        %2099 = vmatprep.subr.mxu0 0.0
        %2100 = vmatpush2.msra.mxu0 0.0
        %2101 = vmatprep.subr.mxu0 0.0
        %2102 = vmatpush2.msra.mxu0 0.0
        %2103 = vmatprep.subr.mxu0 0.0
        %2104 = vmatpush2.msra.mxu0 0.0
        %2105 = vmatprep.subr.mxu0 0.0
        %2106 = vmatpush2.msra.mxu0 0.0
        %2107 = vmatprep.subr.mxu0 0.0
        %2108 = vmatpush2.msra.mxu0 0.0
        %2109 = vmatprep.subr.mxu0 0.0
        %2110 = vmatpush2.msra.mxu0 0.0
        %2111 = vmatprep.subr.mxu0 0.0
        %2112 = vmatpush2.msra.mxu0 0.0
        %2113 = vmatprep.subr.mxu0 0.0
        %2114 = vmatpush2.msra.mxu0 0.0
        %2115 = vmatprep.subr.mxu0 0.0
        %2116 = vmatpush2.msra.mxu0 0.0
        %2117 = vmatprep.subr.mxu0 0.0
        %2118 = vmatpush2.msra.mxu0 0.0
        %2119 = vmatprep.subr.mxu0 0.0
        %2120 = vmatpush2.msra.mxu0 0.0
        %2121 = vmatprep.subr.mxu0 0.0
        %2122 = vmatpush2.msra.mxu0 0.0
        %2123 = vmatprep.subr.mxu0 0.0
        %2124 = vmatpush2.msra.mxu0 0.0
        %2125 = vmatprep.mubr.f32.mxu0 0.0
        %2126 = vmatmul.mubr.f32.gmra.mxu0 %v1989
        %v2127 = vpop.f32.mrf.mxu0
        %v2128 = vadd.f32 0.0, %v2127
        %v2129 = vpop.f32.mrf.mxu0
        %2130 = vdwg.mxu0
        %s2131 = scalar_lea.vmem [#allocation2], %s1987
        %v2132 = vld [vmem:[%s2131] sm:$0x3]
        %v2133 = vadd.f32 %v2132, %v2058
        %v2134 = vxor.u32 %v2133, 2147483648
        %v2135 = vmul.f32 %v2134, 1.442695
        %v2136 = vpow.pop %v2135
        %v2137 = vadd.f32 %v2136, 1.0
        %v2138 = vrcp.pop %v2137
        %v2139 = vmul.f32 1.0, %v2138
        %s2140 = scalar_lea.vmem [#allocation3], %s1987
        %v2141 = vld [vmem:[%s2140] sm:$0x3]
        %v2142 = vadd.f32 %v2141, %v2128
        %v2143 = vxor.u32 %v2142, 2147483648
        %v2144 = vmul.f32 %v2143, 1.442695
        %v2145 = vpow.pop %v2144
        %v2146 = vadd.f32 %v2145, 1.0
        %v2147 = vrcp.pop %v2146
        %v2148 = vmul.f32 1.0, %v2147
        %s2149 = scalar_lea.vmem [#allocation4], %s1987
        %v2150 = vld [vmem:[%s2149] sm:$0x3]
        %2151 = vmatprep.subr.mxu0 0.0
        %2152 = vmatpush1.msra.mxu0 0.0
        %2153 = vmatprep.subr.mxu0 0.0
        %2154 = vmatpush1.msra.mxu0 0.0
        %2155 = vmatprep.subr.mxu0 0.0
        %2156 = vmatpush1.msra.mxu0 0.0
        %2157 = vmatprep.subr.mxu0 0.0
        %2158 = vmatpush1.msra.mxu0 0.0
        %2159 = vmatprep.subr.mxu0 0.0
        %2160 = vmatpush1.msra.mxu0 0.0
        %2161 = vmatprep.subr.mxu0 0.0
        %2162 = vmatpush1.msra.mxu0 0.0
        %2163 = vmatprep.subr.mxu0 0.0
        %2164 = vmatpush1.msra.mxu0 0.0
        %2165 = vmatprep.subr.mxu0 0.0
        %2166 = vmatpush1.msra.mxu0 0.0
        %2167 = vmatprep.subr.mxu0 0.0
        %2168 = vmatpush1.msra.mxu0 0.0
        %2169 = vmatprep.subr.mxu0 0.0
        %2170 = vmatpush1.msra.mxu0 0.0
        %2171 = vmatprep.subr.mxu0 0.0
        %2172 = vmatpush1.msra.mxu0 0.0
        %2173 = vmatprep.subr.mxu0 0.0
        %2174 = vmatpush1.msra.mxu0 0.0
        %2175 = vmatprep.subr.mxu0 0.0
        %2176 = vmatpush1.msra.mxu0 %v512
        %2177 = vmatprep.subr.mxu0 0.0
        %2178 = vmatpush1.msra.mxu0 %v511
        %2179 = vmatprep.subr.mxu0 0.0
        %2180 = vmatpush1.msra.mxu0 %v510
        %2181 = vmatprep.subr.mxu0 0.0
        %2182 = vmatpush1.msra.mxu0 %v509
        %2183 = vmatprep.subr.mxu0 0.0
        %2184 = vmatpush2.msra.mxu0 0.0
        %2185 = vmatprep.subr.mxu0 0.0
        %2186 = vmatpush2.msra.mxu0 0.0
        %2187 = vmatprep.subr.mxu0 0.0
        %2188 = vmatpush2.msra.mxu0 0.0
        %2189 = vmatprep.subr.mxu0 0.0
        %2190 = vmatpush2.msra.mxu0 0.0
        %2191 = vmatprep.subr.mxu0 0.0
        %2192 = vmatpush2.msra.mxu0 0.0
        %2193 = vmatprep.subr.mxu0 0.0
        %2194 = vmatpush2.msra.mxu0 0.0
        %2195 = vmatprep.subr.mxu0 0.0
        %2196 = vmatpush2.msra.mxu0 0.0
        %2197 = vmatprep.subr.mxu0 0.0
        %2198 = vmatpush2.msra.mxu0 0.0
        %2199 = vmatprep.subr.mxu0 0.0
        %2200 = vmatpush2.msra.mxu0 0.0
        %2201 = vmatprep.subr.mxu0 0.0
        %2202 = vmatpush2.msra.mxu0 0.0
        %2203 = vmatprep.subr.mxu0 0.0
        %2204 = vmatpush2.msra.mxu0 0.0
        %2205 = vmatprep.subr.mxu0 0.0
        %2206 = vmatpush2.msra.mxu0 0.0
        %2207 = vmatprep.subr.mxu0 0.0
        %2208 = vmatpush2.msra.mxu0 0.0
        %2209 = vmatprep.subr.mxu0 0.0
        %2210 = vmatpush2.msra.mxu0 0.0
        %2211 = vmatprep.subr.mxu0 0.0
        %2212 = vmatpush2.msra.mxu0 0.0
        %2213 = vmatprep.subr.mxu0 0.0
        %2214 = vmatpush2.msra.mxu0 0.0
        %2215 = vmatprep.mubr.f32.mxu0 0.0
        %2216 = vmatmul.mubr.f32.gmra.mxu0 %v1989
        %v2217 = vpop.f32.mrf.mxu0
        %v2218 = vadd.f32 %v684, %v2217
        %v2219 = vpop.f32.mrf.mxu0
        %2220 = vdwg.mxu0
        %v2221 = vmul.f32 %v2139, %v2218
        %v2222 = vadd.f32 %v2150, %v2221
        %v2223 = vtanh.pop %v2222
        %v2224 = vsub.f32 1.0, %v2148
        %v2225 = vmul.f32 %v2224, %v2223
        %v2226 = vmul.f32 %v2148, %v1983
        %v2227 = vadd.f32 %v2225, %v2226
        %s2228 = scalar_lea.vmem %s292, %s1987
        %2229 = vst.msk [vmem:[%s2228] sm:$0x3] %vm764, %v2227
        %s2230 = scalar_select %p514, 7, 0
        %s2231 = smul.u32 %s2230, 2
        %v2233 = vsel %vm307, %v2227, 0
        %2235 = vmatprep.subr.mxu0 0.0
        %2236 = vmatpush1.msra.mxu0 0.0
        %2237 = vmatprep.subr.mxu0 0.0
        %2238 = vmatpush1.msra.mxu0 0.0
        %2239 = vmatprep.subr.mxu0 0.0
        %2240 = vmatpush1.msra.mxu0 0.0
        %2241 = vmatprep.subr.mxu0 0.0
        %2242 = vmatpush1.msra.mxu0 0.0
        %2243 = vmatprep.subr.mxu0 0.0
        %2244 = vmatpush1.msra.mxu0 0.0
        %2245 = vmatprep.subr.mxu0 0.0
        %2246 = vmatpush1.msra.mxu0 0.0
        %2247 = vmatprep.subr.mxu0 0.0
        %2248 = vmatpush1.msra.mxu0 0.0
        %2249 = vmatprep.subr.mxu0 0.0
        %2250 = vmatpush1.msra.mxu0 0.0
        %2251 = vmatprep.subr.mxu0 0.0
        %2252 = vmatpush1.msra.mxu0 0.0
        %2253 = vmatprep.subr.mxu0 0.0
        %2254 = vmatpush1.msra.mxu0 0.0
        %2255 = vmatprep.subr.mxu0 0.0
        %2256 = vmatpush1.msra.mxu0 0.0
        %2257 = vmatprep.subr.mxu0 0.0
        %2258 = vmatpush1.msra.mxu0 0.0
        %2259 = vmatprep.subr.mxu0 0.0
        %2260 = vmatpush1.msra.mxu0 %v502
        %2261 = vmatprep.subr.mxu0 0.0
        %2262 = vmatpush1.msra.mxu0 %v501
        %2263 = vmatprep.subr.mxu0 0.0
        %2264 = vmatpush1.msra.mxu0 %v500
        %2265 = vmatprep.subr.mxu0 0.0
        %2266 = vmatpush1.msra.mxu0 %v499
        %2267 = vmatprep.subr.mxu0 0.0
        %2268 = vmatpush2.msra.mxu0 0.0
        %2269 = vmatprep.subr.mxu0 0.0
        %2270 = vmatpush2.msra.mxu0 0.0
        %2271 = vmatprep.subr.mxu0 0.0
        %2272 = vmatpush2.msra.mxu0 0.0
        %2273 = vmatprep.subr.mxu0 0.0
        %2274 = vmatpush2.msra.mxu0 0.0
        %2275 = vmatprep.subr.mxu0 0.0
        %2276 = vmatpush2.msra.mxu0 0.0
        %2277 = vmatprep.subr.mxu0 0.0
        %2278 = vmatpush2.msra.mxu0 0.0
        %2279 = vmatprep.subr.mxu0 0.0
        %2280 = vmatpush2.msra.mxu0 0.0
        %2281 = vmatprep.subr.mxu0 0.0
        %2282 = vmatpush2.msra.mxu0 0.0
        %2283 = vmatprep.subr.mxu0 0.0
        %2284 = vmatpush2.msra.mxu0 0.0
        %2285 = vmatprep.subr.mxu0 0.0
        %2286 = vmatpush2.msra.mxu0 0.0
        %2287 = vmatprep.subr.mxu0 0.0
        %2288 = vmatpush2.msra.mxu0 0.0
        %2289 = vmatprep.subr.mxu0 0.0
        %2290 = vmatpush2.msra.mxu0 0.0
        %2291 = vmatprep.subr.mxu0 0.0
        %2292 = vmatpush2.msra.mxu0 0.0
        %2293 = vmatprep.subr.mxu0 0.0
        %2294 = vmatpush2.msra.mxu0 0.0
        %2295 = vmatprep.subr.mxu0 0.0
        %2296 = vmatpush2.msra.mxu0 0.0
        %2297 = vmatprep.subr.mxu0 0.0
        %2298 = vmatpush2.msra.mxu0 0.0
        %2299 = vmatprep.mubr.f32.mxu0 0.0
        %2300 = vmatmul.mubr.f32.gmra.mxu0 %v2233
        %v2301 = vpop.f32.mrf.mxu0
        %v2302 = vadd.f32 0.0, %v2301
        %v2303 = vpop.f32.mrf.mxu0
        %2304 = vdwg.mxu0
        %2305 = vmatprep.subr.mxu0 0.0
        %2306 = vmatpush1.msra.mxu0 0.0
        %2307 = vmatprep.subr.mxu0 0.0
        %2308 = vmatpush1.msra.mxu0 0.0
        %2309 = vmatprep.subr.mxu0 0.0
        %2310 = vmatpush1.msra.mxu0 0.0
        %2311 = vmatprep.subr.mxu0 0.0
        %2312 = vmatpush1.msra.mxu0 0.0
        %2313 = vmatprep.subr.mxu0 0.0
        %2314 = vmatpush1.msra.mxu0 0.0
        %2315 = vmatprep.subr.mxu0 0.0
        %2316 = vmatpush1.msra.mxu0 0.0
        %2317 = vmatprep.subr.mxu0 0.0
        %2318 = vmatpush1.msra.mxu0 0.0
        %2319 = vmatprep.subr.mxu0 0.0
        %2320 = vmatpush1.msra.mxu0 0.0
        %2321 = vmatprep.subr.mxu0 0.0
        %2322 = vmatpush1.msra.mxu0 0.0
        %2323 = vmatprep.subr.mxu0 0.0
        %2324 = vmatpush1.msra.mxu0 0.0
        %2325 = vmatprep.subr.mxu0 0.0
        %2326 = vmatpush1.msra.mxu0 0.0
        %2327 = vmatprep.subr.mxu0 0.0
        %2328 = vmatpush1.msra.mxu0 0.0
        %2329 = vmatprep.subr.mxu0 0.0
        %2330 = vmatpush1.msra.mxu0 %v507
        %2331 = vmatprep.subr.mxu0 0.0
        %2332 = vmatpush1.msra.mxu0 %v506
        %2333 = vmatprep.subr.mxu0 0.0
        %2334 = vmatpush1.msra.mxu0 %v505
        %2335 = vmatprep.subr.mxu0 0.0
        %2336 = vmatpush1.msra.mxu0 %v504
        %2337 = vmatprep.subr.mxu0 0.0
        %2338 = vmatpush2.msra.mxu0 0.0
        %2339 = vmatprep.subr.mxu0 0.0
        %2340 = vmatpush2.msra.mxu0 0.0
        %2341 = vmatprep.subr.mxu0 0.0
        %2342 = vmatpush2.msra.mxu0 0.0
        %2343 = vmatprep.subr.mxu0 0.0
        %2344 = vmatpush2.msra.mxu0 0.0
        %2345 = vmatprep.subr.mxu0 0.0
        %2346 = vmatpush2.msra.mxu0 0.0
        %2347 = vmatprep.subr.mxu0 0.0
        %2348 = vmatpush2.msra.mxu0 0.0
        %2349 = vmatprep.subr.mxu0 0.0
        %2350 = vmatpush2.msra.mxu0 0.0
        %2351 = vmatprep.subr.mxu0 0.0
        %2352 = vmatpush2.msra.mxu0 0.0
        %2353 = vmatprep.subr.mxu0 0.0
        %2354 = vmatpush2.msra.mxu0 0.0
        %2355 = vmatprep.subr.mxu0 0.0
        %2356 = vmatpush2.msra.mxu0 0.0
        %2357 = vmatprep.subr.mxu0 0.0
        %2358 = vmatpush2.msra.mxu0 0.0
        %2359 = vmatprep.subr.mxu0 0.0
        %2360 = vmatpush2.msra.mxu0 0.0
        %2361 = vmatprep.subr.mxu0 0.0
        %2362 = vmatpush2.msra.mxu0 0.0
        %2363 = vmatprep.subr.mxu0 0.0
        %2364 = vmatpush2.msra.mxu0 0.0
        %2365 = vmatprep.subr.mxu0 0.0
        %2366 = vmatpush2.msra.mxu0 0.0
        %2367 = vmatprep.subr.mxu0 0.0
        %2368 = vmatpush2.msra.mxu0 0.0
        %2369 = vmatprep.mubr.f32.mxu0 0.0
        %2370 = vmatmul.mubr.f32.gmra.mxu0 %v2233
        %v2371 = vpop.f32.mrf.mxu0
        %v2372 = vadd.f32 0.0, %v2371
        %v2373 = vpop.f32.mrf.mxu0
        %2374 = vdwg.mxu0
        %s2375 = scalar_lea.vmem [#allocation2], %s2231
        %v2376 = vld [vmem:[%s2375] sm:$0x3]
        %v2377 = vadd.f32 %v2376, %v2302
        %v2378 = vxor.u32 %v2377, 2147483648
        %v2379 = vmul.f32 %v2378, 1.442695
        %v2380 = vpow.pop %v2379
        %v2381 = vadd.f32 %v2380, 1.0
        %v2382 = vrcp.pop %v2381
        %v2383 = vmul.f32 1.0, %v2382
        %s2384 = scalar_lea.vmem [#allocation3], %s2231
        %v2385 = vld [vmem:[%s2384] sm:$0x3]
        %v2386 = vadd.f32 %v2385, %v2372
        %v2387 = vxor.u32 %v2386, 2147483648
        %v2388 = vmul.f32 %v2387, 1.442695
        %v2389 = vpow.pop %v2388
        %v2390 = vadd.f32 %v2389, 1.0
        %v2391 = vrcp.pop %v2390
        %v2392 = vmul.f32 1.0, %v2391
        %s2393 = scalar_lea.vmem [#allocation4], %s2231
        %v2394 = vld [vmem:[%s2393] sm:$0x3]
        %2395 = vmatprep.subr.mxu0 0.0
        %2396 = vmatpush1.msra.mxu0 0.0
        %2397 = vmatprep.subr.mxu0 0.0
        %2398 = vmatpush1.msra.mxu0 0.0
        %2399 = vmatprep.subr.mxu0 0.0
        %2400 = vmatpush1.msra.mxu0 0.0
        %2401 = vmatprep.subr.mxu0 0.0
        %2402 = vmatpush1.msra.mxu0 0.0
        %2403 = vmatprep.subr.mxu0 0.0
        %2404 = vmatpush1.msra.mxu0 0.0
        %2405 = vmatprep.subr.mxu0 0.0
        %2406 = vmatpush1.msra.mxu0 0.0
        %2407 = vmatprep.subr.mxu0 0.0
        %2408 = vmatpush1.msra.mxu0 0.0
        %2409 = vmatprep.subr.mxu0 0.0
        %2410 = vmatpush1.msra.mxu0 0.0
        %2411 = vmatprep.subr.mxu0 0.0
        %2412 = vmatpush1.msra.mxu0 0.0
        %2413 = vmatprep.subr.mxu0 0.0
        %2414 = vmatpush1.msra.mxu0 0.0
        %2415 = vmatprep.subr.mxu0 0.0
        %2416 = vmatpush1.msra.mxu0 0.0
        %2417 = vmatprep.subr.mxu0 0.0
        %2418 = vmatpush1.msra.mxu0 0.0
        %2419 = vmatprep.subr.mxu0 0.0
        %2420 = vmatpush1.msra.mxu0 %v512
        %2421 = vmatprep.subr.mxu0 0.0
        %2422 = vmatpush1.msra.mxu0 %v511
        %2423 = vmatprep.subr.mxu0 0.0
        %2424 = vmatpush1.msra.mxu0 %v510
        %2425 = vmatprep.subr.mxu0 0.0
        %2426 = vmatpush1.msra.mxu0 %v509
        %2427 = vmatprep.subr.mxu0 0.0
        %2428 = vmatpush2.msra.mxu0 0.0
        %2429 = vmatprep.subr.mxu0 0.0
        %2430 = vmatpush2.msra.mxu0 0.0
        %2431 = vmatprep.subr.mxu0 0.0
        %2432 = vmatpush2.msra.mxu0 0.0
        %2433 = vmatprep.subr.mxu0 0.0
        %2434 = vmatpush2.msra.mxu0 0.0
        %2435 = vmatprep.subr.mxu0 0.0
        %2436 = vmatpush2.msra.mxu0 0.0
        %2437 = vmatprep.subr.mxu0 0.0
        %2438 = vmatpush2.msra.mxu0 0.0
        %2439 = vmatprep.subr.mxu0 0.0
        %2440 = vmatpush2.msra.mxu0 0.0
        %2441 = vmatprep.subr.mxu0 0.0
        %2442 = vmatpush2.msra.mxu0 0.0
        %2443 = vmatprep.subr.mxu0 0.0
        %2444 = vmatpush2.msra.mxu0 0.0
        %2445 = vmatprep.subr.mxu0 0.0
        %2446 = vmatpush2.msra.mxu0 0.0
        %2447 = vmatprep.subr.mxu0 0.0
        %2448 = vmatpush2.msra.mxu0 0.0
        %2449 = vmatprep.subr.mxu0 0.0
        %2450 = vmatpush2.msra.mxu0 0.0
        %2451 = vmatprep.subr.mxu0 0.0
        %2452 = vmatpush2.msra.mxu0 0.0
        %2453 = vmatprep.subr.mxu0 0.0
        %2454 = vmatpush2.msra.mxu0 0.0
        %2455 = vmatprep.subr.mxu0 0.0
        %2456 = vmatpush2.msra.mxu0 0.0
        %2457 = vmatprep.subr.mxu0 0.0
        %2458 = vmatpush2.msra.mxu0 0.0
        %2459 = vmatprep.mubr.f32.mxu0 0.0
        %2460 = vmatmul.mubr.f32.gmra.mxu0 %v2233
        %v2461 = vpop.f32.mrf.mxu0
        %v2462 = vadd.f32 %v684, %v2461
        %v2463 = vpop.f32.mrf.mxu0
        %2464 = vdwg.mxu0
        %v2465 = vmul.f32 %v2383, %v2462
        %v2466 = vadd.f32 %v2394, %v2465
        %v2467 = vtanh.pop %v2466
        %v2468 = vsub.f32 1.0, %v2392
        %v2469 = vmul.f32 %v2468, %v2467
        %v2470 = vmul.f32 %v2392, %v2227
        %v2471 = vadd.f32 %v2469, %v2470
        %s2472 = scalar_lea.vmem %s292, %s2231
        %2473 = vst.msk [vmem:[%s2472] sm:$0x3] %vm764, %v2471
        %p2474 = scmp.lt.s32.totalorder %s19, 1
        %s2475 = scalar_select %p2474, %s19, 1
        %s2476 = smul.addr %s2475, 2
        %s2477 = smul.addr %s2476, 8
        %s2478 = scalar_lea.vmem %s5, %s2477
        // Predicated region
        $region45: #{cpg_regression_forward.4} parent=39 // pred_check
          %p2479 = pneg %p162
        $region46: #{cpg_regression_forward.4} parent=39 // pred_check_branch
          %2481 = sbr.rel (%p2479) target = $region48
        $region47: #{cpg_regression_forward.4} parent=39 // pred_region
          _
        $region48: #{cpg_regression_forward.4} parent=39 // pred_fallthru
          _
      $region40: #{cpg_regression_forward.4} parent=5 // pred_fallthru
        _
      %p2482 = scmp.le.s32.totalorder 2, %s14
      // Predicated region
      $region49: #{cpg_regression_forward.4} parent=5 // pred_check
        %p2483 = pneg %p2482
      $region50: #{cpg_regression_forward.4} parent=5 // pred_check_branch
        %2485 = sbr.rel (%p2483) target = $region52
      $region51: #{cpg_regression_forward.4} parent=5 // pred_region
        %s2486 = ssub.s32 %s14, 2
        // Predicated region
        $region53: #{cpg_regression_forward.4} parent=51 // pred_check
          %p2487 = pneg %p168
        $region54: #{cpg_regression_forward.4} parent=51 // pred_check_branch
          %2489 = sbr.rel (%p2487) target = $region56
        $region55: #{cpg_regression_forward.4} parent=51 // pred_region
          %p2490 = scmp.lt.s32.totalorder %s20, 1
          %s2491 = scalar_select %p2490, %s20, 1
          %s2492 = smul.addr %s2491, 2
          %s2493 = smul.addr %s2492, 8
          %s2494 = scalar_lea.vmem %s5, %s2493
        $region56: #{cpg_regression_forward.4} parent=51 // pred_fallthru
          _
      $region52: #{cpg_regression_forward.4} parent=5 // pred_fallthru
        _
    $region6: #{cpg_regression_forward.4} parent=1 // loop_footer
      %s18 = sadd.s32 1, %s14
    $region7: #{cpg_regression_forward.4} parent=1 // loop_footer_branch
      %13 = sbr.rel target = $region3
    $region8: #{cpg_regression_forward.4} parent=1 // loop_exit
      _
    %2495 = vsyncpa [#allocation6], 1
    %s2496 = scalar_lea.sflag [#allocation6], 1
    %2497 = vsyncpa %s2496, 1

</llo_original>
